<compile_context>
chip_gen: v7x
topology: tpu7x:2x2x1
jax: 0.10.0
libtpu: 0.0.40
codegen_flags: <defaults>
</compile_context>

<pallas_src>
import functools

import jax
import jax.numpy as jnp
import numpy as np
from jax import lax
from jax.experimental import pallas as pl
from jax.experimental.pallas import tpu as pltpu

EPS = 1e-5  # torch.nn.BatchNorm1d default


def coder_kernel(*refs, n_layers, K, S, Cu, NS, actf):
    """Whole ResNetCoder_conc forward on one VMEM-resident block."""
    x_ref, w1_ref, g1_ref, be1_ref = refs[0:4]
    layer_refs = refs[4:4 + 6 * n_layers]
    base = 4 + 6 * n_layers
    w2_ref, b2_ref, wl_ref, sel_ref, bl_ref = refs[base:base + 5]
    out_ref = refs[base + 5]

    P = K // 2
    inv_ns = 1.0 / NS

    # --- hoisted once, shared by every layer ---------------------------------
    # Per-row validity mask for each tap offset d = k - P ("same" zero padding),
    # built directly at (NS, Cu) so no broadcast is re-emitted per tap multiply.
    tpos_c = lax.broadcasted_iota(jnp.int32, (NS, Cu), 0) % S
    tpos_1 = lax.broadcasted_iota(jnp.int32, (NS, 1), 0) % S
    masks_c, masks_1 = [], []
    for k in range(K):
        d = k - P
        masks_c.append(((tpos_c + d >= 0) & (tpos_c + d < S)).astype(jnp.float32))
        masks_1.append(((tpos_1 + d >= 0) & (tpos_1 + d < S)).astype(jnp.float32))
    ones_row = jnp.ones((1, NS), jnp.float32)     # BN column-sum operand (MXU)

    def shift(h, d):
        # Row g of the result = h[g + d]; rows that wrap across a sample
        # boundary (or the buffer end) are zeroed by the masks above.
        return h if d == 0 else pltpu.roll(h, shift=(-d) % NS, axis=0)

    def im2col_bf16(h):
        # (NS, K*Cu) bf16 MXU operand built fully in-register: roll (XLU) +
        # mask (f32 VPU) + cast, lane-concatenated.  No scratch stores.
        taps = [(shift(h, k - P) * masks_c[k]).astype(jnp.bfloat16)
                for k in range(K)]
        return jnp.concatenate(taps, axis=1)

    def bn_act(z, gamma, beta, relu):
        # Training-mode BatchNorm1d (batch statistics, biased variance).  Both
        # reduction passes are fused into ONE ones-vector MXU matmul over the
        # lane-concat [z | z*z]; the rest is 2 VALU ops / element.
        zz = jnp.concatenate([z, z * z], axis=1)                     # (NS, 2*Cu)
        s = jnp.dot(ones_row, zz, preferred_element_type=jnp.float32)
        mean = s[:, :Cu] * inv_ns
        var = s[:, Cu:] * inv_ns - mean * mean
        scale = gamma * lax.rsqrt(var + EPS)                         # EUP
        bias = beta - mean * scale
        y = z * scale + bias
        return jnp.maximum(y, 0.0) if relu else y

    # ---- _cnn_1 : Conv1d(1 -> Cu) -> _bn_1 -> relu ---------------------------
    # Ci == 1, so this conv is K broadcast rank-1 updates (VPU), not a 1-deep
    # matmul.  Its bias is dropped: the BN mean subtraction cancels it exactly.
    x = x_ref[...]                                 # (NS, 1)
    w1 = w1_ref[...]                               # (K, Cu)
    z = jnp.zeros((NS, Cu), jnp.float32)
    for k in range(K):
        z = z + (shift(x, k - P) * masks_1[k]) * w1[k:k + 1, :]
    h = bn_act(z, g1_ref[...], be1_ref[...], relu=True)

    # ---- ResNet blocks (identity shortcut: in_channels == out_channels) ------
    for i in range(n_layers):
        wa, ga, bea, wb, gb, beb = layer_refs[6 * i:6 * i + 6]
        z = jnp.dot(im2col_bf16(h), wa[...], preferred_element_type=jnp.float32)
        z = bn_act(z, ga[...], bea[...], relu=True)
        z = jnp.dot(im2col_bf16(z), wb[...], preferred_element_type=jnp.float32)
        z = bn_act(z, gb[...], beb[...], relu=False)
        h = jnp.maximum(z + h, 0.0)                # += shortcut ; relu

    # ---- _cnn_2 (Cu -> 1) + flatten(1) + Linear + dropout(p=0) + actf --------
    # w2 is pre-tiled across BL3 lanes so the conv matmul output is already
    # lane-dense; sel (N, NS) turns the per-sample flatten+Linear into a single
    # MXU matmul (no per-sample XLU reductions / masked row stores), and the
    # result is written with ONE block store.  b2 is kept (no BN follows it).
    y = jnp.dot(im2col_bf16(h), w2_ref[...],
                preferred_element_type=jnp.float32) + b2_ref[...]    # (NS, BL3)
    out = jnp.dot(sel_ref[...], y * wl_ref[...],
                  preferred_element_type=jnp.float32) + bl_ref[...]  # (N, BL3)

    if actf == 'tanh':
        out = jnp.tanh(out)
    elif actf == 'relu':
        out = jnp.maximum(out, 0.0)
    elif actf == 'sigmoid':
        out = jax.nn.sigmoid(out)
    # TODO(synk): elu/selu/leakyrelu/gelu coder_actf variants are not wired up;
    # they fall through as identity here.
    out_ref[...] = out


def resnet_coder_conc_forward(inputs, params, args):
    """ResNetCoder_conc.forward.  inputs: (batch, L_total, 3) float32."""
    N = args['batch_size']
    K = args['coder_kernel']
    Cu = args['coder_units']
    nl = args['coder_layers']
    L = args['block_length'] + args['block_padding'] + args['redundancy']
    S = 3 * L
    NS = N * S
    BL3 = args['block_length'] * 3

    # torch: inputs.transpose(1,2).reshape(B,-1,1).transpose(1,2) == (N, 1, 3L).
    # Rows = (sample, time) sample-major; the single channel sits on the lanes.
    x_seq = jnp.transpose(inputs, (0, 2, 1)).reshape(NS, 1).astype(jnp.float32)

    def to_col(w):  # torch Conv1d weight (O, I, K) -> im2col weight (K*I, O), bf16
        o, i, kk = w.shape
        return jnp.transpose(w, (2, 1, 0)).reshape(kk * i, o).astype(jnp.bfloat16)

    w1k = jnp.transpose(params['w_cnn1'], (2, 1, 0)).reshape(K, Cu)       # f32
    # cnn_2 weight tiled across BL3 lanes -> lane-dense conv-matmul output.
    w2t = jnp.tile(to_col(params['w_cnn2']), (1, BL3))                    # (K*Cu, BL3)
    # Linear weight tiled per sample so row g multiplies wl[g mod S, :].
    wl_tiled = jnp.tile(jnp.transpose(params['w_lin']), (N, 1))           # (NS, BL3)
    # Row-selection matrix: sel[n, g] = 1 iff row g belongs to sample n.
    sel = (jnp.arange(NS) // S == jnp.arange(N)[:, None]).astype(jnp.float32)

    operands = [x_seq, w1k,
                params['g1'].reshape(1, Cu), params['be1'].reshape(1, Cu)]
    for lp in params['layers']:
        operands += [to_col(lp['wa']), lp['ga'].reshape(1, Cu), lp['bea'].reshape(1, Cu),
                     to_col(lp['wb']), lp['gb'].reshape(1, Cu), lp['beb'].reshape(1, Cu)]
    operands += [w2t, params['b_cnn2'].reshape(1, 1),
                 wl_tiled, sel, params['b_lin'].reshape(1, BL3)]

    vmem = pl.BlockSpec(memory_space=pltpu.MemorySpace.VMEM)
    out = pl.pallas_call(
        functools.partial(coder_kernel, n_layers=nl, K=K, S=S, Cu=Cu, NS=NS,
                          actf=args['coder_actf']),
        out_shape=jax.ShapeDtypeStruct((N, BL3), jnp.float32),
        in_specs=[vmem] * len(operands),
        out_specs=vmem,
        compiler_params=pltpu.CompilerParams(vmem_limit_bytes=32 * 1024 * 1024),
    )(*operands)

    # x.reshape((batch, block_length, 3)); Quantizer skipped (continuous channel).
    return out.reshape(N, args['block_length'], 3)


def ref_forward(inputs, params, args):
    """Pure-JAX reference with the exact PyTorch (train-mode) semantics."""
    N = args['batch_size']
    K = args['coder_kernel']
    P = K // 2
    L = args['block_length'] + args['block_padding'] + args['redundancy']
    S = 3 * L

    x = jnp.transpose(inputs, (0, 2, 1)).reshape(N, 1, S).astype(jnp.float32)

    def conv1d(h, w, b):
        y = lax.conv_general_dilated(h, w, window_strides=(1,),
                                     padding=((P, P),),
                                     dimension_numbers=("NCH", "OIH", "NCH"))
        return y + b.reshape(1, -1, 1)

    def bn(h, g, be):
        m = jnp.mean(h, axis=(0, 2), keepdims=True)
        v = jnp.mean((h - m) ** 2, axis=(0, 2), keepdims=True)
        return ((h - m) * lax.rsqrt(v + EPS) * g.reshape(1, -1, 1)
                + be.reshape(1, -1, 1))

    h = jax.nn.relu(bn(conv1d(x, params['w_cnn1'], params['b_cnn1']),
                       params['g1'], params['be1']))
    for lp in params['layers']:
        sc = h                                           # Identity shortcut
        z = jax.nn.relu(bn(conv1d(h, lp['wa'], lp['ba']), lp['ga'], lp['bea']))
        z = bn(conv1d(z, lp['wb'], lp['bb']), lp['gb'], lp['beb'])
        h = jax.nn.relu(z + sc)
    y = conv1d(h, params['w_cnn2'], params['b_cnn2'])    # (N, 1, S)
    y = y.reshape(N, S)                                  # flatten(start_dim=1)
    y = y @ jnp.transpose(params['w_lin']) + params['b_lin']
    y = jnp.tanh(y)                                      # dropout(p=0) then actf
    return y.reshape(N, args['block_length'], 3)


if __name__ == "__main__":
    args = dict(batch_size=2, block_length=16, block_padding=0, redundancy=8,
                coder_units=64, coder_kernel=5, coder_layers=2,
                coder_dropout=0.0, coder_actf='tanh',
                channel='continuous', continuous_coder=False)

    N = args['batch_size']
    L = args['block_length'] + args['block_padding'] + args['redundancy']   # 24
    K, Cu, nl = args['coder_kernel'], args['coder_units'], args['coder_layers']
    S = 3 * L                                                               # 72
    BL3 = args['block_length'] * 3                                          # 48

    keys = iter(jax.random.split(jax.random.PRNGKey(0), 32))

    def nrm(shape, scale):
        return scale * jax.random.normal(next(keys), shape, jnp.float32)

    params = {
        'w_cnn1': nrm((Cu, 1, K), 0.3), 'b_cnn1': nrm((Cu,), 0.1),
        'g1': 1.0 + nrm((Cu,), 0.1), 'be1': nrm((Cu,), 0.1),
        'layers': [],
        'w_cnn2': nrm((1, Cu, K), 0.1), 'b_cnn2': nrm((1,), 0.1),
        'w_lin': nrm((BL3, S), 0.05), 'b_lin': nrm((BL3,), 0.1),
    }
    for _ in range(nl):
        params['layers'].append(dict(
            wa=nrm((Cu, Cu, K), 0.08), ba=nrm((Cu,), 0.1),
            ga=1.0 + nrm((Cu,), 0.1), bea=nrm((Cu,), 0.1),
            wb=nrm((Cu, Cu, K), 0.08), bb=nrm((Cu,), 0.1),
            gb=1.0 + nrm((Cu,), 0.1), beb=nrm((Cu,), 0.1),
        ))

    inputs = jax.random.normal(jax.random.PRNGKey(1), (N, L, 3), jnp.float32)

    out = jax.block_until_ready(resnet_coder_conc_forward(inputs, params, args))
    assert out.shape == (N, args['block_length'], 3)

    ref = jax.block_until_ready(ref_forward(inputs, params, args))
    # bf16 MXU operands (kernel) vs f32 reference: ~0.3-0.5% relative error per
    # conv layer accumulated over 5 convs -> a couple of 1e-2 absolute at most.
    np.testing.assert_allclose(np.asarray(out), np.asarray(ref),
                               atol=2e-2, rtol=2e-2)
    print("KERNEL_OK")
</pallas_src>

<mosaic_0001>
module attributes {stable_mosaic.version = 11 : i64} {
  func.func @coder_kernel(%arg0: memref<144x1xf32, #tpu.memory_space<vmem>>, %arg1: memref<5x64xf32, #tpu.memory_space<vmem>>, %arg2: memref<1x64xf32, #tpu.memory_space<vmem>>, %arg3: memref<1x64xf32, #tpu.memory_space<vmem>>, %arg4: memref<320x64xbf16, #tpu.memory_space<vmem>>, %arg5: memref<1x64xf32, #tpu.memory_space<vmem>>, %arg6: memref<1x64xf32, #tpu.memory_space<vmem>>, %arg7: memref<320x64xbf16, #tpu.memory_space<vmem>>, %arg8: memref<1x64xf32, #tpu.memory_space<vmem>>, %arg9: memref<1x64xf32, #tpu.memory_space<vmem>>, %arg10: memref<320x64xbf16, #tpu.memory_space<vmem>>, %arg11: memref<1x64xf32, #tpu.memory_space<vmem>>, %arg12: memref<1x64xf32, #tpu.memory_space<vmem>>, %arg13: memref<320x64xbf16, #tpu.memory_space<vmem>>, %arg14: memref<1x64xf32, #tpu.memory_space<vmem>>, %arg15: memref<1x64xf32, #tpu.memory_space<vmem>>, %arg16: memref<320x48xbf16, #tpu.memory_space<vmem>>, %arg17: memref<1x1xf32, #tpu.memory_space<vmem>>, %arg18: memref<144x48xf32, #tpu.memory_space<vmem>>, %arg19: memref<2x144xf32, #tpu.memory_space<vmem>>, %arg20: memref<1x48xf32, #tpu.memory_space<vmem>>, %arg21: memref<2x48xf32, #tpu.memory_space<vmem>>) attributes {dimension_semantics = [], scalar_prefetch = 0 : i64, scratch_operands = 0 : i64, tpu.core_type = #tpu.core_type<tc>} {
    %0 = tpu.iota {dimensions = array<i32: 0>} : vector<144x64xi32>
    %c72_i32 = arith.constant 72 : i32
    %c0_i32 = arith.constant 0 : i32
    %1 = arith.cmpi eq, %c72_i32, %c0_i32 : i32
    %c1_i32 = arith.constant 1 : i32
    %2 = arith.select %1, %c1_i32, %c72_i32 : i32
    %3 = vector.broadcast %2 : i32 to vector<144x64xi32>
    %4 = arith.remsi %0, %3 : vector<144x64xi32>
    %c0_i32_0 = arith.constant 0 : i32
    %5 = vector.broadcast %c0_i32_0 : i32 to vector<144x64xi32>
    %6 = arith.cmpi ne, %4, %5 : vector<144x64xi32>
    %c0_i32_1 = arith.constant 0 : i32
    %7 = vector.broadcast %c0_i32_1 : i32 to vector<144x64xi32>
    %8 = arith.cmpi slt, %4, %7 : vector<144x64xi32>
    %c0_i32_2 = arith.constant 0 : i32
    %9 = arith.cmpi slt, %2, %c0_i32_2 : i32
    %10 = vector.broadcast %9 : i1 to vector<144x64xi1>
    %11 = vector.broadcast %10 : vector<144x64xi1> to vector<144x64xi1>
    %12 = arith.xori %8, %11 : vector<144x64xi1>
    %13 = arith.andi %12, %6 : vector<144x64xi1>
    %14 = vector.broadcast %2 : i32 to vector<144x64xi32>
    %15 = arith.addi %4, %14 : vector<144x64xi32>
    %16 = arith.select %13, %15, %4 : vector<144x64xi1>, vector<144x64xi32>
    %17 = tpu.iota {dimensions = array<i32: 0>} : vector<144x1xi32>
    %c72_i32_3 = arith.constant 72 : i32
    %c0_i32_4 = arith.constant 0 : i32
    %18 = arith.cmpi eq, %c72_i32_3, %c0_i32_4 : i32
    %c1_i32_5 = arith.constant 1 : i32
    %19 = arith.select %18, %c1_i32_5, %c72_i32_3 : i32
    %20 = vector.broadcast %19 : i32 to vector<144x1xi32>
    %21 = arith.remsi %17, %20 : vector<144x1xi32>
    %c0_i32_6 = arith.constant 0 : i32
    %22 = vector.broadcast %c0_i32_6 : i32 to vector<144x1xi32>
    %23 = arith.cmpi ne, %21, %22 : vector<144x1xi32>
    %c0_i32_7 = arith.constant 0 : i32
    %24 = vector.broadcast %c0_i32_7 : i32 to vector<144x1xi32>
    %25 = arith.cmpi slt, %21, %24 : vector<144x1xi32>
    %c0_i32_8 = arith.constant 0 : i32
    %26 = arith.cmpi slt, %19, %c0_i32_8 : i32
    %27 = vector.broadcast %26 : i1 to vector<144x1xi1>
    %28 = vector.broadcast %27 : vector<144x1xi1> to vector<144x1xi1>
    %29 = arith.xori %25, %28 : vector<144x1xi1>
    %30 = arith.andi %29, %23 : vector<144x1xi1>
    %31 = vector.broadcast %19 : i32 to vector<144x1xi32>
    %32 = arith.addi %21, %31 : vector<144x1xi32>
    %33 = arith.select %30, %32, %21 : vector<144x1xi1>, vector<144x1xi32>
    %c-2_i32 = arith.constant -2 : i32
    %34 = vector.broadcast %c-2_i32 : i32 to vector<144x64xi32>
    %35 = arith.addi %16, %34 : vector<144x64xi32>
    %c0_i32_9 = arith.constant 0 : i32
    %36 = vector.broadcast %c0_i32_9 : i32 to vector<144x64xi32>
    %37 = arith.cmpi sge, %35, %36 : vector<144x64xi32>
    %c-2_i32_10 = arith.constant -2 : i32
    %38 = vector.broadcast %c-2_i32_10 : i32 to vector<144x64xi32>
    %39 = arith.addi %16, %38 : vector<144x64xi32>
    %c72_i32_11 = arith.constant 72 : i32
    %40 = vector.broadcast %c72_i32_11 : i32 to vector<144x64xi32>
    %41 = arith.cmpi slt, %39, %40 : vector<144x64xi32>
    %42 = arith.andi %37, %41 : vector<144x64xi1>
    %43 = arith.extui %42 : vector<144x64xi1> to vector<144x64xi32>
    %44 = arith.sitofp %43 : vector<144x64xi32> to vector<144x64xf32>
    %c-2_i32_12 = arith.constant -2 : i32
    %45 = vector.broadcast %c-2_i32_12 : i32 to vector<144x1xi32>
    %46 = arith.addi %33, %45 : vector<144x1xi32>
    %c0_i32_13 = arith.constant 0 : i32
    %47 = vector.broadcast %c0_i32_13 : i32 to vector<144x1xi32>
    %48 = arith.cmpi sge, %46, %47 : vector<144x1xi32>
    %c-2_i32_14 = arith.constant -2 : i32
    %49 = vector.broadcast %c-2_i32_14 : i32 to vector<144x1xi32>
    %50 = arith.addi %33, %49 : vector<144x1xi32>
    %c72_i32_15 = arith.constant 72 : i32
    %51 = vector.broadcast %c72_i32_15 : i32 to vector<144x1xi32>
    %52 = arith.cmpi slt, %50, %51 : vector<144x1xi32>
    %53 = arith.andi %48, %52 : vector<144x1xi1>
    %54 = arith.extui %53 : vector<144x1xi1> to vector<144x1xi32>
    %55 = arith.sitofp %54 : vector<144x1xi32> to vector<144x1xf32>
    %c-1_i32 = arith.constant -1 : i32
    %56 = vector.broadcast %c-1_i32 : i32 to vector<144x64xi32>
    %57 = arith.addi %16, %56 : vector<144x64xi32>
    %c0_i32_16 = arith.constant 0 : i32
    %58 = vector.broadcast %c0_i32_16 : i32 to vector<144x64xi32>
    %59 = arith.cmpi sge, %57, %58 : vector<144x64xi32>
    %c-1_i32_17 = arith.constant -1 : i32
    %60 = vector.broadcast %c-1_i32_17 : i32 to vector<144x64xi32>
    %61 = arith.addi %16, %60 : vector<144x64xi32>
    %c72_i32_18 = arith.constant 72 : i32
    %62 = vector.broadcast %c72_i32_18 : i32 to vector<144x64xi32>
    %63 = arith.cmpi slt, %61, %62 : vector<144x64xi32>
    %64 = arith.andi %59, %63 : vector<144x64xi1>
    %65 = arith.extui %64 : vector<144x64xi1> to vector<144x64xi32>
    %66 = arith.sitofp %65 : vector<144x64xi32> to vector<144x64xf32>
    %c-1_i32_19 = arith.constant -1 : i32
    %67 = vector.broadcast %c-1_i32_19 : i32 to vector<144x1xi32>
    %68 = arith.addi %33, %67 : vector<144x1xi32>
    %c0_i32_20 = arith.constant 0 : i32
    %69 = vector.broadcast %c0_i32_20 : i32 to vector<144x1xi32>
    %70 = arith.cmpi sge, %68, %69 : vector<144x1xi32>
    %c-1_i32_21 = arith.constant -1 : i32
    %71 = vector.broadcast %c-1_i32_21 : i32 to vector<144x1xi32>
    %72 = arith.addi %33, %71 : vector<144x1xi32>
    %c72_i32_22 = arith.constant 72 : i32
    %73 = vector.broadcast %c72_i32_22 : i32 to vector<144x1xi32>
    %74 = arith.cmpi slt, %72, %73 : vector<144x1xi32>
    %75 = arith.andi %70, %74 : vector<144x1xi1>
    %76 = arith.extui %75 : vector<144x1xi1> to vector<144x1xi32>
    %77 = arith.sitofp %76 : vector<144x1xi32> to vector<144x1xf32>
    %c0_i32_23 = arith.constant 0 : i32
    %78 = vector.broadcast %c0_i32_23 : i32 to vector<144x64xi32>
    %79 = arith.addi %16, %78 : vector<144x64xi32>
    %c0_i32_24 = arith.constant 0 : i32
    %80 = vector.broadcast %c0_i32_24 : i32 to vector<144x64xi32>
    %81 = arith.cmpi sge, %79, %80 : vector<144x64xi32>
    %c0_i32_25 = arith.constant 0 : i32
    %82 = vector.broadcast %c0_i32_25 : i32 to vector<144x64xi32>
    %83 = arith.addi %16, %82 : vector<144x64xi32>
    %c72_i32_26 = arith.constant 72 : i32
    %84 = vector.broadcast %c72_i32_26 : i32 to vector<144x64xi32>
    %85 = arith.cmpi slt, %83, %84 : vector<144x64xi32>
    %86 = arith.andi %81, %85 : vector<144x64xi1>
    %87 = arith.extui %86 : vector<144x64xi1> to vector<144x64xi32>
    %88 = arith.sitofp %87 : vector<144x64xi32> to vector<144x64xf32>
    %c0_i32_27 = arith.constant 0 : i32
    %89 = vector.broadcast %c0_i32_27 : i32 to vector<144x1xi32>
    %90 = arith.addi %33, %89 : vector<144x1xi32>
    %c0_i32_28 = arith.constant 0 : i32
    %91 = vector.broadcast %c0_i32_28 : i32 to vector<144x1xi32>
    %92 = arith.cmpi sge, %90, %91 : vector<144x1xi32>
    %c0_i32_29 = arith.constant 0 : i32
    %93 = vector.broadcast %c0_i32_29 : i32 to vector<144x1xi32>
    %94 = arith.addi %33, %93 : vector<144x1xi32>
    %c72_i32_30 = arith.constant 72 : i32
    %95 = vector.broadcast %c72_i32_30 : i32 to vector<144x1xi32>
    %96 = arith.cmpi slt, %94, %95 : vector<144x1xi32>
    %97 = arith.andi %92, %96 : vector<144x1xi1>
    %98 = arith.extui %97 : vector<144x1xi1> to vector<144x1xi32>
    %99 = arith.sitofp %98 : vector<144x1xi32> to vector<144x1xf32>
    %c1_i32_31 = arith.constant 1 : i32
    %100 = vector.broadcast %c1_i32_31 : i32 to vector<144x64xi32>
    %101 = arith.addi %16, %100 : vector<144x64xi32>
    %c0_i32_32 = arith.constant 0 : i32
    %102 = vector.broadcast %c0_i32_32 : i32 to vector<144x64xi32>
    %103 = arith.cmpi sge, %101, %102 : vector<144x64xi32>
    %c1_i32_33 = arith.constant 1 : i32
    %104 = vector.broadcast %c1_i32_33 : i32 to vector<144x64xi32>
    %105 = arith.addi %16, %104 : vector<144x64xi32>
    %c72_i32_34 = arith.constant 72 : i32
    %106 = vector.broadcast %c72_i32_34 : i32 to vector<144x64xi32>
    %107 = arith.cmpi slt, %105, %106 : vector<144x64xi32>
    %108 = arith.andi %103, %107 : vector<144x64xi1>
    %109 = arith.extui %108 : vector<144x64xi1> to vector<144x64xi32>
    %110 = arith.sitofp %109 : vector<144x64xi32> to vector<144x64xf32>
    %c1_i32_35 = arith.constant 1 : i32
    %111 = vector.broadcast %c1_i32_35 : i32 to vector<144x1xi32>
    %112 = arith.addi %33, %111 : vector<144x1xi32>
    %c0_i32_36 = arith.constant 0 : i32
    %113 = vector.broadcast %c0_i32_36 : i32 to vector<144x1xi32>
    %114 = arith.cmpi sge, %112, %113 : vector<144x1xi32>
    %c1_i32_37 = arith.constant 1 : i32
    %115 = vector.broadcast %c1_i32_37 : i32 to vector<144x1xi32>
    %116 = arith.addi %33, %115 : vector<144x1xi32>
    %c72_i32_38 = arith.constant 72 : i32
    %117 = vector.broadcast %c72_i32_38 : i32 to vector<144x1xi32>
    %118 = arith.cmpi slt, %116, %117 : vector<144x1xi32>
    %119 = arith.andi %114, %118 : vector<144x1xi1>
    %120 = arith.extui %119 : vector<144x1xi1> to vector<144x1xi32>
    %121 = arith.sitofp %120 : vector<144x1xi32> to vector<144x1xf32>
    %c2_i32 = arith.constant 2 : i32
    %122 = vector.broadcast %c2_i32 : i32 to vector<144x64xi32>
    %123 = arith.addi %16, %122 : vector<144x64xi32>
    %c0_i32_39 = arith.constant 0 : i32
    %124 = vector.broadcast %c0_i32_39 : i32 to vector<144x64xi32>
    %125 = arith.cmpi sge, %123, %124 : vector<144x64xi32>
    %c2_i32_40 = arith.constant 2 : i32
    %126 = vector.broadcast %c2_i32_40 : i32 to vector<144x64xi32>
    %127 = arith.addi %16, %126 : vector<144x64xi32>
    %c72_i32_41 = arith.constant 72 : i32
    %128 = vector.broadcast %c72_i32_41 : i32 to vector<144x64xi32>
    %129 = arith.cmpi slt, %127, %128 : vector<144x64xi32>
    %130 = arith.andi %125, %129 : vector<144x64xi1>
    %131 = arith.extui %130 : vector<144x64xi1> to vector<144x64xi32>
    %132 = arith.sitofp %131 : vector<144x64xi32> to vector<144x64xf32>
    %c2_i32_42 = arith.constant 2 : i32
    %133 = vector.broadcast %c2_i32_42 : i32 to vector<144x1xi32>
    %134 = arith.addi %33, %133 : vector<144x1xi32>
    %c0_i32_43 = arith.constant 0 : i32
    %135 = vector.broadcast %c0_i32_43 : i32 to vector<144x1xi32>
    %136 = arith.cmpi sge, %134, %135 : vector<144x1xi32>
    %c2_i32_44 = arith.constant 2 : i32
    %137 = vector.broadcast %c2_i32_44 : i32 to vector<144x1xi32>
    %138 = arith.addi %33, %137 : vector<144x1xi32>
    %c72_i32_45 = arith.constant 72 : i32
    %139 = vector.broadcast %c72_i32_45 : i32 to vector<144x1xi32>
    %140 = arith.cmpi slt, %138, %139 : vector<144x1xi32>
    %141 = arith.andi %136, %140 : vector<144x1xi1>
    %142 = arith.extui %141 : vector<144x1xi1> to vector<144x1xi32>
    %143 = arith.sitofp %142 : vector<144x1xi32> to vector<144x1xf32>
    %cst = arith.constant 1.000000e+00 : f32
    %144 = vector.broadcast %cst : f32 to vector<1x144xf32>
    %c0 = arith.constant 0 : index
    %c0_46 = arith.constant 0 : index
    %145 = vector.load %arg0[%c0, %c0_46] : memref<144x1xf32, #tpu.memory_space<vmem>>, vector<144x1xf32>
    %c0_47 = arith.constant 0 : index
    %c0_48 = arith.constant 0 : index
    %146 = vector.load %arg1[%c0_47, %c0_48] : memref<5x64xf32, #tpu.memory_space<vmem>>, vector<5x64xf32>
    %cst_49 = arith.constant 0.000000e+00 : f32
    %147 = vector.broadcast %cst_49 : f32 to vector<144x64xf32>
    %c2_i32_50 = arith.constant 2 : i32
    %148 = tpu.dynamic_rotate %145 by %c2_i32_50 dim 0 : vector<144x1xf32>, i32 -> vector<144x1xf32>
    %149 = arith.mulf %148, %55 : vector<144x1xf32>
    %150 = vector.extract_strided_slice %146 {offsets = [0, 0], sizes = [1, 64], strides = [1, 1]} : vector<5x64xf32> to vector<1x64xf32>
    %151 = vector.broadcast %149 : vector<144x1xf32> to vector<144x64xf32>
    %152 = vector.broadcast %150 : vector<1x64xf32> to vector<144x64xf32>
    %153 = arith.mulf %151, %152 : vector<144x64xf32>
    %154 = arith.addf %147, %153 : vector<144x64xf32>
    %c1_i32_51 = arith.constant 1 : i32
    %155 = tpu.dynamic_rotate %145 by %c1_i32_51 dim 0 : vector<144x1xf32>, i32 -> vector<144x1xf32>
    %156 = arith.mulf %155, %77 : vector<144x1xf32>
    %157 = vector.extract_strided_slice %146 {offsets = [1, 0], sizes = [1, 64], strides = [1, 1]} : vector<5x64xf32> to vector<1x64xf32>
    %158 = vector.broadcast %156 : vector<144x1xf32> to vector<144x64xf32>
    %159 = vector.broadcast %157 : vector<1x64xf32> to vector<144x64xf32>
    %160 = arith.mulf %158, %159 : vector<144x64xf32>
    %161 = arith.addf %154, %160 : vector<144x64xf32>
    %162 = arith.mulf %145, %99 : vector<144x1xf32>
    %163 = vector.extract_strided_slice %146 {offsets = [2, 0], sizes = [1, 64], strides = [1, 1]} : vector<5x64xf32> to vector<1x64xf32>
    %164 = vector.broadcast %162 : vector<144x1xf32> to vector<144x64xf32>
    %165 = vector.broadcast %163 : vector<1x64xf32> to vector<144x64xf32>
    %166 = arith.mulf %164, %165 : vector<144x64xf32>
    %167 = arith.addf %161, %166 : vector<144x64xf32>
    %c143_i32 = arith.constant 143 : i32
    %168 = tpu.dynamic_rotate %145 by %c143_i32 dim 0 : vector<144x1xf32>, i32 -> vector<144x1xf32>
    %169 = arith.mulf %168, %121 : vector<144x1xf32>
    %170 = vector.extract_strided_slice %146 {offsets = [3, 0], sizes = [1, 64], strides = [1, 1]} : vector<5x64xf32> to vector<1x64xf32>
    %171 = vector.broadcast %169 : vector<144x1xf32> to vector<144x64xf32>
    %172 = vector.broadcast %170 : vector<1x64xf32> to vector<144x64xf32>
    %173 = arith.mulf %171, %172 : vector<144x64xf32>
    %174 = arith.addf %167, %173 : vector<144x64xf32>
    %c142_i32 = arith.constant 142 : i32
    %175 = tpu.dynamic_rotate %145 by %c142_i32 dim 0 : vector<144x1xf32>, i32 -> vector<144x1xf32>
    %176 = arith.mulf %175, %143 : vector<144x1xf32>
    %177 = vector.extract_strided_slice %146 {offsets = [4, 0], sizes = [1, 64], strides = [1, 1]} : vector<5x64xf32> to vector<1x64xf32>
    %178 = vector.broadcast %176 : vector<144x1xf32> to vector<144x64xf32>
    %179 = vector.broadcast %177 : vector<1x64xf32> to vector<144x64xf32>
    %180 = arith.mulf %178, %179 : vector<144x64xf32>
    %181 = arith.addf %174, %180 : vector<144x64xf32>
    %c0_52 = arith.constant 0 : index
    %c0_53 = arith.constant 0 : index
    %182 = vector.load %arg2[%c0_52, %c0_53] : memref<1x64xf32, #tpu.memory_space<vmem>>, vector<1x64xf32>
    %c0_54 = arith.constant 0 : index
    %c0_55 = arith.constant 0 : index
    %183 = vector.load %arg3[%c0_54, %c0_55] : memref<1x64xf32, #tpu.memory_space<vmem>>, vector<1x64xf32>
    %184 = arith.mulf %181, %181 : vector<144x64xf32>
    %185 = tpu.concatenate %181, %184 in 1 : vector<144x64xf32>, vector<144x64xf32> -> vector<144x128xf32>
    %cst_56 = arith.constant dense<0.000000e+00> : vector<1x128xf32>
    %186 = tpu.matmul %144, %185, %cst_56 {dimension_numbers = #tpu.dot_dimension_numbers<[1], [0], [0], [1], [0, 0, 1, 1], [], []>} : vector<1x144xf32>, vector<144x128xf32>, vector<1x128xf32> -> vector<1x128xf32>
    %187 = vector.extract_strided_slice %186 {offsets = [0, 0], sizes = [1, 64], strides = [1, 1]} : vector<1x128xf32> to vector<1x64xf32>
    %cst_57 = arith.constant 0.0069444445 : f32
    %188 = vector.broadcast %cst_57 : f32 to vector<1x64xf32>
    %189 = arith.mulf %187, %188 : vector<1x64xf32>
    %190 = vector.extract_strided_slice %186 {offsets = [0, 64], sizes = [1, 64], strides = [1, 1]} : vector<1x128xf32> to vector<1x64xf32>
    %cst_58 = arith.constant 0.0069444445 : f32
    %191 = vector.broadcast %cst_58 : f32 to vector<1x64xf32>
    %192 = arith.mulf %190, %191 : vector<1x64xf32>
    %193 = arith.mulf %189, %189 : vector<1x64xf32>
    %194 = arith.subf %192, %193 : vector<1x64xf32>
    %cst_59 = arith.constant 9.99999974E-6 : f32
    %195 = vector.broadcast %cst_59 : f32 to vector<1x64xf32>
    %196 = arith.addf %194, %195 : vector<1x64xf32>
    %197 = math.rsqrt %196 : vector<1x64xf32>
    %198 = arith.mulf %182, %197 : vector<1x64xf32>
    %199 = arith.mulf %189, %198 : vector<1x64xf32>
    %200 = arith.subf %183, %199 : vector<1x64xf32>
    %201 = vector.broadcast %198 : vector<1x64xf32> to vector<144x64xf32>
    %202 = arith.mulf %181, %201 : vector<144x64xf32>
    %203 = vector.broadcast %200 : vector<1x64xf32> to vector<144x64xf32>
    %204 = arith.addf %202, %203 : vector<144x64xf32>
    %cst_60 = arith.constant 0.000000e+00 : f32
    %205 = vector.broadcast %cst_60 : f32 to vector<144x64xf32>
    %206 = arith.maximumf %204, %205 : vector<144x64xf32>
    %c2_i32_61 = arith.constant 2 : i32
    %207 = tpu.dynamic_rotate %206 by %c2_i32_61 dim 0 : vector<144x64xf32>, i32 -> vector<144x64xf32>
    %208 = arith.mulf %207, %44 : vector<144x64xf32>
    %209 = arith.truncf %208 : vector<144x64xf32> to vector<144x64xbf16>
    %c1_i32_62 = arith.constant 1 : i32
    %210 = tpu.dynamic_rotate %206 by %c1_i32_62 dim 0 : vector<144x64xf32>, i32 -> vector<144x64xf32>
    %211 = arith.mulf %210, %66 : vector<144x64xf32>
    %212 = arith.truncf %211 : vector<144x64xf32> to vector<144x64xbf16>
    %213 = arith.mulf %206, %88 : vector<144x64xf32>
    %214 = arith.truncf %213 : vector<144x64xf32> to vector<144x64xbf16>
    %c143_i32_63 = arith.constant 143 : i32
    %215 = tpu.dynamic_rotate %206 by %c143_i32_63 dim 0 : vector<144x64xf32>, i32 -> vector<144x64xf32>
    %216 = arith.mulf %215, %110 : vector<144x64xf32>
    %217 = arith.truncf %216 : vector<144x64xf32> to vector<144x64xbf16>
    %c142_i32_64 = arith.constant 142 : i32
    %218 = tpu.dynamic_rotate %206 by %c142_i32_64 dim 0 : vector<144x64xf32>, i32 -> vector<144x64xf32>
    %219 = arith.mulf %218, %132 : vector<144x64xf32>
    %220 = arith.truncf %219 : vector<144x64xf32> to vector<144x64xbf16>
    %221 = tpu.concatenate %209, %212, %214, %217, %220 in 1 : vector<144x64xbf16>, vector<144x64xbf16>, vector<144x64xbf16>, vector<144x64xbf16>, vector<144x64xbf16> -> vector<144x320xbf16>
    %c0_65 = arith.constant 0 : index
    %c0_66 = arith.constant 0 : index
    %222 = vector.load %arg4[%c0_65, %c0_66] : memref<320x64xbf16, #tpu.memory_space<vmem>>, vector<320x64xbf16>
    %cst_67 = arith.constant dense<0.000000e+00> : vector<144x64xf32>
    %223 = tpu.matmul %221, %222, %cst_67 {dimension_numbers = #tpu.dot_dimension_numbers<[1], [0], [0], [1], [0, 0, 1, 1], [], []>} : vector<144x320xbf16>, vector<320x64xbf16>, vector<144x64xf32> -> vector<144x64xf32>
    %c0_68 = arith.constant 0 : index
    %c0_69 = arith.constant 0 : index
    %224 = vector.load %arg5[%c0_68, %c0_69] : memref<1x64xf32, #tpu.memory_space<vmem>>, vector<1x64xf32>
    %c0_70 = arith.constant 0 : index
    %c0_71 = arith.constant 0 : index
    %225 = vector.load %arg6[%c0_70, %c0_71] : memref<1x64xf32, #tpu.memory_space<vmem>>, vector<1x64xf32>
    %226 = arith.mulf %223, %223 : vector<144x64xf32>
    %227 = tpu.concatenate %223, %226 in 1 : vector<144x64xf32>, vector<144x64xf32> -> vector<144x128xf32>
    %cst_72 = arith.constant dense<0.000000e+00> : vector<1x128xf32>
    %228 = tpu.matmul %144, %227, %cst_72 {dimension_numbers = #tpu.dot_dimension_numbers<[1], [0], [0], [1], [0, 0, 1, 1], [], []>} : vector<1x144xf32>, vector<144x128xf32>, vector<1x128xf32> -> vector<1x128xf32>
    %229 = vector.extract_strided_slice %228 {offsets = [0, 0], sizes = [1, 64], strides = [1, 1]} : vector<1x128xf32> to vector<1x64xf32>
    %cst_73 = arith.constant 0.0069444445 : f32
    %230 = vector.broadcast %cst_73 : f32 to vector<1x64xf32>
    %231 = arith.mulf %229, %230 : vector<1x64xf32>
    %232 = vector.extract_strided_slice %228 {offsets = [0, 64], sizes = [1, 64], strides = [1, 1]} : vector<1x128xf32> to vector<1x64xf32>
    %cst_74 = arith.constant 0.0069444445 : f32
    %233 = vector.broadcast %cst_74 : f32 to vector<1x64xf32>
    %234 = arith.mulf %232, %233 : vector<1x64xf32>
    %235 = arith.mulf %231, %231 : vector<1x64xf32>
    %236 = arith.subf %234, %235 : vector<1x64xf32>
    %cst_75 = arith.constant 9.99999974E-6 : f32
    %237 = vector.broadcast %cst_75 : f32 to vector<1x64xf32>
    %238 = arith.addf %236, %237 : vector<1x64xf32>
    %239 = math.rsqrt %238 : vector<1x64xf32>
    %240 = arith.mulf %224, %239 : vector<1x64xf32>
    %241 = arith.mulf %231, %240 : vector<1x64xf32>
    %242 = arith.subf %225, %241 : vector<1x64xf32>
    %243 = vector.broadcast %240 : vector<1x64xf32> to vector<144x64xf32>
    %244 = arith.mulf %223, %243 : vector<144x64xf32>
    %245 = vector.broadcast %242 : vector<1x64xf32> to vector<144x64xf32>
    %246 = arith.addf %244, %245 : vector<144x64xf32>
    %cst_76 = arith.constant 0.000000e+00 : f32
    %247 = vector.broadcast %cst_76 : f32 to vector<144x64xf32>
    %248 = arith.maximumf %246, %247 : vector<144x64xf32>
    %c2_i32_77 = arith.constant 2 : i32
    %249 = tpu.dynamic_rotate %248 by %c2_i32_77 dim 0 : vector<144x64xf32>, i32 -> vector<144x64xf32>
    %250 = arith.mulf %249, %44 : vector<144x64xf32>
    %251 = arith.truncf %250 : vector<144x64xf32> to vector<144x64xbf16>
    %c1_i32_78 = arith.constant 1 : i32
    %252 = tpu.dynamic_rotate %248 by %c1_i32_78 dim 0 : vector<144x64xf32>, i32 -> vector<144x64xf32>
    %253 = arith.mulf %252, %66 : vector<144x64xf32>
    %254 = arith.truncf %253 : vector<144x64xf32> to vector<144x64xbf16>
    %255 = arith.mulf %248, %88 : vector<144x64xf32>
    %256 = arith.truncf %255 : vector<144x64xf32> to vector<144x64xbf16>
    %c143_i32_79 = arith.constant 143 : i32
    %257 = tpu.dynamic_rotate %248 by %c143_i32_79 dim 0 : vector<144x64xf32>, i32 -> vector<144x64xf32>
    %258 = arith.mulf %257, %110 : vector<144x64xf32>
    %259 = arith.truncf %258 : vector<144x64xf32> to vector<144x64xbf16>
    %c142_i32_80 = arith.constant 142 : i32
    %260 = tpu.dynamic_rotate %248 by %c142_i32_80 dim 0 : vector<144x64xf32>, i32 -> vector<144x64xf32>
    %261 = arith.mulf %260, %132 : vector<144x64xf32>
    %262 = arith.truncf %261 : vector<144x64xf32> to vector<144x64xbf16>
    %263 = tpu.concatenate %251, %254, %256, %259, %262 in 1 : vector<144x64xbf16>, vector<144x64xbf16>, vector<144x64xbf16>, vector<144x64xbf16>, vector<144x64xbf16> -> vector<144x320xbf16>
    %c0_81 = arith.constant 0 : index
    %c0_82 = arith.constant 0 : index
    %264 = vector.load %arg7[%c0_81, %c0_82] : memref<320x64xbf16, #tpu.memory_space<vmem>>, vector<320x64xbf16>
    %cst_83 = arith.constant dense<0.000000e+00> : vector<144x64xf32>
    %265 = tpu.matmul %263, %264, %cst_83 {dimension_numbers = #tpu.dot_dimension_numbers<[1], [0], [0], [1], [0, 0, 1, 1], [], []>} : vector<144x320xbf16>, vector<320x64xbf16>, vector<144x64xf32> -> vector<144x64xf32>
    %c0_84 = arith.constant 0 : index
    %c0_85 = arith.constant 0 : index
    %266 = vector.load %arg8[%c0_84, %c0_85] : memref<1x64xf32, #tpu.memory_space<vmem>>, vector<1x64xf32>
    %c0_86 = arith.constant 0 : index
    %c0_87 = arith.constant 0 : index
    %267 = vector.load %arg9[%c0_86, %c0_87] : memref<1x64xf32, #tpu.memory_space<vmem>>, vector<1x64xf32>
    %268 = arith.mulf %265, %265 : vector<144x64xf32>
    %269 = tpu.concatenate %265, %268 in 1 : vector<144x64xf32>, vector<144x64xf32> -> vector<144x128xf32>
    %cst_88 = arith.constant dense<0.000000e+00> : vector<1x128xf32>
    %270 = tpu.matmul %144, %269, %cst_88 {dimension_numbers = #tpu.dot_dimension_numbers<[1], [0], [0], [1], [0, 0, 1, 1], [], []>} : vector<1x144xf32>, vector<144x128xf32>, vector<1x128xf32> -> vector<1x128xf32>
    %271 = vector.extract_strided_slice %270 {offsets = [0, 0], sizes = [1, 64], strides = [1, 1]} : vector<1x128xf32> to vector<1x64xf32>
    %cst_89 = arith.constant 0.0069444445 : f32
    %272 = vector.broadcast %cst_89 : f32 to vector<1x64xf32>
    %273 = arith.mulf %271, %272 : vector<1x64xf32>
    %274 = vector.extract_strided_slice %270 {offsets = [0, 64], sizes = [1, 64], strides = [1, 1]} : vector<1x128xf32> to vector<1x64xf32>
    %cst_90 = arith.constant 0.0069444445 : f32
    %275 = vector.broadcast %cst_90 : f32 to vector<1x64xf32>
    %276 = arith.mulf %274, %275 : vector<1x64xf32>
    %277 = arith.mulf %273, %273 : vector<1x64xf32>
    %278 = arith.subf %276, %277 : vector<1x64xf32>
    %cst_91 = arith.constant 9.99999974E-6 : f32
    %279 = vector.broadcast %cst_91 : f32 to vector<1x64xf32>
    %280 = arith.addf %278, %279 : vector<1x64xf32>
    %281 = math.rsqrt %280 : vector<1x64xf32>
    %282 = arith.mulf %266, %281 : vector<1x64xf32>
    %283 = arith.mulf %273, %282 : vector<1x64xf32>
    %284 = arith.subf %267, %283 : vector<1x64xf32>
    %285 = vector.broadcast %282 : vector<1x64xf32> to vector<144x64xf32>
    %286 = arith.mulf %265, %285 : vector<144x64xf32>
    %287 = vector.broadcast %284 : vector<1x64xf32> to vector<144x64xf32>
    %288 = arith.addf %286, %287 : vector<144x64xf32>
    %289 = arith.addf %288, %206 : vector<144x64xf32>
    %cst_92 = arith.constant 0.000000e+00 : f32
    %290 = vector.broadcast %cst_92 : f32 to vector<144x64xf32>
    %291 = arith.maximumf %289, %290 : vector<144x64xf32>
    %c2_i32_93 = arith.constant 2 : i32
    %292 = tpu.dynamic_rotate %291 by %c2_i32_93 dim 0 : vector<144x64xf32>, i32 -> vector<144x64xf32>
    %293 = arith.mulf %292, %44 : vector<144x64xf32>
    %294 = arith.truncf %293 : vector<144x64xf32> to vector<144x64xbf16>
    %c1_i32_94 = arith.constant 1 : i32
    %295 = tpu.dynamic_rotate %291 by %c1_i32_94 dim 0 : vector<144x64xf32>, i32 -> vector<144x64xf32>
    %296 = arith.mulf %295, %66 : vector<144x64xf32>
    %297 = arith.truncf %296 : vector<144x64xf32> to vector<144x64xbf16>
    %298 = arith.mulf %291, %88 : vector<144x64xf32>
    %299 = arith.truncf %298 : vector<144x64xf32> to vector<144x64xbf16>
    %c143_i32_95 = arith.constant 143 : i32
    %300 = tpu.dynamic_rotate %291 by %c143_i32_95 dim 0 : vector<144x64xf32>, i32 -> vector<144x64xf32>
    %301 = arith.mulf %300, %110 : vector<144x64xf32>
    %302 = arith.truncf %301 : vector<144x64xf32> to vector<144x64xbf16>
    %c142_i32_96 = arith.constant 142 : i32
    %303 = tpu.dynamic_rotate %291 by %c142_i32_96 dim 0 : vector<144x64xf32>, i32 -> vector<144x64xf32>
    %304 = arith.mulf %303, %132 : vector<144x64xf32>
    %305 = arith.truncf %304 : vector<144x64xf32> to vector<144x64xbf16>
    %306 = tpu.concatenate %294, %297, %299, %302, %305 in 1 : vector<144x64xbf16>, vector<144x64xbf16>, vector<144x64xbf16>, vector<144x64xbf16>, vector<144x64xbf16> -> vector<144x320xbf16>
    %c0_97 = arith.constant 0 : index
    %c0_98 = arith.constant 0 : index
    %307 = vector.load %arg10[%c0_97, %c0_98] : memref<320x64xbf16, #tpu.memory_space<vmem>>, vector<320x64xbf16>
    %cst_99 = arith.constant dense<0.000000e+00> : vector<144x64xf32>
    %308 = tpu.matmul %306, %307, %cst_99 {dimension_numbers = #tpu.dot_dimension_numbers<[1], [0], [0], [1], [0, 0, 1, 1], [], []>} : vector<144x320xbf16>, vector<320x64xbf16>, vector<144x64xf32> -> vector<144x64xf32>
    %c0_100 = arith.constant 0 : index
    %c0_101 = arith.constant 0 : index
    %309 = vector.load %arg11[%c0_100, %c0_101] : memref<1x64xf32, #tpu.memory_space<vmem>>, vector<1x64xf32>
    %c0_102 = arith.constant 0 : index
    %c0_103 = arith.constant 0 : index
    %310 = vector.load %arg12[%c0_102, %c0_103] : memref<1x64xf32, #tpu.memory_space<vmem>>, vector<1x64xf32>
    %311 = arith.mulf %308, %308 : vector<144x64xf32>
    %312 = tpu.concatenate %308, %311 in 1 : vector<144x64xf32>, vector<144x64xf32> -> vector<144x128xf32>
    %cst_104 = arith.constant dense<0.000000e+00> : vector<1x128xf32>
    %313 = tpu.matmul %144, %312, %cst_104 {dimension_numbers = #tpu.dot_dimension_numbers<[1], [0], [0], [1], [0, 0, 1, 1], [], []>} : vector<1x144xf32>, vector<144x128xf32>, vector<1x128xf32> -> vector<1x128xf32>
    %314 = vector.extract_strided_slice %313 {offsets = [0, 0], sizes = [1, 64], strides = [1, 1]} : vector<1x128xf32> to vector<1x64xf32>
    %cst_105 = arith.constant 0.0069444445 : f32
    %315 = vector.broadcast %cst_105 : f32 to vector<1x64xf32>
    %316 = arith.mulf %314, %315 : vector<1x64xf32>
    %317 = vector.extract_strided_slice %313 {offsets = [0, 64], sizes = [1, 64], strides = [1, 1]} : vector<1x128xf32> to vector<1x64xf32>
    %cst_106 = arith.constant 0.0069444445 : f32
    %318 = vector.broadcast %cst_106 : f32 to vector<1x64xf32>
    %319 = arith.mulf %317, %318 : vector<1x64xf32>
    %320 = arith.mulf %316, %316 : vector<1x64xf32>
    %321 = arith.subf %319, %320 : vector<1x64xf32>
    %cst_107 = arith.constant 9.99999974E-6 : f32
    %322 = vector.broadcast %cst_107 : f32 to vector<1x64xf32>
    %323 = arith.addf %321, %322 : vector<1x64xf32>
    %324 = math.rsqrt %323 : vector<1x64xf32>
    %325 = arith.mulf %309, %324 : vector<1x64xf32>
    %326 = arith.mulf %316, %325 : vector<1x64xf32>
    %327 = arith.subf %310, %326 : vector<1x64xf32>
    %328 = vector.broadcast %325 : vector<1x64xf32> to vector<144x64xf32>
    %329 = arith.mulf %308, %328 : vector<144x64xf32>
    %330 = vector.broadcast %327 : vector<1x64xf32> to vector<144x64xf32>
    %331 = arith.addf %329, %330 : vector<144x64xf32>
    %cst_108 = arith.constant 0.000000e+00 : f32
    %332 = vector.broadcast %cst_108 : f32 to vector<144x64xf32>
    %333 = arith.maximumf %331, %332 : vector<144x64xf32>
    %c2_i32_109 = arith.constant 2 : i32
    %334 = tpu.dynamic_rotate %333 by %c2_i32_109 dim 0 : vector<144x64xf32>, i32 -> vector<144x64xf32>
    %335 = arith.mulf %334, %44 : vector<144x64xf32>
    %336 = arith.truncf %335 : vector<144x64xf32> to vector<144x64xbf16>
    %c1_i32_110 = arith.constant 1 : i32
    %337 = tpu.dynamic_rotate %333 by %c1_i32_110 dim 0 : vector<144x64xf32>, i32 -> vector<144x64xf32>
    %338 = arith.mulf %337, %66 : vector<144x64xf32>
    %339 = arith.truncf %338 : vector<144x64xf32> to vector<144x64xbf16>
    %340 = arith.mulf %333, %88 : vector<144x64xf32>
    %341 = arith.truncf %340 : vector<144x64xf32> to vector<144x64xbf16>
    %c143_i32_111 = arith.constant 143 : i32
    %342 = tpu.dynamic_rotate %333 by %c143_i32_111 dim 0 : vector<144x64xf32>, i32 -> vector<144x64xf32>
    %343 = arith.mulf %342, %110 : vector<144x64xf32>
    %344 = arith.truncf %343 : vector<144x64xf32> to vector<144x64xbf16>
    %c142_i32_112 = arith.constant 142 : i32
    %345 = tpu.dynamic_rotate %333 by %c142_i32_112 dim 0 : vector<144x64xf32>, i32 -> vector<144x64xf32>
    %346 = arith.mulf %345, %132 : vector<144x64xf32>
    %347 = arith.truncf %346 : vector<144x64xf32> to vector<144x64xbf16>
    %348 = tpu.concatenate %336, %339, %341, %344, %347 in 1 : vector<144x64xbf16>, vector<144x64xbf16>, vector<144x64xbf16>, vector<144x64xbf16>, vector<144x64xbf16> -> vector<144x320xbf16>
    %c0_113 = arith.constant 0 : index
    %c0_114 = arith.constant 0 : index
    %349 = vector.load %arg13[%c0_113, %c0_114] : memref<320x64xbf16, #tpu.memory_space<vmem>>, vector<320x64xbf16>
    %cst_115 = arith.constant dense<0.000000e+00> : vector<144x64xf32>
    %350 = tpu.matmul %348, %349, %cst_115 {dimension_numbers = #tpu.dot_dimension_numbers<[1], [0], [0], [1], [0, 0, 1, 1], [], []>} : vector<144x320xbf16>, vector<320x64xbf16>, vector<144x64xf32> -> vector<144x64xf32>
    %c0_116 = arith.constant 0 : index
    %c0_117 = arith.constant 0 : index
    %351 = vector.load %arg14[%c0_116, %c0_117] : memref<1x64xf32, #tpu.memory_space<vmem>>, vector<1x64xf32>
    %c0_118 = arith.constant 0 : index
    %c0_119 = arith.constant 0 : index
    %352 = vector.load %arg15[%c0_118, %c0_119] : memref<1x64xf32, #tpu.memory_space<vmem>>, vector<1x64xf32>
    %353 = arith.mulf %350, %350 : vector<144x64xf32>
    %354 = tpu.concatenate %350, %353 in 1 : vector<144x64xf32>, vector<144x64xf32> -> vector<144x128xf32>
    %cst_120 = arith.constant dense<0.000000e+00> : vector<1x128xf32>
    %355 = tpu.matmul %144, %354, %cst_120 {dimension_numbers = #tpu.dot_dimension_numbers<[1], [0], [0], [1], [0, 0, 1, 1], [], []>} : vector<1x144xf32>, vector<144x128xf32>, vector<1x128xf32> -> vector<1x128xf32>
    %356 = vector.extract_strided_slice %355 {offsets = [0, 0], sizes = [1, 64], strides = [1, 1]} : vector<1x128xf32> to vector<1x64xf32>
    %cst_121 = arith.constant 0.0069444445 : f32
    %357 = vector.broadcast %cst_121 : f32 to vector<1x64xf32>
    %358 = arith.mulf %356, %357 : vector<1x64xf32>
    %359 = vector.extract_strided_slice %355 {offsets = [0, 64], sizes = [1, 64], strides = [1, 1]} : vector<1x128xf32> to vector<1x64xf32>
    %cst_122 = arith.constant 0.0069444445 : f32
    %360 = vector.broadcast %cst_122 : f32 to vector<1x64xf32>
    %361 = arith.mulf %359, %360 : vector<1x64xf32>
    %362 = arith.mulf %358, %358 : vector<1x64xf32>
    %363 = arith.subf %361, %362 : vector<1x64xf32>
    %cst_123 = arith.constant 9.99999974E-6 : f32
    %364 = vector.broadcast %cst_123 : f32 to vector<1x64xf32>
    %365 = arith.addf %363, %364 : vector<1x64xf32>
    %366 = math.rsqrt %365 : vector<1x64xf32>
    %367 = arith.mulf %351, %366 : vector<1x64xf32>
    %368 = arith.mulf %358, %367 : vector<1x64xf32>
    %369 = arith.subf %352, %368 : vector<1x64xf32>
    %370 = vector.broadcast %367 : vector<1x64xf32> to vector<144x64xf32>
    %371 = arith.mulf %350, %370 : vector<144x64xf32>
    %372 = vector.broadcast %369 : vector<1x64xf32> to vector<144x64xf32>
    %373 = arith.addf %371, %372 : vector<144x64xf32>
    %374 = arith.addf %373, %291 : vector<144x64xf32>
    %cst_124 = arith.constant 0.000000e+00 : f32
    %375 = vector.broadcast %cst_124 : f32 to vector<144x64xf32>
    %376 = arith.maximumf %374, %375 : vector<144x64xf32>
    %c2_i32_125 = arith.constant 2 : i32
    %377 = tpu.dynamic_rotate %376 by %c2_i32_125 dim 0 : vector<144x64xf32>, i32 -> vector<144x64xf32>
    %378 = arith.mulf %377, %44 : vector<144x64xf32>
    %379 = arith.truncf %378 : vector<144x64xf32> to vector<144x64xbf16>
    %c1_i32_126 = arith.constant 1 : i32
    %380 = tpu.dynamic_rotate %376 by %c1_i32_126 dim 0 : vector<144x64xf32>, i32 -> vector<144x64xf32>
    %381 = arith.mulf %380, %66 : vector<144x64xf32>
    %382 = arith.truncf %381 : vector<144x64xf32> to vector<144x64xbf16>
    %383 = arith.mulf %376, %88 : vector<144x64xf32>
    %384 = arith.truncf %383 : vector<144x64xf32> to vector<144x64xbf16>
    %c143_i32_127 = arith.constant 143 : i32
    %385 = tpu.dynamic_rotate %376 by %c143_i32_127 dim 0 : vector<144x64xf32>, i32 -> vector<144x64xf32>
    %386 = arith.mulf %385, %110 : vector<144x64xf32>
    %387 = arith.truncf %386 : vector<144x64xf32> to vector<144x64xbf16>
    %c142_i32_128 = arith.constant 142 : i32
    %388 = tpu.dynamic_rotate %376 by %c142_i32_128 dim 0 : vector<144x64xf32>, i32 -> vector<144x64xf32>
    %389 = arith.mulf %388, %132 : vector<144x64xf32>
    %390 = arith.truncf %389 : vector<144x64xf32> to vector<144x64xbf16>
    %391 = tpu.concatenate %379, %382, %384, %387, %390 in 1 : vector<144x64xbf16>, vector<144x64xbf16>, vector<144x64xbf16>, vector<144x64xbf16>, vector<144x64xbf16> -> vector<144x320xbf16>
    %c0_129 = arith.constant 0 : index
    %c0_130 = arith.constant 0 : index
    %392 = vector.load %arg16[%c0_129, %c0_130] : memref<320x48xbf16, #tpu.memory_space<vmem>>, vector<320x48xbf16>
    %cst_131 = arith.constant dense<0.000000e+00> : vector<144x48xf32>
    %393 = tpu.matmul %391, %392, %cst_131 {dimension_numbers = #tpu.dot_dimension_numbers<[1], [0], [0], [1], [0, 0, 1, 1], [], []>} : vector<144x320xbf16>, vector<320x48xbf16>, vector<144x48xf32> -> vector<144x48xf32>
    %c0_132 = arith.constant 0 : index
    %c0_133 = arith.constant 0 : index
    %394 = vector.load %arg17[%c0_132, %c0_133] : memref<1x1xf32, #tpu.memory_space<vmem>>, vector<1x1xf32>
    %395 = vector.broadcast %394 : vector<1x1xf32> to vector<144x48xf32>
    %396 = arith.addf %393, %395 : vector<144x48xf32>
    %c0_134 = arith.constant 0 : index
    %c0_135 = arith.constant 0 : index
    %397 = vector.load %arg19[%c0_134, %c0_135] : memref<2x144xf32, #tpu.memory_space<vmem>>, vector<2x144xf32>
    %c0_136 = arith.constant 0 : index
    %c0_137 = arith.constant 0 : index
    %398 = vector.load %arg18[%c0_136, %c0_137] : memref<144x48xf32, #tpu.memory_space<vmem>>, vector<144x48xf32>
    %399 = arith.mulf %396, %398 : vector<144x48xf32>
    %cst_138 = arith.constant dense<0.000000e+00> : vector<2x48xf32>
    %400 = tpu.matmul %397, %399, %cst_138 {dimension_numbers = #tpu.dot_dimension_numbers<[1], [0], [0], [1], [0, 0, 1, 1], [], []>} : vector<2x144xf32>, vector<144x48xf32>, vector<2x48xf32> -> vector<2x48xf32>
    %c0_139 = arith.constant 0 : index
    %c0_140 = arith.constant 0 : index
    %401 = vector.load %arg20[%c0_139, %c0_140] : memref<1x48xf32, #tpu.memory_space<vmem>>, vector<1x48xf32>
    %402 = vector.broadcast %401 : vector<1x48xf32> to vector<2x48xf32>
    %403 = arith.addf %400, %402 : vector<2x48xf32>
    %404 = math.tanh %403 : vector<2x48xf32>
    %c0_141 = arith.constant 0 : index
    %c0_142 = arith.constant 0 : index
    %405 = vector.load %arg21[%c0_141, %c0_142] : memref<2x48xf32, #tpu.memory_space<vmem>>, vector<2x48xf32>
    tpu.vector_store %arg21[%c0_141, %c0_142], %404 {strides = array<i32>} : memref<2x48xf32, #tpu.memory_space<vmem>>, vector<2x48xf32>,
    return
  }
}

</mosaic_0001>

<llo_original>
// kernel: tpu_custom_call.1
$region0: #{tpu_custom_call.1}
  #allocation0 [shape = 'u32[]', space=smem, size = 0x4, offset = 0x4, fixed_abs, tag = 'smem constant byte address 0x4 - core index']
  #allocation1 [shape = 'u32[144,128]{1,0:T(1,128)}', space=vmem, size = 0x12000, scoped, tag = 'internal scratch']
  #allocation2 [shape = 'f32[1,1]{1,0:T(1,128)S(1)}', space=vmem, size = 0x200, scoped, tag = 'scoped memory for tpu_custom_call.1']
  %s0 = inlined_call_operand.vmem [shape: f32[144,1], index: 0, kind: input, shape index: {}]
  %s1 = inlined_call_operand.vmem [shape: f32[5,64], index: 1, kind: input, shape index: {}]
  %s2 = inlined_call_operand.vmem [shape: f32[1,64], index: 2, kind: input, shape index: {}]
  %s3 = inlined_call_operand.vmem [shape: f32[1,64], index: 3, kind: input, shape index: {}]
  %s4 = inlined_call_operand.vmem [shape: bf16[320,64], index: 4, kind: input, shape index: {}]
  %s5 = inlined_call_operand.vmem [shape: f32[1,64], index: 5, kind: input, shape index: {}]
  %s6 = inlined_call_operand.vmem [shape: f32[1,64], index: 6, kind: input, shape index: {}]
  %s7 = inlined_call_operand.vmem [shape: bf16[320,64], index: 7, kind: input, shape index: {}]
  %s8 = inlined_call_operand.vmem [shape: f32[1,64], index: 8, kind: input, shape index: {}]
  %s9 = inlined_call_operand.vmem [shape: f32[1,64], index: 9, kind: input, shape index: {}]
  %s10 = inlined_call_operand.vmem [shape: bf16[320,64], index: 10, kind: input, shape index: {}]
  %s11 = inlined_call_operand.vmem [shape: f32[1,64], index: 11, kind: input, shape index: {}]
  %s12 = inlined_call_operand.vmem [shape: f32[1,64], index: 12, kind: input, shape index: {}]
  %s13 = inlined_call_operand.vmem [shape: bf16[320,64], index: 13, kind: input, shape index: {}]
  %s14 = inlined_call_operand.vmem [shape: f32[1,64], index: 14, kind: input, shape index: {}]
  %s15 = inlined_call_operand.vmem [shape: f32[1,64], index: 15, kind: input, shape index: {}]
  %s16 = inlined_call_operand.vmem [shape: bf16[320,48], index: 16, kind: input, shape index: {}]
  %s17 = inlined_call_operand.<no memory space> [shape: f32[1,1], index: 17, kind: input, shape index: {}]
  %s18 = inlined_call_operand.vmem [shape: f32[144,48], index: 18, kind: input, shape index: {}]
  %s19 = inlined_call_operand.vmem [shape: f32[2,144], index: 19, kind: input, shape index: {}]
  %s20 = inlined_call_operand.vmem [shape: f32[1,48], index: 20, kind: input, shape index: {}]
  %s21 = inlined_call_operand.hbm [shape: f32[2,48], index: 21, kind: output, shape index: {}]
  %s22 = sld [smem:[#allocation0]]
  $region94: #{tpu_custom_call.1} parent=0
    _
  %s24 = ssub.s32 1, %s22
  %s25 = scalar_select 0, %s24, %s22
  %v26 = vstv %s17
  %27 = vst [vmem:[#allocation2] sm:$0x1] %v26
  $region1: #{tpu_custom_call.1} parent=0
    #allocation3 [shape = 'u8[1024]{0}', space=vmem, size = 0x400, scoped, tag = 'output window, operand 0, single buffered']
    #allocation4 [shape = 's32[1]{0}', space=sflag, size = 0x4, scoped, tag = 'scoped memory for tpu_custom_call.1']
    %28 = vsyncpa [#allocation4], 0
    // Predicated region
    $region2: #{tpu_custom_call.1} parent=1 // pred_check
      _
    $region3: #{tpu_custom_call.1} parent=1 // pred_check_branch
      %30 = sbr.rel (0) target = $region5
    $region4: #{tpu_custom_call.1} parent=1 // pred_region
      _
    $region5: #{tpu_custom_call.1} parent=1 // pred_fallthru
      _
    // Predicated region
    $region6: #{tpu_custom_call.1} parent=1 // pred_check
      _
    $region7: #{tpu_custom_call.1} parent=1 // pred_check_branch
      %32 = sbr.rel (0) target = $region9
    $region8: #{tpu_custom_call.1} parent=1 // pred_region
      _
    $region9: #{tpu_custom_call.1} parent=1 // pred_fallthru
      _
    // Predicated region
    $region10: #{tpu_custom_call.1} parent=1 // pred_check
      _
    $region11: #{tpu_custom_call.1} parent=1 // pred_check_branch
      %34 = sbr.rel (0) target = $region13
    $region12: #{tpu_custom_call.1} parent=1 // pred_region
      _
    $region13: #{tpu_custom_call.1} parent=1 // pred_fallthru
      _
    // Predicated region
    $region14: #{tpu_custom_call.1} parent=1 // pred_check
      _
    $region15: #{tpu_custom_call.1} parent=1 // pred_check_branch
      %36 = sbr.rel (0) target = $region17
    $region16: #{tpu_custom_call.1} parent=1 // pred_region
      _
    $region17: #{tpu_custom_call.1} parent=1 // pred_fallthru
      _
    // Predicated region
    $region18: #{tpu_custom_call.1} parent=1 // pred_check
      _
    $region19: #{tpu_custom_call.1} parent=1 // pred_check_branch
      %38 = sbr.rel (0) target = $region21
    $region20: #{tpu_custom_call.1} parent=1 // pred_region
      _
    $region21: #{tpu_custom_call.1} parent=1 // pred_fallthru
      _
    // Predicated region
    $region22: #{tpu_custom_call.1} parent=1 // pred_check
      _
    $region23: #{tpu_custom_call.1} parent=1 // pred_check_branch
      %40 = sbr.rel (0) target = $region25
    $region24: #{tpu_custom_call.1} parent=1 // pred_region
      _
    $region25: #{tpu_custom_call.1} parent=1 // pred_fallthru
      _
    // Predicated region
    $region26: #{tpu_custom_call.1} parent=1 // pred_check
      _
    $region27: #{tpu_custom_call.1} parent=1 // pred_check_branch
      %42 = sbr.rel (0) target = $region29
    $region28: #{tpu_custom_call.1} parent=1 // pred_region
      _
    $region29: #{tpu_custom_call.1} parent=1 // pred_fallthru
      _
    // Predicated region
    $region30: #{tpu_custom_call.1} parent=1 // pred_check
      _
    $region31: #{tpu_custom_call.1} parent=1 // pred_check_branch
      %44 = sbr.rel (0) target = $region33
    $region32: #{tpu_custom_call.1} parent=1 // pred_region
      _
    $region33: #{tpu_custom_call.1} parent=1 // pred_fallthru
      _
    // Predicated region
    $region34: #{tpu_custom_call.1} parent=1 // pred_check
      _
    $region35: #{tpu_custom_call.1} parent=1 // pred_check_branch
      %46 = sbr.rel (0) target = $region37
    $region36: #{tpu_custom_call.1} parent=1 // pred_region
      _
    $region37: #{tpu_custom_call.1} parent=1 // pred_fallthru
      _
    // Predicated region
    $region38: #{tpu_custom_call.1} parent=1 // pred_check
      _
    $region39: #{tpu_custom_call.1} parent=1 // pred_check_branch
      %48 = sbr.rel (0) target = $region41
    $region40: #{tpu_custom_call.1} parent=1 // pred_region
      _
    $region41: #{tpu_custom_call.1} parent=1 // pred_fallthru
      _
    // Predicated region
    $region42: #{tpu_custom_call.1} parent=1 // pred_check
      _
    $region43: #{tpu_custom_call.1} parent=1 // pred_check_branch
      %50 = sbr.rel (0) target = $region45
    $region44: #{tpu_custom_call.1} parent=1 // pred_region
      _
    $region45: #{tpu_custom_call.1} parent=1 // pred_fallthru
      _
    // Predicated region
    $region46: #{tpu_custom_call.1} parent=1 // pred_check
      _
    $region47: #{tpu_custom_call.1} parent=1 // pred_check_branch
      %52 = sbr.rel (0) target = $region49
    $region48: #{tpu_custom_call.1} parent=1 // pred_region
      _
    $region49: #{tpu_custom_call.1} parent=1 // pred_fallthru
      _
    // Predicated region
    $region50: #{tpu_custom_call.1} parent=1 // pred_check
      _
    $region51: #{tpu_custom_call.1} parent=1 // pred_check_branch
      %54 = sbr.rel (0) target = $region53
    $region52: #{tpu_custom_call.1} parent=1 // pred_region
      _
    $region53: #{tpu_custom_call.1} parent=1 // pred_fallthru
      _
    // Predicated region
    $region54: #{tpu_custom_call.1} parent=1 // pred_check
      _
    $region55: #{tpu_custom_call.1} parent=1 // pred_check_branch
      %56 = sbr.rel (0) target = $region57
    $region56: #{tpu_custom_call.1} parent=1 // pred_region
      _
    $region57: #{tpu_custom_call.1} parent=1 // pred_fallthru
      _
    // Predicated region
    $region58: #{tpu_custom_call.1} parent=1 // pred_check
      _
    $region59: #{tpu_custom_call.1} parent=1 // pred_check_branch
      %58 = sbr.rel (0) target = $region61
    $region60: #{tpu_custom_call.1} parent=1 // pred_region
      _
    $region61: #{tpu_custom_call.1} parent=1 // pred_fallthru
      _
    // Predicated region
    $region62: #{tpu_custom_call.1} parent=1 // pred_check
      _
    $region63: #{tpu_custom_call.1} parent=1 // pred_check_branch
      %60 = sbr.rel (0) target = $region65
    $region64: #{tpu_custom_call.1} parent=1 // pred_region
      _
    $region65: #{tpu_custom_call.1} parent=1 // pred_fallthru
      _
    // Predicated region
    $region66: #{tpu_custom_call.1} parent=1 // pred_check
      _
    $region67: #{tpu_custom_call.1} parent=1 // pred_check_branch
      %62 = sbr.rel (0) target = $region69
    $region68: #{tpu_custom_call.1} parent=1 // pred_region
      _
    $region69: #{tpu_custom_call.1} parent=1 // pred_fallthru
      _
    // Predicated region
    $region70: #{tpu_custom_call.1} parent=1 // pred_check
      _
    $region71: #{tpu_custom_call.1} parent=1 // pred_check_branch
      %64 = sbr.rel (0) target = $region73
    $region72: #{tpu_custom_call.1} parent=1 // pred_region
      _
    $region73: #{tpu_custom_call.1} parent=1 // pred_fallthru
      _
    // Predicated region
    $region74: #{tpu_custom_call.1} parent=1 // pred_check
      _
    $region75: #{tpu_custom_call.1} parent=1 // pred_check_branch
      %66 = sbr.rel (0) target = $region77
    $region76: #{tpu_custom_call.1} parent=1 // pred_region
      _
    $region77: #{tpu_custom_call.1} parent=1 // pred_fallthru
      _
    // Predicated region
    $region78: #{tpu_custom_call.1} parent=1 // pred_check
      _
    $region79: #{tpu_custom_call.1} parent=1 // pred_check_branch
      %68 = sbr.rel (0) target = $region81
    $region80: #{tpu_custom_call.1} parent=1 // pred_region
      _
    $region81: #{tpu_custom_call.1} parent=1 // pred_fallthru
      _
    // Predicated region
    $region82: #{tpu_custom_call.1} parent=1 // pred_check
      _
    $region83: #{tpu_custom_call.1} parent=1 // pred_check_branch
      %70 = sbr.rel (0) target = $region85
    $region84: #{tpu_custom_call.1} parent=1 // pred_region
      _
    $region85: #{tpu_custom_call.1} parent=1 // pred_fallthru
      _
    %v72 = vlaneseq
    %v73 = vshrl.u32 %v72, 7
    %v74 = vadd.s32 %v73, 8
    %v75 = vadd.s32 %v73, 16
    %v76 = vadd.s32 %v73, 24
    %v77 = vadd.s32 %v73, 32
    %v78 = vadd.s32 %v73, 40
    %v79 = vadd.s32 %v73, 48
    %v80 = vadd.s32 %v73, 56
    %v81 = vadd.s32 %v73, 64
    %v82 = vadd.s32 %v73, 72
    %v83 = vadd.s32 %v73, 80
    %v84 = vadd.s32 %v73, 88
    %v85 = vadd.s32 %v73, 96
    %v86 = vadd.s32 %v73, 104
    %v87 = vadd.s32 %v73, 112
    %v88 = vadd.s32 %v73, 120
    %v89 = vadd.s32 %v73, 128
    %v90 = vadd.s32 %v73, 136
    %vm91 = vcmp.lt.s32.totalorder %v73, 0
    %v92 = vsub.s32 0, %v73
    %v93 = vsel %vm91, %v92, %v73
    %v94 = vmul.u32.u64.compose %v93, 3817748708
    %v95 = vextract.low.u32 %v94
    %v96 = vextract.high.u32 %v94
    %v97 = vshrl.u32 %v96, 6
    %v98 = vmul.u32 %v97, 72
    %v99 = vsub.s32 %v93, %v98
    %v100 = vsub.s32 0, %v99
    %v101 = vsel %vm91, %v100, %v99
    %vm102 = vcmp.lt.s32.totalorder %v74, 0
    %v103 = vsub.s32 0, %v74
    %v104 = vsel %vm102, %v103, %v74
    %v105 = vmul.u32.u64.compose %v104, 3817748708
    %v106 = vextract.low.u32 %v105
    %v107 = vextract.high.u32 %v105
    %v108 = vshrl.u32 %v107, 6
    %v109 = vmul.u32 %v108, 72
    %v110 = vsub.s32 %v104, %v109
    %v111 = vsub.s32 0, %v110
    %v112 = vsel %vm102, %v111, %v110
    %vm113 = vcmp.lt.s32.totalorder %v75, 0
    %v114 = vsub.s32 0, %v75
    %v115 = vsel %vm113, %v114, %v75
    %v116 = vmul.u32.u64.compose %v115, 3817748708
    %v117 = vextract.low.u32 %v116
    %v118 = vextract.high.u32 %v116
    %v119 = vshrl.u32 %v118, 6
    %v120 = vmul.u32 %v119, 72
    %v121 = vsub.s32 %v115, %v120
    %v122 = vsub.s32 0, %v121
    %v123 = vsel %vm113, %v122, %v121
    %vm124 = vcmp.lt.s32.totalorder %v76, 0
    %v125 = vsub.s32 0, %v76
    %v126 = vsel %vm124, %v125, %v76
    %v127 = vmul.u32.u64.compose %v126, 3817748708
    %v128 = vextract.low.u32 %v127
    %v129 = vextract.high.u32 %v127
    %v130 = vshrl.u32 %v129, 6
    %v131 = vmul.u32 %v130, 72
    %v132 = vsub.s32 %v126, %v131
    %v133 = vsub.s32 0, %v132
    %v134 = vsel %vm124, %v133, %v132
    %vm135 = vcmp.lt.s32.totalorder %v77, 0
    %v136 = vsub.s32 0, %v77
    %v137 = vsel %vm135, %v136, %v77
    %v138 = vmul.u32.u64.compose %v137, 3817748708
    %v139 = vextract.low.u32 %v138
    %v140 = vextract.high.u32 %v138
    %v141 = vshrl.u32 %v140, 6
    %v142 = vmul.u32 %v141, 72
    %v143 = vsub.s32 %v137, %v142
    %v144 = vsub.s32 0, %v143
    %v145 = vsel %vm135, %v144, %v143
    %vm146 = vcmp.lt.s32.totalorder %v78, 0
    %v147 = vsub.s32 0, %v78
    %v148 = vsel %vm146, %v147, %v78
    %v149 = vmul.u32.u64.compose %v148, 3817748708
    %v150 = vextract.low.u32 %v149
    %v151 = vextract.high.u32 %v149
    %v152 = vshrl.u32 %v151, 6
    %v153 = vmul.u32 %v152, 72
    %v154 = vsub.s32 %v148, %v153
    %v155 = vsub.s32 0, %v154
    %v156 = vsel %vm146, %v155, %v154
    %vm157 = vcmp.lt.s32.totalorder %v79, 0
    %v158 = vsub.s32 0, %v79
    %v159 = vsel %vm157, %v158, %v79
    %v160 = vmul.u32.u64.compose %v159, 3817748708
    %v161 = vextract.low.u32 %v160
    %v162 = vextract.high.u32 %v160
    %v163 = vshrl.u32 %v162, 6
    %v164 = vmul.u32 %v163, 72
    %v165 = vsub.s32 %v159, %v164
    %v166 = vsub.s32 0, %v165
    %v167 = vsel %vm157, %v166, %v165
    %vm168 = vcmp.lt.s32.totalorder %v80, 0
    %v169 = vsub.s32 0, %v80
    %v170 = vsel %vm168, %v169, %v80
    %v171 = vmul.u32.u64.compose %v170, 3817748708
    %v172 = vextract.low.u32 %v171
    %v173 = vextract.high.u32 %v171
    %v174 = vshrl.u32 %v173, 6
    %v175 = vmul.u32 %v174, 72
    %v176 = vsub.s32 %v170, %v175
    %v177 = vsub.s32 0, %v176
    %v178 = vsel %vm168, %v177, %v176
    %vm179 = vcmp.lt.s32.totalorder %v81, 0
    %v180 = vsub.s32 0, %v81
    %v181 = vsel %vm179, %v180, %v81
    %v182 = vmul.u32.u64.compose %v181, 3817748708
    %v183 = vextract.low.u32 %v182
    %v184 = vextract.high.u32 %v182
    %v185 = vshrl.u32 %v184, 6
    %v186 = vmul.u32 %v185, 72
    %v187 = vsub.s32 %v181, %v186
    %v188 = vsub.s32 0, %v187
    %v189 = vsel %vm179, %v188, %v187
    %vm190 = vcmp.lt.s32.totalorder %v82, 0
    %v191 = vsub.s32 0, %v82
    %v192 = vsel %vm190, %v191, %v82
    %v193 = vmul.u32.u64.compose %v192, 3817748708
    %v194 = vextract.low.u32 %v193
    %v195 = vextract.high.u32 %v193
    %v196 = vshrl.u32 %v195, 6
    %v197 = vmul.u32 %v196, 72
    %v198 = vsub.s32 %v192, %v197
    %v199 = vsub.s32 0, %v198
    %v200 = vsel %vm190, %v199, %v198
    %vm201 = vcmp.lt.s32.totalorder %v83, 0
    %v202 = vsub.s32 0, %v83
    %v203 = vsel %vm201, %v202, %v83
    %v204 = vmul.u32.u64.compose %v203, 3817748708
    %v205 = vextract.low.u32 %v204
    %v206 = vextract.high.u32 %v204
    %v207 = vshrl.u32 %v206, 6
    %v208 = vmul.u32 %v207, 72
    %v209 = vsub.s32 %v203, %v208
    %v210 = vsub.s32 0, %v209
    %v211 = vsel %vm201, %v210, %v209
    %vm212 = vcmp.lt.s32.totalorder %v84, 0
    %v213 = vsub.s32 0, %v84
    %v214 = vsel %vm212, %v213, %v84
    %v215 = vmul.u32.u64.compose %v214, 3817748708
    %v216 = vextract.low.u32 %v215
    %v217 = vextract.high.u32 %v215
    %v218 = vshrl.u32 %v217, 6
    %v219 = vmul.u32 %v218, 72
    %v220 = vsub.s32 %v214, %v219
    %v221 = vsub.s32 0, %v220
    %v222 = vsel %vm212, %v221, %v220
    %vm223 = vcmp.lt.s32.totalorder %v85, 0
    %v224 = vsub.s32 0, %v85
    %v225 = vsel %vm223, %v224, %v85
    %v226 = vmul.u32.u64.compose %v225, 3817748708
    %v227 = vextract.low.u32 %v226
    %v228 = vextract.high.u32 %v226
    %v229 = vshrl.u32 %v228, 6
    %v230 = vmul.u32 %v229, 72
    %v231 = vsub.s32 %v225, %v230
    %v232 = vsub.s32 0, %v231
    %v233 = vsel %vm223, %v232, %v231
    %vm234 = vcmp.lt.s32.totalorder %v86, 0
    %v235 = vsub.s32 0, %v86
    %v236 = vsel %vm234, %v235, %v86
    %v237 = vmul.u32.u64.compose %v236, 3817748708
    %v238 = vextract.low.u32 %v237
    %v239 = vextract.high.u32 %v237
    %v240 = vshrl.u32 %v239, 6
    %v241 = vmul.u32 %v240, 72
    %v242 = vsub.s32 %v236, %v241
    %v243 = vsub.s32 0, %v242
    %v244 = vsel %vm234, %v243, %v242
    %vm245 = vcmp.lt.s32.totalorder %v87, 0
    %v246 = vsub.s32 0, %v87
    %v247 = vsel %vm245, %v246, %v87
    %v248 = vmul.u32.u64.compose %v247, 3817748708
    %v249 = vextract.low.u32 %v248
    %v250 = vextract.high.u32 %v248
    %v251 = vshrl.u32 %v250, 6
    %v252 = vmul.u32 %v251, 72
    %v253 = vsub.s32 %v247, %v252
    %v254 = vsub.s32 0, %v253
    %v255 = vsel %vm245, %v254, %v253
    %vm256 = vcmp.lt.s32.totalorder %v88, 0
    %v257 = vsub.s32 0, %v88
    %v258 = vsel %vm256, %v257, %v88
    %v259 = vmul.u32.u64.compose %v258, 3817748708
    %v260 = vextract.low.u32 %v259
    %v261 = vextract.high.u32 %v259
    %v262 = vshrl.u32 %v261, 6
    %v263 = vmul.u32 %v262, 72
    %v264 = vsub.s32 %v258, %v263
    %v265 = vsub.s32 0, %v264
    %v266 = vsel %vm256, %v265, %v264
    %vm267 = vcmp.lt.s32.totalorder %v89, 0
    %v268 = vsub.s32 0, %v89
    %v269 = vsel %vm267, %v268, %v89
    %v270 = vmul.u32.u64.compose %v269, 3817748708
    %v271 = vextract.low.u32 %v270
    %v272 = vextract.high.u32 %v270
    %v273 = vshrl.u32 %v272, 6
    %v274 = vmul.u32 %v273, 72
    %v275 = vsub.s32 %v269, %v274
    %v276 = vsub.s32 0, %v275
    %v277 = vsel %vm267, %v276, %v275
    %vm278 = vcmp.lt.s32.totalorder %v90, 0
    %v279 = vsub.s32 0, %v90
    %v280 = vsel %vm278, %v279, %v90
    %v281 = vmul.u32.u64.compose %v280, 3817748708
    %v282 = vextract.low.u32 %v281
    %v283 = vextract.high.u32 %v281
    %v284 = vshrl.u32 %v283, 6
    %v285 = vmul.u32 %v284, 72
    %v286 = vsub.s32 %v280, %v285
    %v287 = vsub.s32 0, %v286
    %v288 = vsel %vm278, %v287, %v286
    %vm289 = vcmp.ne.s32.totalorder %v101, 0
    %vm290 = vcmp.ne.s32.totalorder %v112, 0
    %vm291 = vcmp.ne.s32.totalorder %v123, 0
    %vm292 = vcmp.ne.s32.totalorder %v134, 0
    %vm293 = vcmp.ne.s32.totalorder %v145, 0
    %vm294 = vcmp.ne.s32.totalorder %v156, 0
    %vm295 = vcmp.ne.s32.totalorder %v167, 0
    %vm296 = vcmp.ne.s32.totalorder %v178, 0
    %vm297 = vcmp.ne.s32.totalorder %v189, 0
    %vm298 = vcmp.ne.s32.totalorder %v200, 0
    %vm299 = vcmp.ne.s32.totalorder %v211, 0
    %vm300 = vcmp.ne.s32.totalorder %v222, 0
    %vm301 = vcmp.ne.s32.totalorder %v233, 0
    %vm302 = vcmp.ne.s32.totalorder %v244, 0
    %vm303 = vcmp.ne.s32.totalorder %v255, 0
    %vm304 = vcmp.ne.s32.totalorder %v266, 0
    %vm305 = vcmp.ne.s32.totalorder %v277, 0
    %vm306 = vcmp.ne.s32.totalorder %v288, 0
    %vm307 = vcmp.lt.s32.totalorder %v101, 0
    %vm308 = vcmp.lt.s32.totalorder %v112, 0
    %vm309 = vcmp.lt.s32.totalorder %v123, 0
    %vm310 = vcmp.lt.s32.totalorder %v134, 0
    %vm311 = vcmp.lt.s32.totalorder %v145, 0
    %vm312 = vcmp.lt.s32.totalorder %v156, 0
    %vm313 = vcmp.lt.s32.totalorder %v167, 0
    %vm314 = vcmp.lt.s32.totalorder %v178, 0
    %vm315 = vcmp.lt.s32.totalorder %v189, 0
    %vm316 = vcmp.lt.s32.totalorder %v200, 0
    %vm317 = vcmp.lt.s32.totalorder %v211, 0
    %vm318 = vcmp.lt.s32.totalorder %v222, 0
    %vm319 = vcmp.lt.s32.totalorder %v233, 0
    %vm320 = vcmp.lt.s32.totalorder %v244, 0
    %vm321 = vcmp.lt.s32.totalorder %v255, 0
    %vm322 = vcmp.lt.s32.totalorder %v266, 0
    %vm323 = vcmp.lt.s32.totalorder %v277, 0
    %vm324 = vcmp.lt.s32.totalorder %v288, 0
    %vm325 = vmand %vm307, %vm289
    %vm326 = vmand %vm308, %vm290
    %vm327 = vmand %vm309, %vm291
    %vm328 = vmand %vm310, %vm292
    %vm329 = vmand %vm311, %vm293
    %vm330 = vmand %vm312, %vm294
    %vm331 = vmand %vm313, %vm295
    %vm332 = vmand %vm314, %vm296
    %vm333 = vmand %vm315, %vm297
    %vm334 = vmand %vm316, %vm298
    %vm335 = vmand %vm317, %vm299
    %vm336 = vmand %vm318, %vm300
    %vm337 = vmand %vm319, %vm301
    %vm338 = vmand %vm320, %vm302
    %vm339 = vmand %vm321, %vm303
    %vm340 = vmand %vm322, %vm304
    %vm341 = vmand %vm323, %vm305
    %vm342 = vmand %vm324, %vm306
    %v343 = vadd.s32 %v101, 72
    %v344 = vadd.s32 %v112, 72
    %v345 = vadd.s32 %v123, 72
    %v346 = vadd.s32 %v134, 72
    %v347 = vadd.s32 %v145, 72
    %v348 = vadd.s32 %v156, 72
    %v349 = vadd.s32 %v167, 72
    %v350 = vadd.s32 %v178, 72
    %v351 = vadd.s32 %v189, 72
    %v352 = vadd.s32 %v200, 72
    %v353 = vadd.s32 %v211, 72
    %v354 = vadd.s32 %v222, 72
    %v355 = vadd.s32 %v233, 72
    %v356 = vadd.s32 %v244, 72
    %v357 = vadd.s32 %v255, 72
    %v358 = vadd.s32 %v266, 72
    %v359 = vadd.s32 %v277, 72
    %v360 = vadd.s32 %v288, 72
    %v361 = vsel %vm325, %v343, %v101
    %v362 = vsel %vm326, %v344, %v112
    %v363 = vsel %vm327, %v345, %v123
    %v364 = vsel %vm328, %v346, %v134
    %v365 = vsel %vm329, %v347, %v145
    %v366 = vsel %vm330, %v348, %v156
    %v367 = vsel %vm331, %v349, %v167
    %v368 = vsel %vm332, %v350, %v178
    %v369 = vsel %vm333, %v351, %v189
    %v370 = vsel %vm334, %v352, %v200
    %v371 = vsel %vm335, %v353, %v211
    %v372 = vsel %vm336, %v354, %v222
    %v373 = vsel %vm337, %v355, %v233
    %v374 = vsel %vm338, %v356, %v244
    %v375 = vsel %vm339, %v357, %v255
    %v376 = vsel %vm340, %v358, %v266
    %v377 = vsel %vm341, %v359, %v277
    %v378 = vsel %vm342, %v360, %v288
    %v379 = vadd.s32 %v361, 4294967294
    %v380 = vadd.s32 %v362, 4294967294
    %v381 = vadd.s32 %v363, 4294967294
    %v382 = vadd.s32 %v364, 4294967294
    %v383 = vadd.s32 %v365, 4294967294
    %v384 = vadd.s32 %v366, 4294967294
    %v385 = vadd.s32 %v367, 4294967294
    %v386 = vadd.s32 %v368, 4294967294
    %v387 = vadd.s32 %v369, 4294967294
    %v388 = vadd.s32 %v370, 4294967294
    %v389 = vadd.s32 %v371, 4294967294
    %v390 = vadd.s32 %v372, 4294967294
    %v391 = vadd.s32 %v373, 4294967294
    %v392 = vadd.s32 %v374, 4294967294
    %v393 = vadd.s32 %v375, 4294967294
    %v394 = vadd.s32 %v376, 4294967294
    %v395 = vadd.s32 %v377, 4294967294
    %v396 = vadd.s32 %v378, 4294967294
    %vm397 = vcmp.ge.s32.totalorder %v379, 0
    %vm398 = vcmp.ge.s32.totalorder %v380, 0
    %vm399 = vcmp.ge.s32.totalorder %v381, 0
    %vm400 = vcmp.ge.s32.totalorder %v382, 0
    %vm401 = vcmp.ge.s32.totalorder %v383, 0
    %vm402 = vcmp.ge.s32.totalorder %v384, 0
    %vm403 = vcmp.ge.s32.totalorder %v385, 0
    %vm404 = vcmp.ge.s32.totalorder %v386, 0
    %vm405 = vcmp.ge.s32.totalorder %v387, 0
    %vm406 = vcmp.ge.s32.totalorder %v388, 0
    %vm407 = vcmp.ge.s32.totalorder %v389, 0
    %vm408 = vcmp.ge.s32.totalorder %v390, 0
    %vm409 = vcmp.ge.s32.totalorder %v391, 0
    %vm410 = vcmp.ge.s32.totalorder %v392, 0
    %vm411 = vcmp.ge.s32.totalorder %v393, 0
    %vm412 = vcmp.ge.s32.totalorder %v394, 0
    %vm413 = vcmp.ge.s32.totalorder %v395, 0
    %vm414 = vcmp.ge.s32.totalorder %v396, 0
    %vm415 = vcmp.lt.s32.totalorder %v379, 72
    %vm416 = vcmp.lt.s32.totalorder %v380, 72
    %vm417 = vcmp.lt.s32.totalorder %v381, 72
    %vm418 = vcmp.lt.s32.totalorder %v382, 72
    %vm419 = vcmp.lt.s32.totalorder %v383, 72
    %vm420 = vcmp.lt.s32.totalorder %v384, 72
    %vm421 = vcmp.lt.s32.totalorder %v385, 72
    %vm422 = vcmp.lt.s32.totalorder %v386, 72
    %vm423 = vcmp.lt.s32.totalorder %v387, 72
    %vm424 = vcmp.lt.s32.totalorder %v388, 72
    %vm425 = vcmp.lt.s32.totalorder %v389, 72
    %vm426 = vcmp.lt.s32.totalorder %v390, 72
    %vm427 = vcmp.lt.s32.totalorder %v391, 72
    %vm428 = vcmp.lt.s32.totalorder %v392, 72
    %vm429 = vcmp.lt.s32.totalorder %v393, 72
    %vm430 = vcmp.lt.s32.totalorder %v394, 72
    %vm431 = vcmp.lt.s32.totalorder %v395, 72
    %vm432 = vcmp.lt.s32.totalorder %v396, 72
    %vm433 = vmand %vm397, %vm415
    %vm434 = vmand %vm398, %vm416
    %vm435 = vmand %vm399, %vm417
    %vm436 = vmand %vm400, %vm418
    %vm437 = vmand %vm401, %vm419
    %vm438 = vmand %vm402, %vm420
    %vm439 = vmand %vm403, %vm421
    %vm440 = vmand %vm404, %vm422
    %vm441 = vmand %vm405, %vm423
    %vm442 = vmand %vm406, %vm424
    %vm443 = vmand %vm407, %vm425
    %vm444 = vmand %vm408, %vm426
    %vm445 = vmand %vm409, %vm427
    %vm446 = vmand %vm410, %vm428
    %vm447 = vmand %vm411, %vm429
    %vm448 = vmand %vm412, %vm430
    %vm449 = vmand %vm413, %vm431
    %vm450 = vmand %vm414, %vm432
    %v451 = vsel %vm433, 1, 0
    %v452 = vsel %vm434, 1, 0
    %v453 = vsel %vm435, 1, 0
    %v454 = vsel %vm436, 1, 0
    %v455 = vsel %vm437, 1, 0
    %v456 = vsel %vm438, 1, 0
    %v457 = vsel %vm439, 1, 0
    %v458 = vsel %vm440, 1, 0
    %v459 = vsel %vm441, 1, 0
    %v460 = vsel %vm442, 1, 0
    %v461 = vsel %vm443, 1, 0
    %v462 = vsel %vm444, 1, 0
    %v463 = vsel %vm445, 1, 0
    %v464 = vsel %vm446, 1, 0
    %v465 = vsel %vm447, 1, 0
    %v466 = vsel %vm448, 1, 0
    %v467 = vsel %vm449, 1, 0
    %v468 = vsel %vm450, 1, 0
    %v469 = vcvt.s32.f32 %v451
    %v470 = vcvt.s32.f32 %v452
    %v471 = vcvt.s32.f32 %v453
    %v472 = vcvt.s32.f32 %v454
    %v473 = vcvt.s32.f32 %v455
    %v474 = vcvt.s32.f32 %v456
    %v475 = vcvt.s32.f32 %v457
    %v476 = vcvt.s32.f32 %v458
    %v477 = vcvt.s32.f32 %v459
    %v478 = vcvt.s32.f32 %v460
    %v479 = vcvt.s32.f32 %v461
    %v480 = vcvt.s32.f32 %v462
    %v481 = vcvt.s32.f32 %v463
    %v482 = vcvt.s32.f32 %v464
    %v483 = vcvt.s32.f32 %v465
    %v484 = vcvt.s32.f32 %v466
    %v485 = vcvt.s32.f32 %v467
    %v486 = vcvt.s32.f32 %v468
    %v487 = vadd.s32 %v361, 4294967295
    %v488 = vadd.s32 %v362, 4294967295
    %v489 = vadd.s32 %v363, 4294967295
    %v490 = vadd.s32 %v364, 4294967295
    %v491 = vadd.s32 %v365, 4294967295
    %v492 = vadd.s32 %v366, 4294967295
    %v493 = vadd.s32 %v367, 4294967295
    %v494 = vadd.s32 %v368, 4294967295
    %v495 = vadd.s32 %v369, 4294967295
    %v496 = vadd.s32 %v370, 4294967295
    %v497 = vadd.s32 %v371, 4294967295
    %v498 = vadd.s32 %v372, 4294967295
    %v499 = vadd.s32 %v373, 4294967295
    %v500 = vadd.s32 %v374, 4294967295
    %v501 = vadd.s32 %v375, 4294967295
    %v502 = vadd.s32 %v376, 4294967295
    %v503 = vadd.s32 %v377, 4294967295
    %v504 = vadd.s32 %v378, 4294967295
    %vm505 = vcmp.ge.s32.totalorder %v487, 0
    %vm506 = vcmp.ge.s32.totalorder %v488, 0
    %vm507 = vcmp.ge.s32.totalorder %v489, 0
    %vm508 = vcmp.ge.s32.totalorder %v490, 0
    %vm509 = vcmp.ge.s32.totalorder %v491, 0
    %vm510 = vcmp.ge.s32.totalorder %v492, 0
    %vm511 = vcmp.ge.s32.totalorder %v493, 0
    %vm512 = vcmp.ge.s32.totalorder %v494, 0
    %vm513 = vcmp.ge.s32.totalorder %v495, 0
    %vm514 = vcmp.ge.s32.totalorder %v496, 0
    %vm515 = vcmp.ge.s32.totalorder %v497, 0
    %vm516 = vcmp.ge.s32.totalorder %v498, 0
    %vm517 = vcmp.ge.s32.totalorder %v499, 0
    %vm518 = vcmp.ge.s32.totalorder %v500, 0
    %vm519 = vcmp.ge.s32.totalorder %v501, 0
    %vm520 = vcmp.ge.s32.totalorder %v502, 0
    %vm521 = vcmp.ge.s32.totalorder %v503, 0
    %vm522 = vcmp.ge.s32.totalorder %v504, 0
    %vm523 = vcmp.lt.s32.totalorder %v487, 72
    %vm524 = vcmp.lt.s32.totalorder %v488, 72
    %vm525 = vcmp.lt.s32.totalorder %v489, 72
    %vm526 = vcmp.lt.s32.totalorder %v490, 72
    %vm527 = vcmp.lt.s32.totalorder %v491, 72
    %vm528 = vcmp.lt.s32.totalorder %v492, 72
    %vm529 = vcmp.lt.s32.totalorder %v493, 72
    %vm530 = vcmp.lt.s32.totalorder %v494, 72
    %vm531 = vcmp.lt.s32.totalorder %v495, 72
    %vm532 = vcmp.lt.s32.totalorder %v496, 72
    %vm533 = vcmp.lt.s32.totalorder %v497, 72
    %vm534 = vcmp.lt.s32.totalorder %v498, 72
    %vm535 = vcmp.lt.s32.totalorder %v499, 72
    %vm536 = vcmp.lt.s32.totalorder %v500, 72
    %vm537 = vcmp.lt.s32.totalorder %v501, 72
    %vm538 = vcmp.lt.s32.totalorder %v502, 72
    %vm539 = vcmp.lt.s32.totalorder %v503, 72
    %vm540 = vcmp.lt.s32.totalorder %v504, 72
    %vm541 = vmand %vm505, %vm523
    %vm542 = vmand %vm506, %vm524
    %vm543 = vmand %vm507, %vm525
    %vm544 = vmand %vm508, %vm526
    %vm545 = vmand %vm509, %vm527
    %vm546 = vmand %vm510, %vm528
    %vm547 = vmand %vm511, %vm529
    %vm548 = vmand %vm512, %vm530
    %vm549 = vmand %vm513, %vm531
    %vm550 = vmand %vm514, %vm532
    %vm551 = vmand %vm515, %vm533
    %vm552 = vmand %vm516, %vm534
    %vm553 = vmand %vm517, %vm535
    %vm554 = vmand %vm518, %vm536
    %vm555 = vmand %vm519, %vm537
    %vm556 = vmand %vm520, %vm538
    %vm557 = vmand %vm521, %vm539
    %vm558 = vmand %vm522, %vm540
    %v559 = vsel %vm541, 1, 0
    %v560 = vsel %vm542, 1, 0
    %v561 = vsel %vm543, 1, 0
    %v562 = vsel %vm544, 1, 0
    %v563 = vsel %vm545, 1, 0
    %v564 = vsel %vm546, 1, 0
    %v565 = vsel %vm547, 1, 0
    %v566 = vsel %vm548, 1, 0
    %v567 = vsel %vm549, 1, 0
    %v568 = vsel %vm550, 1, 0
    %v569 = vsel %vm551, 1, 0
    %v570 = vsel %vm552, 1, 0
    %v571 = vsel %vm553, 1, 0
    %v572 = vsel %vm554, 1, 0
    %v573 = vsel %vm555, 1, 0
    %v574 = vsel %vm556, 1, 0
    %v575 = vsel %vm557, 1, 0
    %v576 = vsel %vm558, 1, 0
    %v577 = vcvt.s32.f32 %v559
    %v578 = vcvt.s32.f32 %v560
    %v579 = vcvt.s32.f32 %v561
    %v580 = vcvt.s32.f32 %v562
    %v581 = vcvt.s32.f32 %v563
    %v582 = vcvt.s32.f32 %v564
    %v583 = vcvt.s32.f32 %v565
    %v584 = vcvt.s32.f32 %v566
    %v585 = vcvt.s32.f32 %v567
    %v586 = vcvt.s32.f32 %v568
    %v587 = vcvt.s32.f32 %v569
    %v588 = vcvt.s32.f32 %v570
    %v589 = vcvt.s32.f32 %v571
    %v590 = vcvt.s32.f32 %v572
    %v591 = vcvt.s32.f32 %v573
    %v592 = vcvt.s32.f32 %v574
    %v593 = vcvt.s32.f32 %v575
    %v594 = vcvt.s32.f32 %v576
    %vm595 = vcmp.ge.s32.totalorder %v361, 0
    %vm596 = vcmp.ge.s32.totalorder %v362, 0
    %vm597 = vcmp.ge.s32.totalorder %v363, 0
    %vm598 = vcmp.ge.s32.totalorder %v364, 0
    %vm599 = vcmp.ge.s32.totalorder %v365, 0
    %vm600 = vcmp.ge.s32.totalorder %v366, 0
    %vm601 = vcmp.ge.s32.totalorder %v367, 0
    %vm602 = vcmp.ge.s32.totalorder %v368, 0
    %vm603 = vcmp.ge.s32.totalorder %v369, 0
    %vm604 = vcmp.ge.s32.totalorder %v370, 0
    %vm605 = vcmp.ge.s32.totalorder %v371, 0
    %vm606 = vcmp.ge.s32.totalorder %v372, 0
    %vm607 = vcmp.ge.s32.totalorder %v373, 0
    %vm608 = vcmp.ge.s32.totalorder %v374, 0
    %vm609 = vcmp.ge.s32.totalorder %v375, 0
    %vm610 = vcmp.ge.s32.totalorder %v376, 0
    %vm611 = vcmp.ge.s32.totalorder %v377, 0
    %vm612 = vcmp.ge.s32.totalorder %v378, 0
    %vm613 = vcmp.lt.s32.totalorder %v361, 72
    %vm614 = vcmp.lt.s32.totalorder %v362, 72
    %vm615 = vcmp.lt.s32.totalorder %v363, 72
    %vm616 = vcmp.lt.s32.totalorder %v364, 72
    %vm617 = vcmp.lt.s32.totalorder %v365, 72
    %vm618 = vcmp.lt.s32.totalorder %v366, 72
    %vm619 = vcmp.lt.s32.totalorder %v367, 72
    %vm620 = vcmp.lt.s32.totalorder %v368, 72
    %vm621 = vcmp.lt.s32.totalorder %v369, 72
    %vm622 = vcmp.lt.s32.totalorder %v370, 72
    %vm623 = vcmp.lt.s32.totalorder %v371, 72
    %vm624 = vcmp.lt.s32.totalorder %v372, 72
    %vm625 = vcmp.lt.s32.totalorder %v373, 72
    %vm626 = vcmp.lt.s32.totalorder %v374, 72
    %vm627 = vcmp.lt.s32.totalorder %v375, 72
    %vm628 = vcmp.lt.s32.totalorder %v376, 72
    %vm629 = vcmp.lt.s32.totalorder %v377, 72
    %vm630 = vcmp.lt.s32.totalorder %v378, 72
    %vm631 = vmand %vm595, %vm613
    %vm632 = vmand %vm596, %vm614
    %vm633 = vmand %vm597, %vm615
    %vm634 = vmand %vm598, %vm616
    %vm635 = vmand %vm599, %vm617
    %vm636 = vmand %vm600, %vm618
    %vm637 = vmand %vm601, %vm619
    %vm638 = vmand %vm602, %vm620
    %vm639 = vmand %vm603, %vm621
    %vm640 = vmand %vm604, %vm622
    %vm641 = vmand %vm605, %vm623
    %vm642 = vmand %vm606, %vm624
    %vm643 = vmand %vm607, %vm625
    %vm644 = vmand %vm608, %vm626
    %vm645 = vmand %vm609, %vm627
    %vm646 = vmand %vm610, %vm628
    %vm647 = vmand %vm611, %vm629
    %vm648 = vmand %vm612, %vm630
    %v649 = vsel %vm631, 1, 0
    %v650 = vsel %vm632, 1, 0
    %v651 = vsel %vm633, 1, 0
    %v652 = vsel %vm634, 1, 0
    %v653 = vsel %vm635, 1, 0
    %v654 = vsel %vm636, 1, 0
    %v655 = vsel %vm637, 1, 0
    %v656 = vsel %vm638, 1, 0
    %v657 = vsel %vm639, 1, 0
    %v658 = vsel %vm640, 1, 0
    %v659 = vsel %vm641, 1, 0
    %v660 = vsel %vm642, 1, 0
    %v661 = vsel %vm643, 1, 0
    %v662 = vsel %vm644, 1, 0
    %v663 = vsel %vm645, 1, 0
    %v664 = vsel %vm646, 1, 0
    %v665 = vsel %vm647, 1, 0
    %v666 = vsel %vm648, 1, 0
    %v667 = vcvt.s32.f32 %v649
    %v668 = vcvt.s32.f32 %v650
    %v669 = vcvt.s32.f32 %v651
    %v670 = vcvt.s32.f32 %v652
    %v671 = vcvt.s32.f32 %v653
    %v672 = vcvt.s32.f32 %v654
    %v673 = vcvt.s32.f32 %v655
    %v674 = vcvt.s32.f32 %v656
    %v675 = vcvt.s32.f32 %v657
    %v676 = vcvt.s32.f32 %v658
    %v677 = vcvt.s32.f32 %v659
    %v678 = vcvt.s32.f32 %v660
    %v679 = vcvt.s32.f32 %v661
    %v680 = vcvt.s32.f32 %v662
    %v681 = vcvt.s32.f32 %v663
    %v682 = vcvt.s32.f32 %v664
    %v683 = vcvt.s32.f32 %v665
    %v684 = vcvt.s32.f32 %v666
    %v685 = vadd.s32 %v361, 1
    %v686 = vadd.s32 %v362, 1
    %v687 = vadd.s32 %v363, 1
    %v688 = vadd.s32 %v364, 1
    %v689 = vadd.s32 %v365, 1
    %v690 = vadd.s32 %v366, 1
    %v691 = vadd.s32 %v367, 1
    %v692 = vadd.s32 %v368, 1
    %v693 = vadd.s32 %v369, 1
    %v694 = vadd.s32 %v370, 1
    %v695 = vadd.s32 %v371, 1
    %v696 = vadd.s32 %v372, 1
    %v697 = vadd.s32 %v373, 1
    %v698 = vadd.s32 %v374, 1
    %v699 = vadd.s32 %v375, 1
    %v700 = vadd.s32 %v376, 1
    %v701 = vadd.s32 %v377, 1
    %v702 = vadd.s32 %v378, 1
    %vm703 = vcmp.ge.s32.totalorder %v685, 0
    %vm704 = vcmp.ge.s32.totalorder %v686, 0
    %vm705 = vcmp.ge.s32.totalorder %v687, 0
    %vm706 = vcmp.ge.s32.totalorder %v688, 0
    %vm707 = vcmp.ge.s32.totalorder %v689, 0
    %vm708 = vcmp.ge.s32.totalorder %v690, 0
    %vm709 = vcmp.ge.s32.totalorder %v691, 0
    %vm710 = vcmp.ge.s32.totalorder %v692, 0
    %vm711 = vcmp.ge.s32.totalorder %v693, 0
    %vm712 = vcmp.ge.s32.totalorder %v694, 0
    %vm713 = vcmp.ge.s32.totalorder %v695, 0
    %vm714 = vcmp.ge.s32.totalorder %v696, 0
    %vm715 = vcmp.ge.s32.totalorder %v697, 0
    %vm716 = vcmp.ge.s32.totalorder %v698, 0
    %vm717 = vcmp.ge.s32.totalorder %v699, 0
    %vm718 = vcmp.ge.s32.totalorder %v700, 0
    %vm719 = vcmp.ge.s32.totalorder %v701, 0
    %vm720 = vcmp.ge.s32.totalorder %v702, 0
    %vm721 = vcmp.lt.s32.totalorder %v685, 72
    %vm722 = vcmp.lt.s32.totalorder %v686, 72
    %vm723 = vcmp.lt.s32.totalorder %v687, 72
    %vm724 = vcmp.lt.s32.totalorder %v688, 72
    %vm725 = vcmp.lt.s32.totalorder %v689, 72
    %vm726 = vcmp.lt.s32.totalorder %v690, 72
    %vm727 = vcmp.lt.s32.totalorder %v691, 72
    %vm728 = vcmp.lt.s32.totalorder %v692, 72
    %vm729 = vcmp.lt.s32.totalorder %v693, 72
    %vm730 = vcmp.lt.s32.totalorder %v694, 72
    %vm731 = vcmp.lt.s32.totalorder %v695, 72
    %vm732 = vcmp.lt.s32.totalorder %v696, 72
    %vm733 = vcmp.lt.s32.totalorder %v697, 72
    %vm734 = vcmp.lt.s32.totalorder %v698, 72
    %vm735 = vcmp.lt.s32.totalorder %v699, 72
    %vm736 = vcmp.lt.s32.totalorder %v700, 72
    %vm737 = vcmp.lt.s32.totalorder %v701, 72
    %vm738 = vcmp.lt.s32.totalorder %v702, 72
    %vm739 = vmand %vm703, %vm721
    %vm740 = vmand %vm704, %vm722
    %vm741 = vmand %vm705, %vm723
    %vm742 = vmand %vm706, %vm724
    %vm743 = vmand %vm707, %vm725
    %vm744 = vmand %vm708, %vm726
    %vm745 = vmand %vm709, %vm727
    %vm746 = vmand %vm710, %vm728
    %vm747 = vmand %vm711, %vm729
    %vm748 = vmand %vm712, %vm730
    %vm749 = vmand %vm713, %vm731
    %vm750 = vmand %vm714, %vm732
    %vm751 = vmand %vm715, %vm733
    %vm752 = vmand %vm716, %vm734
    %vm753 = vmand %vm717, %vm735
    %vm754 = vmand %vm718, %vm736
    %vm755 = vmand %vm719, %vm737
    %vm756 = vmand %vm720, %vm738
    %v757 = vsel %vm739, 1, 0
    %v758 = vsel %vm740, 1, 0
    %v759 = vsel %vm741, 1, 0
    %v760 = vsel %vm742, 1, 0
    %v761 = vsel %vm743, 1, 0
    %v762 = vsel %vm744, 1, 0
    %v763 = vsel %vm745, 1, 0
    %v764 = vsel %vm746, 1, 0
    %v765 = vsel %vm747, 1, 0
    %v766 = vsel %vm748, 1, 0
    %v767 = vsel %vm749, 1, 0
    %v768 = vsel %vm750, 1, 0
    %v769 = vsel %vm751, 1, 0
    %v770 = vsel %vm752, 1, 0
    %v771 = vsel %vm753, 1, 0
    %v772 = vsel %vm754, 1, 0
    %v773 = vsel %vm755, 1, 0
    %v774 = vsel %vm756, 1, 0
    %v775 = vcvt.s32.f32 %v757
    %v776 = vcvt.s32.f32 %v758
    %v777 = vcvt.s32.f32 %v759
    %v778 = vcvt.s32.f32 %v760
    %v779 = vcvt.s32.f32 %v761
    %v780 = vcvt.s32.f32 %v762
    %v781 = vcvt.s32.f32 %v763
    %v782 = vcvt.s32.f32 %v764
    %v783 = vcvt.s32.f32 %v765
    %v784 = vcvt.s32.f32 %v766
    %v785 = vcvt.s32.f32 %v767
    %v786 = vcvt.s32.f32 %v768
    %v787 = vcvt.s32.f32 %v769
    %v788 = vcvt.s32.f32 %v770
    %v789 = vcvt.s32.f32 %v771
    %v790 = vcvt.s32.f32 %v772
    %v791 = vcvt.s32.f32 %v773
    %v792 = vcvt.s32.f32 %v774
    %v793 = vadd.s32 %v361, 2
    %v794 = vadd.s32 %v362, 2
    %v795 = vadd.s32 %v363, 2
    %v796 = vadd.s32 %v364, 2
    %v797 = vadd.s32 %v365, 2
    %v798 = vadd.s32 %v366, 2
    %v799 = vadd.s32 %v367, 2
    %v800 = vadd.s32 %v368, 2
    %v801 = vadd.s32 %v369, 2
    %v802 = vadd.s32 %v370, 2
    %v803 = vadd.s32 %v371, 2
    %v804 = vadd.s32 %v372, 2
    %v805 = vadd.s32 %v373, 2
    %v806 = vadd.s32 %v374, 2
    %v807 = vadd.s32 %v375, 2
    %v808 = vadd.s32 %v376, 2
    %v809 = vadd.s32 %v377, 2
    %v810 = vadd.s32 %v378, 2
    %vm811 = vcmp.ge.s32.totalorder %v793, 0
    %vm812 = vcmp.ge.s32.totalorder %v794, 0
    %vm813 = vcmp.ge.s32.totalorder %v795, 0
    %vm814 = vcmp.ge.s32.totalorder %v796, 0
    %vm815 = vcmp.ge.s32.totalorder %v797, 0
    %vm816 = vcmp.ge.s32.totalorder %v798, 0
    %vm817 = vcmp.ge.s32.totalorder %v799, 0
    %vm818 = vcmp.ge.s32.totalorder %v800, 0
    %vm819 = vcmp.ge.s32.totalorder %v801, 0
    %vm820 = vcmp.ge.s32.totalorder %v802, 0
    %vm821 = vcmp.ge.s32.totalorder %v803, 0
    %vm822 = vcmp.ge.s32.totalorder %v804, 0
    %vm823 = vcmp.ge.s32.totalorder %v805, 0
    %vm824 = vcmp.ge.s32.totalorder %v806, 0
    %vm825 = vcmp.ge.s32.totalorder %v807, 0
    %vm826 = vcmp.ge.s32.totalorder %v808, 0
    %vm827 = vcmp.ge.s32.totalorder %v809, 0
    %vm828 = vcmp.ge.s32.totalorder %v810, 0
    %vm829 = vcmp.lt.s32.totalorder %v793, 72
    %vm830 = vcmp.lt.s32.totalorder %v794, 72
    %vm831 = vcmp.lt.s32.totalorder %v795, 72
    %vm832 = vcmp.lt.s32.totalorder %v796, 72
    %vm833 = vcmp.lt.s32.totalorder %v797, 72
    %vm834 = vcmp.lt.s32.totalorder %v798, 72
    %vm835 = vcmp.lt.s32.totalorder %v799, 72
    %vm836 = vcmp.lt.s32.totalorder %v800, 72
    %vm837 = vcmp.lt.s32.totalorder %v801, 72
    %vm838 = vcmp.lt.s32.totalorder %v802, 72
    %vm839 = vcmp.lt.s32.totalorder %v803, 72
    %vm840 = vcmp.lt.s32.totalorder %v804, 72
    %vm841 = vcmp.lt.s32.totalorder %v805, 72
    %vm842 = vcmp.lt.s32.totalorder %v806, 72
    %vm843 = vcmp.lt.s32.totalorder %v807, 72
    %vm844 = vcmp.lt.s32.totalorder %v808, 72
    %vm845 = vcmp.lt.s32.totalorder %v809, 72
    %vm846 = vcmp.lt.s32.totalorder %v810, 72
    %vm847 = vmand %vm811, %vm829
    %vm848 = vmand %vm812, %vm830
    %vm849 = vmand %vm813, %vm831
    %vm850 = vmand %vm814, %vm832
    %vm851 = vmand %vm815, %vm833
    %vm852 = vmand %vm816, %vm834
    %vm853 = vmand %vm817, %vm835
    %vm854 = vmand %vm818, %vm836
    %vm855 = vmand %vm819, %vm837
    %vm856 = vmand %vm820, %vm838
    %vm857 = vmand %vm821, %vm839
    %vm858 = vmand %vm822, %vm840
    %vm859 = vmand %vm823, %vm841
    %vm860 = vmand %vm824, %vm842
    %vm861 = vmand %vm825, %vm843
    %vm862 = vmand %vm826, %vm844
    %vm863 = vmand %vm827, %vm845
    %vm864 = vmand %vm828, %vm846
    %v865 = vsel %vm847, 1, 0
    %v866 = vsel %vm848, 1, 0
    %v867 = vsel %vm849, 1, 0
    %v868 = vsel %vm850, 1, 0
    %v869 = vsel %vm851, 1, 0
    %v870 = vsel %vm852, 1, 0
    %v871 = vsel %vm853, 1, 0
    %v872 = vsel %vm854, 1, 0
    %v873 = vsel %vm855, 1, 0
    %v874 = vsel %vm856, 1, 0
    %v875 = vsel %vm857, 1, 0
    %v876 = vsel %vm858, 1, 0
    %v877 = vsel %vm859, 1, 0
    %v878 = vsel %vm860, 1, 0
    %v879 = vsel %vm861, 1, 0
    %v880 = vsel %vm862, 1, 0
    %v881 = vsel %vm863, 1, 0
    %v882 = vsel %vm864, 1, 0
    %v883 = vcvt.s32.f32 %v865
    %v884 = vcvt.s32.f32 %v866
    %v885 = vcvt.s32.f32 %v867
    %v886 = vcvt.s32.f32 %v868
    %v887 = vcvt.s32.f32 %v869
    %v888 = vcvt.s32.f32 %v870
    %v889 = vcvt.s32.f32 %v871
    %v890 = vcvt.s32.f32 %v872
    %v891 = vcvt.s32.f32 %v873
    %v892 = vcvt.s32.f32 %v874
    %v893 = vcvt.s32.f32 %v875
    %v894 = vcvt.s32.f32 %v876
    %v895 = vcvt.s32.f32 %v877
    %v896 = vcvt.s32.f32 %v878
    %v897 = vcvt.s32.f32 %v879
    %v898 = vcvt.s32.f32 %v880
    %v899 = vcvt.s32.f32 %v881
    %v900 = vcvt.s32.f32 %v882
    %v901 = vld [vmem:[%s0] sm:$0xff]
    %v902 = vld [vmem:[%s0 + $0x8] sm:$0xff]
    %v903 = vld [vmem:[%s0 + $0x10] sm:$0xff]
    %v904 = vld [vmem:[%s0 + $0x18] sm:$0xff]
    %v905 = vld [vmem:[%s0 + $0x20] sm:$0xff]
    %v906 = vld [vmem:[%s0 + $0x28] sm:$0xff]
    %v907 = vld [vmem:[%s0 + $0x30] sm:$0xff]
    %v908 = vld [vmem:[%s0 + $0x38] sm:$0xff]
    %v909 = vld [vmem:[%s0 + $0x40] sm:$0xff]
    %v910 = vld [vmem:[%s0 + $0x48] sm:$0xff]
    %v911 = vld [vmem:[%s0 + $0x50] sm:$0xff]
    %v912 = vld [vmem:[%s0 + $0x58] sm:$0xff]
    %v913 = vld [vmem:[%s0 + $0x60] sm:$0xff]
    %v914 = vld [vmem:[%s0 + $0x68] sm:$0xff]
    %v915 = vld [vmem:[%s0 + $0x70] sm:$0xff]
    %v916 = vld [vmem:[%s0 + $0x78] sm:$0xff]
    %v917 = vld [vmem:[%s0 + $0x80] sm:$0xff]
    %v918 = vld [vmem:[%s0 + $0x88] sm:$0xff]
    %v919 = vld [vmem:[%s1] sm:$0x1f]
    %v920 = vrot.slane %v901, 6
    %v921 = vrot.slane %v902, 6
    %v922 = vrot.slane %v903, 6
    %v923 = vrot.slane %v904, 6
    %v924 = vrot.slane %v905, 6
    %v925 = vrot.slane %v906, 6
    %v926 = vrot.slane %v907, 6
    %v927 = vrot.slane %v908, 6
    %v928 = vrot.slane %v909, 6
    %v929 = vrot.slane %v910, 6
    %v930 = vrot.slane %v911, 6
    %v931 = vrot.slane %v912, 6
    %v932 = vrot.slane %v913, 6
    %v933 = vrot.slane %v914, 6
    %v934 = vrot.slane %v915, 6
    %v935 = vrot.slane %v916, 6
    %v936 = vrot.slane %v917, 6
    %v937 = vrot.slane %v918, 6
    %vm938 = vcmp.lt.s32.totalorder %v73, 2
    %v939 = vsel %vm938, %v936, %v937
    %v940 = vsel %vm938, %v935, %v936
    %v941 = vsel %vm938, %v934, %v935
    %v942 = vsel %vm938, %v933, %v934
    %v943 = vsel %vm938, %v932, %v933
    %v944 = vsel %vm938, %v931, %v932
    %v945 = vsel %vm938, %v930, %v931
    %v946 = vsel %vm938, %v929, %v930
    %v947 = vsel %vm938, %v928, %v929
    %v948 = vsel %vm938, %v927, %v928
    %v949 = vsel %vm938, %v926, %v927
    %v950 = vsel %vm938, %v925, %v926
    %v951 = vsel %vm938, %v924, %v925
    %v952 = vsel %vm938, %v923, %v924
    %v953 = vsel %vm938, %v922, %v923
    %v954 = vsel %vm938, %v921, %v922
    %v955 = vsel %vm938, %v920, %v921
    %v956 = vsel %vm938, %v937, %v920
    %v957 = vmul.f32 %v956, %v469
    %v958 = vmul.f32 %v955, %v470
    %v959 = vmul.f32 %v954, %v471
    %v960 = vmul.f32 %v953, %v472
    %v961 = vmul.f32 %v952, %v473
    %v962 = vmul.f32 %v951, %v474
    %v963 = vmul.f32 %v950, %v475
    %v964 = vmul.f32 %v949, %v476
    %v965 = vmul.f32 %v948, %v477
    %v966 = vmul.f32 %v947, %v478
    %v967 = vmul.f32 %v946, %v479
    %v968 = vmul.f32 %v945, %v480
    %v969 = vmul.f32 %v944, %v481
    %v970 = vmul.f32 %v943, %v482
    %v971 = vmul.f32 %v942, %v483
    %v972 = vmul.f32 %v941, %v484
    %v973 = vmul.f32 %v940, %v485
    %v974 = vmul.f32 %v939, %v486
    %976 = vset.pattern.permute.xlu0 0
    %977 = vperm.xlu0 %976, %v957
    %v978 = vpop.permute.xlu0 %977
    %981 = vset.pattern.permute.xlu0 0
    %982 = vperm.xlu0 %981, %v958
    %v983 = vpop.permute.xlu0 %982
    %986 = vset.pattern.permute.xlu0 0
    %987 = vperm.xlu0 %986, %v959
    %v988 = vpop.permute.xlu0 %987
    %991 = vset.pattern.permute.xlu0 0
    %992 = vperm.xlu0 %991, %v960
    %v993 = vpop.permute.xlu0 %992
    %996 = vset.pattern.permute.xlu0 0
    %997 = vperm.xlu0 %996, %v961
    %v998 = vpop.permute.xlu0 %997
    %1001 = vset.pattern.permute.xlu0 0
    %1002 = vperm.xlu0 %1001, %v962
    %v1003 = vpop.permute.xlu0 %1002
    %1006 = vset.pattern.permute.xlu0 0
    %1007 = vperm.xlu0 %1006, %v963
    %v1008 = vpop.permute.xlu0 %1007
    %1011 = vset.pattern.permute.xlu0 0
    %1012 = vperm.xlu0 %1011, %v964
    %v1013 = vpop.permute.xlu0 %1012
    %1016 = vset.pattern.permute.xlu0 0
    %1017 = vperm.xlu0 %1016, %v965
    %v1018 = vpop.permute.xlu0 %1017
    %1021 = vset.pattern.permute.xlu0 0
    %1022 = vperm.xlu0 %1021, %v966
    %v1023 = vpop.permute.xlu0 %1022
    %1026 = vset.pattern.permute.xlu0 0
    %1027 = vperm.xlu0 %1026, %v967
    %v1028 = vpop.permute.xlu0 %1027
    %1031 = vset.pattern.permute.xlu0 0
    %1032 = vperm.xlu0 %1031, %v968
    %v1033 = vpop.permute.xlu0 %1032
    %1036 = vset.pattern.permute.xlu0 0
    %1037 = vperm.xlu0 %1036, %v969
    %v1038 = vpop.permute.xlu0 %1037
    %1041 = vset.pattern.permute.xlu0 0
    %1042 = vperm.xlu0 %1041, %v970
    %v1043 = vpop.permute.xlu0 %1042
    %1046 = vset.pattern.permute.xlu0 0
    %1047 = vperm.xlu0 %1046, %v971
    %v1048 = vpop.permute.xlu0 %1047
    %1051 = vset.pattern.permute.xlu0 0
    %1052 = vperm.xlu0 %1051, %v972
    %v1053 = vpop.permute.xlu0 %1052
    %1056 = vset.pattern.permute.xlu0 0
    %1057 = vperm.xlu0 %1056, %v973
    %v1058 = vpop.permute.xlu0 %1057
    %1061 = vset.pattern.permute.xlu0 0
    %1062 = vperm.xlu0 %1061, %v974
    %v1063 = vpop.permute.xlu0 %1062
    %v1065 = vlaneseq
    %v1066 = vshrl.u32 %v1065, 7
    %v1067 = vsub.s32 0, %v1066
    %v1068 = vrot.slane %v919, %v1067
    %v1069 = vmul.f32 %v978, %v1068
    %v1070 = vmul.f32 %v983, %v1068
    %v1071 = vmul.f32 %v988, %v1068
    %v1072 = vmul.f32 %v993, %v1068
    %v1073 = vmul.f32 %v998, %v1068
    %v1074 = vmul.f32 %v1003, %v1068
    %v1075 = vmul.f32 %v1008, %v1068
    %v1076 = vmul.f32 %v1013, %v1068
    %v1077 = vmul.f32 %v1018, %v1068
    %v1078 = vmul.f32 %v1023, %v1068
    %v1079 = vmul.f32 %v1028, %v1068
    %v1080 = vmul.f32 %v1033, %v1068
    %v1081 = vmul.f32 %v1038, %v1068
    %v1082 = vmul.f32 %v1043, %v1068
    %v1083 = vmul.f32 %v1048, %v1068
    %v1084 = vmul.f32 %v1053, %v1068
    %v1085 = vmul.f32 %v1058, %v1068
    %v1086 = vmul.f32 %v1063, %v1068
    %v1087 = vadd.f32 %v1069, 0.0
    %v1088 = vadd.f32 %v1070, 0.0
    %v1089 = vadd.f32 %v1071, 0.0
    %v1090 = vadd.f32 %v1072, 0.0
    %v1091 = vadd.f32 %v1073, 0.0
    %v1092 = vadd.f32 %v1074, 0.0
    %v1093 = vadd.f32 %v1075, 0.0
    %v1094 = vadd.f32 %v1076, 0.0
    %v1095 = vadd.f32 %v1077, 0.0
    %v1096 = vadd.f32 %v1078, 0.0
    %v1097 = vadd.f32 %v1079, 0.0
    %v1098 = vadd.f32 %v1080, 0.0
    %v1099 = vadd.f32 %v1081, 0.0
    %v1100 = vadd.f32 %v1082, 0.0
    %v1101 = vadd.f32 %v1083, 0.0
    %v1102 = vadd.f32 %v1084, 0.0
    %v1103 = vadd.f32 %v1085, 0.0
    %v1104 = vadd.f32 %v1086, 0.0
    %v1105 = vrot.slane %v901, 7
    %v1106 = vrot.slane %v902, 7
    %v1107 = vrot.slane %v903, 7
    %v1108 = vrot.slane %v904, 7
    %v1109 = vrot.slane %v905, 7
    %v1110 = vrot.slane %v906, 7
    %v1111 = vrot.slane %v907, 7
    %v1112 = vrot.slane %v908, 7
    %v1113 = vrot.slane %v909, 7
    %v1114 = vrot.slane %v910, 7
    %v1115 = vrot.slane %v911, 7
    %v1116 = vrot.slane %v912, 7
    %v1117 = vrot.slane %v913, 7
    %v1118 = vrot.slane %v914, 7
    %v1119 = vrot.slane %v915, 7
    %v1120 = vrot.slane %v916, 7
    %v1121 = vrot.slane %v917, 7
    %v1122 = vrot.slane %v918, 7
    %vm1123 = vcmp.lt.s32.totalorder %v73, 1
    %v1124 = vsel %vm1123, %v1121, %v1122
    %v1125 = vsel %vm1123, %v1120, %v1121
    %v1126 = vsel %vm1123, %v1119, %v1120
    %v1127 = vsel %vm1123, %v1118, %v1119
    %v1128 = vsel %vm1123, %v1117, %v1118
    %v1129 = vsel %vm1123, %v1116, %v1117
    %v1130 = vsel %vm1123, %v1115, %v1116
    %v1131 = vsel %vm1123, %v1114, %v1115
    %v1132 = vsel %vm1123, %v1113, %v1114
    %v1133 = vsel %vm1123, %v1112, %v1113
    %v1134 = vsel %vm1123, %v1111, %v1112
    %v1135 = vsel %vm1123, %v1110, %v1111
    %v1136 = vsel %vm1123, %v1109, %v1110
    %v1137 = vsel %vm1123, %v1108, %v1109
    %v1138 = vsel %vm1123, %v1107, %v1108
    %v1139 = vsel %vm1123, %v1106, %v1107
    %v1140 = vsel %vm1123, %v1105, %v1106
    %v1141 = vsel %vm1123, %v1122, %v1105
    %v1142 = vmul.f32 %v1141, %v577
    %v1143 = vmul.f32 %v1140, %v578
    %v1144 = vmul.f32 %v1139, %v579
    %v1145 = vmul.f32 %v1138, %v580
    %v1146 = vmul.f32 %v1137, %v581
    %v1147 = vmul.f32 %v1136, %v582
    %v1148 = vmul.f32 %v1135, %v583
    %v1149 = vmul.f32 %v1134, %v584
    %v1150 = vmul.f32 %v1133, %v585
    %v1151 = vmul.f32 %v1132, %v586
    %v1152 = vmul.f32 %v1131, %v587
    %v1153 = vmul.f32 %v1130, %v588
    %v1154 = vmul.f32 %v1129, %v589
    %v1155 = vmul.f32 %v1128, %v590
    %v1156 = vmul.f32 %v1127, %v591
    %v1157 = vmul.f32 %v1126, %v592
    %v1158 = vmul.f32 %v1125, %v593
    %v1159 = vmul.f32 %v1124, %v594
    %1161 = vset.pattern.permute.xlu0 0
    %1162 = vperm.xlu0 %1161, %v1142
    %v1163 = vpop.permute.xlu0 %1162
    %1166 = vset.pattern.permute.xlu0 0
    %1167 = vperm.xlu0 %1166, %v1143
    %v1168 = vpop.permute.xlu0 %1167
    %1171 = vset.pattern.permute.xlu0 0
    %1172 = vperm.xlu0 %1171, %v1144
    %v1173 = vpop.permute.xlu0 %1172
    %1176 = vset.pattern.permute.xlu0 0
    %1177 = vperm.xlu0 %1176, %v1145
    %v1178 = vpop.permute.xlu0 %1177
    %1181 = vset.pattern.permute.xlu0 0
    %1182 = vperm.xlu0 %1181, %v1146
    %v1183 = vpop.permute.xlu0 %1182
    %1186 = vset.pattern.permute.xlu0 0
    %1187 = vperm.xlu0 %1186, %v1147
    %v1188 = vpop.permute.xlu0 %1187
    %1191 = vset.pattern.permute.xlu0 0
    %1192 = vperm.xlu0 %1191, %v1148
    %v1193 = vpop.permute.xlu0 %1192
    %1196 = vset.pattern.permute.xlu0 0
    %1197 = vperm.xlu0 %1196, %v1149
    %v1198 = vpop.permute.xlu0 %1197
    %1201 = vset.pattern.permute.xlu0 0
    %1202 = vperm.xlu0 %1201, %v1150
    %v1203 = vpop.permute.xlu0 %1202
    %1206 = vset.pattern.permute.xlu0 0
    %1207 = vperm.xlu0 %1206, %v1151
    %v1208 = vpop.permute.xlu0 %1207
    %1211 = vset.pattern.permute.xlu0 0
    %1212 = vperm.xlu0 %1211, %v1152
    %v1213 = vpop.permute.xlu0 %1212
    %1216 = vset.pattern.permute.xlu0 0
    %1217 = vperm.xlu0 %1216, %v1153
    %v1218 = vpop.permute.xlu0 %1217
    %1221 = vset.pattern.permute.xlu0 0
    %1222 = vperm.xlu0 %1221, %v1154
    %v1223 = vpop.permute.xlu0 %1222
    %1226 = vset.pattern.permute.xlu0 0
    %1227 = vperm.xlu0 %1226, %v1155
    %v1228 = vpop.permute.xlu0 %1227
    %1231 = vset.pattern.permute.xlu0 0
    %1232 = vperm.xlu0 %1231, %v1156
    %v1233 = vpop.permute.xlu0 %1232
    %1236 = vset.pattern.permute.xlu0 0
    %1237 = vperm.xlu0 %1236, %v1157
    %v1238 = vpop.permute.xlu0 %1237
    %1241 = vset.pattern.permute.xlu0 0
    %1242 = vperm.xlu0 %1241, %v1158
    %v1243 = vpop.permute.xlu0 %1242
    %1246 = vset.pattern.permute.xlu0 0
    %1247 = vperm.xlu0 %1246, %v1159
    %v1248 = vpop.permute.xlu0 %1247
    %v1250 = vlaneseq
    %v1251 = vshrl.u32 %v1250, 7
    %v1252 = vsub.s32 1, %v1251
    %v1253 = vrot.slane %v919, %v1252
    %v1254 = vmul.f32 %v1163, %v1253
    %v1255 = vmul.f32 %v1168, %v1253
    %v1256 = vmul.f32 %v1173, %v1253
    %v1257 = vmul.f32 %v1178, %v1253
    %v1258 = vmul.f32 %v1183, %v1253
    %v1259 = vmul.f32 %v1188, %v1253
    %v1260 = vmul.f32 %v1193, %v1253
    %v1261 = vmul.f32 %v1198, %v1253
    %v1262 = vmul.f32 %v1203, %v1253
    %v1263 = vmul.f32 %v1208, %v1253
    %v1264 = vmul.f32 %v1213, %v1253
    %v1265 = vmul.f32 %v1218, %v1253
    %v1266 = vmul.f32 %v1223, %v1253
    %v1267 = vmul.f32 %v1228, %v1253
    %v1268 = vmul.f32 %v1233, %v1253
    %v1269 = vmul.f32 %v1238, %v1253
    %v1270 = vmul.f32 %v1243, %v1253
    %v1271 = vmul.f32 %v1248, %v1253
    %v1272 = vadd.f32 %v1087, %v1254
    %v1273 = vadd.f32 %v1088, %v1255
    %v1274 = vadd.f32 %v1089, %v1256
    %v1275 = vadd.f32 %v1090, %v1257
    %v1276 = vadd.f32 %v1091, %v1258
    %v1277 = vadd.f32 %v1092, %v1259
    %v1278 = vadd.f32 %v1093, %v1260
    %v1279 = vadd.f32 %v1094, %v1261
    %v1280 = vadd.f32 %v1095, %v1262
    %v1281 = vadd.f32 %v1096, %v1263
    %v1282 = vadd.f32 %v1097, %v1264
    %v1283 = vadd.f32 %v1098, %v1265
    %v1284 = vadd.f32 %v1099, %v1266
    %v1285 = vadd.f32 %v1100, %v1267
    %v1286 = vadd.f32 %v1101, %v1268
    %v1287 = vadd.f32 %v1102, %v1269
    %v1288 = vadd.f32 %v1103, %v1270
    %v1289 = vadd.f32 %v1104, %v1271
    %v1290 = vmul.f32 %v901, %v667
    %v1291 = vmul.f32 %v902, %v668
    %v1292 = vmul.f32 %v903, %v669
    %v1293 = vmul.f32 %v904, %v670
    %v1294 = vmul.f32 %v905, %v671
    %v1295 = vmul.f32 %v906, %v672
    %v1296 = vmul.f32 %v907, %v673
    %v1297 = vmul.f32 %v908, %v674
    %v1298 = vmul.f32 %v909, %v675
    %v1299 = vmul.f32 %v910, %v676
    %v1300 = vmul.f32 %v911, %v677
    %v1301 = vmul.f32 %v912, %v678
    %v1302 = vmul.f32 %v913, %v679
    %v1303 = vmul.f32 %v914, %v680
    %v1304 = vmul.f32 %v915, %v681
    %v1305 = vmul.f32 %v916, %v682
    %v1306 = vmul.f32 %v917, %v683
    %v1307 = vmul.f32 %v918, %v684
    %1309 = vset.pattern.permute.xlu0 0
    %1310 = vperm.xlu0 %1309, %v1290
    %v1311 = vpop.permute.xlu0 %1310
    %1314 = vset.pattern.permute.xlu0 0
    %1315 = vperm.xlu0 %1314, %v1291
    %v1316 = vpop.permute.xlu0 %1315
    %1319 = vset.pattern.permute.xlu0 0
    %1320 = vperm.xlu0 %1319, %v1292
    %v1321 = vpop.permute.xlu0 %1320
    %1324 = vset.pattern.permute.xlu0 0
    %1325 = vperm.xlu0 %1324, %v1293
    %v1326 = vpop.permute.xlu0 %1325
    %1329 = vset.pattern.permute.xlu0 0
    %1330 = vperm.xlu0 %1329, %v1294
    %v1331 = vpop.permute.xlu0 %1330
    %1334 = vset.pattern.permute.xlu0 0
    %1335 = vperm.xlu0 %1334, %v1295
    %v1336 = vpop.permute.xlu0 %1335
    %1339 = vset.pattern.permute.xlu0 0
    %1340 = vperm.xlu0 %1339, %v1296
    %v1341 = vpop.permute.xlu0 %1340
    %1344 = vset.pattern.permute.xlu0 0
    %1345 = vperm.xlu0 %1344, %v1297
    %v1346 = vpop.permute.xlu0 %1345
    %1349 = vset.pattern.permute.xlu0 0
    %1350 = vperm.xlu0 %1349, %v1298
    %v1351 = vpop.permute.xlu0 %1350
    %1354 = vset.pattern.permute.xlu0 0
    %1355 = vperm.xlu0 %1354, %v1299
    %v1356 = vpop.permute.xlu0 %1355
    %1359 = vset.pattern.permute.xlu0 0
    %1360 = vperm.xlu0 %1359, %v1300
    %v1361 = vpop.permute.xlu0 %1360
    %1364 = vset.pattern.permute.xlu0 0
    %1365 = vperm.xlu0 %1364, %v1301
    %v1366 = vpop.permute.xlu0 %1365
    %1369 = vset.pattern.permute.xlu0 0
    %1370 = vperm.xlu0 %1369, %v1302
    %v1371 = vpop.permute.xlu0 %1370
    %1374 = vset.pattern.permute.xlu0 0
    %1375 = vperm.xlu0 %1374, %v1303
    %v1376 = vpop.permute.xlu0 %1375
    %1379 = vset.pattern.permute.xlu0 0
    %1380 = vperm.xlu0 %1379, %v1304
    %v1381 = vpop.permute.xlu0 %1380
    %1384 = vset.pattern.permute.xlu0 0
    %1385 = vperm.xlu0 %1384, %v1305
    %v1386 = vpop.permute.xlu0 %1385
    %1389 = vset.pattern.permute.xlu0 0
    %1390 = vperm.xlu0 %1389, %v1306
    %v1391 = vpop.permute.xlu0 %1390
    %1394 = vset.pattern.permute.xlu0 0
    %1395 = vperm.xlu0 %1394, %v1307
    %v1396 = vpop.permute.xlu0 %1395
    %v1398 = vlaneseq
    %v1399 = vshrl.u32 %v1398, 7
    %v1400 = vsub.s32 2, %v1399
    %v1401 = vrot.slane %v919, %v1400
    %v1402 = vmul.f32 %v1311, %v1401
    %v1403 = vmul.f32 %v1316, %v1401
    %v1404 = vmul.f32 %v1321, %v1401
    %v1405 = vmul.f32 %v1326, %v1401
    %v1406 = vmul.f32 %v1331, %v1401
    %v1407 = vmul.f32 %v1336, %v1401
    %v1408 = vmul.f32 %v1341, %v1401
    %v1409 = vmul.f32 %v1346, %v1401
    %v1410 = vmul.f32 %v1351, %v1401
    %v1411 = vmul.f32 %v1356, %v1401
    %v1412 = vmul.f32 %v1361, %v1401
    %v1413 = vmul.f32 %v1366, %v1401
    %v1414 = vmul.f32 %v1371, %v1401
    %v1415 = vmul.f32 %v1376, %v1401
    %v1416 = vmul.f32 %v1381, %v1401
    %v1417 = vmul.f32 %v1386, %v1401
    %v1418 = vmul.f32 %v1391, %v1401
    %v1419 = vmul.f32 %v1396, %v1401
    %v1420 = vadd.f32 %v1272, %v1402
    %v1421 = vadd.f32 %v1273, %v1403
    %v1422 = vadd.f32 %v1274, %v1404
    %v1423 = vadd.f32 %v1275, %v1405
    %v1424 = vadd.f32 %v1276, %v1406
    %v1425 = vadd.f32 %v1277, %v1407
    %v1426 = vadd.f32 %v1278, %v1408
    %v1427 = vadd.f32 %v1279, %v1409
    %v1428 = vadd.f32 %v1280, %v1410
    %v1429 = vadd.f32 %v1281, %v1411
    %v1430 = vadd.f32 %v1282, %v1412
    %v1431 = vadd.f32 %v1283, %v1413
    %v1432 = vadd.f32 %v1284, %v1414
    %v1433 = vadd.f32 %v1285, %v1415
    %v1434 = vadd.f32 %v1286, %v1416
    %v1435 = vadd.f32 %v1287, %v1417
    %v1436 = vadd.f32 %v1288, %v1418
    %v1437 = vadd.f32 %v1289, %v1419
    %v1438 = vrot.slane %v901, 1
    %v1439 = vrot.slane %v902, 1
    %v1440 = vrot.slane %v903, 1
    %v1441 = vrot.slane %v904, 1
    %v1442 = vrot.slane %v905, 1
    %v1443 = vrot.slane %v906, 1
    %v1444 = vrot.slane %v907, 1
    %v1445 = vrot.slane %v908, 1
    %v1446 = vrot.slane %v909, 1
    %v1447 = vrot.slane %v910, 1
    %v1448 = vrot.slane %v911, 1
    %v1449 = vrot.slane %v912, 1
    %v1450 = vrot.slane %v913, 1
    %v1451 = vrot.slane %v914, 1
    %v1452 = vrot.slane %v915, 1
    %v1453 = vrot.slane %v916, 1
    %v1454 = vrot.slane %v917, 1
    %v1455 = vrot.slane %v918, 1
    %vm1456 = vcmp.lt.s32.totalorder %v73, 7
    %v1457 = vsel %vm1456, %v1454, %v1455
    %v1458 = vsel %vm1456, %v1453, %v1454
    %v1459 = vsel %vm1456, %v1452, %v1453
    %v1460 = vsel %vm1456, %v1451, %v1452
    %v1461 = vsel %vm1456, %v1450, %v1451
    %v1462 = vsel %vm1456, %v1449, %v1450
    %v1463 = vsel %vm1456, %v1448, %v1449
    %v1464 = vsel %vm1456, %v1447, %v1448
    %v1465 = vsel %vm1456, %v1446, %v1447
    %v1466 = vsel %vm1456, %v1445, %v1446
    %v1467 = vsel %vm1456, %v1444, %v1445
    %v1468 = vsel %vm1456, %v1443, %v1444
    %v1469 = vsel %vm1456, %v1442, %v1443
    %v1470 = vsel %vm1456, %v1441, %v1442
    %v1471 = vsel %vm1456, %v1440, %v1441
    %v1472 = vsel %vm1456, %v1439, %v1440
    %v1473 = vsel %vm1456, %v1438, %v1439
    %v1474 = vsel %vm1456, %v1455, %v1438
    %v1475 = vmul.f32 %v1473, %v775
    %v1476 = vmul.f32 %v1472, %v776
    %v1477 = vmul.f32 %v1471, %v777
    %v1478 = vmul.f32 %v1470, %v778
    %v1479 = vmul.f32 %v1469, %v779
    %v1480 = vmul.f32 %v1468, %v780
    %v1481 = vmul.f32 %v1467, %v781
    %v1482 = vmul.f32 %v1466, %v782
    %v1483 = vmul.f32 %v1465, %v783
    %v1484 = vmul.f32 %v1464, %v784
    %v1485 = vmul.f32 %v1463, %v785
    %v1486 = vmul.f32 %v1462, %v786
    %v1487 = vmul.f32 %v1461, %v787
    %v1488 = vmul.f32 %v1460, %v788
    %v1489 = vmul.f32 %v1459, %v789
    %v1490 = vmul.f32 %v1458, %v790
    %v1491 = vmul.f32 %v1457, %v791
    %v1492 = vmul.f32 %v1474, %v792
    %1494 = vset.pattern.permute.xlu0 0
    %1495 = vperm.xlu0 %1494, %v1475
    %v1496 = vpop.permute.xlu0 %1495
    %1499 = vset.pattern.permute.xlu0 0
    %1500 = vperm.xlu0 %1499, %v1476
    %v1501 = vpop.permute.xlu0 %1500
    %1504 = vset.pattern.permute.xlu0 0
    %1505 = vperm.xlu0 %1504, %v1477
    %v1506 = vpop.permute.xlu0 %1505
    %1509 = vset.pattern.permute.xlu0 0
    %1510 = vperm.xlu0 %1509, %v1478
    %v1511 = vpop.permute.xlu0 %1510
    %1514 = vset.pattern.permute.xlu0 0
    %1515 = vperm.xlu0 %1514, %v1479
    %v1516 = vpop.permute.xlu0 %1515
    %1519 = vset.pattern.permute.xlu0 0
    %1520 = vperm.xlu0 %1519, %v1480
    %v1521 = vpop.permute.xlu0 %1520
    %1524 = vset.pattern.permute.xlu0 0
    %1525 = vperm.xlu0 %1524, %v1481
    %v1526 = vpop.permute.xlu0 %1525
    %1529 = vset.pattern.permute.xlu0 0
    %1530 = vperm.xlu0 %1529, %v1482
    %v1531 = vpop.permute.xlu0 %1530
    %1534 = vset.pattern.permute.xlu0 0
    %1535 = vperm.xlu0 %1534, %v1483
    %v1536 = vpop.permute.xlu0 %1535
    %1539 = vset.pattern.permute.xlu0 0
    %1540 = vperm.xlu0 %1539, %v1484
    %v1541 = vpop.permute.xlu0 %1540
    %1544 = vset.pattern.permute.xlu0 0
    %1545 = vperm.xlu0 %1544, %v1485
    %v1546 = vpop.permute.xlu0 %1545
    %1549 = vset.pattern.permute.xlu0 0
    %1550 = vperm.xlu0 %1549, %v1486
    %v1551 = vpop.permute.xlu0 %1550
    %1554 = vset.pattern.permute.xlu0 0
    %1555 = vperm.xlu0 %1554, %v1487
    %v1556 = vpop.permute.xlu0 %1555
    %1559 = vset.pattern.permute.xlu0 0
    %1560 = vperm.xlu0 %1559, %v1488
    %v1561 = vpop.permute.xlu0 %1560
    %1564 = vset.pattern.permute.xlu0 0
    %1565 = vperm.xlu0 %1564, %v1489
    %v1566 = vpop.permute.xlu0 %1565
    %1569 = vset.pattern.permute.xlu0 0
    %1570 = vperm.xlu0 %1569, %v1490
    %v1571 = vpop.permute.xlu0 %1570
    %1574 = vset.pattern.permute.xlu0 0
    %1575 = vperm.xlu0 %1574, %v1491
    %v1576 = vpop.permute.xlu0 %1575
    %1579 = vset.pattern.permute.xlu0 0
    %1580 = vperm.xlu0 %1579, %v1492
    %v1581 = vpop.permute.xlu0 %1580
    %v1583 = vlaneseq
    %v1584 = vshrl.u32 %v1583, 7
    %v1585 = vsub.s32 3, %v1584
    %v1586 = vrot.slane %v919, %v1585
    %v1587 = vmul.f32 %v1496, %v1586
    %v1588 = vmul.f32 %v1501, %v1586
    %v1589 = vmul.f32 %v1506, %v1586
    %v1590 = vmul.f32 %v1511, %v1586
    %v1591 = vmul.f32 %v1516, %v1586
    %v1592 = vmul.f32 %v1521, %v1586
    %v1593 = vmul.f32 %v1526, %v1586
    %v1594 = vmul.f32 %v1531, %v1586
    %v1595 = vmul.f32 %v1536, %v1586
    %v1596 = vmul.f32 %v1541, %v1586
    %v1597 = vmul.f32 %v1546, %v1586
    %v1598 = vmul.f32 %v1551, %v1586
    %v1599 = vmul.f32 %v1556, %v1586
    %v1600 = vmul.f32 %v1561, %v1586
    %v1601 = vmul.f32 %v1566, %v1586
    %v1602 = vmul.f32 %v1571, %v1586
    %v1603 = vmul.f32 %v1576, %v1586
    %v1604 = vmul.f32 %v1581, %v1586
    %v1605 = vadd.f32 %v1420, %v1587
    %v1606 = vadd.f32 %v1421, %v1588
    %v1607 = vadd.f32 %v1422, %v1589
    %v1608 = vadd.f32 %v1423, %v1590
    %v1609 = vadd.f32 %v1424, %v1591
    %v1610 = vadd.f32 %v1425, %v1592
    %v1611 = vadd.f32 %v1426, %v1593
    %v1612 = vadd.f32 %v1427, %v1594
    %v1613 = vadd.f32 %v1428, %v1595
    %v1614 = vadd.f32 %v1429, %v1596
    %v1615 = vadd.f32 %v1430, %v1597
    %v1616 = vadd.f32 %v1431, %v1598
    %v1617 = vadd.f32 %v1432, %v1599
    %v1618 = vadd.f32 %v1433, %v1600
    %v1619 = vadd.f32 %v1434, %v1601
    %v1620 = vadd.f32 %v1435, %v1602
    %v1621 = vadd.f32 %v1436, %v1603
    %v1622 = vadd.f32 %v1437, %v1604
    %v1623 = vrot.slane %v901, 2
    %v1624 = vrot.slane %v902, 2
    %v1625 = vrot.slane %v903, 2
    %v1626 = vrot.slane %v904, 2
    %v1627 = vrot.slane %v905, 2
    %v1628 = vrot.slane %v906, 2
    %v1629 = vrot.slane %v907, 2
    %v1630 = vrot.slane %v908, 2
    %v1631 = vrot.slane %v909, 2
    %v1632 = vrot.slane %v910, 2
    %v1633 = vrot.slane %v911, 2
    %v1634 = vrot.slane %v912, 2
    %v1635 = vrot.slane %v913, 2
    %v1636 = vrot.slane %v914, 2
    %v1637 = vrot.slane %v915, 2
    %v1638 = vrot.slane %v916, 2
    %v1639 = vrot.slane %v917, 2
    %v1640 = vrot.slane %v918, 2
    %vm1641 = vcmp.lt.s32.totalorder %v73, 6
    %v1642 = vsel %vm1641, %v1639, %v1640
    %v1643 = vsel %vm1641, %v1638, %v1639
    %v1644 = vsel %vm1641, %v1637, %v1638
    %v1645 = vsel %vm1641, %v1636, %v1637
    %v1646 = vsel %vm1641, %v1635, %v1636
    %v1647 = vsel %vm1641, %v1634, %v1635
    %v1648 = vsel %vm1641, %v1633, %v1634
    %v1649 = vsel %vm1641, %v1632, %v1633
    %v1650 = vsel %vm1641, %v1631, %v1632
    %v1651 = vsel %vm1641, %v1630, %v1631
    %v1652 = vsel %vm1641, %v1629, %v1630
    %v1653 = vsel %vm1641, %v1628, %v1629
    %v1654 = vsel %vm1641, %v1627, %v1628
    %v1655 = vsel %vm1641, %v1626, %v1627
    %v1656 = vsel %vm1641, %v1625, %v1626
    %v1657 = vsel %vm1641, %v1624, %v1625
    %v1658 = vsel %vm1641, %v1623, %v1624
    %v1659 = vsel %vm1641, %v1640, %v1623
    %v1660 = vmul.f32 %v1658, %v883
    %v1661 = vmul.f32 %v1657, %v884
    %v1662 = vmul.f32 %v1656, %v885
    %v1663 = vmul.f32 %v1655, %v886
    %v1664 = vmul.f32 %v1654, %v887
    %v1665 = vmul.f32 %v1653, %v888
    %v1666 = vmul.f32 %v1652, %v889
    %v1667 = vmul.f32 %v1651, %v890
    %v1668 = vmul.f32 %v1650, %v891
    %v1669 = vmul.f32 %v1649, %v892
    %v1670 = vmul.f32 %v1648, %v893
    %v1671 = vmul.f32 %v1647, %v894
    %v1672 = vmul.f32 %v1646, %v895
    %v1673 = vmul.f32 %v1645, %v896
    %v1674 = vmul.f32 %v1644, %v897
    %v1675 = vmul.f32 %v1643, %v898
    %v1676 = vmul.f32 %v1642, %v899
    %v1677 = vmul.f32 %v1659, %v900
    %1679 = vset.pattern.permute.xlu0 0
    %1680 = vperm.xlu0 %1679, %v1660
    %v1681 = vpop.permute.xlu0 %1680
    %1684 = vset.pattern.permute.xlu0 0
    %1685 = vperm.xlu0 %1684, %v1661
    %v1686 = vpop.permute.xlu0 %1685
    %1689 = vset.pattern.permute.xlu0 0
    %1690 = vperm.xlu0 %1689, %v1662
    %v1691 = vpop.permute.xlu0 %1690
    %1694 = vset.pattern.permute.xlu0 0
    %1695 = vperm.xlu0 %1694, %v1663
    %v1696 = vpop.permute.xlu0 %1695
    %1699 = vset.pattern.permute.xlu0 0
    %1700 = vperm.xlu0 %1699, %v1664
    %v1701 = vpop.permute.xlu0 %1700
    %1704 = vset.pattern.permute.xlu0 0
    %1705 = vperm.xlu0 %1704, %v1665
    %v1706 = vpop.permute.xlu0 %1705
    %1709 = vset.pattern.permute.xlu0 0
    %1710 = vperm.xlu0 %1709, %v1666
    %v1711 = vpop.permute.xlu0 %1710
    %1714 = vset.pattern.permute.xlu0 0
    %1715 = vperm.xlu0 %1714, %v1667
    %v1716 = vpop.permute.xlu0 %1715
    %1719 = vset.pattern.permute.xlu0 0
    %1720 = vperm.xlu0 %1719, %v1668
    %v1721 = vpop.permute.xlu0 %1720
    %1724 = vset.pattern.permute.xlu0 0
    %1725 = vperm.xlu0 %1724, %v1669
    %v1726 = vpop.permute.xlu0 %1725
    %1729 = vset.pattern.permute.xlu0 0
    %1730 = vperm.xlu0 %1729, %v1670
    %v1731 = vpop.permute.xlu0 %1730
    %1734 = vset.pattern.permute.xlu0 0
    %1735 = vperm.xlu0 %1734, %v1671
    %v1736 = vpop.permute.xlu0 %1735
    %1739 = vset.pattern.permute.xlu0 0
    %1740 = vperm.xlu0 %1739, %v1672
    %v1741 = vpop.permute.xlu0 %1740
    %1744 = vset.pattern.permute.xlu0 0
    %1745 = vperm.xlu0 %1744, %v1673
    %v1746 = vpop.permute.xlu0 %1745
    %1749 = vset.pattern.permute.xlu0 0
    %1750 = vperm.xlu0 %1749, %v1674
    %v1751 = vpop.permute.xlu0 %1750
    %1754 = vset.pattern.permute.xlu0 0
    %1755 = vperm.xlu0 %1754, %v1675
    %v1756 = vpop.permute.xlu0 %1755
    %1759 = vset.pattern.permute.xlu0 0
    %1760 = vperm.xlu0 %1759, %v1676
    %v1761 = vpop.permute.xlu0 %1760
    %1764 = vset.pattern.permute.xlu0 0
    %1765 = vperm.xlu0 %1764, %v1677
    %v1766 = vpop.permute.xlu0 %1765
    %v1768 = vlaneseq
    %v1769 = vshrl.u32 %v1768, 7
    %v1770 = vsub.s32 4, %v1769
    %v1771 = vrot.slane %v919, %v1770
    %v1772 = vmul.f32 %v1681, %v1771
    %v1773 = vmul.f32 %v1686, %v1771
    %v1774 = vmul.f32 %v1691, %v1771
    %v1775 = vmul.f32 %v1696, %v1771
    %v1776 = vmul.f32 %v1701, %v1771
    %v1777 = vmul.f32 %v1706, %v1771
    %v1778 = vmul.f32 %v1711, %v1771
    %v1779 = vmul.f32 %v1716, %v1771
    %v1780 = vmul.f32 %v1721, %v1771
    %v1781 = vmul.f32 %v1726, %v1771
    %v1782 = vmul.f32 %v1731, %v1771
    %v1783 = vmul.f32 %v1736, %v1771
    %v1784 = vmul.f32 %v1741, %v1771
    %v1785 = vmul.f32 %v1746, %v1771
    %v1786 = vmul.f32 %v1751, %v1771
    %v1787 = vmul.f32 %v1756, %v1771
    %v1788 = vmul.f32 %v1761, %v1771
    %v1789 = vmul.f32 %v1766, %v1771
    %v1790 = vadd.f32 %v1605, %v1772
    %v1791 = vadd.f32 %v1606, %v1773
    %v1792 = vadd.f32 %v1607, %v1774
    %v1793 = vadd.f32 %v1608, %v1775
    %v1794 = vadd.f32 %v1609, %v1776
    %v1795 = vadd.f32 %v1610, %v1777
    %v1796 = vadd.f32 %v1611, %v1778
    %v1797 = vadd.f32 %v1612, %v1779
    %v1798 = vadd.f32 %v1613, %v1780
    %v1799 = vadd.f32 %v1614, %v1781
    %v1800 = vadd.f32 %v1615, %v1782
    %v1801 = vadd.f32 %v1616, %v1783
    %v1802 = vadd.f32 %v1617, %v1784
    %v1803 = vadd.f32 %v1618, %v1785
    %v1804 = vadd.f32 %v1619, %v1786
    %v1805 = vadd.f32 %v1620, %v1787
    %v1806 = vadd.f32 %v1621, %v1788
    %v1807 = vadd.f32 %v1622, %v1789
    %v1808 = vld [vmem:[%s2] sm:$0x1]
    %v1809 = vld [vmem:[%s3] sm:$0x1]
    %v1810 = vmul.f32 %v1790, %v1790
    %v1811 = vmul.f32 %v1791, %v1791
    %v1812 = vmul.f32 %v1792, %v1792
    %v1813 = vmul.f32 %v1793, %v1793
    %v1814 = vmul.f32 %v1794, %v1794
    %v1815 = vmul.f32 %v1795, %v1795
    %v1816 = vmul.f32 %v1796, %v1796
    %v1817 = vmul.f32 %v1797, %v1797
    %v1818 = vmul.f32 %v1798, %v1798
    %v1819 = vmul.f32 %v1799, %v1799
    %v1820 = vmul.f32 %v1800, %v1800
    %v1821 = vmul.f32 %v1801, %v1801
    %v1822 = vmul.f32 %v1802, %v1802
    %v1823 = vmul.f32 %v1803, %v1803
    %v1824 = vmul.f32 %v1804, %v1804
    %v1825 = vmul.f32 %v1805, %v1805
    %v1826 = vmul.f32 %v1806, %v1806
    %v1827 = vmul.f32 %v1807, %v1807
    %1846 = vrot.lane.b32.xlu0 %v1810, 64
    %v1847 = vpop.permute.xlu0 %1846
    %1848 = vrot.lane.b32.xlu0 %v1811, 64
    %v1849 = vpop.permute.xlu0 %1848
    %1850 = vrot.lane.b32.xlu0 %v1812, 64
    %v1851 = vpop.permute.xlu0 %1850
    %1852 = vrot.lane.b32.xlu0 %v1813, 64
    %v1853 = vpop.permute.xlu0 %1852
    %1854 = vrot.lane.b32.xlu0 %v1814, 64
    %v1855 = vpop.permute.xlu0 %1854
    %1856 = vrot.lane.b32.xlu0 %v1815, 64
    %v1857 = vpop.permute.xlu0 %1856
    %1858 = vrot.lane.b32.xlu0 %v1816, 64
    %v1859 = vpop.permute.xlu0 %1858
    %1860 = vrot.lane.b32.xlu0 %v1817, 64
    %v1861 = vpop.permute.xlu0 %1860
    %1862 = vrot.lane.b32.xlu0 %v1818, 64
    %v1863 = vpop.permute.xlu0 %1862
    %1864 = vrot.lane.b32.xlu0 %v1819, 64
    %v1865 = vpop.permute.xlu0 %1864
    %1866 = vrot.lane.b32.xlu0 %v1820, 64
    %v1867 = vpop.permute.xlu0 %1866
    %1868 = vrot.lane.b32.xlu0 %v1821, 64
    %v1869 = vpop.permute.xlu0 %1868
    %1870 = vrot.lane.b32.xlu0 %v1822, 64
    %v1871 = vpop.permute.xlu0 %1870
    %1872 = vrot.lane.b32.xlu0 %v1823, 64
    %v1873 = vpop.permute.xlu0 %1872
    %1874 = vrot.lane.b32.xlu0 %v1824, 64
    %v1875 = vpop.permute.xlu0 %1874
    %1876 = vrot.lane.b32.xlu0 %v1825, 64
    %v1877 = vpop.permute.xlu0 %1876
    %1878 = vrot.lane.b32.xlu0 %v1826, 64
    %v1879 = vpop.permute.xlu0 %1878
    %1880 = vrot.lane.b32.xlu0 %v1827, 64
    %v1881 = vpop.permute.xlu0 %1880
    %vm1900 = vcmask 523264
    %v1901 = vsel %vm1900, %v1790, %v1847
    %v1902 = vsel %vm1900, %v1791, %v1849
    %v1903 = vsel %vm1900, %v1792, %v1851
    %v1904 = vsel %vm1900, %v1793, %v1853
    %v1905 = vsel %vm1900, %v1794, %v1855
    %v1906 = vsel %vm1900, %v1795, %v1857
    %v1907 = vsel %vm1900, %v1796, %v1859
    %v1908 = vsel %vm1900, %v1797, %v1861
    %v1909 = vsel %vm1900, %v1798, %v1863
    %v1910 = vsel %vm1900, %v1799, %v1865
    %v1911 = vsel %vm1900, %v1800, %v1867
    %v1912 = vsel %vm1900, %v1801, %v1869
    %v1913 = vsel %vm1900, %v1802, %v1871
    %v1914 = vsel %vm1900, %v1803, %v1873
    %v1915 = vsel %vm1900, %v1804, %v1875
    %v1916 = vsel %vm1900, %v1805, %v1877
    %v1917 = vsel %vm1900, %v1806, %v1879
    %v1918 = vsel %vm1900, %v1807, %v1881
    %vm1919 = vcmask 130048
    %v1921 = vsel %vm1919, 1.0, 0
    %1923 = vmatprep.subr.mxu0 0.0
    %1924 = vmatpush1.msra.mxu0 %v1901
    %1925 = vmatprep.subr.mxu0 0.0
    %1926 = vmatpush1.msra.mxu0 %v1902
    %1927 = vmatprep.subr.mxu0 0.0
    %1928 = vmatpush1.msra.mxu0 %v1903
    %1929 = vmatprep.subr.mxu0 0.0
    %1930 = vmatpush1.msra.mxu0 %v1904
    %1931 = vmatprep.subr.mxu0 0.0
    %1932 = vmatpush1.msra.mxu0 %v1905
    %1933 = vmatprep.subr.mxu0 0.0
    %1934 = vmatpush1.msra.mxu0 %v1906
    %1935 = vmatprep.subr.mxu0 0.0
    %1936 = vmatpush1.msra.mxu0 %v1907
    %1937 = vmatprep.subr.mxu0 0.0
    %1938 = vmatpush1.msra.mxu0 %v1908
    %1939 = vmatprep.subr.mxu0 0.0
    %1940 = vmatpush1.msra.mxu0 %v1909
    %1941 = vmatprep.subr.mxu0 0.0
    %1942 = vmatpush1.msra.mxu0 %v1910
    %1943 = vmatprep.subr.mxu0 0.0
    %1944 = vmatpush1.msra.mxu0 %v1911
    %1945 = vmatprep.subr.mxu0 0.0
    %1946 = vmatpush1.msra.mxu0 %v1912
    %1947 = vmatprep.subr.mxu0 0.0
    %1948 = vmatpush1.msra.mxu0 %v1913
    %1949 = vmatprep.subr.mxu0 0.0
    %1950 = vmatpush1.msra.mxu0 %v1914
    %1951 = vmatprep.subr.mxu0 0.0
    %1952 = vmatpush1.msra.mxu0 %v1915
    %1953 = vmatprep.subr.mxu0 0.0
    %1954 = vmatpush1.msra.mxu0 %v1916
    %1955 = vmatprep.subr.mxu0 0.0
    %1956 = vmatpush1.msra.mxu0 %v1917
    %1957 = vmatprep.subr.mxu0 0.0
    %1958 = vmatpush1.msra.mxu0 %v1918
    %1959 = vmatprep.subr.mxu0 0.0
    %1960 = vmatpush1.msra.mxu0 0.0
    %1961 = vmatprep.subr.mxu0 0.0
    %1962 = vmatpush1.msra.mxu0 0.0
    %1963 = vmatprep.subr.mxu0 0.0
    %1964 = vmatpush1.msra.mxu0 0.0
    %1965 = vmatprep.subr.mxu0 0.0
    %1966 = vmatpush1.msra.mxu0 0.0
    %1967 = vmatprep.subr.mxu0 0.0
    %1968 = vmatpush1.msra.mxu0 0.0
    %1969 = vmatprep.subr.mxu0 0.0
    %1970 = vmatpush1.msra.mxu0 0.0
    %1971 = vmatprep.subr.mxu0 0.0
    %1972 = vmatpush1.msra.mxu0 0.0
    %1973 = vmatprep.subr.mxu0 0.0
    %1974 = vmatpush1.msra.mxu0 0.0
    %1975 = vmatprep.subr.mxu0 0.0
    %1976 = vmatpush1.msra.mxu0 0.0
    %1977 = vmatprep.subr.mxu0 0.0
    %1978 = vmatpush1.msra.mxu0 0.0
    %1979 = vmatprep.subr.mxu0 0.0
    %1980 = vmatpush1.msra.mxu0 0.0
    %1981 = vmatprep.subr.mxu0 0.0
    %1982 = vmatpush1.msra.mxu0 0.0
    %1983 = vmatprep.subr.mxu0 0.0
    %1984 = vmatpush1.msra.mxu0 0.0
    %1985 = vmatprep.subr.mxu0 0.0
    %1986 = vmatpush1.msra.mxu0 0.0
    %1987 = vmatprep.mubr.f32.mxu0 %v1921
    %1988 = vmatmul.mubr.f32.gmra.mrb[0].mxu0 1.0
    %v1989 = vpop.f32.mrb[0].mxu0
    %v1990 = vadd.f32 0.0, %v1989
    %v1991 = vpop.f32.mrb[0].mxu0
    %1992 = vdwg.mxu0
    %v1993 = vmul.f32 %v1990, 0.0069444445
    %v1994 = vmul.f32 %v1993, %v1993
    %1996 = vrot.lane.b32.xlu0 %v1994, 64
    %v1997 = vpop.permute.xlu0 %1996
    %v1999 = vsub.f32 %v1993, %v1997
    %v2000 = vadd.f32 %v1999, 1e-05
    %v2001 = vrsqrt.pop %v2000
    %v2004 = vunpack.c.l.s4 1966171168
    %v2005 = vunpack.c.0.s8 %v2004
    %v2006 = vlaneseq
    %v2007 = vshrl.u32 %v2006, 7
    %v2008 = vsub.s32 %v2005, %v2007
    %v2009 = vrot.slane %v2001, %v2008
    %v2011 = vunpack.c.l.s4 1966171168
    %v2012 = vunpack.c.0.s8 %v2011
    %v2013 = vlaneseq
    %v2014 = vshrl.u32 %v2013, 7
    %v2015 = vsub.s32 %v2012, %v2014
    %v2016 = vrot.slane %v2009, %v2015
    %2017 = vrot.lane.b32.xlu0 %v2016, 64
    %v2018 = vpop.permute.xlu0 %2017
    %v2020 = vmul.f32 %v1808, %v2018
    %v2021 = vmul.f32 %v1993, %v2020
    %v2022 = vsub.f32 %v1809, %v2021
    %v2024 = vlaneseq
    %v2025 = vshrl.u32 %v2024, 7
    %v2026 = vsub.s32 0, %v2025
    %v2027 = vrot.slane %v2020, %v2026
    %v2029 = vmul.f32 %v1790, %v2027
    %v2030 = vmul.f32 %v1791, %v2027
    %v2031 = vmul.f32 %v1792, %v2027
    %v2032 = vmul.f32 %v1793, %v2027
    %v2033 = vmul.f32 %v1794, %v2027
    %v2034 = vmul.f32 %v1795, %v2027
    %v2035 = vmul.f32 %v1796, %v2027
    %v2036 = vmul.f32 %v1797, %v2027
    %v2037 = vmul.f32 %v1798, %v2027
    %v2038 = vmul.f32 %v1799, %v2027
    %v2039 = vmul.f32 %v1800, %v2027
    %v2040 = vmul.f32 %v1801, %v2027
    %v2041 = vmul.f32 %v1802, %v2027
    %v2042 = vmul.f32 %v1803, %v2027
    %v2043 = vmul.f32 %v1804, %v2027
    %v2044 = vmul.f32 %v1805, %v2027
    %v2045 = vmul.f32 %v1806, %v2027
    %v2046 = vmul.f32 %v1807, %v2027
    %v2048 = vlaneseq
    %v2049 = vshrl.u32 %v2048, 7
    %v2050 = vsub.s32 0, %v2049
    %v2051 = vrot.slane %v2022, %v2050
    %v2053 = vadd.f32 %v2029, %v2051
    %v2054 = vadd.f32 %v2030, %v2051
    %v2055 = vadd.f32 %v2031, %v2051
    %v2056 = vadd.f32 %v2032, %v2051
    %v2057 = vadd.f32 %v2033, %v2051
    %v2058 = vadd.f32 %v2034, %v2051
    %v2059 = vadd.f32 %v2035, %v2051
    %v2060 = vadd.f32 %v2036, %v2051
    %v2061 = vadd.f32 %v2037, %v2051
    %v2062 = vadd.f32 %v2038, %v2051
    %v2063 = vadd.f32 %v2039, %v2051
    %v2064 = vadd.f32 %v2040, %v2051
    %v2065 = vadd.f32 %v2041, %v2051
    %v2066 = vadd.f32 %v2042, %v2051
    %v2067 = vadd.f32 %v2043, %v2051
    %v2068 = vadd.f32 %v2044, %v2051
    %v2069 = vadd.f32 %v2045, %v2051
    %v2070 = vadd.f32 %v2046, %v2051
    %v2071 = vmax.f32 %v2053, 0.0
    %v2072 = vmax.f32 %v2054, 0.0
    %v2073 = vmax.f32 %v2055, 0.0
    %v2074 = vmax.f32 %v2056, 0.0
    %v2075 = vmax.f32 %v2057, 0.0
    %v2076 = vmax.f32 %v2058, 0.0
    %v2077 = vmax.f32 %v2059, 0.0
    %v2078 = vmax.f32 %v2060, 0.0
    %v2079 = vmax.f32 %v2061, 0.0
    %v2080 = vmax.f32 %v2062, 0.0
    %v2081 = vmax.f32 %v2063, 0.0
    %v2082 = vmax.f32 %v2064, 0.0
    %v2083 = vmax.f32 %v2065, 0.0
    %v2084 = vmax.f32 %v2066, 0.0
    %v2085 = vmax.f32 %v2067, 0.0
    %v2086 = vmax.f32 %v2068, 0.0
    %v2087 = vmax.f32 %v2069, 0.0
    %v2088 = vmax.f32 %v2070, 0.0
    %v2089 = vrot.slane %v2071, 6
    %v2090 = vrot.slane %v2072, 6
    %v2091 = vrot.slane %v2073, 6
    %v2092 = vrot.slane %v2074, 6
    %v2093 = vrot.slane %v2075, 6
    %v2094 = vrot.slane %v2076, 6
    %v2095 = vrot.slane %v2077, 6
    %v2096 = vrot.slane %v2078, 6
    %v2097 = vrot.slane %v2079, 6
    %v2098 = vrot.slane %v2080, 6
    %v2099 = vrot.slane %v2081, 6
    %v2100 = vrot.slane %v2082, 6
    %v2101 = vrot.slane %v2083, 6
    %v2102 = vrot.slane %v2084, 6
    %v2103 = vrot.slane %v2085, 6
    %v2104 = vrot.slane %v2086, 6
    %v2105 = vrot.slane %v2087, 6
    %v2106 = vrot.slane %v2088, 6
    %v2107 = vsel %vm938, %v2105, %v2106
    %v2108 = vsel %vm938, %v2104, %v2105
    %v2109 = vsel %vm938, %v2103, %v2104
    %v2110 = vsel %vm938, %v2102, %v2103
    %v2111 = vsel %vm938, %v2101, %v2102
    %v2112 = vsel %vm938, %v2100, %v2101
    %v2113 = vsel %vm938, %v2099, %v2100
    %v2114 = vsel %vm938, %v2098, %v2099
    %v2115 = vsel %vm938, %v2097, %v2098
    %v2116 = vsel %vm938, %v2096, %v2097
    %v2117 = vsel %vm938, %v2095, %v2096
    %v2118 = vsel %vm938, %v2094, %v2095
    %v2119 = vsel %vm938, %v2093, %v2094
    %v2120 = vsel %vm938, %v2092, %v2093
    %v2121 = vsel %vm938, %v2091, %v2092
    %v2122 = vsel %vm938, %v2090, %v2091
    %v2123 = vsel %vm938, %v2089, %v2090
    %v2124 = vsel %vm938, %v2106, %v2089
    %v2125 = vmul.f32 %v2124, %v469
    %v2126 = vmul.f32 %v2123, %v470
    %v2127 = vmul.f32 %v2122, %v471
    %v2128 = vmul.f32 %v2121, %v472
    %v2129 = vmul.f32 %v2120, %v473
    %v2130 = vmul.f32 %v2119, %v474
    %v2131 = vmul.f32 %v2118, %v475
    %v2132 = vmul.f32 %v2117, %v476
    %v2133 = vmul.f32 %v2116, %v477
    %v2134 = vmul.f32 %v2115, %v478
    %v2135 = vmul.f32 %v2114, %v479
    %v2136 = vmul.f32 %v2113, %v480
    %v2137 = vmul.f32 %v2112, %v481
    %v2138 = vmul.f32 %v2111, %v482
    %v2139 = vmul.f32 %v2110, %v483
    %v2140 = vmul.f32 %v2109, %v484
    %v2141 = vmul.f32 %v2108, %v485
    %v2142 = vmul.f32 %v2107, %v486
    %v2143 = vpack.c.bf16 %v2126, %v2125
    %v2144 = vpack.c.bf16 %v2128, %v2127
    %v2145 = vpack.c.bf16 %v2130, %v2129
    %v2146 = vpack.c.bf16 %v2132, %v2131
    %v2147 = vpack.c.bf16 %v2134, %v2133
    %v2148 = vpack.c.bf16 %v2136, %v2135
    %v2149 = vpack.c.bf16 %v2138, %v2137
    %v2150 = vpack.c.bf16 %v2140, %v2139
    %v2151 = vpack.c.bf16 %v2142, %v2141
    %v2152 = vrot.slane %v2071, 7
    %v2153 = vrot.slane %v2072, 7
    %v2154 = vrot.slane %v2073, 7
    %v2155 = vrot.slane %v2074, 7
    %v2156 = vrot.slane %v2075, 7
    %v2157 = vrot.slane %v2076, 7
    %v2158 = vrot.slane %v2077, 7
    %v2159 = vrot.slane %v2078, 7
    %v2160 = vrot.slane %v2079, 7
    %v2161 = vrot.slane %v2080, 7
    %v2162 = vrot.slane %v2081, 7
    %v2163 = vrot.slane %v2082, 7
    %v2164 = vrot.slane %v2083, 7
    %v2165 = vrot.slane %v2084, 7
    %v2166 = vrot.slane %v2085, 7
    %v2167 = vrot.slane %v2086, 7
    %v2168 = vrot.slane %v2087, 7
    %v2169 = vrot.slane %v2088, 7
    %v2170 = vsel %vm1123, %v2168, %v2169
    %v2171 = vsel %vm1123, %v2167, %v2168
    %v2172 = vsel %vm1123, %v2166, %v2167
    %v2173 = vsel %vm1123, %v2165, %v2166
    %v2174 = vsel %vm1123, %v2164, %v2165
    %v2175 = vsel %vm1123, %v2163, %v2164
    %v2176 = vsel %vm1123, %v2162, %v2163
    %v2177 = vsel %vm1123, %v2161, %v2162
    %v2178 = vsel %vm1123, %v2160, %v2161
    %v2179 = vsel %vm1123, %v2159, %v2160
    %v2180 = vsel %vm1123, %v2158, %v2159
    %v2181 = vsel %vm1123, %v2157, %v2158
    %v2182 = vsel %vm1123, %v2156, %v2157
    %v2183 = vsel %vm1123, %v2155, %v2156
    %v2184 = vsel %vm1123, %v2154, %v2155
    %v2185 = vsel %vm1123, %v2153, %v2154
    %v2186 = vsel %vm1123, %v2152, %v2153
    %v2187 = vsel %vm1123, %v2169, %v2152
    %v2188 = vmul.f32 %v2187, %v577
    %v2189 = vmul.f32 %v2186, %v578
    %v2190 = vmul.f32 %v2185, %v579
    %v2191 = vmul.f32 %v2184, %v580
    %v2192 = vmul.f32 %v2183, %v581
    %v2193 = vmul.f32 %v2182, %v582
    %v2194 = vmul.f32 %v2181, %v583
    %v2195 = vmul.f32 %v2180, %v584
    %v2196 = vmul.f32 %v2179, %v585
    %v2197 = vmul.f32 %v2178, %v586
    %v2198 = vmul.f32 %v2177, %v587
    %v2199 = vmul.f32 %v2176, %v588
    %v2200 = vmul.f32 %v2175, %v589
    %v2201 = vmul.f32 %v2174, %v590
    %v2202 = vmul.f32 %v2173, %v591
    %v2203 = vmul.f32 %v2172, %v592
    %v2204 = vmul.f32 %v2171, %v593
    %v2205 = vmul.f32 %v2170, %v594
    %v2206 = vpack.c.bf16 %v2189, %v2188
    %v2207 = vpack.c.bf16 %v2191, %v2190
    %v2208 = vpack.c.bf16 %v2193, %v2192
    %v2209 = vpack.c.bf16 %v2195, %v2194
    %v2210 = vpack.c.bf16 %v2197, %v2196
    %v2211 = vpack.c.bf16 %v2199, %v2198
    %v2212 = vpack.c.bf16 %v2201, %v2200
    %v2213 = vpack.c.bf16 %v2203, %v2202
    %v2214 = vpack.c.bf16 %v2205, %v2204
    %v2215 = vmul.f32 %v2071, %v667
    %v2216 = vmul.f32 %v2072, %v668
    %v2217 = vmul.f32 %v2073, %v669
    %v2218 = vmul.f32 %v2074, %v670
    %v2219 = vmul.f32 %v2075, %v671
    %v2220 = vmul.f32 %v2076, %v672
    %v2221 = vmul.f32 %v2077, %v673
    %v2222 = vmul.f32 %v2078, %v674
    %v2223 = vmul.f32 %v2079, %v675
    %v2224 = vmul.f32 %v2080, %v676
    %v2225 = vmul.f32 %v2081, %v677
    %v2226 = vmul.f32 %v2082, %v678
    %v2227 = vmul.f32 %v2083, %v679
    %v2228 = vmul.f32 %v2084, %v680
    %v2229 = vmul.f32 %v2085, %v681
    %v2230 = vmul.f32 %v2086, %v682
    %v2231 = vmul.f32 %v2087, %v683
    %v2232 = vmul.f32 %v2088, %v684
    %v2233 = vpack.c.bf16 %v2216, %v2215
    %v2234 = vpack.c.bf16 %v2218, %v2217
    %v2235 = vpack.c.bf16 %v2220, %v2219
    %v2236 = vpack.c.bf16 %v2222, %v2221
    %v2237 = vpack.c.bf16 %v2224, %v2223
    %v2238 = vpack.c.bf16 %v2226, %v2225
    %v2239 = vpack.c.bf16 %v2228, %v2227
    %v2240 = vpack.c.bf16 %v2230, %v2229
    %v2241 = vpack.c.bf16 %v2232, %v2231
    %v2242 = vrot.slane %v2071, 1
    %v2243 = vrot.slane %v2072, 1
    %v2244 = vrot.slane %v2073, 1
    %v2245 = vrot.slane %v2074, 1
    %v2246 = vrot.slane %v2075, 1
    %v2247 = vrot.slane %v2076, 1
    %v2248 = vrot.slane %v2077, 1
    %v2249 = vrot.slane %v2078, 1
    %v2250 = vrot.slane %v2079, 1
    %v2251 = vrot.slane %v2080, 1
    %v2252 = vrot.slane %v2081, 1
    %v2253 = vrot.slane %v2082, 1
    %v2254 = vrot.slane %v2083, 1
    %v2255 = vrot.slane %v2084, 1
    %v2256 = vrot.slane %v2085, 1
    %v2257 = vrot.slane %v2086, 1
    %v2258 = vrot.slane %v2087, 1
    %v2259 = vrot.slane %v2088, 1
    %v2260 = vsel %vm1456, %v2258, %v2259
    %v2261 = vsel %vm1456, %v2257, %v2258
    %v2262 = vsel %vm1456, %v2256, %v2257
    %v2263 = vsel %vm1456, %v2255, %v2256
    %v2264 = vsel %vm1456, %v2254, %v2255
    %v2265 = vsel %vm1456, %v2253, %v2254
    %v2266 = vsel %vm1456, %v2252, %v2253
    %v2267 = vsel %vm1456, %v2251, %v2252
    %v2268 = vsel %vm1456, %v2250, %v2251
    %v2269 = vsel %vm1456, %v2249, %v2250
    %v2270 = vsel %vm1456, %v2248, %v2249
    %v2271 = vsel %vm1456, %v2247, %v2248
    %v2272 = vsel %vm1456, %v2246, %v2247
    %v2273 = vsel %vm1456, %v2245, %v2246
    %v2274 = vsel %vm1456, %v2244, %v2245
    %v2275 = vsel %vm1456, %v2243, %v2244
    %v2276 = vsel %vm1456, %v2242, %v2243
    %v2277 = vsel %vm1456, %v2259, %v2242
    %v2278 = vmul.f32 %v2276, %v775
    %v2279 = vmul.f32 %v2275, %v776
    %v2280 = vmul.f32 %v2274, %v777
    %v2281 = vmul.f32 %v2273, %v778
    %v2282 = vmul.f32 %v2272, %v779
    %v2283 = vmul.f32 %v2271, %v780
    %v2284 = vmul.f32 %v2270, %v781
    %v2285 = vmul.f32 %v2269, %v782
    %v2286 = vmul.f32 %v2268, %v783
    %v2287 = vmul.f32 %v2267, %v784
    %v2288 = vmul.f32 %v2266, %v785
    %v2289 = vmul.f32 %v2265, %v786
    %v2290 = vmul.f32 %v2264, %v787
    %v2291 = vmul.f32 %v2263, %v788
    %v2292 = vmul.f32 %v2262, %v789
    %v2293 = vmul.f32 %v2261, %v790
    %v2294 = vmul.f32 %v2260, %v791
    %v2295 = vmul.f32 %v2277, %v792
    %v2296 = vpack.c.bf16 %v2279, %v2278
    %v2297 = vpack.c.bf16 %v2281, %v2280
    %v2298 = vpack.c.bf16 %v2283, %v2282
    %v2299 = vpack.c.bf16 %v2285, %v2284
    %v2300 = vpack.c.bf16 %v2287, %v2286
    %v2301 = vpack.c.bf16 %v2289, %v2288
    %v2302 = vpack.c.bf16 %v2291, %v2290
    %v2303 = vpack.c.bf16 %v2293, %v2292
    %v2304 = vpack.c.bf16 %v2295, %v2294
    %v2305 = vrot.slane %v2071, 2
    %v2306 = vrot.slane %v2072, 2
    %v2307 = vrot.slane %v2073, 2
    %v2308 = vrot.slane %v2074, 2
    %v2309 = vrot.slane %v2075, 2
    %v2310 = vrot.slane %v2076, 2
    %v2311 = vrot.slane %v2077, 2
    %v2312 = vrot.slane %v2078, 2
    %v2313 = vrot.slane %v2079, 2
    %v2314 = vrot.slane %v2080, 2
    %v2315 = vrot.slane %v2081, 2
    %v2316 = vrot.slane %v2082, 2
    %v2317 = vrot.slane %v2083, 2
    %v2318 = vrot.slane %v2084, 2
    %v2319 = vrot.slane %v2085, 2
    %v2320 = vrot.slane %v2086, 2
    %v2321 = vrot.slane %v2087, 2
    %v2322 = vrot.slane %v2088, 2
    %v2323 = vsel %vm1641, %v2321, %v2322
    %v2324 = vsel %vm1641, %v2320, %v2321
    %v2325 = vsel %vm1641, %v2319, %v2320
    %v2326 = vsel %vm1641, %v2318, %v2319
    %v2327 = vsel %vm1641, %v2317, %v2318
    %v2328 = vsel %vm1641, %v2316, %v2317
    %v2329 = vsel %vm1641, %v2315, %v2316
    %v2330 = vsel %vm1641, %v2314, %v2315
    %v2331 = vsel %vm1641, %v2313, %v2314
    %v2332 = vsel %vm1641, %v2312, %v2313
    %v2333 = vsel %vm1641, %v2311, %v2312
    %v2334 = vsel %vm1641, %v2310, %v2311
    %v2335 = vsel %vm1641, %v2309, %v2310
    %v2336 = vsel %vm1641, %v2308, %v2309
    %v2337 = vsel %vm1641, %v2307, %v2308
    %v2338 = vsel %vm1641, %v2306, %v2307
    %v2339 = vsel %vm1641, %v2305, %v2306
    %v2340 = vsel %vm1641, %v2322, %v2305
    %v2341 = vmul.f32 %v2339, %v883
    %v2342 = vmul.f32 %v2338, %v884
    %v2343 = vmul.f32 %v2337, %v885
    %v2344 = vmul.f32 %v2336, %v886
    %v2345 = vmul.f32 %v2335, %v887
    %v2346 = vmul.f32 %v2334, %v888
    %v2347 = vmul.f32 %v2333, %v889
    %v2348 = vmul.f32 %v2332, %v890
    %v2349 = vmul.f32 %v2331, %v891
    %v2350 = vmul.f32 %v2330, %v892
    %v2351 = vmul.f32 %v2329, %v893
    %v2352 = vmul.f32 %v2328, %v894
    %v2353 = vmul.f32 %v2327, %v895
    %v2354 = vmul.f32 %v2326, %v896
    %v2355 = vmul.f32 %v2325, %v897
    %v2356 = vmul.f32 %v2324, %v898
    %v2357 = vmul.f32 %v2323, %v899
    %v2358 = vmul.f32 %v2340, %v900
    %v2359 = vpack.c.bf16 %v2342, %v2341
    %v2360 = vpack.c.bf16 %v2344, %v2343
    %v2361 = vpack.c.bf16 %v2346, %v2345
    %v2362 = vpack.c.bf16 %v2348, %v2347
    %v2363 = vpack.c.bf16 %v2350, %v2349
    %v2364 = vpack.c.bf16 %v2352, %v2351
    %v2365 = vpack.c.bf16 %v2354, %v2353
    %v2366 = vpack.c.bf16 %v2356, %v2355
    %v2367 = vpack.c.bf16 %v2358, %v2357
    %2377 = vrot.lane.b32.xlu0 %v2206, 64
    %v2378 = vpop.permute.xlu0 %2377
    %2379 = vrot.lane.b32.xlu0 %v2207, 64
    %v2380 = vpop.permute.xlu0 %2379
    %2381 = vrot.lane.b32.xlu0 %v2208, 64
    %v2382 = vpop.permute.xlu0 %2381
    %2383 = vrot.lane.b32.xlu0 %v2209, 64
    %v2384 = vpop.permute.xlu0 %2383
    %2385 = vrot.lane.b32.xlu0 %v2210, 64
    %v2386 = vpop.permute.xlu0 %2385
    %2387 = vrot.lane.b32.xlu0 %v2211, 64
    %v2388 = vpop.permute.xlu0 %2387
    %2389 = vrot.lane.b32.xlu0 %v2212, 64
    %v2390 = vpop.permute.xlu0 %2389
    %2391 = vrot.lane.b32.xlu0 %v2213, 64
    %v2392 = vpop.permute.xlu0 %2391
    %2393 = vrot.lane.b32.xlu0 %v2214, 64
    %v2394 = vpop.permute.xlu0 %2393
    %2404 = vrot.lane.b32.xlu0 %v2296, 64
    %v2405 = vpop.permute.xlu0 %2404
    %2406 = vrot.lane.b32.xlu0 %v2297, 64
    %v2407 = vpop.permute.xlu0 %2406
    %2408 = vrot.lane.b32.xlu0 %v2298, 64
    %v2409 = vpop.permute.xlu0 %2408
    %2410 = vrot.lane.b32.xlu0 %v2299, 64
    %v2411 = vpop.permute.xlu0 %2410
    %2412 = vrot.lane.b32.xlu0 %v2300, 64
    %v2413 = vpop.permute.xlu0 %2412
    %2414 = vrot.lane.b32.xlu0 %v2301, 64
    %v2415 = vpop.permute.xlu0 %2414
    %2416 = vrot.lane.b32.xlu0 %v2302, 64
    %v2417 = vpop.permute.xlu0 %2416
    %2418 = vrot.lane.b32.xlu0 %v2303, 64
    %v2419 = vpop.permute.xlu0 %2418
    %2420 = vrot.lane.b32.xlu0 %v2304, 64
    %v2421 = vpop.permute.xlu0 %2420
    %v2424 = vsel %vm1900, %v2143, %v2378
    %v2428 = vsel %vm1900, %v2144, %v2380
    %v2432 = vsel %vm1900, %v2145, %v2382
    %v2436 = vsel %vm1900, %v2146, %v2384
    %v2440 = vsel %vm1900, %v2147, %v2386
    %v2444 = vsel %vm1900, %v2148, %v2388
    %v2448 = vsel %vm1900, %v2149, %v2390
    %v2452 = vsel %vm1900, %v2150, %v2392
    %v2456 = vsel %vm1900, %v2151, %v2394
    %v2460 = vsel %vm1900, %v2233, %v2405
    %v2464 = vsel %vm1900, %v2234, %v2407
    %v2468 = vsel %vm1900, %v2235, %v2409
    %v2472 = vsel %vm1900, %v2236, %v2411
    %v2476 = vsel %vm1900, %v2237, %v2413
    %v2480 = vsel %vm1900, %v2238, %v2415
    %v2484 = vsel %vm1900, %v2239, %v2417
    %v2488 = vsel %vm1900, %v2240, %v2419
    %v2492 = vsel %vm1900, %v2241, %v2421
    %v2494 = vld [vmem:[%s4] sm:$0xf]
    %v2495 = vld [vmem:[%s4 + $0x4] sm:$0xf]
    %v2496 = vld [vmem:[%s4 + $0x8] sm:$0xf]
    %v2497 = vld [vmem:[%s4 + $0xc] sm:$0xf]
    %v2498 = vld [vmem:[%s4 + $0x10] sm:$0xf]
    %v2499 = vld [vmem:[%s4 + $0x14] sm:$0xf]
    %v2500 = vld [vmem:[%s4 + $0x18] sm:$0xf]
    %v2501 = vld [vmem:[%s4 + $0x1c] sm:$0xf]
    %v2502 = vld [vmem:[%s4 + $0x20] sm:$0xf]
    %v2503 = vld [vmem:[%s4 + $0x24] sm:$0xf]
    %v2504 = vld [vmem:[%s4 + $0x28] sm:$0xf]
    %v2505 = vld [vmem:[%s4 + $0x2c] sm:$0xf]
    %v2506 = vld [vmem:[%s4 + $0x30] sm:$0xf]
    %v2507 = vld [vmem:[%s4 + $0x34] sm:$0xf]
    %v2508 = vld [vmem:[%s4 + $0x38] sm:$0xf]
    %v2509 = vld [vmem:[%s4 + $0x3c] sm:$0xf]
    %v2510 = vld [vmem:[%s4 + $0x40] sm:$0xf]
    %v2511 = vld [vmem:[%s4 + $0x44] sm:$0xf]
    %v2512 = vld [vmem:[%s4 + $0x48] sm:$0xf]
    %v2513 = vld [vmem:[%s4 + $0x4c] sm:$0xf]
    %v2514 = vld [vmem:[%s4 + $0x50] sm:$0xf]
    %v2515 = vld [vmem:[%s4 + $0x54] sm:$0xf]
    %v2516 = vld [vmem:[%s4 + $0x58] sm:$0xf]
    %v2517 = vld [vmem:[%s4 + $0x5c] sm:$0xf]
    %v2518 = vld [vmem:[%s4 + $0x60] sm:$0xf]
    %v2519 = vld [vmem:[%s4 + $0x64] sm:$0xf]
    %v2520 = vld [vmem:[%s4 + $0x68] sm:$0xf]
    %v2521 = vld [vmem:[%s4 + $0x6c] sm:$0xf]
    %v2522 = vld [vmem:[%s4 + $0x70] sm:$0xf]
    %v2523 = vld [vmem:[%s4 + $0x74] sm:$0xf]
    %v2524 = vld [vmem:[%s4 + $0x78] sm:$0xf]
    %v2525 = vld [vmem:[%s4 + $0x7c] sm:$0xf]
    %v2526 = vld [vmem:[%s4 + $0x80] sm:$0xf]
    %v2527 = vld [vmem:[%s4 + $0x84] sm:$0xf]
    %v2528 = vld [vmem:[%s4 + $0x88] sm:$0xf]
    %v2529 = vld [vmem:[%s4 + $0x8c] sm:$0xf]
    %v2530 = vld [vmem:[%s4 + $0x90] sm:$0xf]
    %v2531 = vld [vmem:[%s4 + $0x94] sm:$0xf]
    %v2532 = vld [vmem:[%s4 + $0x98] sm:$0xf]
    %v2533 = vld [vmem:[%s4 + $0x9c] sm:$0xf]
    %v2574 = vunpack.c.l.b16 %v2494
    %v2575 = vunpack.c.l.b16 %v2495
    %v2576 = vunpack.c.l.b16 %v2496
    %v2577 = vunpack.c.l.b16 %v2497
    %v2578 = vunpack.c.l.b16 %v2498
    %v2579 = vunpack.c.l.b16 %v2499
    %v2580 = vunpack.c.l.b16 %v2500
    %v2581 = vunpack.c.l.b16 %v2501
    %v2582 = vunpack.c.l.b16 %v2502
    %v2583 = vunpack.c.l.b16 %v2503
    %v2584 = vunpack.c.l.b16 %v2504
    %v2585 = vunpack.c.l.b16 %v2505
    %v2586 = vunpack.c.l.b16 %v2506
    %v2587 = vunpack.c.l.b16 %v2507
    %v2588 = vunpack.c.l.b16 %v2508
    %v2589 = vunpack.c.l.b16 %v2509
    %v2590 = vunpack.c.l.b16 %v2510
    %v2591 = vunpack.c.l.b16 %v2511
    %v2592 = vunpack.c.l.b16 %v2512
    %v2593 = vunpack.c.l.b16 %v2513
    %v2594 = vunpack.c.l.b16 %v2514
    %v2595 = vunpack.c.l.b16 %v2515
    %v2596 = vunpack.c.l.b16 %v2516
    %v2597 = vunpack.c.l.b16 %v2517
    %v2598 = vunpack.c.l.b16 %v2518
    %v2599 = vunpack.c.l.b16 %v2519
    %v2600 = vunpack.c.l.b16 %v2520
    %v2601 = vunpack.c.l.b16 %v2521
    %v2602 = vunpack.c.l.b16 %v2522
    %v2603 = vunpack.c.l.b16 %v2523
    %v2604 = vunpack.c.l.b16 %v2524
    %v2605 = vunpack.c.l.b16 %v2525
    %v2606 = vunpack.c.l.b16 %v2526
    %v2607 = vunpack.c.l.b16 %v2527
    %v2608 = vunpack.c.l.b16 %v2528
    %v2609 = vunpack.c.l.b16 %v2529
    %v2610 = vunpack.c.l.b16 %v2530
    %v2611 = vunpack.c.l.b16 %v2531
    %v2612 = vunpack.c.l.b16 %v2532
    %v2613 = vunpack.c.l.b16 %v2533
    %v2614 = vpack.c.b16 %v2575, %v2574
    %v2615 = vpack.c.b16 %v2577, %v2576
    %v2616 = vpack.c.b16 %v2579, %v2578
    %v2617 = vpack.c.b16 %v2581, %v2580
    %v2618 = vpack.c.b16 %v2583, %v2582
    %v2619 = vpack.c.b16 %v2585, %v2584
    %v2620 = vpack.c.b16 %v2587, %v2586
    %v2621 = vpack.c.b16 %v2589, %v2588
    %v2622 = vpack.c.b16 %v2591, %v2590
    %v2623 = vpack.c.b16 %v2593, %v2592
    %v2624 = vpack.c.b16 %v2595, %v2594
    %v2625 = vpack.c.b16 %v2597, %v2596
    %v2626 = vpack.c.b16 %v2599, %v2598
    %v2627 = vpack.c.b16 %v2601, %v2600
    %v2628 = vpack.c.b16 %v2603, %v2602
    %v2629 = vpack.c.b16 %v2605, %v2604
    %v2630 = vpack.c.b16 %v2607, %v2606
    %v2631 = vpack.c.b16 %v2609, %v2608
    %v2632 = vpack.c.b16 %v2611, %v2610
    %v2633 = vpack.c.b16 %v2613, %v2612
    %v2655 = vsel %vm1900, %v2359, 0
    %v2658 = vsel %vm1900, %v2360, 0
    %v2661 = vsel %vm1900, %v2361, 0
    %v2664 = vsel %vm1900, %v2362, 0
    %v2667 = vsel %vm1900, %v2363, 0
    %v2670 = vsel %vm1900, %v2364, 0
    %v2673 = vsel %vm1900, %v2365, 0
    %v2676 = vsel %vm1900, %v2366, 0
    %v2679 = vsel %vm1900, %v2367, 0
    %2681 = vmatprep.subr.bf16.mxu0 0
    %2682 = vmatpush1.bf16.msra.mxu0 %v2614
    %2683 = vmatprep.subr.bf16.mxu0 0
    %2684 = vmatpush1.bf16.msra.mxu0 %v2615
    %2685 = vmatprep.subr.bf16.mxu0 0
    %2686 = vmatpush1.bf16.msra.mxu0 %v2616
    %2687 = vmatprep.subr.bf16.mxu0 0
    %2688 = vmatpush1.bf16.msra.mxu0 %v2617
    %2689 = vmatprep.subr.bf16.mxu0 0
    %2690 = vmatpush1.bf16.msra.mxu0 %v2618
    %2691 = vmatprep.subr.bf16.mxu0 0
    %2692 = vmatpush1.bf16.msra.mxu0 %v2619
    %2693 = vmatprep.subr.bf16.mxu0 0
    %2694 = vmatpush1.bf16.msra.mxu0 %v2620
    %2695 = vmatprep.subr.bf16.mxu0 0
    %2696 = vmatpush1.bf16.msra.mxu0 %v2621
    %2697 = vmatprep.subr.bf16.mxu0 0
    %2698 = vmatpush1.bf16.msra.mxu0 %v2622
    %2699 = vmatprep.subr.bf16.mxu0 0
    %2700 = vmatpush1.bf16.msra.mxu0 %v2623
    %2701 = vmatprep.subr.bf16.mxu0 0
    %2702 = vmatpush1.bf16.msra.mxu0 %v2624
    %2703 = vmatprep.subr.bf16.mxu0 0
    %2704 = vmatpush1.bf16.msra.mxu0 %v2625
    %2705 = vmatprep.subr.bf16.mxu0 0
    %2706 = vmatpush1.bf16.msra.mxu0 %v2626
    %2707 = vmatprep.subr.bf16.mxu0 0
    %2708 = vmatpush1.bf16.msra.mxu0 %v2627
    %2709 = vmatprep.subr.bf16.mxu0 0
    %2710 = vmatpush1.bf16.msra.mxu0 %v2628
    %2711 = vmatprep.subr.bf16.mxu0 0
    %2712 = vmatpush1.bf16.msra.mxu0 %v2629
    %2713 = vmatprep.mubr.bf16.mxu0 %v2460
    %2714 = vmatmul.mubr.bf16.gmra.mrb[0].mxu0 %v2424
    %v2715 = vpop.f32.mrb[0].mxu0
    %v2716 = vadd.f32 0.0, %v2715
    %v2717 = vpop.f32.mrb[0].mxu0
    %v2718 = vpop.f32.mrb[0].mxu0
    %v2719 = vadd.f32 0.0, %v2718
    %v2720 = vpop.f32.mrb[0].mxu0
    %2721 = vmatprep.mubr.bf16.mxu0 %v2464
    %2722 = vmatmul.mubr.bf16.gmra.mrb[0].mxu0 %v2428
    %v2723 = vpop.f32.mrb[0].mxu0
    %v2724 = vadd.f32 0.0, %v2723
    %v2725 = vpop.f32.mrb[0].mxu0
    %v2726 = vpop.f32.mrb[0].mxu0
    %v2727 = vadd.f32 0.0, %v2726
    %v2728 = vpop.f32.mrb[0].mxu0
    %2729 = vmatprep.mubr.bf16.mxu0 %v2468
    %2730 = vmatmul.mubr.bf16.gmra.mrb[0].mxu0 %v2432
    %v2731 = vpop.f32.mrb[0].mxu0
    %v2732 = vadd.f32 0.0, %v2731
    %v2733 = vpop.f32.mrb[0].mxu0
    %v2734 = vpop.f32.mrb[0].mxu0
    %v2735 = vadd.f32 0.0, %v2734
    %v2736 = vpop.f32.mrb[0].mxu0
    %2737 = vmatprep.mubr.bf16.mxu0 %v2472
    %2738 = vmatmul.mubr.bf16.gmra.mrb[0].mxu0 %v2436
    %v2739 = vpop.f32.mrb[0].mxu0
    %v2740 = vadd.f32 0.0, %v2739
    %v2741 = vpop.f32.mrb[0].mxu0
    %v2742 = vpop.f32.mrb[0].mxu0
    %v2743 = vadd.f32 0.0, %v2742
    %v2744 = vpop.f32.mrb[0].mxu0
    %2745 = vmatprep.mubr.bf16.mxu0 %v2476
    %2746 = vmatmul.mubr.bf16.gmra.mrb[0].mxu0 %v2440
    %v2747 = vpop.f32.mrb[0].mxu0
    %v2748 = vadd.f32 0.0, %v2747
    %v2749 = vpop.f32.mrb[0].mxu0
    %v2750 = vpop.f32.mrb[0].mxu0
    %v2751 = vadd.f32 0.0, %v2750
    %v2752 = vpop.f32.mrb[0].mxu0
    %2753 = vmatprep.mubr.bf16.mxu0 %v2480
    %2754 = vmatmul.mubr.bf16.gmra.mrb[0].mxu0 %v2444
    %v2755 = vpop.f32.mrb[0].mxu0
    %v2756 = vadd.f32 0.0, %v2755
    %v2757 = vpop.f32.mrb[0].mxu0
    %v2758 = vpop.f32.mrb[0].mxu0
    %v2759 = vadd.f32 0.0, %v2758
    %v2760 = vpop.f32.mrb[0].mxu0
    %2761 = vmatprep.mubr.bf16.mxu0 %v2484
    %2762 = vmatmul.mubr.bf16.gmra.mrb[0].mxu0 %v2448
    %v2763 = vpop.f32.mrb[0].mxu0
    %v2764 = vadd.f32 0.0, %v2763
    %v2765 = vpop.f32.mrb[0].mxu0
    %v2766 = vpop.f32.mrb[0].mxu0
    %v2767 = vadd.f32 0.0, %v2766
    %v2768 = vpop.f32.mrb[0].mxu0
    %2769 = vmatprep.mubr.bf16.mxu0 %v2488
    %2770 = vmatmul.mubr.bf16.gmra.mrb[0].mxu0 %v2452
    %v2771 = vpop.f32.mrb[0].mxu0
    %v2772 = vadd.f32 0.0, %v2771
    %v2773 = vpop.f32.mrb[0].mxu0
    %v2774 = vpop.f32.mrb[0].mxu0
    %v2775 = vadd.f32 0.0, %v2774
    %v2776 = vpop.f32.mrb[0].mxu0
    %2777 = vmatprep.mubr.bf16.mxu0 %v2492
    %2778 = vmatmul.mubr.bf16.gmra.mrb[0].mxu0 %v2456
    %v2779 = vpop.f32.mrb[0].mxu0
    %v2780 = vadd.f32 0.0, %v2779
    %v2781 = vpop.f32.mrb[0].mxu0
    %v2782 = vpop.f32.mrb[0].mxu0
    %v2783 = vadd.f32 0.0, %v2782
    %v2784 = vpop.f32.mrb[0].mxu0
    %2785 = vdwg.mxu0
    %2786 = vmatprep.subr.bf16.mxu0 0
    %2787 = vmatpush1.bf16.msra.mxu0 %v2630
    %2788 = vmatprep.subr.bf16.mxu0 0
    %2789 = vmatpush1.bf16.msra.mxu0 %v2631
    %2790 = vmatprep.subr.bf16.mxu0 0
    %2791 = vmatpush1.bf16.msra.mxu0 %v2632
    %2792 = vmatprep.subr.bf16.mxu0 0
    %2793 = vmatpush1.bf16.msra.mxu0 %v2633
    %2794 = vmatprep.subr.bf16.mxu0 0
    %2795 = vmatpush1.bf16.msra.mxu0 0
    %2796 = vmatprep.subr.bf16.mxu0 0
    %2797 = vmatpush1.bf16.msra.mxu0 0
    %2798 = vmatprep.subr.bf16.mxu0 0
    %2799 = vmatpush1.bf16.msra.mxu0 0
    %2800 = vmatprep.subr.bf16.mxu0 0
    %2801 = vmatpush1.bf16.msra.mxu0 0
    %2802 = vmatprep.subr.bf16.mxu0 0
    %2803 = vmatpush1.bf16.msra.mxu0 0
    %2804 = vmatprep.subr.bf16.mxu0 0
    %2805 = vmatpush1.bf16.msra.mxu0 0
    %2806 = vmatprep.subr.bf16.mxu0 0
    %2807 = vmatpush1.bf16.msra.mxu0 0
    %2808 = vmatprep.subr.bf16.mxu0 0
    %2809 = vmatpush1.bf16.msra.mxu0 0
    %2810 = vmatprep.subr.bf16.mxu0 0
    %2811 = vmatpush1.bf16.msra.mxu0 0
    %2812 = vmatprep.subr.bf16.mxu0 0
    %2813 = vmatpush1.bf16.msra.mxu0 0
    %2814 = vmatprep.subr.bf16.mxu0 0
    %2815 = vmatpush1.bf16.msra.mxu0 0
    %2816 = vmatprep.subr.bf16.mxu0 0
    %2817 = vmatpush1.bf16.msra.mxu0 0
    %2818 = vmatprep.mubr.bf16.mxu0 0
    %2819 = vmatmul.mubr.bf16.gmra.mrb[0].mxu0 %v2655
    %v2820 = vpop.f32.mrb[0].mxu0
    %v2821 = vadd.f32 %v2716, %v2820
    %v2822 = vpop.f32.mrb[0].mxu0
    %v2823 = vpop.f32.mrb[0].mxu0
    %v2824 = vadd.f32 %v2719, %v2823
    %v2825 = vpop.f32.mrb[0].mxu0
    %2826 = vmatprep.mubr.bf16.mxu0 0
    %2827 = vmatmul.mubr.bf16.gmra.mrb[0].mxu0 %v2658
    %v2828 = vpop.f32.mrb[0].mxu0
    %v2829 = vadd.f32 %v2724, %v2828
    %v2830 = vpop.f32.mrb[0].mxu0
    %v2831 = vpop.f32.mrb[0].mxu0
    %v2832 = vadd.f32 %v2727, %v2831
    %v2833 = vpop.f32.mrb[0].mxu0
    %2834 = vmatprep.mubr.bf16.mxu0 0
    %2835 = vmatmul.mubr.bf16.gmra.mrb[0].mxu0 %v2661
    %v2836 = vpop.f32.mrb[0].mxu0
    %v2837 = vadd.f32 %v2732, %v2836
    %v2838 = vpop.f32.mrb[0].mxu0
    %v2839 = vpop.f32.mrb[0].mxu0
    %v2840 = vadd.f32 %v2735, %v2839
    %v2841 = vpop.f32.mrb[0].mxu0
    %2842 = vmatprep.mubr.bf16.mxu0 0
    %2843 = vmatmul.mubr.bf16.gmra.mrb[0].mxu0 %v2664
    %v2844 = vpop.f32.mrb[0].mxu0
    %v2845 = vadd.f32 %v2740, %v2844
    %v2846 = vpop.f32.mrb[0].mxu0
    %v2847 = vpop.f32.mrb[0].mxu0
    %v2848 = vadd.f32 %v2743, %v2847
    %v2849 = vpop.f32.mrb[0].mxu0
    %2850 = vmatprep.mubr.bf16.mxu0 0
    %2851 = vmatmul.mubr.bf16.gmra.mrb[0].mxu0 %v2667
    %v2852 = vpop.f32.mrb[0].mxu0
    %v2853 = vadd.f32 %v2748, %v2852
    %v2854 = vpop.f32.mrb[0].mxu0
    %v2855 = vpop.f32.mrb[0].mxu0
    %v2856 = vadd.f32 %v2751, %v2855
    %v2857 = vpop.f32.mrb[0].mxu0
    %2858 = vmatprep.mubr.bf16.mxu0 0
    %2859 = vmatmul.mubr.bf16.gmra.mrb[0].mxu0 %v2670
    %v2860 = vpop.f32.mrb[0].mxu0
    %v2861 = vadd.f32 %v2756, %v2860
    %v2862 = vpop.f32.mrb[0].mxu0
    %v2863 = vpop.f32.mrb[0].mxu0
    %v2864 = vadd.f32 %v2759, %v2863
    %v2865 = vpop.f32.mrb[0].mxu0
    %2866 = vmatprep.mubr.bf16.mxu0 0
    %2867 = vmatmul.mubr.bf16.gmra.mrb[0].mxu0 %v2673
    %v2868 = vpop.f32.mrb[0].mxu0
    %v2869 = vadd.f32 %v2764, %v2868
    %v2870 = vpop.f32.mrb[0].mxu0
    %v2871 = vpop.f32.mrb[0].mxu0
    %v2872 = vadd.f32 %v2767, %v2871
    %v2873 = vpop.f32.mrb[0].mxu0
    %2874 = vmatprep.mubr.bf16.mxu0 0
    %2875 = vmatmul.mubr.bf16.gmra.mrb[0].mxu0 %v2676
    %v2876 = vpop.f32.mrb[0].mxu0
    %v2877 = vadd.f32 %v2772, %v2876
    %v2878 = vpop.f32.mrb[0].mxu0
    %v2879 = vpop.f32.mrb[0].mxu0
    %v2880 = vadd.f32 %v2775, %v2879
    %v2881 = vpop.f32.mrb[0].mxu0
    %2882 = vmatprep.mubr.bf16.mxu0 0
    %2883 = vmatmul.mubr.bf16.gmra.mrb[0].mxu0 %v2679
    %v2884 = vpop.f32.mrb[0].mxu0
    %v2885 = vadd.f32 %v2780, %v2884
    %v2886 = vpop.f32.mrb[0].mxu0
    %v2887 = vpop.f32.mrb[0].mxu0
    %v2888 = vadd.f32 %v2783, %v2887
    %v2889 = vpop.f32.mrb[0].mxu0
    %2890 = vdwg.mxu0
    %v2891 = vld [vmem:[%s5] sm:$0x1]
    %v2892 = vld [vmem:[%s6] sm:$0x1]
    %v2893 = vmul.f32 %v2821, %v2821
    %v2894 = vmul.f32 %v2824, %v2824
    %v2895 = vmul.f32 %v2829, %v2829
    %v2896 = vmul.f32 %v2832, %v2832
    %v2897 = vmul.f32 %v2837, %v2837
    %v2898 = vmul.f32 %v2840, %v2840
    %v2899 = vmul.f32 %v2845, %v2845
    %v2900 = vmul.f32 %v2848, %v2848
    %v2901 = vmul.f32 %v2853, %v2853
    %v2902 = vmul.f32 %v2856, %v2856
    %v2903 = vmul.f32 %v2861, %v2861
    %v2904 = vmul.f32 %v2864, %v2864
    %v2905 = vmul.f32 %v2869, %v2869
    %v2906 = vmul.f32 %v2872, %v2872
    %v2907 = vmul.f32 %v2877, %v2877
    %v2908 = vmul.f32 %v2880, %v2880
    %v2909 = vmul.f32 %v2885, %v2885
    %v2910 = vmul.f32 %v2888, %v2888
    %2929 = vrot.lane.b32.xlu0 %v2893, 64
    %v2930 = vpop.permute.xlu0 %2929
    %2931 = vrot.lane.b32.xlu0 %v2894, 64
    %v2932 = vpop.permute.xlu0 %2931
    %2933 = vrot.lane.b32.xlu0 %v2895, 64
    %v2934 = vpop.permute.xlu0 %2933
    %2935 = vrot.lane.b32.xlu0 %v2896, 64
    %v2936 = vpop.permute.xlu0 %2935
    %2937 = vrot.lane.b32.xlu0 %v2897, 64
    %v2938 = vpop.permute.xlu0 %2937
    %2939 = vrot.lane.b32.xlu0 %v2898, 64
    %v2940 = vpop.permute.xlu0 %2939
    %2941 = vrot.lane.b32.xlu0 %v2899, 64
    %v2942 = vpop.permute.xlu0 %2941
    %2943 = vrot.lane.b32.xlu0 %v2900, 64
    %v2944 = vpop.permute.xlu0 %2943
    %2945 = vrot.lane.b32.xlu0 %v2901, 64
    %v2946 = vpop.permute.xlu0 %2945
    %2947 = vrot.lane.b32.xlu0 %v2902, 64
    %v2948 = vpop.permute.xlu0 %2947
    %2949 = vrot.lane.b32.xlu0 %v2903, 64
    %v2950 = vpop.permute.xlu0 %2949
    %2951 = vrot.lane.b32.xlu0 %v2904, 64
    %v2952 = vpop.permute.xlu0 %2951
    %2953 = vrot.lane.b32.xlu0 %v2905, 64
    %v2954 = vpop.permute.xlu0 %2953
    %2955 = vrot.lane.b32.xlu0 %v2906, 64
    %v2956 = vpop.permute.xlu0 %2955
    %2957 = vrot.lane.b32.xlu0 %v2907, 64
    %v2958 = vpop.permute.xlu0 %2957
    %2959 = vrot.lane.b32.xlu0 %v2908, 64
    %v2960 = vpop.permute.xlu0 %2959
    %2961 = vrot.lane.b32.xlu0 %v2909, 64
    %v2962 = vpop.permute.xlu0 %2961
    %2963 = vrot.lane.b32.xlu0 %v2910, 64
    %v2964 = vpop.permute.xlu0 %2963
    %v2983 = vsel %vm1900, %v2821, %v2930
    %v2984 = vsel %vm1900, %v2824, %v2932
    %v2985 = vsel %vm1900, %v2829, %v2934
    %v2986 = vsel %vm1900, %v2832, %v2936
    %v2987 = vsel %vm1900, %v2837, %v2938
    %v2988 = vsel %vm1900, %v2840, %v2940
    %v2989 = vsel %vm1900, %v2845, %v2942
    %v2990 = vsel %vm1900, %v2848, %v2944
    %v2991 = vsel %vm1900, %v2853, %v2946
    %v2992 = vsel %vm1900, %v2856, %v2948
    %v2993 = vsel %vm1900, %v2861, %v2950
    %v2994 = vsel %vm1900, %v2864, %v2952
    %v2995 = vsel %vm1900, %v2869, %v2954
    %v2996 = vsel %vm1900, %v2872, %v2956
    %v2997 = vsel %vm1900, %v2877, %v2958
    %v2998 = vsel %vm1900, %v2880, %v2960
    %v2999 = vsel %vm1900, %v2885, %v2962
    %v3000 = vsel %vm1900, %v2888, %v2964
    %3001 = vmatprep.subr.mxu0 0.0
    %3002 = vmatpush1.msra.mxu0 %v2983
    %3003 = vmatprep.subr.mxu0 0.0
    %3004 = vmatpush1.msra.mxu0 %v2984
    %3005 = vmatprep.subr.mxu0 0.0
    %3006 = vmatpush1.msra.mxu0 %v2985
    %3007 = vmatprep.subr.mxu0 0.0
    %3008 = vmatpush1.msra.mxu0 %v2986
    %3009 = vmatprep.subr.mxu0 0.0
    %3010 = vmatpush1.msra.mxu0 %v2987
    %3011 = vmatprep.subr.mxu0 0.0
    %3012 = vmatpush1.msra.mxu0 %v2988
    %3013 = vmatprep.subr.mxu0 0.0
    %3014 = vmatpush1.msra.mxu0 %v2989
    %3015 = vmatprep.subr.mxu0 0.0
    %3016 = vmatpush1.msra.mxu0 %v2990
    %3017 = vmatprep.subr.mxu0 0.0
    %3018 = vmatpush1.msra.mxu0 %v2991
    %3019 = vmatprep.subr.mxu0 0.0
    %3020 = vmatpush1.msra.mxu0 %v2992
    %3021 = vmatprep.subr.mxu0 0.0
    %3022 = vmatpush1.msra.mxu0 %v2993
    %3023 = vmatprep.subr.mxu0 0.0
    %3024 = vmatpush1.msra.mxu0 %v2994
    %3025 = vmatprep.subr.mxu0 0.0
    %3026 = vmatpush1.msra.mxu0 %v2995
    %3027 = vmatprep.subr.mxu0 0.0
    %3028 = vmatpush1.msra.mxu0 %v2996
    %3029 = vmatprep.subr.mxu0 0.0
    %3030 = vmatpush1.msra.mxu0 %v2997
    %3031 = vmatprep.subr.mxu0 0.0
    %3032 = vmatpush1.msra.mxu0 %v2998
    %3033 = vmatprep.subr.mxu0 0.0
    %3034 = vmatpush1.msra.mxu0 %v2999
    %3035 = vmatprep.subr.mxu0 0.0
    %3036 = vmatpush1.msra.mxu0 %v3000
    %3037 = vmatprep.subr.mxu0 0.0
    %3038 = vmatpush1.msra.mxu0 0.0
    %3039 = vmatprep.subr.mxu0 0.0
    %3040 = vmatpush1.msra.mxu0 0.0
    %3041 = vmatprep.subr.mxu0 0.0
    %3042 = vmatpush1.msra.mxu0 0.0
    %3043 = vmatprep.subr.mxu0 0.0
    %3044 = vmatpush1.msra.mxu0 0.0
    %3045 = vmatprep.subr.mxu0 0.0
    %3046 = vmatpush1.msra.mxu0 0.0
    %3047 = vmatprep.subr.mxu0 0.0
    %3048 = vmatpush1.msra.mxu0 0.0
    %3049 = vmatprep.subr.mxu0 0.0
    %3050 = vmatpush1.msra.mxu0 0.0
    %3051 = vmatprep.subr.mxu0 0.0
    %3052 = vmatpush1.msra.mxu0 0.0
    %3053 = vmatprep.subr.mxu0 0.0
    %3054 = vmatpush1.msra.mxu0 0.0
    %3055 = vmatprep.subr.mxu0 0.0
    %3056 = vmatpush1.msra.mxu0 0.0
    %3057 = vmatprep.subr.mxu0 0.0
    %3058 = vmatpush1.msra.mxu0 0.0
    %3059 = vmatprep.subr.mxu0 0.0
    %3060 = vmatpush1.msra.mxu0 0.0
    %3061 = vmatprep.subr.mxu0 0.0
    %3062 = vmatpush1.msra.mxu0 0.0
    %3063 = vmatprep.subr.mxu0 0.0
    %3064 = vmatpush1.msra.mxu0 0.0
    %3065 = vmatprep.mubr.f32.mxu0 %v1921
    %3066 = vmatmul.mubr.f32.gmra.mrb[0].mxu0 1.0
    %v3067 = vpop.f32.mrb[0].mxu0
    %v3068 = vadd.f32 0.0, %v3067
    %v3069 = vpop.f32.mrb[0].mxu0
    %3070 = vdwg.mxu0
    %v3071 = vmul.f32 %v3068, 0.0069444445
    %v3072 = vmul.f32 %v3071, %v3071
    %3074 = vrot.lane.b32.xlu0 %v3072, 64
    %v3075 = vpop.permute.xlu0 %3074
    %v3077 = vsub.f32 %v3071, %v3075
    %v3078 = vadd.f32 %v3077, 1e-05
    %v3079 = vrsqrt.pop %v3078
    %v3082 = vunpack.c.l.s4 1966171168
    %v3083 = vunpack.c.0.s8 %v3082
    %v3084 = vlaneseq
    %v3085 = vshrl.u32 %v3084, 7
    %v3086 = vsub.s32 %v3083, %v3085
    %v3087 = vrot.slane %v3079, %v3086
    %v3089 = vunpack.c.l.s4 1966171168
    %v3090 = vunpack.c.0.s8 %v3089
    %v3091 = vlaneseq
    %v3092 = vshrl.u32 %v3091, 7
    %v3093 = vsub.s32 %v3090, %v3092
    %v3094 = vrot.slane %v3087, %v3093
    %3095 = vrot.lane.b32.xlu0 %v3094, 64
    %v3096 = vpop.permute.xlu0 %3095
    %v3098 = vmul.f32 %v2891, %v3096
    %v3099 = vmul.f32 %v3071, %v3098
    %v3100 = vsub.f32 %v2892, %v3099
    %v3102 = vlaneseq
    %v3103 = vshrl.u32 %v3102, 7
    %v3104 = vsub.s32 0, %v3103
    %v3105 = vrot.slane %v3098, %v3104
    %v3107 = vmul.f32 %v2821, %v3105
    %v3108 = vmul.f32 %v2824, %v3105
    %v3109 = vmul.f32 %v2829, %v3105
    %v3110 = vmul.f32 %v2832, %v3105
    %v3111 = vmul.f32 %v2837, %v3105
    %v3112 = vmul.f32 %v2840, %v3105
    %v3113 = vmul.f32 %v2845, %v3105
    %v3114 = vmul.f32 %v2848, %v3105
    %v3115 = vmul.f32 %v2853, %v3105
    %v3116 = vmul.f32 %v2856, %v3105
    %v3117 = vmul.f32 %v2861, %v3105
    %v3118 = vmul.f32 %v2864, %v3105
    %v3119 = vmul.f32 %v2869, %v3105
    %v3120 = vmul.f32 %v2872, %v3105
    %v3121 = vmul.f32 %v2877, %v3105
    %v3122 = vmul.f32 %v2880, %v3105
    %v3123 = vmul.f32 %v2885, %v3105
    %v3124 = vmul.f32 %v2888, %v3105
    %v3126 = vlaneseq
    %v3127 = vshrl.u32 %v3126, 7
    %v3128 = vsub.s32 0, %v3127
    %v3129 = vrot.slane %v3100, %v3128
    %v3131 = vadd.f32 %v3107, %v3129
    %v3132 = vadd.f32 %v3108, %v3129
    %v3133 = vadd.f32 %v3109, %v3129
    %v3134 = vadd.f32 %v3110, %v3129
    %v3135 = vadd.f32 %v3111, %v3129
    %v3136 = vadd.f32 %v3112, %v3129
    %v3137 = vadd.f32 %v3113, %v3129
    %v3138 = vadd.f32 %v3114, %v3129
    %v3139 = vadd.f32 %v3115, %v3129
    %v3140 = vadd.f32 %v3116, %v3129
    %v3141 = vadd.f32 %v3117, %v3129
    %v3142 = vadd.f32 %v3118, %v3129
    %v3143 = vadd.f32 %v3119, %v3129
    %v3144 = vadd.f32 %v3120, %v3129
    %v3145 = vadd.f32 %v3121, %v3129
    %v3146 = vadd.f32 %v3122, %v3129
    %v3147 = vadd.f32 %v3123, %v3129
    %v3148 = vadd.f32 %v3124, %v3129
    %v3149 = vmax.f32 %v3131, 0.0
    %v3150 = vmax.f32 %v3132, 0.0
    %v3151 = vmax.f32 %v3133, 0.0
    %v3152 = vmax.f32 %v3134, 0.0
    %v3153 = vmax.f32 %v3135, 0.0
    %v3154 = vmax.f32 %v3136, 0.0
    %v3155 = vmax.f32 %v3137, 0.0
    %v3156 = vmax.f32 %v3138, 0.0
    %v3157 = vmax.f32 %v3139, 0.0
    %v3158 = vmax.f32 %v3140, 0.0
    %v3159 = vmax.f32 %v3141, 0.0
    %v3160 = vmax.f32 %v3142, 0.0
    %v3161 = vmax.f32 %v3143, 0.0
    %v3162 = vmax.f32 %v3144, 0.0
    %v3163 = vmax.f32 %v3145, 0.0
    %v3164 = vmax.f32 %v3146, 0.0
    %v3165 = vmax.f32 %v3147, 0.0
    %v3166 = vmax.f32 %v3148, 0.0
    %v3167 = vrot.slane %v3149, 6
    %v3168 = vrot.slane %v3150, 6
    %v3169 = vrot.slane %v3151, 6
    %v3170 = vrot.slane %v3152, 6
    %v3171 = vrot.slane %v3153, 6
    %v3172 = vrot.slane %v3154, 6
    %v3173 = vrot.slane %v3155, 6
    %v3174 = vrot.slane %v3156, 6
    %v3175 = vrot.slane %v3157, 6
    %v3176 = vrot.slane %v3158, 6
    %v3177 = vrot.slane %v3159, 6
    %v3178 = vrot.slane %v3160, 6
    %v3179 = vrot.slane %v3161, 6
    %v3180 = vrot.slane %v3162, 6
    %v3181 = vrot.slane %v3163, 6
    %v3182 = vrot.slane %v3164, 6
    %v3183 = vrot.slane %v3165, 6
    %v3184 = vrot.slane %v3166, 6
    %v3185 = vsel %vm938, %v3183, %v3184
    %v3186 = vsel %vm938, %v3182, %v3183
    %v3187 = vsel %vm938, %v3181, %v3182
    %v3188 = vsel %vm938, %v3180, %v3181
    %v3189 = vsel %vm938, %v3179, %v3180
    %v3190 = vsel %vm938, %v3178, %v3179
    %v3191 = vsel %vm938, %v3177, %v3178
    %v3192 = vsel %vm938, %v3176, %v3177
    %v3193 = vsel %vm938, %v3175, %v3176
    %v3194 = vsel %vm938, %v3174, %v3175
    %v3195 = vsel %vm938, %v3173, %v3174
    %v3196 = vsel %vm938, %v3172, %v3173
    %v3197 = vsel %vm938, %v3171, %v3172
    %v3198 = vsel %vm938, %v3170, %v3171
    %v3199 = vsel %vm938, %v3169, %v3170
    %v3200 = vsel %vm938, %v3168, %v3169
    %v3201 = vsel %vm938, %v3167, %v3168
    %v3202 = vsel %vm938, %v3184, %v3167
    %v3203 = vmul.f32 %v3202, %v469
    %v3204 = vmul.f32 %v3201, %v470
    %v3205 = vmul.f32 %v3200, %v471
    %v3206 = vmul.f32 %v3199, %v472
    %v3207 = vmul.f32 %v3198, %v473
    %v3208 = vmul.f32 %v3197, %v474
    %v3209 = vmul.f32 %v3196, %v475
    %v3210 = vmul.f32 %v3195, %v476
    %v3211 = vmul.f32 %v3194, %v477
    %v3212 = vmul.f32 %v3193, %v478
    %v3213 = vmul.f32 %v3192, %v479
    %v3214 = vmul.f32 %v3191, %v480
    %v3215 = vmul.f32 %v3190, %v481
    %v3216 = vmul.f32 %v3189, %v482
    %v3217 = vmul.f32 %v3188, %v483
    %v3218 = vmul.f32 %v3187, %v484
    %v3219 = vmul.f32 %v3186, %v485
    %v3220 = vmul.f32 %v3185, %v486
    %v3221 = vpack.c.bf16 %v3204, %v3203
    %v3222 = vpack.c.bf16 %v3206, %v3205
    %v3223 = vpack.c.bf16 %v3208, %v3207
    %v3224 = vpack.c.bf16 %v3210, %v3209
    %v3225 = vpack.c.bf16 %v3212, %v3211
    %v3226 = vpack.c.bf16 %v3214, %v3213
    %v3227 = vpack.c.bf16 %v3216, %v3215
    %v3228 = vpack.c.bf16 %v3218, %v3217
    %v3229 = vpack.c.bf16 %v3220, %v3219
    %v3230 = vrot.slane %v3149, 7
    %v3231 = vrot.slane %v3150, 7
    %v3232 = vrot.slane %v3151, 7
    %v3233 = vrot.slane %v3152, 7
    %v3234 = vrot.slane %v3153, 7
    %v3235 = vrot.slane %v3154, 7
    %v3236 = vrot.slane %v3155, 7
    %v3237 = vrot.slane %v3156, 7
    %v3238 = vrot.slane %v3157, 7
    %v3239 = vrot.slane %v3158, 7
    %v3240 = vrot.slane %v3159, 7
    %v3241 = vrot.slane %v3160, 7
    %v3242 = vrot.slane %v3161, 7
    %v3243 = vrot.slane %v3162, 7
    %v3244 = vrot.slane %v3163, 7
    %v3245 = vrot.slane %v3164, 7
    %v3246 = vrot.slane %v3165, 7
    %v3247 = vrot.slane %v3166, 7
    %v3248 = vsel %vm1123, %v3246, %v3247
    %v3249 = vsel %vm1123, %v3245, %v3246
    %v3250 = vsel %vm1123, %v3244, %v3245
    %v3251 = vsel %vm1123, %v3243, %v3244
    %v3252 = vsel %vm1123, %v3242, %v3243
    %v3253 = vsel %vm1123, %v3241, %v3242
    %v3254 = vsel %vm1123, %v3240, %v3241
    %v3255 = vsel %vm1123, %v3239, %v3240
    %v3256 = vsel %vm1123, %v3238, %v3239
    %v3257 = vsel %vm1123, %v3237, %v3238
    %v3258 = vsel %vm1123, %v3236, %v3237
    %v3259 = vsel %vm1123, %v3235, %v3236
    %v3260 = vsel %vm1123, %v3234, %v3235
    %v3261 = vsel %vm1123, %v3233, %v3234
    %v3262 = vsel %vm1123, %v3232, %v3233
    %v3263 = vsel %vm1123, %v3231, %v3232
    %v3264 = vsel %vm1123, %v3230, %v3231
    %v3265 = vsel %vm1123, %v3247, %v3230
    %v3266 = vmul.f32 %v3265, %v577
    %v3267 = vmul.f32 %v3264, %v578
    %v3268 = vmul.f32 %v3263, %v579
    %v3269 = vmul.f32 %v3262, %v580
    %v3270 = vmul.f32 %v3261, %v581
    %v3271 = vmul.f32 %v3260, %v582
    %v3272 = vmul.f32 %v3259, %v583
    %v3273 = vmul.f32 %v3258, %v584
    %v3274 = vmul.f32 %v3257, %v585
    %v3275 = vmul.f32 %v3256, %v586
    %v3276 = vmul.f32 %v3255, %v587
    %v3277 = vmul.f32 %v3254, %v588
    %v3278 = vmul.f32 %v3253, %v589
    %v3279 = vmul.f32 %v3252, %v590
    %v3280 = vmul.f32 %v3251, %v591
    %v3281 = vmul.f32 %v3250, %v592
    %v3282 = vmul.f32 %v3249, %v593
    %v3283 = vmul.f32 %v3248, %v594
    %v3284 = vpack.c.bf16 %v3267, %v3266
    %v3285 = vpack.c.bf16 %v3269, %v3268
    %v3286 = vpack.c.bf16 %v3271, %v3270
    %v3287 = vpack.c.bf16 %v3273, %v3272
    %v3288 = vpack.c.bf16 %v3275, %v3274
    %v3289 = vpack.c.bf16 %v3277, %v3276
    %v3290 = vpack.c.bf16 %v3279, %v3278
    %v3291 = vpack.c.bf16 %v3281, %v3280
    %v3292 = vpack.c.bf16 %v3283, %v3282
    %v3293 = vmul.f32 %v3149, %v667
    %v3294 = vmul.f32 %v3150, %v668
    %v3295 = vmul.f32 %v3151, %v669
    %v3296 = vmul.f32 %v3152, %v670
    %v3297 = vmul.f32 %v3153, %v671
    %v3298 = vmul.f32 %v3154, %v672
    %v3299 = vmul.f32 %v3155, %v673
    %v3300 = vmul.f32 %v3156, %v674
    %v3301 = vmul.f32 %v3157, %v675
    %v3302 = vmul.f32 %v3158, %v676
    %v3303 = vmul.f32 %v3159, %v677
    %v3304 = vmul.f32 %v3160, %v678
    %v3305 = vmul.f32 %v3161, %v679
    %v3306 = vmul.f32 %v3162, %v680
    %v3307 = vmul.f32 %v3163, %v681
    %v3308 = vmul.f32 %v3164, %v682
    %v3309 = vmul.f32 %v3165, %v683
    %v3310 = vmul.f32 %v3166, %v684
    %v3311 = vpack.c.bf16 %v3294, %v3293
    %v3312 = vpack.c.bf16 %v3296, %v3295
    %v3313 = vpack.c.bf16 %v3298, %v3297
    %v3314 = vpack.c.bf16 %v3300, %v3299
    %v3315 = vpack.c.bf16 %v3302, %v3301
    %v3316 = vpack.c.bf16 %v3304, %v3303
    %v3317 = vpack.c.bf16 %v3306, %v3305
    %v3318 = vpack.c.bf16 %v3308, %v3307
    %v3319 = vpack.c.bf16 %v3310, %v3309
    %v3320 = vrot.slane %v3149, 1
    %v3321 = vrot.slane %v3150, 1
    %v3322 = vrot.slane %v3151, 1
    %v3323 = vrot.slane %v3152, 1
    %v3324 = vrot.slane %v3153, 1
    %v3325 = vrot.slane %v3154, 1
    %v3326 = vrot.slane %v3155, 1
    %v3327 = vrot.slane %v3156, 1
    %v3328 = vrot.slane %v3157, 1
    %v3329 = vrot.slane %v3158, 1
    %v3330 = vrot.slane %v3159, 1
    %v3331 = vrot.slane %v3160, 1
    %v3332 = vrot.slane %v3161, 1
    %v3333 = vrot.slane %v3162, 1
    %v3334 = vrot.slane %v3163, 1
    %v3335 = vrot.slane %v3164, 1
    %v3336 = vrot.slane %v3165, 1
    %v3337 = vrot.slane %v3166, 1
    %v3338 = vsel %vm1456, %v3336, %v3337
    %v3339 = vsel %vm1456, %v3335, %v3336
    %v3340 = vsel %vm1456, %v3334, %v3335
    %v3341 = vsel %vm1456, %v3333, %v3334
    %v3342 = vsel %vm1456, %v3332, %v3333
    %v3343 = vsel %vm1456, %v3331, %v3332
    %v3344 = vsel %vm1456, %v3330, %v3331
    %v3345 = vsel %vm1456, %v3329, %v3330
    %v3346 = vsel %vm1456, %v3328, %v3329
    %v3347 = vsel %vm1456, %v3327, %v3328
    %v3348 = vsel %vm1456, %v3326, %v3327
    %v3349 = vsel %vm1456, %v3325, %v3326
    %v3350 = vsel %vm1456, %v3324, %v3325
    %v3351 = vsel %vm1456, %v3323, %v3324
    %v3352 = vsel %vm1456, %v3322, %v3323
    %v3353 = vsel %vm1456, %v3321, %v3322
    %v3354 = vsel %vm1456, %v3320, %v3321
    %v3355 = vsel %vm1456, %v3337, %v3320
    %v3356 = vmul.f32 %v3354, %v775
    %v3357 = vmul.f32 %v3353, %v776
    %v3358 = vmul.f32 %v3352, %v777
    %v3359 = vmul.f32 %v3351, %v778
    %v3360 = vmul.f32 %v3350, %v779
    %v3361 = vmul.f32 %v3349, %v780
    %v3362 = vmul.f32 %v3348, %v781
    %v3363 = vmul.f32 %v3347, %v782
    %v3364 = vmul.f32 %v3346, %v783
    %v3365 = vmul.f32 %v3345, %v784
    %v3366 = vmul.f32 %v3344, %v785
    %v3367 = vmul.f32 %v3343, %v786
    %v3368 = vmul.f32 %v3342, %v787
    %v3369 = vmul.f32 %v3341, %v788
    %v3370 = vmul.f32 %v3340, %v789
    %v3371 = vmul.f32 %v3339, %v790
    %v3372 = vmul.f32 %v3338, %v791
    %v3373 = vmul.f32 %v3355, %v792
    %v3374 = vpack.c.bf16 %v3357, %v3356
    %v3375 = vpack.c.bf16 %v3359, %v3358
    %v3376 = vpack.c.bf16 %v3361, %v3360
    %v3377 = vpack.c.bf16 %v3363, %v3362
    %v3378 = vpack.c.bf16 %v3365, %v3364
    %v3379 = vpack.c.bf16 %v3367, %v3366
    %v3380 = vpack.c.bf16 %v3369, %v3368
    %v3381 = vpack.c.bf16 %v3371, %v3370
    %v3382 = vpack.c.bf16 %v3373, %v3372
    %v3383 = vrot.slane %v3149, 2
    %v3384 = vrot.slane %v3150, 2
    %v3385 = vrot.slane %v3151, 2
    %v3386 = vrot.slane %v3152, 2
    %v3387 = vrot.slane %v3153, 2
    %v3388 = vrot.slane %v3154, 2
    %v3389 = vrot.slane %v3155, 2
    %v3390 = vrot.slane %v3156, 2
    %v3391 = vrot.slane %v3157, 2
    %v3392 = vrot.slane %v3158, 2
    %v3393 = vrot.slane %v3159, 2
    %v3394 = vrot.slane %v3160, 2
    %v3395 = vrot.slane %v3161, 2
    %v3396 = vrot.slane %v3162, 2
    %v3397 = vrot.slane %v3163, 2
    %v3398 = vrot.slane %v3164, 2
    %v3399 = vrot.slane %v3165, 2
    %v3400 = vrot.slane %v3166, 2
    %v3401 = vsel %vm1641, %v3399, %v3400
    %v3402 = vsel %vm1641, %v3398, %v3399
    %v3403 = vsel %vm1641, %v3397, %v3398
    %v3404 = vsel %vm1641, %v3396, %v3397
    %v3405 = vsel %vm1641, %v3395, %v3396
    %v3406 = vsel %vm1641, %v3394, %v3395
    %v3407 = vsel %vm1641, %v3393, %v3394
    %v3408 = vsel %vm1641, %v3392, %v3393
    %v3409 = vsel %vm1641, %v3391, %v3392
    %v3410 = vsel %vm1641, %v3390, %v3391
    %v3411 = vsel %vm1641, %v3389, %v3390
    %v3412 = vsel %vm1641, %v3388, %v3389
    %v3413 = vsel %vm1641, %v3387, %v3388
    %v3414 = vsel %vm1641, %v3386, %v3387
    %v3415 = vsel %vm1641, %v3385, %v3386
    %v3416 = vsel %vm1641, %v3384, %v3385
    %v3417 = vsel %vm1641, %v3383, %v3384
    %v3418 = vsel %vm1641, %v3400, %v3383
    %v3419 = vmul.f32 %v3417, %v883
    %v3420 = vmul.f32 %v3416, %v884
    %v3421 = vmul.f32 %v3415, %v885
    %v3422 = vmul.f32 %v3414, %v886
    %v3423 = vmul.f32 %v3413, %v887
    %v3424 = vmul.f32 %v3412, %v888
    %v3425 = vmul.f32 %v3411, %v889
    %v3426 = vmul.f32 %v3410, %v890
    %v3427 = vmul.f32 %v3409, %v891
    %v3428 = vmul.f32 %v3408, %v892
    %v3429 = vmul.f32 %v3407, %v893
    %v3430 = vmul.f32 %v3406, %v894
    %v3431 = vmul.f32 %v3405, %v895
    %v3432 = vmul.f32 %v3404, %v896
    %v3433 = vmul.f32 %v3403, %v897
    %v3434 = vmul.f32 %v3402, %v898
    %v3435 = vmul.f32 %v3401, %v899
    %v3436 = vmul.f32 %v3418, %v900
    %v3437 = vpack.c.bf16 %v3420, %v3419
    %v3438 = vpack.c.bf16 %v3422, %v3421
    %v3439 = vpack.c.bf16 %v3424, %v3423
    %v3440 = vpack.c.bf16 %v3426, %v3425
    %v3441 = vpack.c.bf16 %v3428, %v3427
    %v3442 = vpack.c.bf16 %v3430, %v3429
    %v3443 = vpack.c.bf16 %v3432, %v3431
    %v3444 = vpack.c.bf16 %v3434, %v3433
    %v3445 = vpack.c.bf16 %v3436, %v3435
    %3455 = vrot.lane.b32.xlu0 %v3284, 64
    %v3456 = vpop.permute.xlu0 %3455
    %3457 = vrot.lane.b32.xlu0 %v3285, 64
    %v3458 = vpop.permute.xlu0 %3457
    %3459 = vrot.lane.b32.xlu0 %v3286, 64
    %v3460 = vpop.permute.xlu0 %3459
    %3461 = vrot.lane.b32.xlu0 %v3287, 64
    %v3462 = vpop.permute.xlu0 %3461
    %3463 = vrot.lane.b32.xlu0 %v3288, 64
    %v3464 = vpop.permute.xlu0 %3463
    %3465 = vrot.lane.b32.xlu0 %v3289, 64
    %v3466 = vpop.permute.xlu0 %3465
    %3467 = vrot.lane.b32.xlu0 %v3290, 64
    %v3468 = vpop.permute.xlu0 %3467
    %3469 = vrot.lane.b32.xlu0 %v3291, 64
    %v3470 = vpop.permute.xlu0 %3469
    %3471 = vrot.lane.b32.xlu0 %v3292, 64
    %v3472 = vpop.permute.xlu0 %3471
    %3482 = vrot.lane.b32.xlu0 %v3374, 64
    %v3483 = vpop.permute.xlu0 %3482
    %3484 = vrot.lane.b32.xlu0 %v3375, 64
    %v3485 = vpop.permute.xlu0 %3484
    %3486 = vrot.lane.b32.xlu0 %v3376, 64
    %v3487 = vpop.permute.xlu0 %3486
    %3488 = vrot.lane.b32.xlu0 %v3377, 64
    %v3489 = vpop.permute.xlu0 %3488
    %3490 = vrot.lane.b32.xlu0 %v3378, 64
    %v3491 = vpop.permute.xlu0 %3490
    %3492 = vrot.lane.b32.xlu0 %v3379, 64
    %v3493 = vpop.permute.xlu0 %3492
    %3494 = vrot.lane.b32.xlu0 %v3380, 64
    %v3495 = vpop.permute.xlu0 %3494
    %3496 = vrot.lane.b32.xlu0 %v3381, 64
    %v3497 = vpop.permute.xlu0 %3496
    %3498 = vrot.lane.b32.xlu0 %v3382, 64
    %v3499 = vpop.permute.xlu0 %3498
    %v3502 = vsel %vm1900, %v3221, %v3456
    %v3506 = vsel %vm1900, %v3222, %v3458
    %v3510 = vsel %vm1900, %v3223, %v3460
    %v3514 = vsel %vm1900, %v3224, %v3462
    %v3518 = vsel %vm1900, %v3225, %v3464
    %v3522 = vsel %vm1900, %v3226, %v3466
    %v3526 = vsel %vm1900, %v3227, %v3468
    %v3530 = vsel %vm1900, %v3228, %v3470
    %v3534 = vsel %vm1900, %v3229, %v3472
    %v3538 = vsel %vm1900, %v3311, %v3483
    %v3542 = vsel %vm1900, %v3312, %v3485
    %v3546 = vsel %vm1900, %v3313, %v3487
    %v3550 = vsel %vm1900, %v3314, %v3489
    %v3554 = vsel %vm1900, %v3315, %v3491
    %v3558 = vsel %vm1900, %v3316, %v3493
    %v3562 = vsel %vm1900, %v3317, %v3495
    %v3566 = vsel %vm1900, %v3318, %v3497
    %v3570 = vsel %vm1900, %v3319, %v3499
    %v3572 = vld [vmem:[%s7] sm:$0xf]
    %v3573 = vld [vmem:[%s7 + $0x4] sm:$0xf]
    %v3574 = vld [vmem:[%s7 + $0x8] sm:$0xf]
    %v3575 = vld [vmem:[%s7 + $0xc] sm:$0xf]
    %v3576 = vld [vmem:[%s7 + $0x10] sm:$0xf]
    %v3577 = vld [vmem:[%s7 + $0x14] sm:$0xf]
    %v3578 = vld [vmem:[%s7 + $0x18] sm:$0xf]
    %v3579 = vld [vmem:[%s7 + $0x1c] sm:$0xf]
    %v3580 = vld [vmem:[%s7 + $0x20] sm:$0xf]
    %v3581 = vld [vmem:[%s7 + $0x24] sm:$0xf]
    %v3582 = vld [vmem:[%s7 + $0x28] sm:$0xf]
    %v3583 = vld [vmem:[%s7 + $0x2c] sm:$0xf]
    %v3584 = vld [vmem:[%s7 + $0x30] sm:$0xf]
    %v3585 = vld [vmem:[%s7 + $0x34] sm:$0xf]
    %v3586 = vld [vmem:[%s7 + $0x38] sm:$0xf]
    %v3587 = vld [vmem:[%s7 + $0x3c] sm:$0xf]
    %v3588 = vld [vmem:[%s7 + $0x40] sm:$0xf]
    %v3589 = vld [vmem:[%s7 + $0x44] sm:$0xf]
    %v3590 = vld [vmem:[%s7 + $0x48] sm:$0xf]
    %v3591 = vld [vmem:[%s7 + $0x4c] sm:$0xf]
    %v3592 = vld [vmem:[%s7 + $0x50] sm:$0xf]
    %v3593 = vld [vmem:[%s7 + $0x54] sm:$0xf]
    %v3594 = vld [vmem:[%s7 + $0x58] sm:$0xf]
    %v3595 = vld [vmem:[%s7 + $0x5c] sm:$0xf]
    %v3596 = vld [vmem:[%s7 + $0x60] sm:$0xf]
    %v3597 = vld [vmem:[%s7 + $0x64] sm:$0xf]
    %v3598 = vld [vmem:[%s7 + $0x68] sm:$0xf]
    %v3599 = vld [vmem:[%s7 + $0x6c] sm:$0xf]
    %v3600 = vld [vmem:[%s7 + $0x70] sm:$0xf]
    %v3601 = vld [vmem:[%s7 + $0x74] sm:$0xf]
    %v3602 = vld [vmem:[%s7 + $0x78] sm:$0xf]
    %v3603 = vld [vmem:[%s7 + $0x7c] sm:$0xf]
    %v3604 = vld [vmem:[%s7 + $0x80] sm:$0xf]
    %v3605 = vld [vmem:[%s7 + $0x84] sm:$0xf]
    %v3606 = vld [vmem:[%s7 + $0x88] sm:$0xf]
    %v3607 = vld [vmem:[%s7 + $0x8c] sm:$0xf]
    %v3608 = vld [vmem:[%s7 + $0x90] sm:$0xf]
    %v3609 = vld [vmem:[%s7 + $0x94] sm:$0xf]
    %v3610 = vld [vmem:[%s7 + $0x98] sm:$0xf]
    %v3611 = vld [vmem:[%s7 + $0x9c] sm:$0xf]
    %v3652 = vunpack.c.l.b16 %v3572
    %v3653 = vunpack.c.l.b16 %v3573
    %v3654 = vunpack.c.l.b16 %v3574
    %v3655 = vunpack.c.l.b16 %v3575
    %v3656 = vunpack.c.l.b16 %v3576
    %v3657 = vunpack.c.l.b16 %v3577
    %v3658 = vunpack.c.l.b16 %v3578
    %v3659 = vunpack.c.l.b16 %v3579
    %v3660 = vunpack.c.l.b16 %v3580
    %v3661 = vunpack.c.l.b16 %v3581
    %v3662 = vunpack.c.l.b16 %v3582
    %v3663 = vunpack.c.l.b16 %v3583
    %v3664 = vunpack.c.l.b16 %v3584
    %v3665 = vunpack.c.l.b16 %v3585
    %v3666 = vunpack.c.l.b16 %v3586
    %v3667 = vunpack.c.l.b16 %v3587
    %v3668 = vunpack.c.l.b16 %v3588
    %v3669 = vunpack.c.l.b16 %v3589
    %v3670 = vunpack.c.l.b16 %v3590
    %v3671 = vunpack.c.l.b16 %v3591
    %v3672 = vunpack.c.l.b16 %v3592
    %v3673 = vunpack.c.l.b16 %v3593
    %v3674 = vunpack.c.l.b16 %v3594
    %v3675 = vunpack.c.l.b16 %v3595
    %v3676 = vunpack.c.l.b16 %v3596
    %v3677 = vunpack.c.l.b16 %v3597
    %v3678 = vunpack.c.l.b16 %v3598
    %v3679 = vunpack.c.l.b16 %v3599
    %v3680 = vunpack.c.l.b16 %v3600
    %v3681 = vunpack.c.l.b16 %v3601
    %v3682 = vunpack.c.l.b16 %v3602
    %v3683 = vunpack.c.l.b16 %v3603
    %v3684 = vunpack.c.l.b16 %v3604
    %v3685 = vunpack.c.l.b16 %v3605
    %v3686 = vunpack.c.l.b16 %v3606
    %v3687 = vunpack.c.l.b16 %v3607
    %v3688 = vunpack.c.l.b16 %v3608
    %v3689 = vunpack.c.l.b16 %v3609
    %v3690 = vunpack.c.l.b16 %v3610
    %v3691 = vunpack.c.l.b16 %v3611
    %v3692 = vpack.c.b16 %v3653, %v3652
    %v3693 = vpack.c.b16 %v3655, %v3654
    %v3694 = vpack.c.b16 %v3657, %v3656
    %v3695 = vpack.c.b16 %v3659, %v3658
    %v3696 = vpack.c.b16 %v3661, %v3660
    %v3697 = vpack.c.b16 %v3663, %v3662
    %v3698 = vpack.c.b16 %v3665, %v3664
    %v3699 = vpack.c.b16 %v3667, %v3666
    %v3700 = vpack.c.b16 %v3669, %v3668
    %v3701 = vpack.c.b16 %v3671, %v3670
    %v3702 = vpack.c.b16 %v3673, %v3672
    %v3703 = vpack.c.b16 %v3675, %v3674
    %v3704 = vpack.c.b16 %v3677, %v3676
    %v3705 = vpack.c.b16 %v3679, %v3678
    %v3706 = vpack.c.b16 %v3681, %v3680
    %v3707 = vpack.c.b16 %v3683, %v3682
    %v3708 = vpack.c.b16 %v3685, %v3684
    %v3709 = vpack.c.b16 %v3687, %v3686
    %v3710 = vpack.c.b16 %v3689, %v3688
    %v3711 = vpack.c.b16 %v3691, %v3690
    %v3733 = vsel %vm1900, %v3437, 0
    %v3736 = vsel %vm1900, %v3438, 0
    %v3739 = vsel %vm1900, %v3439, 0
    %v3742 = vsel %vm1900, %v3440, 0
    %v3745 = vsel %vm1900, %v3441, 0
    %v3748 = vsel %vm1900, %v3442, 0
    %v3751 = vsel %vm1900, %v3443, 0
    %v3754 = vsel %vm1900, %v3444, 0
    %v3757 = vsel %vm1900, %v3445, 0
    %3759 = vmatprep.subr.bf16.mxu0 0
    %3760 = vmatpush1.bf16.msra.mxu0 %v3692
    %3761 = vmatprep.subr.bf16.mxu0 0
    %3762 = vmatpush1.bf16.msra.mxu0 %v3693
    %3763 = vmatprep.subr.bf16.mxu0 0
    %3764 = vmatpush1.bf16.msra.mxu0 %v3694
    %3765 = vmatprep.subr.bf16.mxu0 0
    %3766 = vmatpush1.bf16.msra.mxu0 %v3695
    %3767 = vmatprep.subr.bf16.mxu0 0
    %3768 = vmatpush1.bf16.msra.mxu0 %v3696
    %3769 = vmatprep.subr.bf16.mxu0 0
    %3770 = vmatpush1.bf16.msra.mxu0 %v3697
    %3771 = vmatprep.subr.bf16.mxu0 0
    %3772 = vmatpush1.bf16.msra.mxu0 %v3698
    %3773 = vmatprep.subr.bf16.mxu0 0
    %3774 = vmatpush1.bf16.msra.mxu0 %v3699
    %3775 = vmatprep.subr.bf16.mxu0 0
    %3776 = vmatpush1.bf16.msra.mxu0 %v3700
    %3777 = vmatprep.subr.bf16.mxu0 0
    %3778 = vmatpush1.bf16.msra.mxu0 %v3701
    %3779 = vmatprep.subr.bf16.mxu0 0
    %3780 = vmatpush1.bf16.msra.mxu0 %v3702
    %3781 = vmatprep.subr.bf16.mxu0 0
    %3782 = vmatpush1.bf16.msra.mxu0 %v3703
    %3783 = vmatprep.subr.bf16.mxu0 0
    %3784 = vmatpush1.bf16.msra.mxu0 %v3704
    %3785 = vmatprep.subr.bf16.mxu0 0
    %3786 = vmatpush1.bf16.msra.mxu0 %v3705
    %3787 = vmatprep.subr.bf16.mxu0 0
    %3788 = vmatpush1.bf16.msra.mxu0 %v3706
    %3789 = vmatprep.subr.bf16.mxu0 0
    %3790 = vmatpush1.bf16.msra.mxu0 %v3707
    %3791 = vmatprep.mubr.bf16.mxu0 %v3538
    %3792 = vmatmul.mubr.bf16.gmra.mrb[0].mxu0 %v3502
    %v3793 = vpop.f32.mrb[0].mxu0
    %v3794 = vadd.f32 0.0, %v3793
    %v3795 = vpop.f32.mrb[0].mxu0
    %v3796 = vpop.f32.mrb[0].mxu0
    %v3797 = vadd.f32 0.0, %v3796
    %v3798 = vpop.f32.mrb[0].mxu0
    %3799 = vmatprep.mubr.bf16.mxu0 %v3542
    %3800 = vmatmul.mubr.bf16.gmra.mrb[0].mxu0 %v3506
    %v3801 = vpop.f32.mrb[0].mxu0
    %v3802 = vadd.f32 0.0, %v3801
    %v3803 = vpop.f32.mrb[0].mxu0
    %v3804 = vpop.f32.mrb[0].mxu0
    %v3805 = vadd.f32 0.0, %v3804
    %v3806 = vpop.f32.mrb[0].mxu0
    %3807 = vmatprep.mubr.bf16.mxu0 %v3546
    %3808 = vmatmul.mubr.bf16.gmra.mrb[0].mxu0 %v3510
    %v3809 = vpop.f32.mrb[0].mxu0
    %v3810 = vadd.f32 0.0, %v3809
    %v3811 = vpop.f32.mrb[0].mxu0
    %v3812 = vpop.f32.mrb[0].mxu0
    %v3813 = vadd.f32 0.0, %v3812
    %v3814 = vpop.f32.mrb[0].mxu0
    %3815 = vmatprep.mubr.bf16.mxu0 %v3550
    %3816 = vmatmul.mubr.bf16.gmra.mrb[0].mxu0 %v3514
    %v3817 = vpop.f32.mrb[0].mxu0
    %v3818 = vadd.f32 0.0, %v3817
    %v3819 = vpop.f32.mrb[0].mxu0
    %v3820 = vpop.f32.mrb[0].mxu0
    %v3821 = vadd.f32 0.0, %v3820
    %v3822 = vpop.f32.mrb[0].mxu0
    %3823 = vmatprep.mubr.bf16.mxu0 %v3554
    %3824 = vmatmul.mubr.bf16.gmra.mrb[0].mxu0 %v3518
    %v3825 = vpop.f32.mrb[0].mxu0
    %v3826 = vadd.f32 0.0, %v3825
    %v3827 = vpop.f32.mrb[0].mxu0
    %v3828 = vpop.f32.mrb[0].mxu0
    %v3829 = vadd.f32 0.0, %v3828
    %v3830 = vpop.f32.mrb[0].mxu0
    %3831 = vmatprep.mubr.bf16.mxu0 %v3558
    %3832 = vmatmul.mubr.bf16.gmra.mrb[0].mxu0 %v3522
    %v3833 = vpop.f32.mrb[0].mxu0
    %v3834 = vadd.f32 0.0, %v3833
    %v3835 = vpop.f32.mrb[0].mxu0
    %v3836 = vpop.f32.mrb[0].mxu0
    %v3837 = vadd.f32 0.0, %v3836
    %v3838 = vpop.f32.mrb[0].mxu0
    %3839 = vmatprep.mubr.bf16.mxu0 %v3562
    %3840 = vmatmul.mubr.bf16.gmra.mrb[0].mxu0 %v3526
    %v3841 = vpop.f32.mrb[0].mxu0
    %v3842 = vadd.f32 0.0, %v3841
    %v3843 = vpop.f32.mrb[0].mxu0
    %v3844 = vpop.f32.mrb[0].mxu0
    %v3845 = vadd.f32 0.0, %v3844
    %v3846 = vpop.f32.mrb[0].mxu0
    %3847 = vmatprep.mubr.bf16.mxu0 %v3566
    %3848 = vmatmul.mubr.bf16.gmra.mrb[0].mxu0 %v3530
    %v3849 = vpop.f32.mrb[0].mxu0
    %v3850 = vadd.f32 0.0, %v3849
    %v3851 = vpop.f32.mrb[0].mxu0
    %v3852 = vpop.f32.mrb[0].mxu0
    %v3853 = vadd.f32 0.0, %v3852
    %v3854 = vpop.f32.mrb[0].mxu0
    %3855 = vmatprep.mubr.bf16.mxu0 %v3570
    %3856 = vmatmul.mubr.bf16.gmra.mrb[0].mxu0 %v3534
    %v3857 = vpop.f32.mrb[0].mxu0
    %v3858 = vadd.f32 0.0, %v3857
    %v3859 = vpop.f32.mrb[0].mxu0
    %v3860 = vpop.f32.mrb[0].mxu0
    %v3861 = vadd.f32 0.0, %v3860
    %v3862 = vpop.f32.mrb[0].mxu0
    %3863 = vdwg.mxu0
    %3864 = vmatprep.subr.bf16.mxu0 0
    %3865 = vmatpush1.bf16.msra.mxu0 %v3708
    %3866 = vmatprep.subr.bf16.mxu0 0
    %3867 = vmatpush1.bf16.msra.mxu0 %v3709
    %3868 = vmatprep.subr.bf16.mxu0 0
    %3869 = vmatpush1.bf16.msra.mxu0 %v3710
    %3870 = vmatprep.subr.bf16.mxu0 0
    %3871 = vmatpush1.bf16.msra.mxu0 %v3711
    %3872 = vmatprep.subr.bf16.mxu0 0
    %3873 = vmatpush1.bf16.msra.mxu0 0
    %3874 = vmatprep.subr.bf16.mxu0 0
    %3875 = vmatpush1.bf16.msra.mxu0 0
    %3876 = vmatprep.subr.bf16.mxu0 0
    %3877 = vmatpush1.bf16.msra.mxu0 0
    %3878 = vmatprep.subr.bf16.mxu0 0
    %3879 = vmatpush1.bf16.msra.mxu0 0
    %3880 = vmatprep.subr.bf16.mxu0 0
    %3881 = vmatpush1.bf16.msra.mxu0 0
    %3882 = vmatprep.subr.bf16.mxu0 0
    %3883 = vmatpush1.bf16.msra.mxu0 0
    %3884 = vmatprep.subr.bf16.mxu0 0
    %3885 = vmatpush1.bf16.msra.mxu0 0
    %3886 = vmatprep.subr.bf16.mxu0 0
    %3887 = vmatpush1.bf16.msra.mxu0 0
    %3888 = vmatprep.subr.bf16.mxu0 0
    %3889 = vmatpush1.bf16.msra.mxu0 0
    %3890 = vmatprep.subr.bf16.mxu0 0
    %3891 = vmatpush1.bf16.msra.mxu0 0
    %3892 = vmatprep.subr.bf16.mxu0 0
    %3893 = vmatpush1.bf16.msra.mxu0 0
    %3894 = vmatprep.subr.bf16.mxu0 0
    %3895 = vmatpush1.bf16.msra.mxu0 0
    %3896 = vmatprep.mubr.bf16.mxu0 0
    %3897 = vmatmul.mubr.bf16.gmra.mrb[0].mxu0 %v3733
    %v3898 = vpop.f32.mrb[0].mxu0
    %v3899 = vadd.f32 %v3794, %v3898
    %v3900 = vpop.f32.mrb[0].mxu0
    %v3901 = vpop.f32.mrb[0].mxu0
    %v3902 = vadd.f32 %v3797, %v3901
    %v3903 = vpop.f32.mrb[0].mxu0
    %3904 = vmatprep.mubr.bf16.mxu0 0
    %3905 = vmatmul.mubr.bf16.gmra.mrb[0].mxu0 %v3736
    %v3906 = vpop.f32.mrb[0].mxu0
    %v3907 = vadd.f32 %v3802, %v3906
    %v3908 = vpop.f32.mrb[0].mxu0
    %v3909 = vpop.f32.mrb[0].mxu0
    %v3910 = vadd.f32 %v3805, %v3909
    %v3911 = vpop.f32.mrb[0].mxu0
    %3912 = vmatprep.mubr.bf16.mxu0 0
    %3913 = vmatmul.mubr.bf16.gmra.mrb[0].mxu0 %v3739
    %v3914 = vpop.f32.mrb[0].mxu0
    %v3915 = vadd.f32 %v3810, %v3914
    %v3916 = vpop.f32.mrb[0].mxu0
    %v3917 = vpop.f32.mrb[0].mxu0
    %v3918 = vadd.f32 %v3813, %v3917
    %v3919 = vpop.f32.mrb[0].mxu0
    %3920 = vmatprep.mubr.bf16.mxu0 0
    %3921 = vmatmul.mubr.bf16.gmra.mrb[0].mxu0 %v3742
    %v3922 = vpop.f32.mrb[0].mxu0
    %v3923 = vadd.f32 %v3818, %v3922
    %v3924 = vpop.f32.mrb[0].mxu0
    %v3925 = vpop.f32.mrb[0].mxu0
    %v3926 = vadd.f32 %v3821, %v3925
    %v3927 = vpop.f32.mrb[0].mxu0
    %3928 = vmatprep.mubr.bf16.mxu0 0
    %3929 = vmatmul.mubr.bf16.gmra.mrb[0].mxu0 %v3745
    %v3930 = vpop.f32.mrb[0].mxu0
    %v3931 = vadd.f32 %v3826, %v3930
    %v3932 = vpop.f32.mrb[0].mxu0
    %v3933 = vpop.f32.mrb[0].mxu0
    %v3934 = vadd.f32 %v3829, %v3933
    %v3935 = vpop.f32.mrb[0].mxu0
    %3936 = vmatprep.mubr.bf16.mxu0 0
    %3937 = vmatmul.mubr.bf16.gmra.mrb[0].mxu0 %v3748
    %v3938 = vpop.f32.mrb[0].mxu0
    %v3939 = vadd.f32 %v3834, %v3938
    %v3940 = vpop.f32.mrb[0].mxu0
    %v3941 = vpop.f32.mrb[0].mxu0
    %v3942 = vadd.f32 %v3837, %v3941
    %v3943 = vpop.f32.mrb[0].mxu0
    %3944 = vmatprep.mubr.bf16.mxu0 0
    %3945 = vmatmul.mubr.bf16.gmra.mrb[0].mxu0 %v3751
    %v3946 = vpop.f32.mrb[0].mxu0
    %v3947 = vadd.f32 %v3842, %v3946
    %v3948 = vpop.f32.mrb[0].mxu0
    %v3949 = vpop.f32.mrb[0].mxu0
    %v3950 = vadd.f32 %v3845, %v3949
    %v3951 = vpop.f32.mrb[0].mxu0
    %3952 = vmatprep.mubr.bf16.mxu0 0
    %3953 = vmatmul.mubr.bf16.gmra.mrb[0].mxu0 %v3754
    %v3954 = vpop.f32.mrb[0].mxu0
    %v3955 = vadd.f32 %v3850, %v3954
    %v3956 = vpop.f32.mrb[0].mxu0
    %v3957 = vpop.f32.mrb[0].mxu0
    %v3958 = vadd.f32 %v3853, %v3957
    %v3959 = vpop.f32.mrb[0].mxu0
    %3960 = vmatprep.mubr.bf16.mxu0 0
    %3961 = vmatmul.mubr.bf16.gmra.mrb[0].mxu0 %v3757
    %v3962 = vpop.f32.mrb[0].mxu0
    %v3963 = vadd.f32 %v3858, %v3962
    %v3964 = vpop.f32.mrb[0].mxu0
    %v3965 = vpop.f32.mrb[0].mxu0
    %v3966 = vadd.f32 %v3861, %v3965
    %v3967 = vpop.f32.mrb[0].mxu0
    %3968 = vdwg.mxu0
    %v3969 = vld [vmem:[%s8] sm:$0x1]
    %v3970 = vld [vmem:[%s9] sm:$0x1]
    %v3971 = vmul.f32 %v3899, %v3899
    %v3972 = vmul.f32 %v3902, %v3902
    %v3973 = vmul.f32 %v3907, %v3907
    %v3974 = vmul.f32 %v3910, %v3910
    %v3975 = vmul.f32 %v3915, %v3915
    %v3976 = vmul.f32 %v3918, %v3918
    %v3977 = vmul.f32 %v3923, %v3923
    %v3978 = vmul.f32 %v3926, %v3926
    %v3979 = vmul.f32 %v3931, %v3931
    %v3980 = vmul.f32 %v3934, %v3934
    %v3981 = vmul.f32 %v3939, %v3939
    %v3982 = vmul.f32 %v3942, %v3942
    %v3983 = vmul.f32 %v3947, %v3947
    %v3984 = vmul.f32 %v3950, %v3950
    %v3985 = vmul.f32 %v3955, %v3955
    %v3986 = vmul.f32 %v3958, %v3958
    %v3987 = vmul.f32 %v3963, %v3963
    %v3988 = vmul.f32 %v3966, %v3966
    %4007 = vrot.lane.b32.xlu0 %v3971, 64
    %v4008 = vpop.permute.xlu0 %4007
    %4009 = vrot.lane.b32.xlu0 %v3972, 64
    %v4010 = vpop.permute.xlu0 %4009
    %4011 = vrot.lane.b32.xlu0 %v3973, 64
    %v4012 = vpop.permute.xlu0 %4011
    %4013 = vrot.lane.b32.xlu0 %v3974, 64
    %v4014 = vpop.permute.xlu0 %4013
    %4015 = vrot.lane.b32.xlu0 %v3975, 64
    %v4016 = vpop.permute.xlu0 %4015
    %4017 = vrot.lane.b32.xlu0 %v3976, 64
    %v4018 = vpop.permute.xlu0 %4017
    %4019 = vrot.lane.b32.xlu0 %v3977, 64
    %v4020 = vpop.permute.xlu0 %4019
    %4021 = vrot.lane.b32.xlu0 %v3978, 64
    %v4022 = vpop.permute.xlu0 %4021
    %4023 = vrot.lane.b32.xlu0 %v3979, 64
    %v4024 = vpop.permute.xlu0 %4023
    %4025 = vrot.lane.b32.xlu0 %v3980, 64
    %v4026 = vpop.permute.xlu0 %4025
    %4027 = vrot.lane.b32.xlu0 %v3981, 64
    %v4028 = vpop.permute.xlu0 %4027
    %4029 = vrot.lane.b32.xlu0 %v3982, 64
    %v4030 = vpop.permute.xlu0 %4029
    %4031 = vrot.lane.b32.xlu0 %v3983, 64
    %v4032 = vpop.permute.xlu0 %4031
    %4033 = vrot.lane.b32.xlu0 %v3984, 64
    %v4034 = vpop.permute.xlu0 %4033
    %4035 = vrot.lane.b32.xlu0 %v3985, 64
    %v4036 = vpop.permute.xlu0 %4035
    %4037 = vrot.lane.b32.xlu0 %v3986, 64
    %v4038 = vpop.permute.xlu0 %4037
    %4039 = vrot.lane.b32.xlu0 %v3987, 64
    %v4040 = vpop.permute.xlu0 %4039
    %4041 = vrot.lane.b32.xlu0 %v3988, 64
    %v4042 = vpop.permute.xlu0 %4041
    %v4061 = vsel %vm1900, %v3899, %v4008
    %v4062 = vsel %vm1900, %v3902, %v4010
    %v4063 = vsel %vm1900, %v3907, %v4012
    %v4064 = vsel %vm1900, %v3910, %v4014
    %v4065 = vsel %vm1900, %v3915, %v4016
    %v4066 = vsel %vm1900, %v3918, %v4018
    %v4067 = vsel %vm1900, %v3923, %v4020
    %v4068 = vsel %vm1900, %v3926, %v4022
    %v4069 = vsel %vm1900, %v3931, %v4024
    %v4070 = vsel %vm1900, %v3934, %v4026
    %v4071 = vsel %vm1900, %v3939, %v4028
    %v4072 = vsel %vm1900, %v3942, %v4030
    %v4073 = vsel %vm1900, %v3947, %v4032
    %v4074 = vsel %vm1900, %v3950, %v4034
    %v4075 = vsel %vm1900, %v3955, %v4036
    %v4076 = vsel %vm1900, %v3958, %v4038
    %v4077 = vsel %vm1900, %v3963, %v4040
    %v4078 = vsel %vm1900, %v3966, %v4042
    %4079 = vmatprep.subr.mxu0 0.0
    %4080 = vmatpush1.msra.mxu0 %v4061
    %4081 = vmatprep.subr.mxu0 0.0
    %4082 = vmatpush1.msra.mxu0 %v4062
    %4083 = vmatprep.subr.mxu0 0.0
    %4084 = vmatpush1.msra.mxu0 %v4063
    %4085 = vmatprep.subr.mxu0 0.0
    %4086 = vmatpush1.msra.mxu0 %v4064
    %4087 = vmatprep.subr.mxu0 0.0
    %4088 = vmatpush1.msra.mxu0 %v4065
    %4089 = vmatprep.subr.mxu0 0.0
    %4090 = vmatpush1.msra.mxu0 %v4066
    %4091 = vmatprep.subr.mxu0 0.0
    %4092 = vmatpush1.msra.mxu0 %v4067
    %4093 = vmatprep.subr.mxu0 0.0
    %4094 = vmatpush1.msra.mxu0 %v4068
    %4095 = vmatprep.subr.mxu0 0.0
    %4096 = vmatpush1.msra.mxu0 %v4069
    %4097 = vmatprep.subr.mxu0 0.0
    %4098 = vmatpush1.msra.mxu0 %v4070
    %4099 = vmatprep.subr.mxu0 0.0
    %4100 = vmatpush1.msra.mxu0 %v4071
    %4101 = vmatprep.subr.mxu0 0.0
    %4102 = vmatpush1.msra.mxu0 %v4072
    %4103 = vmatprep.subr.mxu0 0.0
    %4104 = vmatpush1.msra.mxu0 %v4073
    %4105 = vmatprep.subr.mxu0 0.0
    %4106 = vmatpush1.msra.mxu0 %v4074
    %4107 = vmatprep.subr.mxu0 0.0
    %4108 = vmatpush1.msra.mxu0 %v4075
    %4109 = vmatprep.subr.mxu0 0.0
    %4110 = vmatpush1.msra.mxu0 %v4076
    %4111 = vmatprep.subr.mxu0 0.0
    %4112 = vmatpush1.msra.mxu0 %v4077
    %4113 = vmatprep.subr.mxu0 0.0
    %4114 = vmatpush1.msra.mxu0 %v4078
    %4115 = vmatprep.subr.mxu0 0.0
    %4116 = vmatpush1.msra.mxu0 0.0
    %4117 = vmatprep.subr.mxu0 0.0
    %4118 = vmatpush1.msra.mxu0 0.0
    %4119 = vmatprep.subr.mxu0 0.0
    %4120 = vmatpush1.msra.mxu0 0.0
    %4121 = vmatprep.subr.mxu0 0.0
    %4122 = vmatpush1.msra.mxu0 0.0
    %4123 = vmatprep.subr.mxu0 0.0
    %4124 = vmatpush1.msra.mxu0 0.0
    %4125 = vmatprep.subr.mxu0 0.0
    %4126 = vmatpush1.msra.mxu0 0.0
    %4127 = vmatprep.subr.mxu0 0.0
    %4128 = vmatpush1.msra.mxu0 0.0
    %4129 = vmatprep.subr.mxu0 0.0
    %4130 = vmatpush1.msra.mxu0 0.0
    %4131 = vmatprep.subr.mxu0 0.0
    %4132 = vmatpush1.msra.mxu0 0.0
    %4133 = vmatprep.subr.mxu0 0.0
    %4134 = vmatpush1.msra.mxu0 0.0
    %4135 = vmatprep.subr.mxu0 0.0
    %4136 = vmatpush1.msra.mxu0 0.0
    %4137 = vmatprep.subr.mxu0 0.0
    %4138 = vmatpush1.msra.mxu0 0.0
    %4139 = vmatprep.subr.mxu0 0.0
    %4140 = vmatpush1.msra.mxu0 0.0
    %4141 = vmatprep.subr.mxu0 0.0
    %4142 = vmatpush1.msra.mxu0 0.0
    %4143 = vmatprep.mubr.f32.mxu0 %v1921
    %4144 = vmatmul.mubr.f32.gmra.mrb[0].mxu0 1.0
    %v4145 = vpop.f32.mrb[0].mxu0
    %v4146 = vadd.f32 0.0, %v4145
    %v4147 = vpop.f32.mrb[0].mxu0
    %4148 = vdwg.mxu0
    %v4149 = vmul.f32 %v4146, 0.0069444445
    %v4150 = vmul.f32 %v4149, %v4149
    %4152 = vrot.lane.b32.xlu0 %v4150, 64
    %v4153 = vpop.permute.xlu0 %4152
    %v4155 = vsub.f32 %v4149, %v4153
    %v4156 = vadd.f32 %v4155, 1e-05
    %v4157 = vrsqrt.pop %v4156
    %v4160 = vunpack.c.l.s4 1966171168
    %v4161 = vunpack.c.0.s8 %v4160
    %v4162 = vlaneseq
    %v4163 = vshrl.u32 %v4162, 7
    %v4164 = vsub.s32 %v4161, %v4163
    %v4165 = vrot.slane %v4157, %v4164
    %v4167 = vunpack.c.l.s4 1966171168
    %v4168 = vunpack.c.0.s8 %v4167
    %v4169 = vlaneseq
    %v4170 = vshrl.u32 %v4169, 7
    %v4171 = vsub.s32 %v4168, %v4170
    %v4172 = vrot.slane %v4165, %v4171
    %4173 = vrot.lane.b32.xlu0 %v4172, 64
    %v4174 = vpop.permute.xlu0 %4173
    %v4176 = vmul.f32 %v3969, %v4174
    %v4177 = vmul.f32 %v4149, %v4176
    %v4178 = vsub.f32 %v3970, %v4177
    %v4180 = vlaneseq
    %v4181 = vshrl.u32 %v4180, 7
    %v4182 = vsub.s32 0, %v4181
    %v4183 = vrot.slane %v4176, %v4182
    %v4185 = vmul.f32 %v3899, %v4183
    %v4186 = vmul.f32 %v3902, %v4183
    %v4187 = vmul.f32 %v3907, %v4183
    %v4188 = vmul.f32 %v3910, %v4183
    %v4189 = vmul.f32 %v3915, %v4183
    %v4190 = vmul.f32 %v3918, %v4183
    %v4191 = vmul.f32 %v3923, %v4183
    %v4192 = vmul.f32 %v3926, %v4183
    %v4193 = vmul.f32 %v3931, %v4183
    %v4194 = vmul.f32 %v3934, %v4183
    %v4195 = vmul.f32 %v3939, %v4183
    %v4196 = vmul.f32 %v3942, %v4183
    %v4197 = vmul.f32 %v3947, %v4183
    %v4198 = vmul.f32 %v3950, %v4183
    %v4199 = vmul.f32 %v3955, %v4183
    %v4200 = vmul.f32 %v3958, %v4183
    %v4201 = vmul.f32 %v3963, %v4183
    %v4202 = vmul.f32 %v3966, %v4183
    %v4204 = vlaneseq
    %v4205 = vshrl.u32 %v4204, 7
    %v4206 = vsub.s32 0, %v4205
    %v4207 = vrot.slane %v4178, %v4206
    %v4209 = vadd.f32 %v4185, %v4207
    %v4210 = vadd.f32 %v4186, %v4207
    %v4211 = vadd.f32 %v4187, %v4207
    %v4212 = vadd.f32 %v4188, %v4207
    %v4213 = vadd.f32 %v4189, %v4207
    %v4214 = vadd.f32 %v4190, %v4207
    %v4215 = vadd.f32 %v4191, %v4207
    %v4216 = vadd.f32 %v4192, %v4207
    %v4217 = vadd.f32 %v4193, %v4207
    %v4218 = vadd.f32 %v4194, %v4207
    %v4219 = vadd.f32 %v4195, %v4207
    %v4220 = vadd.f32 %v4196, %v4207
    %v4221 = vadd.f32 %v4197, %v4207
    %v4222 = vadd.f32 %v4198, %v4207
    %v4223 = vadd.f32 %v4199, %v4207
    %v4224 = vadd.f32 %v4200, %v4207
    %v4225 = vadd.f32 %v4201, %v4207
    %v4226 = vadd.f32 %v4202, %v4207
    %v4227 = vadd.f32 %v4209, %v2071
    %v4228 = vadd.f32 %v4210, %v2072
    %v4229 = vadd.f32 %v4211, %v2073
    %v4230 = vadd.f32 %v4212, %v2074
    %v4231 = vadd.f32 %v4213, %v2075
    %v4232 = vadd.f32 %v4214, %v2076
    %v4233 = vadd.f32 %v4215, %v2077
    %v4234 = vadd.f32 %v4216, %v2078
    %v4235 = vadd.f32 %v4217, %v2079
    %v4236 = vadd.f32 %v4218, %v2080
    %v4237 = vadd.f32 %v4219, %v2081
    %v4238 = vadd.f32 %v4220, %v2082
    %v4239 = vadd.f32 %v4221, %v2083
    %v4240 = vadd.f32 %v4222, %v2084
    %v4241 = vadd.f32 %v4223, %v2085
    %v4242 = vadd.f32 %v4224, %v2086
    %v4243 = vadd.f32 %v4225, %v2087
    %v4244 = vadd.f32 %v4226, %v2088
    %v4245 = vmax.f32 %v4227, 0.0
    %v4246 = vmax.f32 %v4228, 0.0
    %v4247 = vmax.f32 %v4229, 0.0
    %v4248 = vmax.f32 %v4230, 0.0
    %v4249 = vmax.f32 %v4231, 0.0
    %v4250 = vmax.f32 %v4232, 0.0
    %v4251 = vmax.f32 %v4233, 0.0
    %v4252 = vmax.f32 %v4234, 0.0
    %v4253 = vmax.f32 %v4235, 0.0
    %v4254 = vmax.f32 %v4236, 0.0
    %v4255 = vmax.f32 %v4237, 0.0
    %v4256 = vmax.f32 %v4238, 0.0
    %v4257 = vmax.f32 %v4239, 0.0
    %v4258 = vmax.f32 %v4240, 0.0
    %v4259 = vmax.f32 %v4241, 0.0
    %v4260 = vmax.f32 %v4242, 0.0
    %v4261 = vmax.f32 %v4243, 0.0
    %v4262 = vmax.f32 %v4244, 0.0
    %v4263 = vrot.slane %v4245, 6
    %v4264 = vrot.slane %v4246, 6
    %v4265 = vrot.slane %v4247, 6
    %v4266 = vrot.slane %v4248, 6
    %v4267 = vrot.slane %v4249, 6
    %v4268 = vrot.slane %v4250, 6
    %v4269 = vrot.slane %v4251, 6
    %v4270 = vrot.slane %v4252, 6
    %v4271 = vrot.slane %v4253, 6
    %v4272 = vrot.slane %v4254, 6
    %v4273 = vrot.slane %v4255, 6
    %v4274 = vrot.slane %v4256, 6
    %v4275 = vrot.slane %v4257, 6
    %v4276 = vrot.slane %v4258, 6
    %v4277 = vrot.slane %v4259, 6
    %v4278 = vrot.slane %v4260, 6
    %v4279 = vrot.slane %v4261, 6
    %v4280 = vrot.slane %v4262, 6
    %v4281 = vsel %vm938, %v4279, %v4280
    %v4282 = vsel %vm938, %v4278, %v4279
    %v4283 = vsel %vm938, %v4277, %v4278
    %v4284 = vsel %vm938, %v4276, %v4277
    %v4285 = vsel %vm938, %v4275, %v4276
    %v4286 = vsel %vm938, %v4274, %v4275
    %v4287 = vsel %vm938, %v4273, %v4274
    %v4288 = vsel %vm938, %v4272, %v4273
    %v4289 = vsel %vm938, %v4271, %v4272
    %v4290 = vsel %vm938, %v4270, %v4271
    %v4291 = vsel %vm938, %v4269, %v4270
    %v4292 = vsel %vm938, %v4268, %v4269
    %v4293 = vsel %vm938, %v4267, %v4268
    %v4294 = vsel %vm938, %v4266, %v4267
    %v4295 = vsel %vm938, %v4265, %v4266
    %v4296 = vsel %vm938, %v4264, %v4265
    %v4297 = vsel %vm938, %v4263, %v4264
    %v4298 = vsel %vm938, %v4280, %v4263
    %v4299 = vmul.f32 %v4298, %v469
    %v4300 = vmul.f32 %v4297, %v470
    %v4301 = vmul.f32 %v4296, %v471
    %v4302 = vmul.f32 %v4295, %v472
    %v4303 = vmul.f32 %v4294, %v473
    %v4304 = vmul.f32 %v4293, %v474
    %v4305 = vmul.f32 %v4292, %v475
    %v4306 = vmul.f32 %v4291, %v476
    %v4307 = vmul.f32 %v4290, %v477
    %v4308 = vmul.f32 %v4289, %v478
    %v4309 = vmul.f32 %v4288, %v479
    %v4310 = vmul.f32 %v4287, %v480
    %v4311 = vmul.f32 %v4286, %v481
    %v4312 = vmul.f32 %v4285, %v482
    %v4313 = vmul.f32 %v4284, %v483
    %v4314 = vmul.f32 %v4283, %v484
    %v4315 = vmul.f32 %v4282, %v485
    %v4316 = vmul.f32 %v4281, %v486
    %v4317 = vpack.c.bf16 %v4300, %v4299
    %v4318 = vpack.c.bf16 %v4302, %v4301
    %v4319 = vpack.c.bf16 %v4304, %v4303
    %v4320 = vpack.c.bf16 %v4306, %v4305
    %v4321 = vpack.c.bf16 %v4308, %v4307
    %v4322 = vpack.c.bf16 %v4310, %v4309
    %v4323 = vpack.c.bf16 %v4312, %v4311
    %v4324 = vpack.c.bf16 %v4314, %v4313
    %v4325 = vpack.c.bf16 %v4316, %v4315
    %v4326 = vrot.slane %v4245, 7
    %v4327 = vrot.slane %v4246, 7
    %v4328 = vrot.slane %v4247, 7
    %v4329 = vrot.slane %v4248, 7
    %v4330 = vrot.slane %v4249, 7
    %v4331 = vrot.slane %v4250, 7
    %v4332 = vrot.slane %v4251, 7
    %v4333 = vrot.slane %v4252, 7
    %v4334 = vrot.slane %v4253, 7
    %v4335 = vrot.slane %v4254, 7
    %v4336 = vrot.slane %v4255, 7
    %v4337 = vrot.slane %v4256, 7
    %v4338 = vrot.slane %v4257, 7
    %v4339 = vrot.slane %v4258, 7
    %v4340 = vrot.slane %v4259, 7
    %v4341 = vrot.slane %v4260, 7
    %v4342 = vrot.slane %v4261, 7
    %v4343 = vrot.slane %v4262, 7
    %v4344 = vsel %vm1123, %v4342, %v4343
    %v4345 = vsel %vm1123, %v4341, %v4342
    %v4346 = vsel %vm1123, %v4340, %v4341
    %v4347 = vsel %vm1123, %v4339, %v4340
    %v4348 = vsel %vm1123, %v4338, %v4339
    %v4349 = vsel %vm1123, %v4337, %v4338
    %v4350 = vsel %vm1123, %v4336, %v4337
    %v4351 = vsel %vm1123, %v4335, %v4336
    %v4352 = vsel %vm1123, %v4334, %v4335
    %v4353 = vsel %vm1123, %v4333, %v4334
    %v4354 = vsel %vm1123, %v4332, %v4333
    %v4355 = vsel %vm1123, %v4331, %v4332
    %v4356 = vsel %vm1123, %v4330, %v4331
    %v4357 = vsel %vm1123, %v4329, %v4330
    %v4358 = vsel %vm1123, %v4328, %v4329
    %v4359 = vsel %vm1123, %v4327, %v4328
    %v4360 = vsel %vm1123, %v4326, %v4327
    %v4361 = vsel %vm1123, %v4343, %v4326
    %v4362 = vmul.f32 %v4361, %v577
    %v4363 = vmul.f32 %v4360, %v578
    %v4364 = vmul.f32 %v4359, %v579
    %v4365 = vmul.f32 %v4358, %v580
    %v4366 = vmul.f32 %v4357, %v581
    %v4367 = vmul.f32 %v4356, %v582
    %v4368 = vmul.f32 %v4355, %v583
    %v4369 = vmul.f32 %v4354, %v584
    %v4370 = vmul.f32 %v4353, %v585
    %v4371 = vmul.f32 %v4352, %v586
    %v4372 = vmul.f32 %v4351, %v587
    %v4373 = vmul.f32 %v4350, %v588
    %v4374 = vmul.f32 %v4349, %v589
    %v4375 = vmul.f32 %v4348, %v590
    %v4376 = vmul.f32 %v4347, %v591
    %v4377 = vmul.f32 %v4346, %v592
    %v4378 = vmul.f32 %v4345, %v593
    %v4379 = vmul.f32 %v4344, %v594
    %v4380 = vpack.c.bf16 %v4363, %v4362
    %v4381 = vpack.c.bf16 %v4365, %v4364
    %v4382 = vpack.c.bf16 %v4367, %v4366
    %v4383 = vpack.c.bf16 %v4369, %v4368
    %v4384 = vpack.c.bf16 %v4371, %v4370
    %v4385 = vpack.c.bf16 %v4373, %v4372
    %v4386 = vpack.c.bf16 %v4375, %v4374
    %v4387 = vpack.c.bf16 %v4377, %v4376
    %v4388 = vpack.c.bf16 %v4379, %v4378
    %v4389 = vmul.f32 %v4245, %v667
    %v4390 = vmul.f32 %v4246, %v668
    %v4391 = vmul.f32 %v4247, %v669
    %v4392 = vmul.f32 %v4248, %v670
    %v4393 = vmul.f32 %v4249, %v671
    %v4394 = vmul.f32 %v4250, %v672
    %v4395 = vmul.f32 %v4251, %v673
    %v4396 = vmul.f32 %v4252, %v674
    %v4397 = vmul.f32 %v4253, %v675
    %v4398 = vmul.f32 %v4254, %v676
    %v4399 = vmul.f32 %v4255, %v677
    %v4400 = vmul.f32 %v4256, %v678
    %v4401 = vmul.f32 %v4257, %v679
    %v4402 = vmul.f32 %v4258, %v680
    %v4403 = vmul.f32 %v4259, %v681
    %v4404 = vmul.f32 %v4260, %v682
    %v4405 = vmul.f32 %v4261, %v683
    %v4406 = vmul.f32 %v4262, %v684
    %v4407 = vpack.c.bf16 %v4390, %v4389
    %v4408 = vpack.c.bf16 %v4392, %v4391
    %v4409 = vpack.c.bf16 %v4394, %v4393
    %v4410 = vpack.c.bf16 %v4396, %v4395
    %v4411 = vpack.c.bf16 %v4398, %v4397
    %v4412 = vpack.c.bf16 %v4400, %v4399
    %v4413 = vpack.c.bf16 %v4402, %v4401
    %v4414 = vpack.c.bf16 %v4404, %v4403
    %v4415 = vpack.c.bf16 %v4406, %v4405
    %v4416 = vrot.slane %v4245, 1
    %v4417 = vrot.slane %v4246, 1
    %v4418 = vrot.slane %v4247, 1
    %v4419 = vrot.slane %v4248, 1
    %v4420 = vrot.slane %v4249, 1
    %v4421 = vrot.slane %v4250, 1
    %v4422 = vrot.slane %v4251, 1
    %v4423 = vrot.slane %v4252, 1
    %v4424 = vrot.slane %v4253, 1
    %v4425 = vrot.slane %v4254, 1
    %v4426 = vrot.slane %v4255, 1
    %v4427 = vrot.slane %v4256, 1
    %v4428 = vrot.slane %v4257, 1
    %v4429 = vrot.slane %v4258, 1
    %v4430 = vrot.slane %v4259, 1
    %v4431 = vrot.slane %v4260, 1
    %v4432 = vrot.slane %v4261, 1
    %v4433 = vrot.slane %v4262, 1
    %v4434 = vsel %vm1456, %v4432, %v4433
    %v4435 = vsel %vm1456, %v4431, %v4432
    %v4436 = vsel %vm1456, %v4430, %v4431
    %v4437 = vsel %vm1456, %v4429, %v4430
    %v4438 = vsel %vm1456, %v4428, %v4429
    %v4439 = vsel %vm1456, %v4427, %v4428
    %v4440 = vsel %vm1456, %v4426, %v4427
    %v4441 = vsel %vm1456, %v4425, %v4426
    %v4442 = vsel %vm1456, %v4424, %v4425
    %v4443 = vsel %vm1456, %v4423, %v4424
    %v4444 = vsel %vm1456, %v4422, %v4423
    %v4445 = vsel %vm1456, %v4421, %v4422
    %v4446 = vsel %vm1456, %v4420, %v4421
    %v4447 = vsel %vm1456, %v4419, %v4420
    %v4448 = vsel %vm1456, %v4418, %v4419
    %v4449 = vsel %vm1456, %v4417, %v4418
    %v4450 = vsel %vm1456, %v4416, %v4417
    %v4451 = vsel %vm1456, %v4433, %v4416
    %v4452 = vmul.f32 %v4450, %v775
    %v4453 = vmul.f32 %v4449, %v776
    %v4454 = vmul.f32 %v4448, %v777
    %v4455 = vmul.f32 %v4447, %v778
    %v4456 = vmul.f32 %v4446, %v779
    %v4457 = vmul.f32 %v4445, %v780
    %v4458 = vmul.f32 %v4444, %v781
    %v4459 = vmul.f32 %v4443, %v782
    %v4460 = vmul.f32 %v4442, %v783
    %v4461 = vmul.f32 %v4441, %v784
    %v4462 = vmul.f32 %v4440, %v785
    %v4463 = vmul.f32 %v4439, %v786
    %v4464 = vmul.f32 %v4438, %v787
    %v4465 = vmul.f32 %v4437, %v788
    %v4466 = vmul.f32 %v4436, %v789
    %v4467 = vmul.f32 %v4435, %v790
    %v4468 = vmul.f32 %v4434, %v791
    %v4469 = vmul.f32 %v4451, %v792
    %v4470 = vpack.c.bf16 %v4453, %v4452
    %v4471 = vpack.c.bf16 %v4455, %v4454
    %v4472 = vpack.c.bf16 %v4457, %v4456
    %v4473 = vpack.c.bf16 %v4459, %v4458
    %v4474 = vpack.c.bf16 %v4461, %v4460
    %v4475 = vpack.c.bf16 %v4463, %v4462
    %v4476 = vpack.c.bf16 %v4465, %v4464
    %v4477 = vpack.c.bf16 %v4467, %v4466
    %v4478 = vpack.c.bf16 %v4469, %v4468
    %v4479 = vrot.slane %v4245, 2
    %v4480 = vrot.slane %v4246, 2
    %v4481 = vrot.slane %v4247, 2
    %v4482 = vrot.slane %v4248, 2
    %v4483 = vrot.slane %v4249, 2
    %v4484 = vrot.slane %v4250, 2
    %v4485 = vrot.slane %v4251, 2
    %v4486 = vrot.slane %v4252, 2
    %v4487 = vrot.slane %v4253, 2
    %v4488 = vrot.slane %v4254, 2
    %v4489 = vrot.slane %v4255, 2
    %v4490 = vrot.slane %v4256, 2
    %v4491 = vrot.slane %v4257, 2
    %v4492 = vrot.slane %v4258, 2
    %v4493 = vrot.slane %v4259, 2
    %v4494 = vrot.slane %v4260, 2
    %v4495 = vrot.slane %v4261, 2
    %v4496 = vrot.slane %v4262, 2
    %v4497 = vsel %vm1641, %v4495, %v4496
    %v4498 = vsel %vm1641, %v4494, %v4495
    %v4499 = vsel %vm1641, %v4493, %v4494
    %v4500 = vsel %vm1641, %v4492, %v4493
    %v4501 = vsel %vm1641, %v4491, %v4492
    %v4502 = vsel %vm1641, %v4490, %v4491
    %v4503 = vsel %vm1641, %v4489, %v4490
    %v4504 = vsel %vm1641, %v4488, %v4489
    %v4505 = vsel %vm1641, %v4487, %v4488
    %v4506 = vsel %vm1641, %v4486, %v4487
    %v4507 = vsel %vm1641, %v4485, %v4486
    %v4508 = vsel %vm1641, %v4484, %v4485
    %v4509 = vsel %vm1641, %v4483, %v4484
    %v4510 = vsel %vm1641, %v4482, %v4483
    %v4511 = vsel %vm1641, %v4481, %v4482
    %v4512 = vsel %vm1641, %v4480, %v4481
    %v4513 = vsel %vm1641, %v4479, %v4480
    %v4514 = vsel %vm1641, %v4496, %v4479
    %v4515 = vmul.f32 %v4513, %v883
    %v4516 = vmul.f32 %v4512, %v884
    %v4517 = vmul.f32 %v4511, %v885
    %v4518 = vmul.f32 %v4510, %v886
    %v4519 = vmul.f32 %v4509, %v887
    %v4520 = vmul.f32 %v4508, %v888
    %v4521 = vmul.f32 %v4507, %v889
    %v4522 = vmul.f32 %v4506, %v890
    %v4523 = vmul.f32 %v4505, %v891
    %v4524 = vmul.f32 %v4504, %v892
    %v4525 = vmul.f32 %v4503, %v893
    %v4526 = vmul.f32 %v4502, %v894
    %v4527 = vmul.f32 %v4501, %v895
    %v4528 = vmul.f32 %v4500, %v896
    %v4529 = vmul.f32 %v4499, %v897
    %v4530 = vmul.f32 %v4498, %v898
    %v4531 = vmul.f32 %v4497, %v899
    %v4532 = vmul.f32 %v4514, %v900
    %v4533 = vpack.c.bf16 %v4516, %v4515
    %v4534 = vpack.c.bf16 %v4518, %v4517
    %v4535 = vpack.c.bf16 %v4520, %v4519
    %v4536 = vpack.c.bf16 %v4522, %v4521
    %v4537 = vpack.c.bf16 %v4524, %v4523
    %v4538 = vpack.c.bf16 %v4526, %v4525
    %v4539 = vpack.c.bf16 %v4528, %v4527
    %v4540 = vpack.c.bf16 %v4530, %v4529
    %v4541 = vpack.c.bf16 %v4532, %v4531
    %4551 = vrot.lane.b32.xlu0 %v4380, 64
    %v4552 = vpop.permute.xlu0 %4551
    %4553 = vrot.lane.b32.xlu0 %v4381, 64
    %v4554 = vpop.permute.xlu0 %4553
    %4555 = vrot.lane.b32.xlu0 %v4382, 64
    %v4556 = vpop.permute.xlu0 %4555
    %4557 = vrot.lane.b32.xlu0 %v4383, 64
    %v4558 = vpop.permute.xlu0 %4557
    %4559 = vrot.lane.b32.xlu0 %v4384, 64
    %v4560 = vpop.permute.xlu0 %4559
    %4561 = vrot.lane.b32.xlu0 %v4385, 64
    %v4562 = vpop.permute.xlu0 %4561
    %4563 = vrot.lane.b32.xlu0 %v4386, 64
    %v4564 = vpop.permute.xlu0 %4563
    %4565 = vrot.lane.b32.xlu0 %v4387, 64
    %v4566 = vpop.permute.xlu0 %4565
    %4567 = vrot.lane.b32.xlu0 %v4388, 64
    %v4568 = vpop.permute.xlu0 %4567
    %4578 = vrot.lane.b32.xlu0 %v4470, 64
    %v4579 = vpop.permute.xlu0 %4578
    %4580 = vrot.lane.b32.xlu0 %v4471, 64
    %v4581 = vpop.permute.xlu0 %4580
    %4582 = vrot.lane.b32.xlu0 %v4472, 64
    %v4583 = vpop.permute.xlu0 %4582
    %4584 = vrot.lane.b32.xlu0 %v4473, 64
    %v4585 = vpop.permute.xlu0 %4584
    %4586 = vrot.lane.b32.xlu0 %v4474, 64
    %v4587 = vpop.permute.xlu0 %4586
    %4588 = vrot.lane.b32.xlu0 %v4475, 64
    %v4589 = vpop.permute.xlu0 %4588
    %4590 = vrot.lane.b32.xlu0 %v4476, 64
    %v4591 = vpop.permute.xlu0 %4590
    %4592 = vrot.lane.b32.xlu0 %v4477, 64
    %v4593 = vpop.permute.xlu0 %4592
    %4594 = vrot.lane.b32.xlu0 %v4478, 64
    %v4595 = vpop.permute.xlu0 %4594
    %v4598 = vsel %vm1900, %v4317, %v4552
    %v4602 = vsel %vm1900, %v4318, %v4554
    %v4606 = vsel %vm1900, %v4319, %v4556
    %v4610 = vsel %vm1900, %v4320, %v4558
    %v4614 = vsel %vm1900, %v4321, %v4560
    %v4618 = vsel %vm1900, %v4322, %v4562
    %v4622 = vsel %vm1900, %v4323, %v4564
    %v4626 = vsel %vm1900, %v4324, %v4566
    %v4630 = vsel %vm1900, %v4325, %v4568
    %v4634 = vsel %vm1900, %v4407, %v4579
    %v4638 = vsel %vm1900, %v4408, %v4581
    %v4642 = vsel %vm1900, %v4409, %v4583
    %v4646 = vsel %vm1900, %v4410, %v4585
    %v4650 = vsel %vm1900, %v4411, %v4587
    %v4654 = vsel %vm1900, %v4412, %v4589
    %v4658 = vsel %vm1900, %v4413, %v4591
    %v4662 = vsel %vm1900, %v4414, %v4593
    %v4666 = vsel %vm1900, %v4415, %v4595
    %v4668 = vld [vmem:[%s10] sm:$0xf]
    %v4669 = vld [vmem:[%s10 + $0x4] sm:$0xf]
    %v4670 = vld [vmem:[%s10 + $0x8] sm:$0xf]
    %v4671 = vld [vmem:[%s10 + $0xc] sm:$0xf]
    %v4672 = vld [vmem:[%s10 + $0x10] sm:$0xf]
    %v4673 = vld [vmem:[%s10 + $0x14] sm:$0xf]
    %v4674 = vld [vmem:[%s10 + $0x18] sm:$0xf]
    %v4675 = vld [vmem:[%s10 + $0x1c] sm:$0xf]
    %v4676 = vld [vmem:[%s10 + $0x20] sm:$0xf]
    %v4677 = vld [vmem:[%s10 + $0x24] sm:$0xf]
    %v4678 = vld [vmem:[%s10 + $0x28] sm:$0xf]
    %v4679 = vld [vmem:[%s10 + $0x2c] sm:$0xf]
    %v4680 = vld [vmem:[%s10 + $0x30] sm:$0xf]
    %v4681 = vld [vmem:[%s10 + $0x34] sm:$0xf]
    %v4682 = vld [vmem:[%s10 + $0x38] sm:$0xf]
    %v4683 = vld [vmem:[%s10 + $0x3c] sm:$0xf]
    %v4684 = vld [vmem:[%s10 + $0x40] sm:$0xf]
    %v4685 = vld [vmem:[%s10 + $0x44] sm:$0xf]
    %v4686 = vld [vmem:[%s10 + $0x48] sm:$0xf]
    %v4687 = vld [vmem:[%s10 + $0x4c] sm:$0xf]
    %v4688 = vld [vmem:[%s10 + $0x50] sm:$0xf]
    %v4689 = vld [vmem:[%s10 + $0x54] sm:$0xf]
    %v4690 = vld [vmem:[%s10 + $0x58] sm:$0xf]
    %v4691 = vld [vmem:[%s10 + $0x5c] sm:$0xf]
    %v4692 = vld [vmem:[%s10 + $0x60] sm:$0xf]
    %v4693 = vld [vmem:[%s10 + $0x64] sm:$0xf]
    %v4694 = vld [vmem:[%s10 + $0x68] sm:$0xf]
    %v4695 = vld [vmem:[%s10 + $0x6c] sm:$0xf]
    %v4696 = vld [vmem:[%s10 + $0x70] sm:$0xf]
    %v4697 = vld [vmem:[%s10 + $0x74] sm:$0xf]
    %v4698 = vld [vmem:[%s10 + $0x78] sm:$0xf]
    %v4699 = vld [vmem:[%s10 + $0x7c] sm:$0xf]
    %v4700 = vld [vmem:[%s10 + $0x80] sm:$0xf]
    %v4701 = vld [vmem:[%s10 + $0x84] sm:$0xf]
    %v4702 = vld [vmem:[%s10 + $0x88] sm:$0xf]
    %v4703 = vld [vmem:[%s10 + $0x8c] sm:$0xf]
    %v4704 = vld [vmem:[%s10 + $0x90] sm:$0xf]
    %v4705 = vld [vmem:[%s10 + $0x94] sm:$0xf]
    %v4706 = vld [vmem:[%s10 + $0x98] sm:$0xf]
    %v4707 = vld [vmem:[%s10 + $0x9c] sm:$0xf]
    %v4748 = vunpack.c.l.b16 %v4668
    %v4749 = vunpack.c.l.b16 %v4669
    %v4750 = vunpack.c.l.b16 %v4670
    %v4751 = vunpack.c.l.b16 %v4671
    %v4752 = vunpack.c.l.b16 %v4672
    %v4753 = vunpack.c.l.b16 %v4673
    %v4754 = vunpack.c.l.b16 %v4674
    %v4755 = vunpack.c.l.b16 %v4675
    %v4756 = vunpack.c.l.b16 %v4676
    %v4757 = vunpack.c.l.b16 %v4677
    %v4758 = vunpack.c.l.b16 %v4678
    %v4759 = vunpack.c.l.b16 %v4679
    %v4760 = vunpack.c.l.b16 %v4680
    %v4761 = vunpack.c.l.b16 %v4681
    %v4762 = vunpack.c.l.b16 %v4682
    %v4763 = vunpack.c.l.b16 %v4683
    %v4764 = vunpack.c.l.b16 %v4684
    %v4765 = vunpack.c.l.b16 %v4685
    %v4766 = vunpack.c.l.b16 %v4686
    %v4767 = vunpack.c.l.b16 %v4687
    %v4768 = vunpack.c.l.b16 %v4688
    %v4769 = vunpack.c.l.b16 %v4689
    %v4770 = vunpack.c.l.b16 %v4690
    %v4771 = vunpack.c.l.b16 %v4691
    %v4772 = vunpack.c.l.b16 %v4692
    %v4773 = vunpack.c.l.b16 %v4693
    %v4774 = vunpack.c.l.b16 %v4694
    %v4775 = vunpack.c.l.b16 %v4695
    %v4776 = vunpack.c.l.b16 %v4696
    %v4777 = vunpack.c.l.b16 %v4697
    %v4778 = vunpack.c.l.b16 %v4698
    %v4779 = vunpack.c.l.b16 %v4699
    %v4780 = vunpack.c.l.b16 %v4700
    %v4781 = vunpack.c.l.b16 %v4701
    %v4782 = vunpack.c.l.b16 %v4702
    %v4783 = vunpack.c.l.b16 %v4703
    %v4784 = vunpack.c.l.b16 %v4704
    %v4785 = vunpack.c.l.b16 %v4705
    %v4786 = vunpack.c.l.b16 %v4706
    %v4787 = vunpack.c.l.b16 %v4707
    %v4788 = vpack.c.b16 %v4749, %v4748
    %v4789 = vpack.c.b16 %v4751, %v4750
    %v4790 = vpack.c.b16 %v4753, %v4752
    %v4791 = vpack.c.b16 %v4755, %v4754
    %v4792 = vpack.c.b16 %v4757, %v4756
    %v4793 = vpack.c.b16 %v4759, %v4758
    %v4794 = vpack.c.b16 %v4761, %v4760
    %v4795 = vpack.c.b16 %v4763, %v4762
    %v4796 = vpack.c.b16 %v4765, %v4764
    %v4797 = vpack.c.b16 %v4767, %v4766
    %v4798 = vpack.c.b16 %v4769, %v4768
    %v4799 = vpack.c.b16 %v4771, %v4770
    %v4800 = vpack.c.b16 %v4773, %v4772
    %v4801 = vpack.c.b16 %v4775, %v4774
    %v4802 = vpack.c.b16 %v4777, %v4776
    %v4803 = vpack.c.b16 %v4779, %v4778
    %v4804 = vpack.c.b16 %v4781, %v4780
    %v4805 = vpack.c.b16 %v4783, %v4782
    %v4806 = vpack.c.b16 %v4785, %v4784
    %v4807 = vpack.c.b16 %v4787, %v4786
    %v4829 = vsel %vm1900, %v4533, 0
    %v4832 = vsel %vm1900, %v4534, 0
    %v4835 = vsel %vm1900, %v4535, 0
    %v4838 = vsel %vm1900, %v4536, 0
    %v4841 = vsel %vm1900, %v4537, 0
    %v4844 = vsel %vm1900, %v4538, 0
    %v4847 = vsel %vm1900, %v4539, 0
    %v4850 = vsel %vm1900, %v4540, 0
    %v4853 = vsel %vm1900, %v4541, 0
    %4855 = vmatprep.subr.bf16.mxu0 0
    %4856 = vmatpush1.bf16.msra.mxu0 %v4788
    %4857 = vmatprep.subr.bf16.mxu0 0
    %4858 = vmatpush1.bf16.msra.mxu0 %v4789
    %4859 = vmatprep.subr.bf16.mxu0 0
    %4860 = vmatpush1.bf16.msra.mxu0 %v4790
    %4861 = vmatprep.subr.bf16.mxu0 0
    %4862 = vmatpush1.bf16.msra.mxu0 %v4791
    %4863 = vmatprep.subr.bf16.mxu0 0
    %4864 = vmatpush1.bf16.msra.mxu0 %v4792
    %4865 = vmatprep.subr.bf16.mxu0 0
    %4866 = vmatpush1.bf16.msra.mxu0 %v4793
    %4867 = vmatprep.subr.bf16.mxu0 0
    %4868 = vmatpush1.bf16.msra.mxu0 %v4794
    %4869 = vmatprep.subr.bf16.mxu0 0
    %4870 = vmatpush1.bf16.msra.mxu0 %v4795
    %4871 = vmatprep.subr.bf16.mxu0 0
    %4872 = vmatpush1.bf16.msra.mxu0 %v4796
    %4873 = vmatprep.subr.bf16.mxu0 0
    %4874 = vmatpush1.bf16.msra.mxu0 %v4797
    %4875 = vmatprep.subr.bf16.mxu0 0
    %4876 = vmatpush1.bf16.msra.mxu0 %v4798
    %4877 = vmatprep.subr.bf16.mxu0 0
    %4878 = vmatpush1.bf16.msra.mxu0 %v4799
    %4879 = vmatprep.subr.bf16.mxu0 0
    %4880 = vmatpush1.bf16.msra.mxu0 %v4800
    %4881 = vmatprep.subr.bf16.mxu0 0
    %4882 = vmatpush1.bf16.msra.mxu0 %v4801
    %4883 = vmatprep.subr.bf16.mxu0 0
    %4884 = vmatpush1.bf16.msra.mxu0 %v4802
    %4885 = vmatprep.subr.bf16.mxu0 0
    %4886 = vmatpush1.bf16.msra.mxu0 %v4803
    %4887 = vmatprep.mubr.bf16.mxu0 %v4634
    %4888 = vmatmul.mubr.bf16.gmra.mrb[0].mxu0 %v4598
    %v4889 = vpop.f32.mrb[0].mxu0
    %v4890 = vadd.f32 0.0, %v4889
    %v4891 = vpop.f32.mrb[0].mxu0
    %v4892 = vpop.f32.mrb[0].mxu0
    %v4893 = vadd.f32 0.0, %v4892
    %v4894 = vpop.f32.mrb[0].mxu0
    %4895 = vmatprep.mubr.bf16.mxu0 %v4638
    %4896 = vmatmul.mubr.bf16.gmra.mrb[0].mxu0 %v4602
    %v4897 = vpop.f32.mrb[0].mxu0
    %v4898 = vadd.f32 0.0, %v4897
    %v4899 = vpop.f32.mrb[0].mxu0
    %v4900 = vpop.f32.mrb[0].mxu0
    %v4901 = vadd.f32 0.0, %v4900
    %v4902 = vpop.f32.mrb[0].mxu0
    %4903 = vmatprep.mubr.bf16.mxu0 %v4642
    %4904 = vmatmul.mubr.bf16.gmra.mrb[0].mxu0 %v4606
    %v4905 = vpop.f32.mrb[0].mxu0
    %v4906 = vadd.f32 0.0, %v4905
    %v4907 = vpop.f32.mrb[0].mxu0
    %v4908 = vpop.f32.mrb[0].mxu0
    %v4909 = vadd.f32 0.0, %v4908
    %v4910 = vpop.f32.mrb[0].mxu0
    %4911 = vmatprep.mubr.bf16.mxu0 %v4646
    %4912 = vmatmul.mubr.bf16.gmra.mrb[0].mxu0 %v4610
    %v4913 = vpop.f32.mrb[0].mxu0
    %v4914 = vadd.f32 0.0, %v4913
    %v4915 = vpop.f32.mrb[0].mxu0
    %v4916 = vpop.f32.mrb[0].mxu0
    %v4917 = vadd.f32 0.0, %v4916
    %v4918 = vpop.f32.mrb[0].mxu0
    %4919 = vmatprep.mubr.bf16.mxu0 %v4650
    %4920 = vmatmul.mubr.bf16.gmra.mrb[0].mxu0 %v4614
    %v4921 = vpop.f32.mrb[0].mxu0
    %v4922 = vadd.f32 0.0, %v4921
    %v4923 = vpop.f32.mrb[0].mxu0
    %v4924 = vpop.f32.mrb[0].mxu0
    %v4925 = vadd.f32 0.0, %v4924
    %v4926 = vpop.f32.mrb[0].mxu0
    %4927 = vmatprep.mubr.bf16.mxu0 %v4654
    %4928 = vmatmul.mubr.bf16.gmra.mrb[0].mxu0 %v4618
    %v4929 = vpop.f32.mrb[0].mxu0
    %v4930 = vadd.f32 0.0, %v4929
    %v4931 = vpop.f32.mrb[0].mxu0
    %v4932 = vpop.f32.mrb[0].mxu0
    %v4933 = vadd.f32 0.0, %v4932
    %v4934 = vpop.f32.mrb[0].mxu0
    %4935 = vmatprep.mubr.bf16.mxu0 %v4658
    %4936 = vmatmul.mubr.bf16.gmra.mrb[0].mxu0 %v4622
    %v4937 = vpop.f32.mrb[0].mxu0
    %v4938 = vadd.f32 0.0, %v4937
    %v4939 = vpop.f32.mrb[0].mxu0
    %v4940 = vpop.f32.mrb[0].mxu0
    %v4941 = vadd.f32 0.0, %v4940
    %v4942 = vpop.f32.mrb[0].mxu0
    %4943 = vmatprep.mubr.bf16.mxu0 %v4662
    %4944 = vmatmul.mubr.bf16.gmra.mrb[0].mxu0 %v4626
    %v4945 = vpop.f32.mrb[0].mxu0
    %v4946 = vadd.f32 0.0, %v4945
    %v4947 = vpop.f32.mrb[0].mxu0
    %v4948 = vpop.f32.mrb[0].mxu0
    %v4949 = vadd.f32 0.0, %v4948
    %v4950 = vpop.f32.mrb[0].mxu0
    %4951 = vmatprep.mubr.bf16.mxu0 %v4666
    %4952 = vmatmul.mubr.bf16.gmra.mrb[0].mxu0 %v4630
    %v4953 = vpop.f32.mrb[0].mxu0
    %v4954 = vadd.f32 0.0, %v4953
    %v4955 = vpop.f32.mrb[0].mxu0
    %v4956 = vpop.f32.mrb[0].mxu0
    %v4957 = vadd.f32 0.0, %v4956
    %v4958 = vpop.f32.mrb[0].mxu0
    %4959 = vdwg.mxu0
    %4960 = vmatprep.subr.bf16.mxu0 0
    %4961 = vmatpush1.bf16.msra.mxu0 %v4804
    %4962 = vmatprep.subr.bf16.mxu0 0
    %4963 = vmatpush1.bf16.msra.mxu0 %v4805
    %4964 = vmatprep.subr.bf16.mxu0 0
    %4965 = vmatpush1.bf16.msra.mxu0 %v4806
    %4966 = vmatprep.subr.bf16.mxu0 0
    %4967 = vmatpush1.bf16.msra.mxu0 %v4807
    %4968 = vmatprep.subr.bf16.mxu0 0
    %4969 = vmatpush1.bf16.msra.mxu0 0
    %4970 = vmatprep.subr.bf16.mxu0 0
    %4971 = vmatpush1.bf16.msra.mxu0 0
    %4972 = vmatprep.subr.bf16.mxu0 0
    %4973 = vmatpush1.bf16.msra.mxu0 0
    %4974 = vmatprep.subr.bf16.mxu0 0
    %4975 = vmatpush1.bf16.msra.mxu0 0
    %4976 = vmatprep.subr.bf16.mxu0 0
    %4977 = vmatpush1.bf16.msra.mxu0 0
    %4978 = vmatprep.subr.bf16.mxu0 0
    %4979 = vmatpush1.bf16.msra.mxu0 0
    %4980 = vmatprep.subr.bf16.mxu0 0
    %4981 = vmatpush1.bf16.msra.mxu0 0
    %4982 = vmatprep.subr.bf16.mxu0 0
    %4983 = vmatpush1.bf16.msra.mxu0 0
    %4984 = vmatprep.subr.bf16.mxu0 0
    %4985 = vmatpush1.bf16.msra.mxu0 0
    %4986 = vmatprep.subr.bf16.mxu0 0
    %4987 = vmatpush1.bf16.msra.mxu0 0
    %4988 = vmatprep.subr.bf16.mxu0 0
    %4989 = vmatpush1.bf16.msra.mxu0 0
    %4990 = vmatprep.subr.bf16.mxu0 0
    %4991 = vmatpush1.bf16.msra.mxu0 0
    %4992 = vmatprep.mubr.bf16.mxu0 0
    %4993 = vmatmul.mubr.bf16.gmra.mrb[0].mxu0 %v4829
    %v4994 = vpop.f32.mrb[0].mxu0
    %v4995 = vadd.f32 %v4890, %v4994
    %v4996 = vpop.f32.mrb[0].mxu0
    %v4997 = vpop.f32.mrb[0].mxu0
    %v4998 = vadd.f32 %v4893, %v4997
    %v4999 = vpop.f32.mrb[0].mxu0
    %5000 = vmatprep.mubr.bf16.mxu0 0
    %5001 = vmatmul.mubr.bf16.gmra.mrb[0].mxu0 %v4832
    %v5002 = vpop.f32.mrb[0].mxu0
    %v5003 = vadd.f32 %v4898, %v5002
    %v5004 = vpop.f32.mrb[0].mxu0
    %v5005 = vpop.f32.mrb[0].mxu0
    %v5006 = vadd.f32 %v4901, %v5005
    %v5007 = vpop.f32.mrb[0].mxu0
    %5008 = vmatprep.mubr.bf16.mxu0 0
    %5009 = vmatmul.mubr.bf16.gmra.mrb[0].mxu0 %v4835
    %v5010 = vpop.f32.mrb[0].mxu0
    %v5011 = vadd.f32 %v4906, %v5010
    %v5012 = vpop.f32.mrb[0].mxu0
    %v5013 = vpop.f32.mrb[0].mxu0
    %v5014 = vadd.f32 %v4909, %v5013
    %v5015 = vpop.f32.mrb[0].mxu0
    %5016 = vmatprep.mubr.bf16.mxu0 0
    %5017 = vmatmul.mubr.bf16.gmra.mrb[0].mxu0 %v4838
    %v5018 = vpop.f32.mrb[0].mxu0
    %v5019 = vadd.f32 %v4914, %v5018
    %v5020 = vpop.f32.mrb[0].mxu0
    %v5021 = vpop.f32.mrb[0].mxu0
    %v5022 = vadd.f32 %v4917, %v5021
    %v5023 = vpop.f32.mrb[0].mxu0
    %5024 = vmatprep.mubr.bf16.mxu0 0
    %5025 = vmatmul.mubr.bf16.gmra.mrb[0].mxu0 %v4841
    %v5026 = vpop.f32.mrb[0].mxu0
    %v5027 = vadd.f32 %v4922, %v5026
    %v5028 = vpop.f32.mrb[0].mxu0
    %v5029 = vpop.f32.mrb[0].mxu0
    %v5030 = vadd.f32 %v4925, %v5029
    %v5031 = vpop.f32.mrb[0].mxu0
    %5032 = vmatprep.mubr.bf16.mxu0 0
    %5033 = vmatmul.mubr.bf16.gmra.mrb[0].mxu0 %v4844
    %v5034 = vpop.f32.mrb[0].mxu0
    %v5035 = vadd.f32 %v4930, %v5034
    %v5036 = vpop.f32.mrb[0].mxu0
    %v5037 = vpop.f32.mrb[0].mxu0
    %v5038 = vadd.f32 %v4933, %v5037
    %v5039 = vpop.f32.mrb[0].mxu0
    %5040 = vmatprep.mubr.bf16.mxu0 0
    %5041 = vmatmul.mubr.bf16.gmra.mrb[0].mxu0 %v4847
    %v5042 = vpop.f32.mrb[0].mxu0
    %v5043 = vadd.f32 %v4938, %v5042
    %v5044 = vpop.f32.mrb[0].mxu0
    %v5045 = vpop.f32.mrb[0].mxu0
    %v5046 = vadd.f32 %v4941, %v5045
    %v5047 = vpop.f32.mrb[0].mxu0
    %5048 = vmatprep.mubr.bf16.mxu0 0
    %5049 = vmatmul.mubr.bf16.gmra.mrb[0].mxu0 %v4850
    %v5050 = vpop.f32.mrb[0].mxu0
    %v5051 = vadd.f32 %v4946, %v5050
    %v5052 = vpop.f32.mrb[0].mxu0
    %v5053 = vpop.f32.mrb[0].mxu0
    %v5054 = vadd.f32 %v4949, %v5053
    %v5055 = vpop.f32.mrb[0].mxu0
    %5056 = vmatprep.mubr.bf16.mxu0 0
    %5057 = vmatmul.mubr.bf16.gmra.mrb[0].mxu0 %v4853
    %v5058 = vpop.f32.mrb[0].mxu0
    %v5059 = vadd.f32 %v4954, %v5058
    %v5060 = vpop.f32.mrb[0].mxu0
    %v5061 = vpop.f32.mrb[0].mxu0
    %v5062 = vadd.f32 %v4957, %v5061
    %v5063 = vpop.f32.mrb[0].mxu0
    %5064 = vdwg.mxu0
    %v5065 = vld [vmem:[%s11] sm:$0x1]
    %v5066 = vld [vmem:[%s12] sm:$0x1]
    %v5067 = vmul.f32 %v4995, %v4995
    %v5068 = vmul.f32 %v4998, %v4998
    %v5069 = vmul.f32 %v5003, %v5003
    %v5070 = vmul.f32 %v5006, %v5006
    %v5071 = vmul.f32 %v5011, %v5011
    %v5072 = vmul.f32 %v5014, %v5014
    %v5073 = vmul.f32 %v5019, %v5019
    %v5074 = vmul.f32 %v5022, %v5022
    %v5075 = vmul.f32 %v5027, %v5027
    %v5076 = vmul.f32 %v5030, %v5030
    %v5077 = vmul.f32 %v5035, %v5035
    %v5078 = vmul.f32 %v5038, %v5038
    %v5079 = vmul.f32 %v5043, %v5043
    %v5080 = vmul.f32 %v5046, %v5046
    %v5081 = vmul.f32 %v5051, %v5051
    %v5082 = vmul.f32 %v5054, %v5054
    %v5083 = vmul.f32 %v5059, %v5059
    %v5084 = vmul.f32 %v5062, %v5062
    %5103 = vrot.lane.b32.xlu0 %v5067, 64
    %v5104 = vpop.permute.xlu0 %5103
    %5105 = vrot.lane.b32.xlu0 %v5068, 64
    %v5106 = vpop.permute.xlu0 %5105
    %5107 = vrot.lane.b32.xlu0 %v5069, 64
    %v5108 = vpop.permute.xlu0 %5107
    %5109 = vrot.lane.b32.xlu0 %v5070, 64
    %v5110 = vpop.permute.xlu0 %5109
    %5111 = vrot.lane.b32.xlu0 %v5071, 64
    %v5112 = vpop.permute.xlu0 %5111
    %5113 = vrot.lane.b32.xlu0 %v5072, 64
    %v5114 = vpop.permute.xlu0 %5113
    %5115 = vrot.lane.b32.xlu0 %v5073, 64
    %v5116 = vpop.permute.xlu0 %5115
    %5117 = vrot.lane.b32.xlu0 %v5074, 64
    %v5118 = vpop.permute.xlu0 %5117
    %5119 = vrot.lane.b32.xlu0 %v5075, 64
    %v5120 = vpop.permute.xlu0 %5119
    %5121 = vrot.lane.b32.xlu0 %v5076, 64
    %v5122 = vpop.permute.xlu0 %5121
    %5123 = vrot.lane.b32.xlu0 %v5077, 64
    %v5124 = vpop.permute.xlu0 %5123
    %5125 = vrot.lane.b32.xlu0 %v5078, 64
    %v5126 = vpop.permute.xlu0 %5125
    %5127 = vrot.lane.b32.xlu0 %v5079, 64
    %v5128 = vpop.permute.xlu0 %5127
    %5129 = vrot.lane.b32.xlu0 %v5080, 64
    %v5130 = vpop.permute.xlu0 %5129
    %5131 = vrot.lane.b32.xlu0 %v5081, 64
    %v5132 = vpop.permute.xlu0 %5131
    %5133 = vrot.lane.b32.xlu0 %v5082, 64
    %v5134 = vpop.permute.xlu0 %5133
    %5135 = vrot.lane.b32.xlu0 %v5083, 64
    %v5136 = vpop.permute.xlu0 %5135
    %5137 = vrot.lane.b32.xlu0 %v5084, 64
    %v5138 = vpop.permute.xlu0 %5137
    %v5157 = vsel %vm1900, %v4995, %v5104
    %v5158 = vsel %vm1900, %v4998, %v5106
    %v5159 = vsel %vm1900, %v5003, %v5108
    %v5160 = vsel %vm1900, %v5006, %v5110
    %v5161 = vsel %vm1900, %v5011, %v5112
    %v5162 = vsel %vm1900, %v5014, %v5114
    %v5163 = vsel %vm1900, %v5019, %v5116
    %v5164 = vsel %vm1900, %v5022, %v5118
    %v5165 = vsel %vm1900, %v5027, %v5120
    %v5166 = vsel %vm1900, %v5030, %v5122
    %v5167 = vsel %vm1900, %v5035, %v5124
    %v5168 = vsel %vm1900, %v5038, %v5126
    %v5169 = vsel %vm1900, %v5043, %v5128
    %v5170 = vsel %vm1900, %v5046, %v5130
    %v5171 = vsel %vm1900, %v5051, %v5132
    %v5172 = vsel %vm1900, %v5054, %v5134
    %v5173 = vsel %vm1900, %v5059, %v5136
    %v5174 = vsel %vm1900, %v5062, %v5138
    %5175 = vmatprep.subr.mxu0 0.0
    %5176 = vmatpush1.msra.mxu0 %v5157
    %5177 = vmatprep.subr.mxu0 0.0
    %5178 = vmatpush1.msra.mxu0 %v5158
    %5179 = vmatprep.subr.mxu0 0.0
    %5180 = vmatpush1.msra.mxu0 %v5159
    %5181 = vmatprep.subr.mxu0 0.0
    %5182 = vmatpush1.msra.mxu0 %v5160
    %5183 = vmatprep.subr.mxu0 0.0
    %5184 = vmatpush1.msra.mxu0 %v5161
    %5185 = vmatprep.subr.mxu0 0.0
    %5186 = vmatpush1.msra.mxu0 %v5162
    %5187 = vmatprep.subr.mxu0 0.0
    %5188 = vmatpush1.msra.mxu0 %v5163
    %5189 = vmatprep.subr.mxu0 0.0
    %5190 = vmatpush1.msra.mxu0 %v5164
    %5191 = vmatprep.subr.mxu0 0.0
    %5192 = vmatpush1.msra.mxu0 %v5165
    %5193 = vmatprep.subr.mxu0 0.0
    %5194 = vmatpush1.msra.mxu0 %v5166
    %5195 = vmatprep.subr.mxu0 0.0
    %5196 = vmatpush1.msra.mxu0 %v5167
    %5197 = vmatprep.subr.mxu0 0.0
    %5198 = vmatpush1.msra.mxu0 %v5168
    %5199 = vmatprep.subr.mxu0 0.0
    %5200 = vmatpush1.msra.mxu0 %v5169
    %5201 = vmatprep.subr.mxu0 0.0
    %5202 = vmatpush1.msra.mxu0 %v5170
    %5203 = vmatprep.subr.mxu0 0.0
    %5204 = vmatpush1.msra.mxu0 %v5171
    %5205 = vmatprep.subr.mxu0 0.0
    %5206 = vmatpush1.msra.mxu0 %v5172
    %5207 = vmatprep.subr.mxu0 0.0
    %5208 = vmatpush1.msra.mxu0 %v5173
    %5209 = vmatprep.subr.mxu0 0.0
    %5210 = vmatpush1.msra.mxu0 %v5174
    %5211 = vmatprep.subr.mxu0 0.0
    %5212 = vmatpush1.msra.mxu0 0.0
    %5213 = vmatprep.subr.mxu0 0.0
    %5214 = vmatpush1.msra.mxu0 0.0
    %5215 = vmatprep.subr.mxu0 0.0
    %5216 = vmatpush1.msra.mxu0 0.0
    %5217 = vmatprep.subr.mxu0 0.0
    %5218 = vmatpush1.msra.mxu0 0.0
    %5219 = vmatprep.subr.mxu0 0.0
    %5220 = vmatpush1.msra.mxu0 0.0
    %5221 = vmatprep.subr.mxu0 0.0
    %5222 = vmatpush1.msra.mxu0 0.0
    %5223 = vmatprep.subr.mxu0 0.0
    %5224 = vmatpush1.msra.mxu0 0.0
    %5225 = vmatprep.subr.mxu0 0.0
    %5226 = vmatpush1.msra.mxu0 0.0
    %5227 = vmatprep.subr.mxu0 0.0
    %5228 = vmatpush1.msra.mxu0 0.0
    %5229 = vmatprep.subr.mxu0 0.0
    %5230 = vmatpush1.msra.mxu0 0.0
    %5231 = vmatprep.subr.mxu0 0.0
    %5232 = vmatpush1.msra.mxu0 0.0
    %5233 = vmatprep.subr.mxu0 0.0
    %5234 = vmatpush1.msra.mxu0 0.0
    %5235 = vmatprep.subr.mxu0 0.0
    %5236 = vmatpush1.msra.mxu0 0.0
    %5237 = vmatprep.subr.mxu0 0.0
    %5238 = vmatpush1.msra.mxu0 0.0
    %5239 = vmatprep.mubr.f32.mxu0 %v1921
    %5240 = vmatmul.mubr.f32.gmra.mrb[0].mxu0 1.0
    %v5241 = vpop.f32.mrb[0].mxu0
    %v5242 = vadd.f32 0.0, %v5241
    %v5243 = vpop.f32.mrb[0].mxu0
    %5244 = vdwg.mxu0
    %v5245 = vmul.f32 %v5242, 0.0069444445
    %v5246 = vmul.f32 %v5245, %v5245
    %5248 = vrot.lane.b32.xlu0 %v5246, 64
    %v5249 = vpop.permute.xlu0 %5248
    %v5251 = vsub.f32 %v5245, %v5249
    %v5252 = vadd.f32 %v5251, 1e-05
    %v5253 = vrsqrt.pop %v5252
    %v5256 = vunpack.c.l.s4 1966171168
    %v5257 = vunpack.c.0.s8 %v5256
    %v5258 = vlaneseq
    %v5259 = vshrl.u32 %v5258, 7
    %v5260 = vsub.s32 %v5257, %v5259
    %v5261 = vrot.slane %v5253, %v5260
    %v5263 = vunpack.c.l.s4 1966171168
    %v5264 = vunpack.c.0.s8 %v5263
    %v5265 = vlaneseq
    %v5266 = vshrl.u32 %v5265, 7
    %v5267 = vsub.s32 %v5264, %v5266
    %v5268 = vrot.slane %v5261, %v5267
    %5269 = vrot.lane.b32.xlu0 %v5268, 64
    %v5270 = vpop.permute.xlu0 %5269
    %v5272 = vmul.f32 %v5065, %v5270
    %v5273 = vmul.f32 %v5245, %v5272
    %v5274 = vsub.f32 %v5066, %v5273
    %v5276 = vlaneseq
    %v5277 = vshrl.u32 %v5276, 7
    %v5278 = vsub.s32 0, %v5277
    %v5279 = vrot.slane %v5272, %v5278
    %v5281 = vmul.f32 %v4995, %v5279
    %v5282 = vmul.f32 %v4998, %v5279
    %v5283 = vmul.f32 %v5003, %v5279
    %v5284 = vmul.f32 %v5006, %v5279
    %v5285 = vmul.f32 %v5011, %v5279
    %v5286 = vmul.f32 %v5014, %v5279
    %v5287 = vmul.f32 %v5019, %v5279
    %v5288 = vmul.f32 %v5022, %v5279
    %v5289 = vmul.f32 %v5027, %v5279
    %v5290 = vmul.f32 %v5030, %v5279
    %v5291 = vmul.f32 %v5035, %v5279
    %v5292 = vmul.f32 %v5038, %v5279
    %v5293 = vmul.f32 %v5043, %v5279
    %v5294 = vmul.f32 %v5046, %v5279
    %v5295 = vmul.f32 %v5051, %v5279
    %v5296 = vmul.f32 %v5054, %v5279
    %v5297 = vmul.f32 %v5059, %v5279
    %v5298 = vmul.f32 %v5062, %v5279
    %v5300 = vlaneseq
    %v5301 = vshrl.u32 %v5300, 7
    %v5302 = vsub.s32 0, %v5301
    %v5303 = vrot.slane %v5274, %v5302
    %v5305 = vadd.f32 %v5281, %v5303
    %v5306 = vadd.f32 %v5282, %v5303
    %v5307 = vadd.f32 %v5283, %v5303
    %v5308 = vadd.f32 %v5284, %v5303
    %v5309 = vadd.f32 %v5285, %v5303
    %v5310 = vadd.f32 %v5286, %v5303
    %v5311 = vadd.f32 %v5287, %v5303
    %v5312 = vadd.f32 %v5288, %v5303
    %v5313 = vadd.f32 %v5289, %v5303
    %v5314 = vadd.f32 %v5290, %v5303
    %v5315 = vadd.f32 %v5291, %v5303
    %v5316 = vadd.f32 %v5292, %v5303
    %v5317 = vadd.f32 %v5293, %v5303
    %v5318 = vadd.f32 %v5294, %v5303
    %v5319 = vadd.f32 %v5295, %v5303
    %v5320 = vadd.f32 %v5296, %v5303
    %v5321 = vadd.f32 %v5297, %v5303
    %v5322 = vadd.f32 %v5298, %v5303
    %v5323 = vmax.f32 %v5305, 0.0
    %v5324 = vmax.f32 %v5306, 0.0
    %v5325 = vmax.f32 %v5307, 0.0
    %v5326 = vmax.f32 %v5308, 0.0
    %v5327 = vmax.f32 %v5309, 0.0
    %v5328 = vmax.f32 %v5310, 0.0
    %v5329 = vmax.f32 %v5311, 0.0
    %v5330 = vmax.f32 %v5312, 0.0
    %v5331 = vmax.f32 %v5313, 0.0
    %v5332 = vmax.f32 %v5314, 0.0
    %v5333 = vmax.f32 %v5315, 0.0
    %v5334 = vmax.f32 %v5316, 0.0
    %v5335 = vmax.f32 %v5317, 0.0
    %v5336 = vmax.f32 %v5318, 0.0
    %v5337 = vmax.f32 %v5319, 0.0
    %v5338 = vmax.f32 %v5320, 0.0
    %v5339 = vmax.f32 %v5321, 0.0
    %v5340 = vmax.f32 %v5322, 0.0
    %v5341 = vrot.slane %v5323, 6
    %v5342 = vrot.slane %v5324, 6
    %v5343 = vrot.slane %v5325, 6
    %v5344 = vrot.slane %v5326, 6
    %v5345 = vrot.slane %v5327, 6
    %v5346 = vrot.slane %v5328, 6
    %v5347 = vrot.slane %v5329, 6
    %v5348 = vrot.slane %v5330, 6
    %v5349 = vrot.slane %v5331, 6
    %v5350 = vrot.slane %v5332, 6
    %v5351 = vrot.slane %v5333, 6
    %v5352 = vrot.slane %v5334, 6
    %v5353 = vrot.slane %v5335, 6
    %v5354 = vrot.slane %v5336, 6
    %v5355 = vrot.slane %v5337, 6
    %v5356 = vrot.slane %v5338, 6
    %v5357 = vrot.slane %v5339, 6
    %v5358 = vrot.slane %v5340, 6
    %v5359 = vsel %vm938, %v5357, %v5358
    %v5360 = vsel %vm938, %v5356, %v5357
    %v5361 = vsel %vm938, %v5355, %v5356
    %v5362 = vsel %vm938, %v5354, %v5355
    %v5363 = vsel %vm938, %v5353, %v5354
    %v5364 = vsel %vm938, %v5352, %v5353
    %v5365 = vsel %vm938, %v5351, %v5352
    %v5366 = vsel %vm938, %v5350, %v5351
    %v5367 = vsel %vm938, %v5349, %v5350
    %v5368 = vsel %vm938, %v5348, %v5349
    %v5369 = vsel %vm938, %v5347, %v5348
    %v5370 = vsel %vm938, %v5346, %v5347
    %v5371 = vsel %vm938, %v5345, %v5346
    %v5372 = vsel %vm938, %v5344, %v5345
    %v5373 = vsel %vm938, %v5343, %v5344
    %v5374 = vsel %vm938, %v5342, %v5343
    %v5375 = vsel %vm938, %v5341, %v5342
    %v5376 = vsel %vm938, %v5358, %v5341
    %v5377 = vmul.f32 %v5376, %v469
    %v5378 = vmul.f32 %v5375, %v470
    %v5379 = vmul.f32 %v5374, %v471
    %v5380 = vmul.f32 %v5373, %v472
    %v5381 = vmul.f32 %v5372, %v473
    %v5382 = vmul.f32 %v5371, %v474
    %v5383 = vmul.f32 %v5370, %v475
    %v5384 = vmul.f32 %v5369, %v476
    %v5385 = vmul.f32 %v5368, %v477
    %v5386 = vmul.f32 %v5367, %v478
    %v5387 = vmul.f32 %v5366, %v479
    %v5388 = vmul.f32 %v5365, %v480
    %v5389 = vmul.f32 %v5364, %v481
    %v5390 = vmul.f32 %v5363, %v482
    %v5391 = vmul.f32 %v5362, %v483
    %v5392 = vmul.f32 %v5361, %v484
    %v5393 = vmul.f32 %v5360, %v485
    %v5394 = vmul.f32 %v5359, %v486
    %v5395 = vpack.c.bf16 %v5378, %v5377
    %v5396 = vpack.c.bf16 %v5380, %v5379
    %v5397 = vpack.c.bf16 %v5382, %v5381
    %v5398 = vpack.c.bf16 %v5384, %v5383
    %v5399 = vpack.c.bf16 %v5386, %v5385
    %v5400 = vpack.c.bf16 %v5388, %v5387
    %v5401 = vpack.c.bf16 %v5390, %v5389
    %v5402 = vpack.c.bf16 %v5392, %v5391
    %v5403 = vpack.c.bf16 %v5394, %v5393
    %v5404 = vrot.slane %v5323, 7
    %v5405 = vrot.slane %v5324, 7
    %v5406 = vrot.slane %v5325, 7
    %v5407 = vrot.slane %v5326, 7
    %v5408 = vrot.slane %v5327, 7
    %v5409 = vrot.slane %v5328, 7
    %v5410 = vrot.slane %v5329, 7
    %v5411 = vrot.slane %v5330, 7
    %v5412 = vrot.slane %v5331, 7
    %v5413 = vrot.slane %v5332, 7
    %v5414 = vrot.slane %v5333, 7
    %v5415 = vrot.slane %v5334, 7
    %v5416 = vrot.slane %v5335, 7
    %v5417 = vrot.slane %v5336, 7
    %v5418 = vrot.slane %v5337, 7
    %v5419 = vrot.slane %v5338, 7
    %v5420 = vrot.slane %v5339, 7
    %v5421 = vrot.slane %v5340, 7
    %v5422 = vsel %vm1123, %v5420, %v5421
    %v5423 = vsel %vm1123, %v5419, %v5420
    %v5424 = vsel %vm1123, %v5418, %v5419
    %v5425 = vsel %vm1123, %v5417, %v5418
    %v5426 = vsel %vm1123, %v5416, %v5417
    %v5427 = vsel %vm1123, %v5415, %v5416
    %v5428 = vsel %vm1123, %v5414, %v5415
    %v5429 = vsel %vm1123, %v5413, %v5414
    %v5430 = vsel %vm1123, %v5412, %v5413
    %v5431 = vsel %vm1123, %v5411, %v5412
    %v5432 = vsel %vm1123, %v5410, %v5411
    %v5433 = vsel %vm1123, %v5409, %v5410
    %v5434 = vsel %vm1123, %v5408, %v5409
    %v5435 = vsel %vm1123, %v5407, %v5408
    %v5436 = vsel %vm1123, %v5406, %v5407
    %v5437 = vsel %vm1123, %v5405, %v5406
    %v5438 = vsel %vm1123, %v5404, %v5405
    %v5439 = vsel %vm1123, %v5421, %v5404
    %v5440 = vmul.f32 %v5439, %v577
    %v5441 = vmul.f32 %v5438, %v578
    %v5442 = vmul.f32 %v5437, %v579
    %v5443 = vmul.f32 %v5436, %v580
    %v5444 = vmul.f32 %v5435, %v581
    %v5445 = vmul.f32 %v5434, %v582
    %v5446 = vmul.f32 %v5433, %v583
    %v5447 = vmul.f32 %v5432, %v584
    %v5448 = vmul.f32 %v5431, %v585
    %v5449 = vmul.f32 %v5430, %v586
    %v5450 = vmul.f32 %v5429, %v587
    %v5451 = vmul.f32 %v5428, %v588
    %v5452 = vmul.f32 %v5427, %v589
    %v5453 = vmul.f32 %v5426, %v590
    %v5454 = vmul.f32 %v5425, %v591
    %v5455 = vmul.f32 %v5424, %v592
    %v5456 = vmul.f32 %v5423, %v593
    %v5457 = vmul.f32 %v5422, %v594
    %v5458 = vpack.c.bf16 %v5441, %v5440
    %v5459 = vpack.c.bf16 %v5443, %v5442
    %v5460 = vpack.c.bf16 %v5445, %v5444
    %v5461 = vpack.c.bf16 %v5447, %v5446
    %v5462 = vpack.c.bf16 %v5449, %v5448
    %v5463 = vpack.c.bf16 %v5451, %v5450
    %v5464 = vpack.c.bf16 %v5453, %v5452
    %v5465 = vpack.c.bf16 %v5455, %v5454
    %v5466 = vpack.c.bf16 %v5457, %v5456
    %v5467 = vmul.f32 %v5323, %v667
    %v5468 = vmul.f32 %v5324, %v668
    %v5469 = vmul.f32 %v5325, %v669
    %v5470 = vmul.f32 %v5326, %v670
    %v5471 = vmul.f32 %v5327, %v671
    %v5472 = vmul.f32 %v5328, %v672
    %v5473 = vmul.f32 %v5329, %v673
    %v5474 = vmul.f32 %v5330, %v674
    %v5475 = vmul.f32 %v5331, %v675
    %v5476 = vmul.f32 %v5332, %v676
    %v5477 = vmul.f32 %v5333, %v677
    %v5478 = vmul.f32 %v5334, %v678
    %v5479 = vmul.f32 %v5335, %v679
    %v5480 = vmul.f32 %v5336, %v680
    %v5481 = vmul.f32 %v5337, %v681
    %v5482 = vmul.f32 %v5338, %v682
    %v5483 = vmul.f32 %v5339, %v683
    %v5484 = vmul.f32 %v5340, %v684
    %v5485 = vpack.c.bf16 %v5468, %v5467
    %v5486 = vpack.c.bf16 %v5470, %v5469
    %v5487 = vpack.c.bf16 %v5472, %v5471
    %v5488 = vpack.c.bf16 %v5474, %v5473
    %v5489 = vpack.c.bf16 %v5476, %v5475
    %v5490 = vpack.c.bf16 %v5478, %v5477
    %v5491 = vpack.c.bf16 %v5480, %v5479
    %v5492 = vpack.c.bf16 %v5482, %v5481
    %v5493 = vpack.c.bf16 %v5484, %v5483
    %v5494 = vrot.slane %v5323, 1
    %v5495 = vrot.slane %v5324, 1
    %v5496 = vrot.slane %v5325, 1
    %v5497 = vrot.slane %v5326, 1
    %v5498 = vrot.slane %v5327, 1
    %v5499 = vrot.slane %v5328, 1
    %v5500 = vrot.slane %v5329, 1
    %v5501 = vrot.slane %v5330, 1
    %v5502 = vrot.slane %v5331, 1
    %v5503 = vrot.slane %v5332, 1
    %v5504 = vrot.slane %v5333, 1
    %v5505 = vrot.slane %v5334, 1
    %v5506 = vrot.slane %v5335, 1
    %v5507 = vrot.slane %v5336, 1
    %v5508 = vrot.slane %v5337, 1
    %v5509 = vrot.slane %v5338, 1
    %v5510 = vrot.slane %v5339, 1
    %v5511 = vrot.slane %v5340, 1
    %v5512 = vsel %vm1456, %v5510, %v5511
    %v5513 = vsel %vm1456, %v5509, %v5510
    %v5514 = vsel %vm1456, %v5508, %v5509
    %v5515 = vsel %vm1456, %v5507, %v5508
    %v5516 = vsel %vm1456, %v5506, %v5507
    %v5517 = vsel %vm1456, %v5505, %v5506
    %v5518 = vsel %vm1456, %v5504, %v5505
    %v5519 = vsel %vm1456, %v5503, %v5504
    %v5520 = vsel %vm1456, %v5502, %v5503
    %v5521 = vsel %vm1456, %v5501, %v5502
    %v5522 = vsel %vm1456, %v5500, %v5501
    %v5523 = vsel %vm1456, %v5499, %v5500
    %v5524 = vsel %vm1456, %v5498, %v5499
    %v5525 = vsel %vm1456, %v5497, %v5498
    %v5526 = vsel %vm1456, %v5496, %v5497
    %v5527 = vsel %vm1456, %v5495, %v5496
    %v5528 = vsel %vm1456, %v5494, %v5495
    %v5529 = vsel %vm1456, %v5511, %v5494
    %v5530 = vmul.f32 %v5528, %v775
    %v5531 = vmul.f32 %v5527, %v776
    %v5532 = vmul.f32 %v5526, %v777
    %v5533 = vmul.f32 %v5525, %v778
    %v5534 = vmul.f32 %v5524, %v779
    %v5535 = vmul.f32 %v5523, %v780
    %v5536 = vmul.f32 %v5522, %v781
    %v5537 = vmul.f32 %v5521, %v782
    %v5538 = vmul.f32 %v5520, %v783
    %v5539 = vmul.f32 %v5519, %v784
    %v5540 = vmul.f32 %v5518, %v785
    %v5541 = vmul.f32 %v5517, %v786
    %v5542 = vmul.f32 %v5516, %v787
    %v5543 = vmul.f32 %v5515, %v788
    %v5544 = vmul.f32 %v5514, %v789
    %v5545 = vmul.f32 %v5513, %v790
    %v5546 = vmul.f32 %v5512, %v791
    %v5547 = vmul.f32 %v5529, %v792
    %v5548 = vpack.c.bf16 %v5531, %v5530
    %v5549 = vpack.c.bf16 %v5533, %v5532
    %v5550 = vpack.c.bf16 %v5535, %v5534
    %v5551 = vpack.c.bf16 %v5537, %v5536
    %v5552 = vpack.c.bf16 %v5539, %v5538
    %v5553 = vpack.c.bf16 %v5541, %v5540
    %v5554 = vpack.c.bf16 %v5543, %v5542
    %v5555 = vpack.c.bf16 %v5545, %v5544
    %v5556 = vpack.c.bf16 %v5547, %v5546
    %v5557 = vrot.slane %v5323, 2
    %v5558 = vrot.slane %v5324, 2
    %v5559 = vrot.slane %v5325, 2
    %v5560 = vrot.slane %v5326, 2
    %v5561 = vrot.slane %v5327, 2
    %v5562 = vrot.slane %v5328, 2
    %v5563 = vrot.slane %v5329, 2
    %v5564 = vrot.slane %v5330, 2
    %v5565 = vrot.slane %v5331, 2
    %v5566 = vrot.slane %v5332, 2
    %v5567 = vrot.slane %v5333, 2
    %v5568 = vrot.slane %v5334, 2
    %v5569 = vrot.slane %v5335, 2
    %v5570 = vrot.slane %v5336, 2
    %v5571 = vrot.slane %v5337, 2
    %v5572 = vrot.slane %v5338, 2
    %v5573 = vrot.slane %v5339, 2
    %v5574 = vrot.slane %v5340, 2
    %v5575 = vsel %vm1641, %v5573, %v5574
    %v5576 = vsel %vm1641, %v5572, %v5573
    %v5577 = vsel %vm1641, %v5571, %v5572
    %v5578 = vsel %vm1641, %v5570, %v5571
    %v5579 = vsel %vm1641, %v5569, %v5570
    %v5580 = vsel %vm1641, %v5568, %v5569
    %v5581 = vsel %vm1641, %v5567, %v5568
    %v5582 = vsel %vm1641, %v5566, %v5567
    %v5583 = vsel %vm1641, %v5565, %v5566
    %v5584 = vsel %vm1641, %v5564, %v5565
    %v5585 = vsel %vm1641, %v5563, %v5564
    %v5586 = vsel %vm1641, %v5562, %v5563
    %v5587 = vsel %vm1641, %v5561, %v5562
    %v5588 = vsel %vm1641, %v5560, %v5561
    %v5589 = vsel %vm1641, %v5559, %v5560
    %v5590 = vsel %vm1641, %v5558, %v5559
    %v5591 = vsel %vm1641, %v5557, %v5558
    %v5592 = vsel %vm1641, %v5574, %v5557
    %v5593 = vmul.f32 %v5591, %v883
    %v5594 = vmul.f32 %v5590, %v884
    %v5595 = vmul.f32 %v5589, %v885
    %v5596 = vmul.f32 %v5588, %v886
    %v5597 = vmul.f32 %v5587, %v887
    %v5598 = vmul.f32 %v5586, %v888
    %v5599 = vmul.f32 %v5585, %v889
    %v5600 = vmul.f32 %v5584, %v890
    %v5601 = vmul.f32 %v5583, %v891
    %v5602 = vmul.f32 %v5582, %v892
    %v5603 = vmul.f32 %v5581, %v893
    %v5604 = vmul.f32 %v5580, %v894
    %v5605 = vmul.f32 %v5579, %v895
    %v5606 = vmul.f32 %v5578, %v896
    %v5607 = vmul.f32 %v5577, %v897
    %v5608 = vmul.f32 %v5576, %v898
    %v5609 = vmul.f32 %v5575, %v899
    %v5610 = vmul.f32 %v5592, %v900
    %v5611 = vpack.c.bf16 %v5594, %v5593
    %v5612 = vpack.c.bf16 %v5596, %v5595
    %v5613 = vpack.c.bf16 %v5598, %v5597
    %v5614 = vpack.c.bf16 %v5600, %v5599
    %v5615 = vpack.c.bf16 %v5602, %v5601
    %v5616 = vpack.c.bf16 %v5604, %v5603
    %v5617 = vpack.c.bf16 %v5606, %v5605
    %v5618 = vpack.c.bf16 %v5608, %v5607
    %v5619 = vpack.c.bf16 %v5610, %v5609
    %5629 = vrot.lane.b32.xlu0 %v5458, 64
    %v5630 = vpop.permute.xlu0 %5629
    %5631 = vrot.lane.b32.xlu0 %v5459, 64
    %v5632 = vpop.permute.xlu0 %5631
    %5633 = vrot.lane.b32.xlu0 %v5460, 64
    %v5634 = vpop.permute.xlu0 %5633
    %5635 = vrot.lane.b32.xlu0 %v5461, 64
    %v5636 = vpop.permute.xlu0 %5635
    %5637 = vrot.lane.b32.xlu0 %v5462, 64
    %v5638 = vpop.permute.xlu0 %5637
    %5639 = vrot.lane.b32.xlu0 %v5463, 64
    %v5640 = vpop.permute.xlu0 %5639
    %5641 = vrot.lane.b32.xlu0 %v5464, 64
    %v5642 = vpop.permute.xlu0 %5641
    %5643 = vrot.lane.b32.xlu0 %v5465, 64
    %v5644 = vpop.permute.xlu0 %5643
    %5645 = vrot.lane.b32.xlu0 %v5466, 64
    %v5646 = vpop.permute.xlu0 %5645
    %5656 = vrot.lane.b32.xlu0 %v5548, 64
    %v5657 = vpop.permute.xlu0 %5656
    %5658 = vrot.lane.b32.xlu0 %v5549, 64
    %v5659 = vpop.permute.xlu0 %5658
    %5660 = vrot.lane.b32.xlu0 %v5550, 64
    %v5661 = vpop.permute.xlu0 %5660
    %5662 = vrot.lane.b32.xlu0 %v5551, 64
    %v5663 = vpop.permute.xlu0 %5662
    %5664 = vrot.lane.b32.xlu0 %v5552, 64
    %v5665 = vpop.permute.xlu0 %5664
    %5666 = vrot.lane.b32.xlu0 %v5553, 64
    %v5667 = vpop.permute.xlu0 %5666
    %5668 = vrot.lane.b32.xlu0 %v5554, 64
    %v5669 = vpop.permute.xlu0 %5668
    %5670 = vrot.lane.b32.xlu0 %v5555, 64
    %v5671 = vpop.permute.xlu0 %5670
    %5672 = vrot.lane.b32.xlu0 %v5556, 64
    %v5673 = vpop.permute.xlu0 %5672
    %v5676 = vsel %vm1900, %v5395, %v5630
    %v5680 = vsel %vm1900, %v5396, %v5632
    %v5684 = vsel %vm1900, %v5397, %v5634
    %v5688 = vsel %vm1900, %v5398, %v5636
    %v5692 = vsel %vm1900, %v5399, %v5638
    %v5696 = vsel %vm1900, %v5400, %v5640
    %v5700 = vsel %vm1900, %v5401, %v5642
    %v5704 = vsel %vm1900, %v5402, %v5644
    %v5708 = vsel %vm1900, %v5403, %v5646
    %v5712 = vsel %vm1900, %v5485, %v5657
    %v5716 = vsel %vm1900, %v5486, %v5659
    %v5720 = vsel %vm1900, %v5487, %v5661
    %v5724 = vsel %vm1900, %v5488, %v5663
    %v5728 = vsel %vm1900, %v5489, %v5665
    %v5732 = vsel %vm1900, %v5490, %v5667
    %v5736 = vsel %vm1900, %v5491, %v5669
    %v5740 = vsel %vm1900, %v5492, %v5671
    %v5744 = vsel %vm1900, %v5493, %v5673
    %v5746 = vld [vmem:[%s13] sm:$0xf]
    %v5747 = vld [vmem:[%s13 + $0x4] sm:$0xf]
    %v5748 = vld [vmem:[%s13 + $0x8] sm:$0xf]
    %v5749 = vld [vmem:[%s13 + $0xc] sm:$0xf]
    %v5750 = vld [vmem:[%s13 + $0x10] sm:$0xf]
    %v5751 = vld [vmem:[%s13 + $0x14] sm:$0xf]
    %v5752 = vld [vmem:[%s13 + $0x18] sm:$0xf]
    %v5753 = vld [vmem:[%s13 + $0x1c] sm:$0xf]
    %v5754 = vld [vmem:[%s13 + $0x20] sm:$0xf]
    %v5755 = vld [vmem:[%s13 + $0x24] sm:$0xf]
    %v5756 = vld [vmem:[%s13 + $0x28] sm:$0xf]
    %v5757 = vld [vmem:[%s13 + $0x2c] sm:$0xf]
    %v5758 = vld [vmem:[%s13 + $0x30] sm:$0xf]
    %v5759 = vld [vmem:[%s13 + $0x34] sm:$0xf]
    %v5760 = vld [vmem:[%s13 + $0x38] sm:$0xf]
    %v5761 = vld [vmem:[%s13 + $0x3c] sm:$0xf]
    %v5762 = vld [vmem:[%s13 + $0x40] sm:$0xf]
    %v5763 = vld [vmem:[%s13 + $0x44] sm:$0xf]
    %v5764 = vld [vmem:[%s13 + $0x48] sm:$0xf]
    %v5765 = vld [vmem:[%s13 + $0x4c] sm:$0xf]
    %v5766 = vld [vmem:[%s13 + $0x50] sm:$0xf]
    %v5767 = vld [vmem:[%s13 + $0x54] sm:$0xf]
    %v5768 = vld [vmem:[%s13 + $0x58] sm:$0xf]
    %v5769 = vld [vmem:[%s13 + $0x5c] sm:$0xf]
    %v5770 = vld [vmem:[%s13 + $0x60] sm:$0xf]
    %v5771 = vld [vmem:[%s13 + $0x64] sm:$0xf]
    %v5772 = vld [vmem:[%s13 + $0x68] sm:$0xf]
    %v5773 = vld [vmem:[%s13 + $0x6c] sm:$0xf]
    %v5774 = vld [vmem:[%s13 + $0x70] sm:$0xf]
    %v5775 = vld [vmem:[%s13 + $0x74] sm:$0xf]
    %v5776 = vld [vmem:[%s13 + $0x78] sm:$0xf]
    %v5777 = vld [vmem:[%s13 + $0x7c] sm:$0xf]
    %v5778 = vld [vmem:[%s13 + $0x80] sm:$0xf]
    %v5779 = vld [vmem:[%s13 + $0x84] sm:$0xf]
    %v5780 = vld [vmem:[%s13 + $0x88] sm:$0xf]
    %v5781 = vld [vmem:[%s13 + $0x8c] sm:$0xf]
    %v5782 = vld [vmem:[%s13 + $0x90] sm:$0xf]
    %v5783 = vld [vmem:[%s13 + $0x94] sm:$0xf]
    %v5784 = vld [vmem:[%s13 + $0x98] sm:$0xf]
    %v5785 = vld [vmem:[%s13 + $0x9c] sm:$0xf]
    %v5826 = vunpack.c.l.b16 %v5746
    %v5827 = vunpack.c.l.b16 %v5747
    %v5828 = vunpack.c.l.b16 %v5748
    %v5829 = vunpack.c.l.b16 %v5749
    %v5830 = vunpack.c.l.b16 %v5750
    %v5831 = vunpack.c.l.b16 %v5751
    %v5832 = vunpack.c.l.b16 %v5752
    %v5833 = vunpack.c.l.b16 %v5753
    %v5834 = vunpack.c.l.b16 %v5754
    %v5835 = vunpack.c.l.b16 %v5755
    %v5836 = vunpack.c.l.b16 %v5756
    %v5837 = vunpack.c.l.b16 %v5757
    %v5838 = vunpack.c.l.b16 %v5758
    %v5839 = vunpack.c.l.b16 %v5759
    %v5840 = vunpack.c.l.b16 %v5760
    %v5841 = vunpack.c.l.b16 %v5761
    %v5842 = vunpack.c.l.b16 %v5762
    %v5843 = vunpack.c.l.b16 %v5763
    %v5844 = vunpack.c.l.b16 %v5764
    %v5845 = vunpack.c.l.b16 %v5765
    %v5846 = vunpack.c.l.b16 %v5766
    %v5847 = vunpack.c.l.b16 %v5767
    %v5848 = vunpack.c.l.b16 %v5768
    %v5849 = vunpack.c.l.b16 %v5769
    %v5850 = vunpack.c.l.b16 %v5770
    %v5851 = vunpack.c.l.b16 %v5771
    %v5852 = vunpack.c.l.b16 %v5772
    %v5853 = vunpack.c.l.b16 %v5773
    %v5854 = vunpack.c.l.b16 %v5774
    %v5855 = vunpack.c.l.b16 %v5775
    %v5856 = vunpack.c.l.b16 %v5776
    %v5857 = vunpack.c.l.b16 %v5777
    %v5858 = vunpack.c.l.b16 %v5778
    %v5859 = vunpack.c.l.b16 %v5779
    %v5860 = vunpack.c.l.b16 %v5780
    %v5861 = vunpack.c.l.b16 %v5781
    %v5862 = vunpack.c.l.b16 %v5782
    %v5863 = vunpack.c.l.b16 %v5783
    %v5864 = vunpack.c.l.b16 %v5784
    %v5865 = vunpack.c.l.b16 %v5785
    %v5866 = vpack.c.b16 %v5827, %v5826
    %v5867 = vpack.c.b16 %v5829, %v5828
    %v5868 = vpack.c.b16 %v5831, %v5830
    %v5869 = vpack.c.b16 %v5833, %v5832
    %v5870 = vpack.c.b16 %v5835, %v5834
    %v5871 = vpack.c.b16 %v5837, %v5836
    %v5872 = vpack.c.b16 %v5839, %v5838
    %v5873 = vpack.c.b16 %v5841, %v5840
    %v5874 = vpack.c.b16 %v5843, %v5842
    %v5875 = vpack.c.b16 %v5845, %v5844
    %v5876 = vpack.c.b16 %v5847, %v5846
    %v5877 = vpack.c.b16 %v5849, %v5848
    %v5878 = vpack.c.b16 %v5851, %v5850
    %v5879 = vpack.c.b16 %v5853, %v5852
    %v5880 = vpack.c.b16 %v5855, %v5854
    %v5881 = vpack.c.b16 %v5857, %v5856
    %v5882 = vpack.c.b16 %v5859, %v5858
    %v5883 = vpack.c.b16 %v5861, %v5860
    %v5884 = vpack.c.b16 %v5863, %v5862
    %v5885 = vpack.c.b16 %v5865, %v5864
    %v5907 = vsel %vm1900, %v5611, 0
    %v5910 = vsel %vm1900, %v5612, 0
    %v5913 = vsel %vm1900, %v5613, 0
    %v5916 = vsel %vm1900, %v5614, 0
    %v5919 = vsel %vm1900, %v5615, 0
    %v5922 = vsel %vm1900, %v5616, 0
    %v5925 = vsel %vm1900, %v5617, 0
    %v5928 = vsel %vm1900, %v5618, 0
    %v5931 = vsel %vm1900, %v5619, 0
    %5933 = vmatprep.subr.bf16.mxu0 0
    %5934 = vmatpush1.bf16.msra.mxu0 %v5866
    %5935 = vmatprep.subr.bf16.mxu0 0
    %5936 = vmatpush1.bf16.msra.mxu0 %v5867
    %5937 = vmatprep.subr.bf16.mxu0 0
    %5938 = vmatpush1.bf16.msra.mxu0 %v5868
    %5939 = vmatprep.subr.bf16.mxu0 0
    %5940 = vmatpush1.bf16.msra.mxu0 %v5869
    %5941 = vmatprep.subr.bf16.mxu0 0
    %5942 = vmatpush1.bf16.msra.mxu0 %v5870
    %5943 = vmatprep.subr.bf16.mxu0 0
    %5944 = vmatpush1.bf16.msra.mxu0 %v5871
    %5945 = vmatprep.subr.bf16.mxu0 0
    %5946 = vmatpush1.bf16.msra.mxu0 %v5872
    %5947 = vmatprep.subr.bf16.mxu0 0
    %5948 = vmatpush1.bf16.msra.mxu0 %v5873
    %5949 = vmatprep.subr.bf16.mxu0 0
    %5950 = vmatpush1.bf16.msra.mxu0 %v5874
    %5951 = vmatprep.subr.bf16.mxu0 0
    %5952 = vmatpush1.bf16.msra.mxu0 %v5875
    %5953 = vmatprep.subr.bf16.mxu0 0
    %5954 = vmatpush1.bf16.msra.mxu0 %v5876
    %5955 = vmatprep.subr.bf16.mxu0 0
    %5956 = vmatpush1.bf16.msra.mxu0 %v5877
    %5957 = vmatprep.subr.bf16.mxu0 0
    %5958 = vmatpush1.bf16.msra.mxu0 %v5878
    %5959 = vmatprep.subr.bf16.mxu0 0
    %5960 = vmatpush1.bf16.msra.mxu0 %v5879
    %5961 = vmatprep.subr.bf16.mxu0 0
    %5962 = vmatpush1.bf16.msra.mxu0 %v5880
    %5963 = vmatprep.subr.bf16.mxu0 0
    %5964 = vmatpush1.bf16.msra.mxu0 %v5881
    %5965 = vmatprep.mubr.bf16.mxu0 %v5712
    %5966 = vmatmul.mubr.bf16.gmra.mrb[0].mxu0 %v5676
    %v5967 = vpop.f32.mrb[0].mxu0
    %v5968 = vadd.f32 0.0, %v5967
    %v5969 = vpop.f32.mrb[0].mxu0
    %v5970 = vpop.f32.mrb[0].mxu0
    %v5971 = vadd.f32 0.0, %v5970
    %v5972 = vpop.f32.mrb[0].mxu0
    %5973 = vmatprep.mubr.bf16.mxu0 %v5716
    %5974 = vmatmul.mubr.bf16.gmra.mrb[0].mxu0 %v5680
    %v5975 = vpop.f32.mrb[0].mxu0
    %v5976 = vadd.f32 0.0, %v5975
    %v5977 = vpop.f32.mrb[0].mxu0
    %v5978 = vpop.f32.mrb[0].mxu0
    %v5979 = vadd.f32 0.0, %v5978
    %v5980 = vpop.f32.mrb[0].mxu0
    %5981 = vmatprep.mubr.bf16.mxu0 %v5720
    %5982 = vmatmul.mubr.bf16.gmra.mrb[0].mxu0 %v5684
    %v5983 = vpop.f32.mrb[0].mxu0
    %v5984 = vadd.f32 0.0, %v5983
    %v5985 = vpop.f32.mrb[0].mxu0
    %v5986 = vpop.f32.mrb[0].mxu0
    %v5987 = vadd.f32 0.0, %v5986
    %v5988 = vpop.f32.mrb[0].mxu0
    %5989 = vmatprep.mubr.bf16.mxu0 %v5724
    %5990 = vmatmul.mubr.bf16.gmra.mrb[0].mxu0 %v5688
    %v5991 = vpop.f32.mrb[0].mxu0
    %v5992 = vadd.f32 0.0, %v5991
    %v5993 = vpop.f32.mrb[0].mxu0
    %v5994 = vpop.f32.mrb[0].mxu0
    %v5995 = vadd.f32 0.0, %v5994
    %v5996 = vpop.f32.mrb[0].mxu0
    %5997 = vmatprep.mubr.bf16.mxu0 %v5728
    %5998 = vmatmul.mubr.bf16.gmra.mrb[0].mxu0 %v5692
    %v5999 = vpop.f32.mrb[0].mxu0
    %v6000 = vadd.f32 0.0, %v5999
    %v6001 = vpop.f32.mrb[0].mxu0
    %v6002 = vpop.f32.mrb[0].mxu0
    %v6003 = vadd.f32 0.0, %v6002
    %v6004 = vpop.f32.mrb[0].mxu0
    %6005 = vmatprep.mubr.bf16.mxu0 %v5732
    %6006 = vmatmul.mubr.bf16.gmra.mrb[0].mxu0 %v5696
    %v6007 = vpop.f32.mrb[0].mxu0
    %v6008 = vadd.f32 0.0, %v6007
    %v6009 = vpop.f32.mrb[0].mxu0
    %v6010 = vpop.f32.mrb[0].mxu0
    %v6011 = vadd.f32 0.0, %v6010
    %v6012 = vpop.f32.mrb[0].mxu0
    %6013 = vmatprep.mubr.bf16.mxu0 %v5736
    %6014 = vmatmul.mubr.bf16.gmra.mrb[0].mxu0 %v5700
    %v6015 = vpop.f32.mrb[0].mxu0
    %v6016 = vadd.f32 0.0, %v6015
    %v6017 = vpop.f32.mrb[0].mxu0
    %v6018 = vpop.f32.mrb[0].mxu0
    %v6019 = vadd.f32 0.0, %v6018
    %v6020 = vpop.f32.mrb[0].mxu0
    %6021 = vmatprep.mubr.bf16.mxu0 %v5740
    %6022 = vmatmul.mubr.bf16.gmra.mrb[0].mxu0 %v5704
    %v6023 = vpop.f32.mrb[0].mxu0
    %v6024 = vadd.f32 0.0, %v6023
    %v6025 = vpop.f32.mrb[0].mxu0
    %v6026 = vpop.f32.mrb[0].mxu0
    %v6027 = vadd.f32 0.0, %v6026
    %v6028 = vpop.f32.mrb[0].mxu0
    %6029 = vmatprep.mubr.bf16.mxu0 %v5744
    %6030 = vmatmul.mubr.bf16.gmra.mrb[0].mxu0 %v5708
    %v6031 = vpop.f32.mrb[0].mxu0
    %v6032 = vadd.f32 0.0, %v6031
    %v6033 = vpop.f32.mrb[0].mxu0
    %v6034 = vpop.f32.mrb[0].mxu0
    %v6035 = vadd.f32 0.0, %v6034
    %v6036 = vpop.f32.mrb[0].mxu0
    %6037 = vdwg.mxu0
    %6038 = vmatprep.subr.bf16.mxu0 0
    %6039 = vmatpush1.bf16.msra.mxu0 %v5882
    %6040 = vmatprep.subr.bf16.mxu0 0
    %6041 = vmatpush1.bf16.msra.mxu0 %v5883
    %6042 = vmatprep.subr.bf16.mxu0 0
    %6043 = vmatpush1.bf16.msra.mxu0 %v5884
    %6044 = vmatprep.subr.bf16.mxu0 0
    %6045 = vmatpush1.bf16.msra.mxu0 %v5885
    %6046 = vmatprep.subr.bf16.mxu0 0
    %6047 = vmatpush1.bf16.msra.mxu0 0
    %6048 = vmatprep.subr.bf16.mxu0 0
    %6049 = vmatpush1.bf16.msra.mxu0 0
    %6050 = vmatprep.subr.bf16.mxu0 0
    %6051 = vmatpush1.bf16.msra.mxu0 0
    %6052 = vmatprep.subr.bf16.mxu0 0
    %6053 = vmatpush1.bf16.msra.mxu0 0
    %6054 = vmatprep.subr.bf16.mxu0 0
    %6055 = vmatpush1.bf16.msra.mxu0 0
    %6056 = vmatprep.subr.bf16.mxu0 0
    %6057 = vmatpush1.bf16.msra.mxu0 0
    %6058 = vmatprep.subr.bf16.mxu0 0
    %6059 = vmatpush1.bf16.msra.mxu0 0
    %6060 = vmatprep.subr.bf16.mxu0 0
    %6061 = vmatpush1.bf16.msra.mxu0 0
    %6062 = vmatprep.subr.bf16.mxu0 0
    %6063 = vmatpush1.bf16.msra.mxu0 0
    %6064 = vmatprep.subr.bf16.mxu0 0
    %6065 = vmatpush1.bf16.msra.mxu0 0
    %6066 = vmatprep.subr.bf16.mxu0 0
    %6067 = vmatpush1.bf16.msra.mxu0 0
    %6068 = vmatprep.subr.bf16.mxu0 0
    %6069 = vmatpush1.bf16.msra.mxu0 0
    %6070 = vmatprep.mubr.bf16.mxu0 0
    %6071 = vmatmul.mubr.bf16.gmra.mrb[0].mxu0 %v5907
    %v6072 = vpop.f32.mrb[0].mxu0
    %v6073 = vadd.f32 %v5968, %v6072
    %v6074 = vpop.f32.mrb[0].mxu0
    %v6075 = vpop.f32.mrb[0].mxu0
    %v6076 = vadd.f32 %v5971, %v6075
    %v6077 = vpop.f32.mrb[0].mxu0
    %6078 = vmatprep.mubr.bf16.mxu0 0
    %6079 = vmatmul.mubr.bf16.gmra.mrb[0].mxu0 %v5910
    %v6080 = vpop.f32.mrb[0].mxu0
    %v6081 = vadd.f32 %v5976, %v6080
    %v6082 = vpop.f32.mrb[0].mxu0
    %v6083 = vpop.f32.mrb[0].mxu0
    %v6084 = vadd.f32 %v5979, %v6083
    %v6085 = vpop.f32.mrb[0].mxu0
    %6086 = vmatprep.mubr.bf16.mxu0 0
    %6087 = vmatmul.mubr.bf16.gmra.mrb[0].mxu0 %v5913
    %v6088 = vpop.f32.mrb[0].mxu0
    %v6089 = vadd.f32 %v5984, %v6088
    %v6090 = vpop.f32.mrb[0].mxu0
    %v6091 = vpop.f32.mrb[0].mxu0
    %v6092 = vadd.f32 %v5987, %v6091
    %v6093 = vpop.f32.mrb[0].mxu0
    %6094 = vmatprep.mubr.bf16.mxu0 0
    %6095 = vmatmul.mubr.bf16.gmra.mrb[0].mxu0 %v5916
    %v6096 = vpop.f32.mrb[0].mxu0
    %v6097 = vadd.f32 %v5992, %v6096
    %v6098 = vpop.f32.mrb[0].mxu0
    %v6099 = vpop.f32.mrb[0].mxu0
    %v6100 = vadd.f32 %v5995, %v6099
    %v6101 = vpop.f32.mrb[0].mxu0
    %6102 = vmatprep.mubr.bf16.mxu0 0
    %6103 = vmatmul.mubr.bf16.gmra.mrb[0].mxu0 %v5919
    %v6104 = vpop.f32.mrb[0].mxu0
    %v6105 = vadd.f32 %v6000, %v6104
    %v6106 = vpop.f32.mrb[0].mxu0
    %v6107 = vpop.f32.mrb[0].mxu0
    %v6108 = vadd.f32 %v6003, %v6107
    %v6109 = vpop.f32.mrb[0].mxu0
    %6110 = vmatprep.mubr.bf16.mxu0 0
    %6111 = vmatmul.mubr.bf16.gmra.mrb[0].mxu0 %v5922
    %v6112 = vpop.f32.mrb[0].mxu0
    %v6113 = vadd.f32 %v6008, %v6112
    %v6114 = vpop.f32.mrb[0].mxu0
    %v6115 = vpop.f32.mrb[0].mxu0
    %v6116 = vadd.f32 %v6011, %v6115
    %v6117 = vpop.f32.mrb[0].mxu0
    %6118 = vmatprep.mubr.bf16.mxu0 0
    %6119 = vmatmul.mubr.bf16.gmra.mrb[0].mxu0 %v5925
    %v6120 = vpop.f32.mrb[0].mxu0
    %v6121 = vadd.f32 %v6016, %v6120
    %v6122 = vpop.f32.mrb[0].mxu0
    %v6123 = vpop.f32.mrb[0].mxu0
    %v6124 = vadd.f32 %v6019, %v6123
    %v6125 = vpop.f32.mrb[0].mxu0
    %6126 = vmatprep.mubr.bf16.mxu0 0
    %6127 = vmatmul.mubr.bf16.gmra.mrb[0].mxu0 %v5928
    %v6128 = vpop.f32.mrb[0].mxu0
    %v6129 = vadd.f32 %v6024, %v6128
    %v6130 = vpop.f32.mrb[0].mxu0
    %v6131 = vpop.f32.mrb[0].mxu0
    %v6132 = vadd.f32 %v6027, %v6131
    %v6133 = vpop.f32.mrb[0].mxu0
    %6134 = vmatprep.mubr.bf16.mxu0 0
    %6135 = vmatmul.mubr.bf16.gmra.mrb[0].mxu0 %v5931
    %v6136 = vpop.f32.mrb[0].mxu0
    %v6137 = vadd.f32 %v6032, %v6136
    %v6138 = vpop.f32.mrb[0].mxu0
    %v6139 = vpop.f32.mrb[0].mxu0
    %v6140 = vadd.f32 %v6035, %v6139
    %v6141 = vpop.f32.mrb[0].mxu0
    %6142 = vdwg.mxu0
    %v6143 = vld [vmem:[%s14] sm:$0x1]
    %v6144 = vld [vmem:[%s15] sm:$0x1]
    %v6145 = vmul.f32 %v6073, %v6073
    %v6146 = vmul.f32 %v6076, %v6076
    %v6147 = vmul.f32 %v6081, %v6081
    %v6148 = vmul.f32 %v6084, %v6084
    %v6149 = vmul.f32 %v6089, %v6089
    %v6150 = vmul.f32 %v6092, %v6092
    %v6151 = vmul.f32 %v6097, %v6097
    %v6152 = vmul.f32 %v6100, %v6100
    %v6153 = vmul.f32 %v6105, %v6105
    %v6154 = vmul.f32 %v6108, %v6108
    %v6155 = vmul.f32 %v6113, %v6113
    %v6156 = vmul.f32 %v6116, %v6116
    %v6157 = vmul.f32 %v6121, %v6121
    %v6158 = vmul.f32 %v6124, %v6124
    %v6159 = vmul.f32 %v6129, %v6129
    %v6160 = vmul.f32 %v6132, %v6132
    %v6161 = vmul.f32 %v6137, %v6137
    %v6162 = vmul.f32 %v6140, %v6140
    %6181 = vrot.lane.b32.xlu0 %v6145, 64
    %v6182 = vpop.permute.xlu0 %6181
    %6183 = vrot.lane.b32.xlu0 %v6146, 64
    %v6184 = vpop.permute.xlu0 %6183
    %6185 = vrot.lane.b32.xlu0 %v6147, 64
    %v6186 = vpop.permute.xlu0 %6185
    %6187 = vrot.lane.b32.xlu0 %v6148, 64
    %v6188 = vpop.permute.xlu0 %6187
    %6189 = vrot.lane.b32.xlu0 %v6149, 64
    %v6190 = vpop.permute.xlu0 %6189
    %6191 = vrot.lane.b32.xlu0 %v6150, 64
    %v6192 = vpop.permute.xlu0 %6191
    %6193 = vrot.lane.b32.xlu0 %v6151, 64
    %v6194 = vpop.permute.xlu0 %6193
    %6195 = vrot.lane.b32.xlu0 %v6152, 64
    %v6196 = vpop.permute.xlu0 %6195
    %6197 = vrot.lane.b32.xlu0 %v6153, 64
    %v6198 = vpop.permute.xlu0 %6197
    %6199 = vrot.lane.b32.xlu0 %v6154, 64
    %v6200 = vpop.permute.xlu0 %6199
    %6201 = vrot.lane.b32.xlu0 %v6155, 64
    %v6202 = vpop.permute.xlu0 %6201
    %6203 = vrot.lane.b32.xlu0 %v6156, 64
    %v6204 = vpop.permute.xlu0 %6203
    %6205 = vrot.lane.b32.xlu0 %v6157, 64
    %v6206 = vpop.permute.xlu0 %6205
    %6207 = vrot.lane.b32.xlu0 %v6158, 64
    %v6208 = vpop.permute.xlu0 %6207
    %6209 = vrot.lane.b32.xlu0 %v6159, 64
    %v6210 = vpop.permute.xlu0 %6209
    %6211 = vrot.lane.b32.xlu0 %v6160, 64
    %v6212 = vpop.permute.xlu0 %6211
    %6213 = vrot.lane.b32.xlu0 %v6161, 64
    %v6214 = vpop.permute.xlu0 %6213
    %6215 = vrot.lane.b32.xlu0 %v6162, 64
    %v6216 = vpop.permute.xlu0 %6215
    %v6235 = vsel %vm1900, %v6073, %v6182
    %v6236 = vsel %vm1900, %v6076, %v6184
    %v6237 = vsel %vm1900, %v6081, %v6186
    %v6238 = vsel %vm1900, %v6084, %v6188
    %v6239 = vsel %vm1900, %v6089, %v6190
    %v6240 = vsel %vm1900, %v6092, %v6192
    %v6241 = vsel %vm1900, %v6097, %v6194
    %v6242 = vsel %vm1900, %v6100, %v6196
    %v6243 = vsel %vm1900, %v6105, %v6198
    %v6244 = vsel %vm1900, %v6108, %v6200
    %v6245 = vsel %vm1900, %v6113, %v6202
    %v6246 = vsel %vm1900, %v6116, %v6204
    %v6247 = vsel %vm1900, %v6121, %v6206
    %v6248 = vsel %vm1900, %v6124, %v6208
    %v6249 = vsel %vm1900, %v6129, %v6210
    %v6250 = vsel %vm1900, %v6132, %v6212
    %v6251 = vsel %vm1900, %v6137, %v6214
    %v6252 = vsel %vm1900, %v6140, %v6216
    %6253 = vmatprep.subr.mxu0 0.0
    %6254 = vmatpush1.msra.mxu0 %v6235
    %6255 = vmatprep.subr.mxu0 0.0
    %6256 = vmatpush1.msra.mxu0 %v6236
    %6257 = vmatprep.subr.mxu0 0.0
    %6258 = vmatpush1.msra.mxu0 %v6237
    %6259 = vmatprep.subr.mxu0 0.0
    %6260 = vmatpush1.msra.mxu0 %v6238
    %6261 = vmatprep.subr.mxu0 0.0
    %6262 = vmatpush1.msra.mxu0 %v6239
    %6263 = vmatprep.subr.mxu0 0.0
    %6264 = vmatpush1.msra.mxu0 %v6240
    %6265 = vmatprep.subr.mxu0 0.0
    %6266 = vmatpush1.msra.mxu0 %v6241
    %6267 = vmatprep.subr.mxu0 0.0
    %6268 = vmatpush1.msra.mxu0 %v6242
    %6269 = vmatprep.subr.mxu0 0.0
    %6270 = vmatpush1.msra.mxu0 %v6243
    %6271 = vmatprep.subr.mxu0 0.0
    %6272 = vmatpush1.msra.mxu0 %v6244
    %6273 = vmatprep.subr.mxu0 0.0
    %6274 = vmatpush1.msra.mxu0 %v6245
    %6275 = vmatprep.subr.mxu0 0.0
    %6276 = vmatpush1.msra.mxu0 %v6246
    %6277 = vmatprep.subr.mxu0 0.0
    %6278 = vmatpush1.msra.mxu0 %v6247
    %6279 = vmatprep.subr.mxu0 0.0
    %6280 = vmatpush1.msra.mxu0 %v6248
    %6281 = vmatprep.subr.mxu0 0.0
    %6282 = vmatpush1.msra.mxu0 %v6249
    %6283 = vmatprep.subr.mxu0 0.0
    %6284 = vmatpush1.msra.mxu0 %v6250
    %6285 = vmatprep.subr.mxu0 0.0
    %6286 = vmatpush1.msra.mxu0 %v6251
    %6287 = vmatprep.subr.mxu0 0.0
    %6288 = vmatpush1.msra.mxu0 %v6252
    %6289 = vmatprep.subr.mxu0 0.0
    %6290 = vmatpush1.msra.mxu0 0.0
    %6291 = vmatprep.subr.mxu0 0.0
    %6292 = vmatpush1.msra.mxu0 0.0
    %6293 = vmatprep.subr.mxu0 0.0
    %6294 = vmatpush1.msra.mxu0 0.0
    %6295 = vmatprep.subr.mxu0 0.0
    %6296 = vmatpush1.msra.mxu0 0.0
    %6297 = vmatprep.subr.mxu0 0.0
    %6298 = vmatpush1.msra.mxu0 0.0
    %6299 = vmatprep.subr.mxu0 0.0
    %6300 = vmatpush1.msra.mxu0 0.0
    %6301 = vmatprep.subr.mxu0 0.0
    %6302 = vmatpush1.msra.mxu0 0.0
    %6303 = vmatprep.subr.mxu0 0.0
    %6304 = vmatpush1.msra.mxu0 0.0
    %6305 = vmatprep.subr.mxu0 0.0
    %6306 = vmatpush1.msra.mxu0 0.0
    %6307 = vmatprep.subr.mxu0 0.0
    %6308 = vmatpush1.msra.mxu0 0.0
    %6309 = vmatprep.subr.mxu0 0.0
    %6310 = vmatpush1.msra.mxu0 0.0
    %6311 = vmatprep.subr.mxu0 0.0
    %6312 = vmatpush1.msra.mxu0 0.0
    %6313 = vmatprep.subr.mxu0 0.0
    %6314 = vmatpush1.msra.mxu0 0.0
    %6315 = vmatprep.subr.mxu0 0.0
    %6316 = vmatpush1.msra.mxu0 0.0
    %6317 = vmatprep.mubr.f32.mxu0 %v1921
    %6318 = vmatmul.mubr.f32.gmra.mrb[0].mxu0 1.0
    %v6319 = vpop.f32.mrb[0].mxu0
    %v6320 = vadd.f32 0.0, %v6319
    %v6321 = vpop.f32.mrb[0].mxu0
    %6322 = vdwg.mxu0
    %v6323 = vmul.f32 %v6320, 0.0069444445
    %v6324 = vmul.f32 %v6323, %v6323
    %6326 = vrot.lane.b32.xlu0 %v6324, 64
    %v6327 = vpop.permute.xlu0 %6326
    %v6329 = vsub.f32 %v6323, %v6327
    %v6330 = vadd.f32 %v6329, 1e-05
    %v6331 = vrsqrt.pop %v6330
    %v6334 = vunpack.c.l.s4 1966171168
    %v6335 = vunpack.c.0.s8 %v6334
    %v6336 = vlaneseq
    %v6337 = vshrl.u32 %v6336, 7
    %v6338 = vsub.s32 %v6335, %v6337
    %v6339 = vrot.slane %v6331, %v6338
    %v6341 = vunpack.c.l.s4 1966171168
    %v6342 = vunpack.c.0.s8 %v6341
    %v6343 = vlaneseq
    %v6344 = vshrl.u32 %v6343, 7
    %v6345 = vsub.s32 %v6342, %v6344
    %v6346 = vrot.slane %v6339, %v6345
    %6347 = vrot.lane.b32.xlu0 %v6346, 64
    %v6348 = vpop.permute.xlu0 %6347
    %v6350 = vmul.f32 %v6143, %v6348
    %v6351 = vmul.f32 %v6323, %v6350
    %v6352 = vsub.f32 %v6144, %v6351
    %v6354 = vlaneseq
    %v6355 = vshrl.u32 %v6354, 7
    %v6356 = vsub.s32 0, %v6355
    %v6357 = vrot.slane %v6350, %v6356
    %v6359 = vmul.f32 %v6073, %v6357
    %v6360 = vmul.f32 %v6076, %v6357
    %v6361 = vmul.f32 %v6081, %v6357
    %v6362 = vmul.f32 %v6084, %v6357
    %v6363 = vmul.f32 %v6089, %v6357
    %v6364 = vmul.f32 %v6092, %v6357
    %v6365 = vmul.f32 %v6097, %v6357
    %v6366 = vmul.f32 %v6100, %v6357
    %v6367 = vmul.f32 %v6105, %v6357
    %v6368 = vmul.f32 %v6108, %v6357
    %v6369 = vmul.f32 %v6113, %v6357
    %v6370 = vmul.f32 %v6116, %v6357
    %v6371 = vmul.f32 %v6121, %v6357
    %v6372 = vmul.f32 %v6124, %v6357
    %v6373 = vmul.f32 %v6129, %v6357
    %v6374 = vmul.f32 %v6132, %v6357
    %v6375 = vmul.f32 %v6137, %v6357
    %v6376 = vmul.f32 %v6140, %v6357
    %v6378 = vlaneseq
    %v6379 = vshrl.u32 %v6378, 7
    %v6380 = vsub.s32 0, %v6379
    %v6381 = vrot.slane %v6352, %v6380
    %v6383 = vadd.f32 %v6359, %v6381
    %v6384 = vadd.f32 %v6360, %v6381
    %v6385 = vadd.f32 %v6361, %v6381
    %v6386 = vadd.f32 %v6362, %v6381
    %v6387 = vadd.f32 %v6363, %v6381
    %v6388 = vadd.f32 %v6364, %v6381
    %v6389 = vadd.f32 %v6365, %v6381
    %v6390 = vadd.f32 %v6366, %v6381
    %v6391 = vadd.f32 %v6367, %v6381
    %v6392 = vadd.f32 %v6368, %v6381
    %v6393 = vadd.f32 %v6369, %v6381
    %v6394 = vadd.f32 %v6370, %v6381
    %v6395 = vadd.f32 %v6371, %v6381
    %v6396 = vadd.f32 %v6372, %v6381
    %v6397 = vadd.f32 %v6373, %v6381
    %v6398 = vadd.f32 %v6374, %v6381
    %v6399 = vadd.f32 %v6375, %v6381
    %v6400 = vadd.f32 %v6376, %v6381
    %v6401 = vadd.f32 %v6383, %v4245
    %v6402 = vadd.f32 %v6384, %v4246
    %v6403 = vadd.f32 %v6385, %v4247
    %v6404 = vadd.f32 %v6386, %v4248
    %v6405 = vadd.f32 %v6387, %v4249
    %v6406 = vadd.f32 %v6388, %v4250
    %v6407 = vadd.f32 %v6389, %v4251
    %v6408 = vadd.f32 %v6390, %v4252
    %v6409 = vadd.f32 %v6391, %v4253
    %v6410 = vadd.f32 %v6392, %v4254
    %v6411 = vadd.f32 %v6393, %v4255
    %v6412 = vadd.f32 %v6394, %v4256
    %v6413 = vadd.f32 %v6395, %v4257
    %v6414 = vadd.f32 %v6396, %v4258
    %v6415 = vadd.f32 %v6397, %v4259
    %v6416 = vadd.f32 %v6398, %v4260
    %v6417 = vadd.f32 %v6399, %v4261
    %v6418 = vadd.f32 %v6400, %v4262
    %v6419 = vmax.f32 %v6401, 0.0
    %v6420 = vmax.f32 %v6402, 0.0
    %v6421 = vmax.f32 %v6403, 0.0
    %v6422 = vmax.f32 %v6404, 0.0
    %v6423 = vmax.f32 %v6405, 0.0
    %v6424 = vmax.f32 %v6406, 0.0
    %v6425 = vmax.f32 %v6407, 0.0
    %v6426 = vmax.f32 %v6408, 0.0
    %v6427 = vmax.f32 %v6409, 0.0
    %v6428 = vmax.f32 %v6410, 0.0
    %v6429 = vmax.f32 %v6411, 0.0
    %v6430 = vmax.f32 %v6412, 0.0
    %v6431 = vmax.f32 %v6413, 0.0
    %v6432 = vmax.f32 %v6414, 0.0
    %v6433 = vmax.f32 %v6415, 0.0
    %v6434 = vmax.f32 %v6416, 0.0
    %v6435 = vmax.f32 %v6417, 0.0
    %v6436 = vmax.f32 %v6418, 0.0
    %v6437 = vrot.slane %v6419, 6
    %v6438 = vrot.slane %v6420, 6
    %v6439 = vrot.slane %v6421, 6
    %v6440 = vrot.slane %v6422, 6
    %v6441 = vrot.slane %v6423, 6
    %v6442 = vrot.slane %v6424, 6
    %v6443 = vrot.slane %v6425, 6
    %v6444 = vrot.slane %v6426, 6
    %v6445 = vrot.slane %v6427, 6
    %v6446 = vrot.slane %v6428, 6
    %v6447 = vrot.slane %v6429, 6
    %v6448 = vrot.slane %v6430, 6
    %v6449 = vrot.slane %v6431, 6
    %v6450 = vrot.slane %v6432, 6
    %v6451 = vrot.slane %v6433, 6
    %v6452 = vrot.slane %v6434, 6
    %v6453 = vrot.slane %v6435, 6
    %v6454 = vrot.slane %v6436, 6
    %v6455 = vsel %vm938, %v6453, %v6454
    %v6456 = vsel %vm938, %v6452, %v6453
    %v6457 = vsel %vm938, %v6451, %v6452
    %v6458 = vsel %vm938, %v6450, %v6451
    %v6459 = vsel %vm938, %v6449, %v6450
    %v6460 = vsel %vm938, %v6448, %v6449
    %v6461 = vsel %vm938, %v6447, %v6448
    %v6462 = vsel %vm938, %v6446, %v6447
    %v6463 = vsel %vm938, %v6445, %v6446
    %v6464 = vsel %vm938, %v6444, %v6445
    %v6465 = vsel %vm938, %v6443, %v6444
    %v6466 = vsel %vm938, %v6442, %v6443
    %v6467 = vsel %vm938, %v6441, %v6442
    %v6468 = vsel %vm938, %v6440, %v6441
    %v6469 = vsel %vm938, %v6439, %v6440
    %v6470 = vsel %vm938, %v6438, %v6439
    %v6471 = vsel %vm938, %v6437, %v6438
    %v6472 = vsel %vm938, %v6454, %v6437
    %v6473 = vmul.f32 %v6472, %v469
    %v6474 = vmul.f32 %v6471, %v470
    %v6475 = vmul.f32 %v6470, %v471
    %v6476 = vmul.f32 %v6469, %v472
    %v6477 = vmul.f32 %v6468, %v473
    %v6478 = vmul.f32 %v6467, %v474
    %v6479 = vmul.f32 %v6466, %v475
    %v6480 = vmul.f32 %v6465, %v476
    %v6481 = vmul.f32 %v6464, %v477
    %v6482 = vmul.f32 %v6463, %v478
    %v6483 = vmul.f32 %v6462, %v479
    %v6484 = vmul.f32 %v6461, %v480
    %v6485 = vmul.f32 %v6460, %v481
    %v6486 = vmul.f32 %v6459, %v482
    %v6487 = vmul.f32 %v6458, %v483
    %v6488 = vmul.f32 %v6457, %v484
    %v6489 = vmul.f32 %v6456, %v485
    %v6490 = vmul.f32 %v6455, %v486
    %v6491 = vpack.c.bf16 %v6474, %v6473
    %v6492 = vpack.c.bf16 %v6476, %v6475
    %v6493 = vpack.c.bf16 %v6478, %v6477
    %v6494 = vpack.c.bf16 %v6480, %v6479
    %v6495 = vpack.c.bf16 %v6482, %v6481
    %v6496 = vpack.c.bf16 %v6484, %v6483
    %v6497 = vpack.c.bf16 %v6486, %v6485
    %v6498 = vpack.c.bf16 %v6488, %v6487
    %v6499 = vpack.c.bf16 %v6490, %v6489
    %v6500 = vrot.slane %v6419, 7
    %v6501 = vrot.slane %v6420, 7
    %v6502 = vrot.slane %v6421, 7
    %v6503 = vrot.slane %v6422, 7
    %v6504 = vrot.slane %v6423, 7
    %v6505 = vrot.slane %v6424, 7
    %v6506 = vrot.slane %v6425, 7
    %v6507 = vrot.slane %v6426, 7
    %v6508 = vrot.slane %v6427, 7
    %v6509 = vrot.slane %v6428, 7
    %v6510 = vrot.slane %v6429, 7
    %v6511 = vrot.slane %v6430, 7
    %v6512 = vrot.slane %v6431, 7
    %v6513 = vrot.slane %v6432, 7
    %v6514 = vrot.slane %v6433, 7
    %v6515 = vrot.slane %v6434, 7
    %v6516 = vrot.slane %v6435, 7
    %v6517 = vrot.slane %v6436, 7
    %v6518 = vsel %vm1123, %v6516, %v6517
    %v6519 = vsel %vm1123, %v6515, %v6516
    %v6520 = vsel %vm1123, %v6514, %v6515
    %v6521 = vsel %vm1123, %v6513, %v6514
    %v6522 = vsel %vm1123, %v6512, %v6513
    %v6523 = vsel %vm1123, %v6511, %v6512
    %v6524 = vsel %vm1123, %v6510, %v6511
    %v6525 = vsel %vm1123, %v6509, %v6510
    %v6526 = vsel %vm1123, %v6508, %v6509
    %v6527 = vsel %vm1123, %v6507, %v6508
    %v6528 = vsel %vm1123, %v6506, %v6507
    %v6529 = vsel %vm1123, %v6505, %v6506
    %v6530 = vsel %vm1123, %v6504, %v6505
    %v6531 = vsel %vm1123, %v6503, %v6504
    %v6532 = vsel %vm1123, %v6502, %v6503
    %v6533 = vsel %vm1123, %v6501, %v6502
    %v6534 = vsel %vm1123, %v6500, %v6501
    %v6535 = vsel %vm1123, %v6517, %v6500
    %v6536 = vmul.f32 %v6535, %v577
    %v6537 = vmul.f32 %v6534, %v578
    %v6538 = vmul.f32 %v6533, %v579
    %v6539 = vmul.f32 %v6532, %v580
    %v6540 = vmul.f32 %v6531, %v581
    %v6541 = vmul.f32 %v6530, %v582
    %v6542 = vmul.f32 %v6529, %v583
    %v6543 = vmul.f32 %v6528, %v584
    %v6544 = vmul.f32 %v6527, %v585
    %v6545 = vmul.f32 %v6526, %v586
    %v6546 = vmul.f32 %v6525, %v587
    %v6547 = vmul.f32 %v6524, %v588
    %v6548 = vmul.f32 %v6523, %v589
    %v6549 = vmul.f32 %v6522, %v590
    %v6550 = vmul.f32 %v6521, %v591
    %v6551 = vmul.f32 %v6520, %v592
    %v6552 = vmul.f32 %v6519, %v593
    %v6553 = vmul.f32 %v6518, %v594
    %v6554 = vpack.c.bf16 %v6537, %v6536
    %v6555 = vpack.c.bf16 %v6539, %v6538
    %v6556 = vpack.c.bf16 %v6541, %v6540
    %v6557 = vpack.c.bf16 %v6543, %v6542
    %v6558 = vpack.c.bf16 %v6545, %v6544
    %v6559 = vpack.c.bf16 %v6547, %v6546
    %v6560 = vpack.c.bf16 %v6549, %v6548
    %v6561 = vpack.c.bf16 %v6551, %v6550
    %v6562 = vpack.c.bf16 %v6553, %v6552
    %v6563 = vmul.f32 %v6419, %v667
    %v6564 = vmul.f32 %v6420, %v668
    %v6565 = vmul.f32 %v6421, %v669
    %v6566 = vmul.f32 %v6422, %v670
    %v6567 = vmul.f32 %v6423, %v671
    %v6568 = vmul.f32 %v6424, %v672
    %v6569 = vmul.f32 %v6425, %v673
    %v6570 = vmul.f32 %v6426, %v674
    %v6571 = vmul.f32 %v6427, %v675
    %v6572 = vmul.f32 %v6428, %v676
    %v6573 = vmul.f32 %v6429, %v677
    %v6574 = vmul.f32 %v6430, %v678
    %v6575 = vmul.f32 %v6431, %v679
    %v6576 = vmul.f32 %v6432, %v680
    %v6577 = vmul.f32 %v6433, %v681
    %v6578 = vmul.f32 %v6434, %v682
    %v6579 = vmul.f32 %v6435, %v683
    %v6580 = vmul.f32 %v6436, %v684
    %v6581 = vpack.c.bf16 %v6564, %v6563
    %v6582 = vpack.c.bf16 %v6566, %v6565
    %v6583 = vpack.c.bf16 %v6568, %v6567
    %v6584 = vpack.c.bf16 %v6570, %v6569
    %v6585 = vpack.c.bf16 %v6572, %v6571
    %v6586 = vpack.c.bf16 %v6574, %v6573
    %v6587 = vpack.c.bf16 %v6576, %v6575
    %v6588 = vpack.c.bf16 %v6578, %v6577
    %v6589 = vpack.c.bf16 %v6580, %v6579
    %v6590 = vrot.slane %v6419, 1
    %v6591 = vrot.slane %v6420, 1
    %v6592 = vrot.slane %v6421, 1
    %v6593 = vrot.slane %v6422, 1
    %v6594 = vrot.slane %v6423, 1
    %v6595 = vrot.slane %v6424, 1
    %v6596 = vrot.slane %v6425, 1
    %v6597 = vrot.slane %v6426, 1
    %v6598 = vrot.slane %v6427, 1
    %v6599 = vrot.slane %v6428, 1
    %v6600 = vrot.slane %v6429, 1
    %v6601 = vrot.slane %v6430, 1
    %v6602 = vrot.slane %v6431, 1
    %v6603 = vrot.slane %v6432, 1
    %v6604 = vrot.slane %v6433, 1
    %v6605 = vrot.slane %v6434, 1
    %v6606 = vrot.slane %v6435, 1
    %v6607 = vrot.slane %v6436, 1
    %v6608 = vsel %vm1456, %v6606, %v6607
    %v6609 = vsel %vm1456, %v6605, %v6606
    %v6610 = vsel %vm1456, %v6604, %v6605
    %v6611 = vsel %vm1456, %v6603, %v6604
    %v6612 = vsel %vm1456, %v6602, %v6603
    %v6613 = vsel %vm1456, %v6601, %v6602
    %v6614 = vsel %vm1456, %v6600, %v6601
    %v6615 = vsel %vm1456, %v6599, %v6600
    %v6616 = vsel %vm1456, %v6598, %v6599
    %v6617 = vsel %vm1456, %v6597, %v6598
    %v6618 = vsel %vm1456, %v6596, %v6597
    %v6619 = vsel %vm1456, %v6595, %v6596
    %v6620 = vsel %vm1456, %v6594, %v6595
    %v6621 = vsel %vm1456, %v6593, %v6594
    %v6622 = vsel %vm1456, %v6592, %v6593
    %v6623 = vsel %vm1456, %v6591, %v6592
    %v6624 = vsel %vm1456, %v6590, %v6591
    %v6625 = vsel %vm1456, %v6607, %v6590
    %v6626 = vmul.f32 %v6624, %v775
    %v6627 = vmul.f32 %v6623, %v776
    %v6628 = vmul.f32 %v6622, %v777
    %v6629 = vmul.f32 %v6621, %v778
    %v6630 = vmul.f32 %v6620, %v779
    %v6631 = vmul.f32 %v6619, %v780
    %v6632 = vmul.f32 %v6618, %v781
    %v6633 = vmul.f32 %v6617, %v782
    %v6634 = vmul.f32 %v6616, %v783
    %v6635 = vmul.f32 %v6615, %v784
    %v6636 = vmul.f32 %v6614, %v785
    %v6637 = vmul.f32 %v6613, %v786
    %v6638 = vmul.f32 %v6612, %v787
    %v6639 = vmul.f32 %v6611, %v788
    %v6640 = vmul.f32 %v6610, %v789
    %v6641 = vmul.f32 %v6609, %v790
    %v6642 = vmul.f32 %v6608, %v791
    %v6643 = vmul.f32 %v6625, %v792
    %v6644 = vpack.c.bf16 %v6627, %v6626
    %v6645 = vpack.c.bf16 %v6629, %v6628
    %v6646 = vpack.c.bf16 %v6631, %v6630
    %v6647 = vpack.c.bf16 %v6633, %v6632
    %v6648 = vpack.c.bf16 %v6635, %v6634
    %v6649 = vpack.c.bf16 %v6637, %v6636
    %v6650 = vpack.c.bf16 %v6639, %v6638
    %v6651 = vpack.c.bf16 %v6641, %v6640
    %v6652 = vpack.c.bf16 %v6643, %v6642
    %v6653 = vrot.slane %v6419, 2
    %v6654 = vrot.slane %v6420, 2
    %v6655 = vrot.slane %v6421, 2
    %v6656 = vrot.slane %v6422, 2
    %v6657 = vrot.slane %v6423, 2
    %v6658 = vrot.slane %v6424, 2
    %v6659 = vrot.slane %v6425, 2
    %v6660 = vrot.slane %v6426, 2
    %v6661 = vrot.slane %v6427, 2
    %v6662 = vrot.slane %v6428, 2
    %v6663 = vrot.slane %v6429, 2
    %v6664 = vrot.slane %v6430, 2
    %v6665 = vrot.slane %v6431, 2
    %v6666 = vrot.slane %v6432, 2
    %v6667 = vrot.slane %v6433, 2
    %v6668 = vrot.slane %v6434, 2
    %v6669 = vrot.slane %v6435, 2
    %v6670 = vrot.slane %v6436, 2
    %v6671 = vsel %vm1641, %v6669, %v6670
    %v6672 = vsel %vm1641, %v6668, %v6669
    %v6673 = vsel %vm1641, %v6667, %v6668
    %v6674 = vsel %vm1641, %v6666, %v6667
    %v6675 = vsel %vm1641, %v6665, %v6666
    %v6676 = vsel %vm1641, %v6664, %v6665
    %v6677 = vsel %vm1641, %v6663, %v6664
    %v6678 = vsel %vm1641, %v6662, %v6663
    %v6679 = vsel %vm1641, %v6661, %v6662
    %v6680 = vsel %vm1641, %v6660, %v6661
    %v6681 = vsel %vm1641, %v6659, %v6660
    %v6682 = vsel %vm1641, %v6658, %v6659
    %v6683 = vsel %vm1641, %v6657, %v6658
    %v6684 = vsel %vm1641, %v6656, %v6657
    %v6685 = vsel %vm1641, %v6655, %v6656
    %v6686 = vsel %vm1641, %v6654, %v6655
    %v6687 = vsel %vm1641, %v6653, %v6654
    %v6688 = vsel %vm1641, %v6670, %v6653
    %v6689 = vmul.f32 %v6687, %v883
    %v6690 = vmul.f32 %v6686, %v884
    %v6691 = vmul.f32 %v6685, %v885
    %v6692 = vmul.f32 %v6684, %v886
    %v6693 = vmul.f32 %v6683, %v887
    %v6694 = vmul.f32 %v6682, %v888
    %v6695 = vmul.f32 %v6681, %v889
    %v6696 = vmul.f32 %v6680, %v890
    %v6697 = vmul.f32 %v6679, %v891
    %v6698 = vmul.f32 %v6678, %v892
    %v6699 = vmul.f32 %v6677, %v893
    %v6700 = vmul.f32 %v6676, %v894
    %v6701 = vmul.f32 %v6675, %v895
    %v6702 = vmul.f32 %v6674, %v896
    %v6703 = vmul.f32 %v6673, %v897
    %v6704 = vmul.f32 %v6672, %v898
    %v6705 = vmul.f32 %v6671, %v899
    %v6706 = vmul.f32 %v6688, %v900
    %v6707 = vpack.c.bf16 %v6690, %v6689
    %v6708 = vpack.c.bf16 %v6692, %v6691
    %v6709 = vpack.c.bf16 %v6694, %v6693
    %v6710 = vpack.c.bf16 %v6696, %v6695
    %v6711 = vpack.c.bf16 %v6698, %v6697
    %v6712 = vpack.c.bf16 %v6700, %v6699
    %v6713 = vpack.c.bf16 %v6702, %v6701
    %v6714 = vpack.c.bf16 %v6704, %v6703
    %v6715 = vpack.c.bf16 %v6706, %v6705
    %6725 = vrot.lane.b32.xlu0 %v6554, 64
    %v6726 = vpop.permute.xlu0 %6725
    %6727 = vrot.lane.b32.xlu0 %v6555, 64
    %v6728 = vpop.permute.xlu0 %6727
    %6729 = vrot.lane.b32.xlu0 %v6556, 64
    %v6730 = vpop.permute.xlu0 %6729
    %6731 = vrot.lane.b32.xlu0 %v6557, 64
    %v6732 = vpop.permute.xlu0 %6731
    %6733 = vrot.lane.b32.xlu0 %v6558, 64
    %v6734 = vpop.permute.xlu0 %6733
    %6735 = vrot.lane.b32.xlu0 %v6559, 64
    %v6736 = vpop.permute.xlu0 %6735
    %6737 = vrot.lane.b32.xlu0 %v6560, 64
    %v6738 = vpop.permute.xlu0 %6737
    %6739 = vrot.lane.b32.xlu0 %v6561, 64
    %v6740 = vpop.permute.xlu0 %6739
    %6741 = vrot.lane.b32.xlu0 %v6562, 64
    %v6742 = vpop.permute.xlu0 %6741
    %6752 = vrot.lane.b32.xlu0 %v6644, 64
    %v6753 = vpop.permute.xlu0 %6752
    %6754 = vrot.lane.b32.xlu0 %v6645, 64
    %v6755 = vpop.permute.xlu0 %6754
    %6756 = vrot.lane.b32.xlu0 %v6646, 64
    %v6757 = vpop.permute.xlu0 %6756
    %6758 = vrot.lane.b32.xlu0 %v6647, 64
    %v6759 = vpop.permute.xlu0 %6758
    %6760 = vrot.lane.b32.xlu0 %v6648, 64
    %v6761 = vpop.permute.xlu0 %6760
    %6762 = vrot.lane.b32.xlu0 %v6649, 64
    %v6763 = vpop.permute.xlu0 %6762
    %6764 = vrot.lane.b32.xlu0 %v6650, 64
    %v6765 = vpop.permute.xlu0 %6764
    %6766 = vrot.lane.b32.xlu0 %v6651, 64
    %v6767 = vpop.permute.xlu0 %6766
    %6768 = vrot.lane.b32.xlu0 %v6652, 64
    %v6769 = vpop.permute.xlu0 %6768
    %v6772 = vsel %vm1900, %v6491, %v6726
    %v6776 = vsel %vm1900, %v6492, %v6728
    %v6780 = vsel %vm1900, %v6493, %v6730
    %v6784 = vsel %vm1900, %v6494, %v6732
    %v6788 = vsel %vm1900, %v6495, %v6734
    %v6792 = vsel %vm1900, %v6496, %v6736
    %v6796 = vsel %vm1900, %v6497, %v6738
    %v6800 = vsel %vm1900, %v6498, %v6740
    %v6804 = vsel %vm1900, %v6499, %v6742
    %v6808 = vsel %vm1900, %v6581, %v6753
    %v6812 = vsel %vm1900, %v6582, %v6755
    %v6816 = vsel %vm1900, %v6583, %v6757
    %v6820 = vsel %vm1900, %v6584, %v6759
    %v6824 = vsel %vm1900, %v6585, %v6761
    %v6828 = vsel %vm1900, %v6586, %v6763
    %v6832 = vsel %vm1900, %v6587, %v6765
    %v6836 = vsel %vm1900, %v6588, %v6767
    %v6840 = vsel %vm1900, %v6589, %v6769
    %v6842 = vld [vmem:[%s16] sm:$0xf]
    %v6843 = vld [vmem:[%s16 + $0x4] sm:$0xf]
    %v6844 = vld [vmem:[%s16 + $0x8] sm:$0xf]
    %v6845 = vld [vmem:[%s16 + $0xc] sm:$0xf]
    %v6846 = vld [vmem:[%s16 + $0x10] sm:$0xf]
    %v6847 = vld [vmem:[%s16 + $0x14] sm:$0xf]
    %v6848 = vld [vmem:[%s16 + $0x18] sm:$0xf]
    %v6849 = vld [vmem:[%s16 + $0x1c] sm:$0xf]
    %v6850 = vld [vmem:[%s16 + $0x20] sm:$0xf]
    %v6851 = vld [vmem:[%s16 + $0x24] sm:$0xf]
    %v6852 = vld [vmem:[%s16 + $0x28] sm:$0xf]
    %v6853 = vld [vmem:[%s16 + $0x2c] sm:$0xf]
    %v6854 = vld [vmem:[%s16 + $0x30] sm:$0xf]
    %v6855 = vld [vmem:[%s16 + $0x34] sm:$0xf]
    %v6856 = vld [vmem:[%s16 + $0x38] sm:$0xf]
    %v6857 = vld [vmem:[%s16 + $0x3c] sm:$0xf]
    %v6858 = vld [vmem:[%s16 + $0x40] sm:$0xf]
    %v6859 = vld [vmem:[%s16 + $0x44] sm:$0xf]
    %v6860 = vld [vmem:[%s16 + $0x48] sm:$0xf]
    %v6861 = vld [vmem:[%s16 + $0x4c] sm:$0xf]
    %v6862 = vld [vmem:[%s16 + $0x50] sm:$0xf]
    %v6863 = vld [vmem:[%s16 + $0x54] sm:$0xf]
    %v6864 = vld [vmem:[%s16 + $0x58] sm:$0xf]
    %v6865 = vld [vmem:[%s16 + $0x5c] sm:$0xf]
    %v6866 = vld [vmem:[%s16 + $0x60] sm:$0xf]
    %v6867 = vld [vmem:[%s16 + $0x64] sm:$0xf]
    %v6868 = vld [vmem:[%s16 + $0x68] sm:$0xf]
    %v6869 = vld [vmem:[%s16 + $0x6c] sm:$0xf]
    %v6870 = vld [vmem:[%s16 + $0x70] sm:$0xf]
    %v6871 = vld [vmem:[%s16 + $0x74] sm:$0xf]
    %v6872 = vld [vmem:[%s16 + $0x78] sm:$0xf]
    %v6873 = vld [vmem:[%s16 + $0x7c] sm:$0xf]
    %v6874 = vld [vmem:[%s16 + $0x80] sm:$0xf]
    %v6875 = vld [vmem:[%s16 + $0x84] sm:$0xf]
    %v6876 = vld [vmem:[%s16 + $0x88] sm:$0xf]
    %v6877 = vld [vmem:[%s16 + $0x8c] sm:$0xf]
    %v6878 = vld [vmem:[%s16 + $0x90] sm:$0xf]
    %v6879 = vld [vmem:[%s16 + $0x94] sm:$0xf]
    %v6880 = vld [vmem:[%s16 + $0x98] sm:$0xf]
    %v6881 = vld [vmem:[%s16 + $0x9c] sm:$0xf]
    %v6882 = vld [vmem:[#allocation2] sm:$0x1]
    %v6884 = vlaneseq
    %v6885 = vshrl.u32 %v6884, 7
    %v6886 = vsub.s32 0, %v6885
    %v6887 = vrot.slane %v6882, %v6886
    %6888 = vset.pattern.permute.xlu0 0
    %6889 = vperm.xlu0 %6888, %v6887
    %v6890 = vpop.permute.xlu0 %6889
    %v6932 = vunpack.c.l.b16 %v6842
    %v6933 = vunpack.c.l.b16 %v6843
    %v6934 = vunpack.c.l.b16 %v6844
    %v6935 = vunpack.c.l.b16 %v6845
    %v6936 = vunpack.c.l.b16 %v6846
    %v6937 = vunpack.c.l.b16 %v6847
    %v6938 = vunpack.c.l.b16 %v6848
    %v6939 = vunpack.c.l.b16 %v6849
    %v6940 = vunpack.c.l.b16 %v6850
    %v6941 = vunpack.c.l.b16 %v6851
    %v6942 = vunpack.c.l.b16 %v6852
    %v6943 = vunpack.c.l.b16 %v6853
    %v6944 = vunpack.c.l.b16 %v6854
    %v6945 = vunpack.c.l.b16 %v6855
    %v6946 = vunpack.c.l.b16 %v6856
    %v6947 = vunpack.c.l.b16 %v6857
    %v6948 = vunpack.c.l.b16 %v6858
    %v6949 = vunpack.c.l.b16 %v6859
    %v6950 = vunpack.c.l.b16 %v6860
    %v6951 = vunpack.c.l.b16 %v6861
    %v6952 = vunpack.c.l.b16 %v6862
    %v6953 = vunpack.c.l.b16 %v6863
    %v6954 = vunpack.c.l.b16 %v6864
    %v6955 = vunpack.c.l.b16 %v6865
    %v6956 = vunpack.c.l.b16 %v6866
    %v6957 = vunpack.c.l.b16 %v6867
    %v6958 = vunpack.c.l.b16 %v6868
    %v6959 = vunpack.c.l.b16 %v6869
    %v6960 = vunpack.c.l.b16 %v6870
    %v6961 = vunpack.c.l.b16 %v6871
    %v6962 = vunpack.c.l.b16 %v6872
    %v6963 = vunpack.c.l.b16 %v6873
    %v6964 = vunpack.c.l.b16 %v6874
    %v6965 = vunpack.c.l.b16 %v6875
    %v6966 = vunpack.c.l.b16 %v6876
    %v6967 = vunpack.c.l.b16 %v6877
    %v6968 = vunpack.c.l.b16 %v6878
    %v6969 = vunpack.c.l.b16 %v6879
    %v6970 = vunpack.c.l.b16 %v6880
    %v6971 = vunpack.c.l.b16 %v6881
    %v6972 = vpack.c.b16 %v6933, %v6932
    %v6973 = vpack.c.b16 %v6935, %v6934
    %v6974 = vpack.c.b16 %v6937, %v6936
    %v6975 = vpack.c.b16 %v6939, %v6938
    %v6976 = vpack.c.b16 %v6941, %v6940
    %v6977 = vpack.c.b16 %v6943, %v6942
    %v6978 = vpack.c.b16 %v6945, %v6944
    %v6979 = vpack.c.b16 %v6947, %v6946
    %v6980 = vpack.c.b16 %v6949, %v6948
    %v6981 = vpack.c.b16 %v6951, %v6950
    %v6982 = vpack.c.b16 %v6953, %v6952
    %v6983 = vpack.c.b16 %v6955, %v6954
    %v6984 = vpack.c.b16 %v6957, %v6956
    %v6985 = vpack.c.b16 %v6959, %v6958
    %v6986 = vpack.c.b16 %v6961, %v6960
    %v6987 = vpack.c.b16 %v6963, %v6962
    %v6988 = vpack.c.b16 %v6965, %v6964
    %v6989 = vpack.c.b16 %v6967, %v6966
    %v6990 = vpack.c.b16 %v6969, %v6968
    %v6991 = vpack.c.b16 %v6971, %v6970
    %v7013 = vsel %vm1900, %v6707, 0
    %v7016 = vsel %vm1900, %v6708, 0
    %v7019 = vsel %vm1900, %v6709, 0
    %v7022 = vsel %vm1900, %v6710, 0
    %v7025 = vsel %vm1900, %v6711, 0
    %v7028 = vsel %vm1900, %v6712, 0
    %v7031 = vsel %vm1900, %v6713, 0
    %v7034 = vsel %vm1900, %v6714, 0
    %v7037 = vsel %vm1900, %v6715, 0
    %7039 = vmatprep.subr.bf16.mxu0 0
    %7040 = vmatpush1.bf16.msra.mxu0 %v6972
    %7041 = vmatprep.subr.bf16.mxu0 0
    %7042 = vmatpush1.bf16.msra.mxu0 %v6973
    %7043 = vmatprep.subr.bf16.mxu0 0
    %7044 = vmatpush1.bf16.msra.mxu0 %v6974
    %7045 = vmatprep.subr.bf16.mxu0 0
    %7046 = vmatpush1.bf16.msra.mxu0 %v6975
    %7047 = vmatprep.subr.bf16.mxu0 0
    %7048 = vmatpush1.bf16.msra.mxu0 %v6976
    %7049 = vmatprep.subr.bf16.mxu0 0
    %7050 = vmatpush1.bf16.msra.mxu0 %v6977
    %7051 = vmatprep.subr.bf16.mxu0 0
    %7052 = vmatpush1.bf16.msra.mxu0 %v6978
    %7053 = vmatprep.subr.bf16.mxu0 0
    %7054 = vmatpush1.bf16.msra.mxu0 %v6979
    %7055 = vmatprep.subr.bf16.mxu0 0
    %7056 = vmatpush1.bf16.msra.mxu0 %v6980
    %7057 = vmatprep.subr.bf16.mxu0 0
    %7058 = vmatpush1.bf16.msra.mxu0 %v6981
    %7059 = vmatprep.subr.bf16.mxu0 0
    %7060 = vmatpush1.bf16.msra.mxu0 %v6982
    %7061 = vmatprep.subr.bf16.mxu0 0
    %7062 = vmatpush1.bf16.msra.mxu0 %v6983
    %7063 = vmatprep.subr.bf16.mxu0 0
    %7064 = vmatpush1.bf16.msra.mxu0 %v6984
    %7065 = vmatprep.subr.bf16.mxu0 0
    %7066 = vmatpush1.bf16.msra.mxu0 %v6985
    %7067 = vmatprep.subr.bf16.mxu0 0
    %7068 = vmatpush1.bf16.msra.mxu0 %v6986
    %7069 = vmatprep.subr.bf16.mxu0 0
    %7070 = vmatpush1.bf16.msra.mxu0 %v6987
    %7071 = vmatprep.mubr.bf16.mxu0 %v6808
    %7072 = vmatmul.mubr.bf16.gmra.mrb[0].mxu0 %v6772
    %v7073 = vpop.f32.mrb[0].mxu0
    %v7074 = vadd.f32 %v6890, %v7073
    %v7075 = vpop.f32.mrb[0].mxu0
    %v7076 = vpop.f32.mrb[0].mxu0
    %v7077 = vadd.f32 %v6890, %v7076
    %v7078 = vpop.f32.mrb[0].mxu0
    %7079 = vmatprep.mubr.bf16.mxu0 %v6812
    %7080 = vmatmul.mubr.bf16.gmra.mrb[0].mxu0 %v6776
    %v7081 = vpop.f32.mrb[0].mxu0
    %v7082 = vadd.f32 %v6890, %v7081
    %v7083 = vpop.f32.mrb[0].mxu0
    %v7084 = vpop.f32.mrb[0].mxu0
    %v7085 = vadd.f32 %v6890, %v7084
    %v7086 = vpop.f32.mrb[0].mxu0
    %7087 = vmatprep.mubr.bf16.mxu0 %v6816
    %7088 = vmatmul.mubr.bf16.gmra.mrb[0].mxu0 %v6780
    %v7089 = vpop.f32.mrb[0].mxu0
    %v7090 = vadd.f32 %v6890, %v7089
    %v7091 = vpop.f32.mrb[0].mxu0
    %v7092 = vpop.f32.mrb[0].mxu0
    %v7093 = vadd.f32 %v6890, %v7092
    %v7094 = vpop.f32.mrb[0].mxu0
    %7095 = vmatprep.mubr.bf16.mxu0 %v6820
    %7096 = vmatmul.mubr.bf16.gmra.mrb[0].mxu0 %v6784
    %v7097 = vpop.f32.mrb[0].mxu0
    %v7098 = vadd.f32 %v6890, %v7097
    %v7099 = vpop.f32.mrb[0].mxu0
    %v7100 = vpop.f32.mrb[0].mxu0
    %v7101 = vadd.f32 %v6890, %v7100
    %v7102 = vpop.f32.mrb[0].mxu0
    %7103 = vmatprep.mubr.bf16.mxu0 %v6824
    %7104 = vmatmul.mubr.bf16.gmra.mrb[0].mxu0 %v6788
    %v7105 = vpop.f32.mrb[0].mxu0
    %v7106 = vadd.f32 %v6890, %v7105
    %v7107 = vpop.f32.mrb[0].mxu0
    %v7108 = vpop.f32.mrb[0].mxu0
    %v7109 = vadd.f32 %v6890, %v7108
    %v7110 = vpop.f32.mrb[0].mxu0
    %7111 = vmatprep.mubr.bf16.mxu0 %v6828
    %7112 = vmatmul.mubr.bf16.gmra.mrb[0].mxu0 %v6792
    %v7113 = vpop.f32.mrb[0].mxu0
    %v7114 = vadd.f32 %v6890, %v7113
    %v7115 = vpop.f32.mrb[0].mxu0
    %v7116 = vpop.f32.mrb[0].mxu0
    %v7117 = vadd.f32 %v6890, %v7116
    %v7118 = vpop.f32.mrb[0].mxu0
    %7119 = vmatprep.mubr.bf16.mxu0 %v6832
    %7120 = vmatmul.mubr.bf16.gmra.mrb[0].mxu0 %v6796
    %v7121 = vpop.f32.mrb[0].mxu0
    %v7122 = vadd.f32 %v6890, %v7121
    %v7123 = vpop.f32.mrb[0].mxu0
    %v7124 = vpop.f32.mrb[0].mxu0
    %v7125 = vadd.f32 %v6890, %v7124
    %v7126 = vpop.f32.mrb[0].mxu0
    %7127 = vmatprep.mubr.bf16.mxu0 %v6836
    %7128 = vmatmul.mubr.bf16.gmra.mrb[0].mxu0 %v6800
    %v7129 = vpop.f32.mrb[0].mxu0
    %v7130 = vadd.f32 %v6890, %v7129
    %v7131 = vpop.f32.mrb[0].mxu0
    %v7132 = vpop.f32.mrb[0].mxu0
    %v7133 = vadd.f32 %v6890, %v7132
    %v7134 = vpop.f32.mrb[0].mxu0
    %7135 = vmatprep.mubr.bf16.mxu0 %v6840
    %7136 = vmatmul.mubr.bf16.gmra.mrb[0].mxu0 %v6804
    %v7137 = vpop.f32.mrb[0].mxu0
    %v7138 = vadd.f32 %v6890, %v7137
    %v7139 = vpop.f32.mrb[0].mxu0
    %v7140 = vpop.f32.mrb[0].mxu0
    %v7141 = vadd.f32 %v6890, %v7140
    %v7142 = vpop.f32.mrb[0].mxu0
    %7143 = vdwg.mxu0
    %7144 = vmatprep.subr.bf16.mxu0 0
    %7145 = vmatpush1.bf16.msra.mxu0 %v6988
    %7146 = vmatprep.subr.bf16.mxu0 0
    %7147 = vmatpush1.bf16.msra.mxu0 %v6989
    %7148 = vmatprep.subr.bf16.mxu0 0
    %7149 = vmatpush1.bf16.msra.mxu0 %v6990
    %7150 = vmatprep.subr.bf16.mxu0 0
    %7151 = vmatpush1.bf16.msra.mxu0 %v6991
    %7152 = vmatprep.subr.bf16.mxu0 0
    %7153 = vmatpush1.bf16.msra.mxu0 0
    %7154 = vmatprep.subr.bf16.mxu0 0
    %7155 = vmatpush1.bf16.msra.mxu0 0
    %7156 = vmatprep.subr.bf16.mxu0 0
    %7157 = vmatpush1.bf16.msra.mxu0 0
    %7158 = vmatprep.subr.bf16.mxu0 0
    %7159 = vmatpush1.bf16.msra.mxu0 0
    %7160 = vmatprep.subr.bf16.mxu0 0
    %7161 = vmatpush1.bf16.msra.mxu0 0
    %7162 = vmatprep.subr.bf16.mxu0 0
    %7163 = vmatpush1.bf16.msra.mxu0 0
    %7164 = vmatprep.subr.bf16.mxu0 0
    %7165 = vmatpush1.bf16.msra.mxu0 0
    %7166 = vmatprep.subr.bf16.mxu0 0
    %7167 = vmatpush1.bf16.msra.mxu0 0
    %7168 = vmatprep.subr.bf16.mxu0 0
    %7169 = vmatpush1.bf16.msra.mxu0 0
    %7170 = vmatprep.subr.bf16.mxu0 0
    %7171 = vmatpush1.bf16.msra.mxu0 0
    %7172 = vmatprep.subr.bf16.mxu0 0
    %7173 = vmatpush1.bf16.msra.mxu0 0
    %7174 = vmatprep.subr.bf16.mxu0 0
    %7175 = vmatpush1.bf16.msra.mxu0 0
    %7176 = vmatprep.mubr.bf16.mxu0 0
    %7177 = vmatmul.mubr.bf16.gmra.mrb[0].mxu0 %v7013
    %v7178 = vpop.f32.mrb[0].mxu0
    %v7179 = vadd.f32 %v7074, %v7178
    %v7180 = vpop.f32.mrb[0].mxu0
    %v7181 = vpop.f32.mrb[0].mxu0
    %v7182 = vadd.f32 %v7077, %v7181
    %v7183 = vpop.f32.mrb[0].mxu0
    %7184 = vmatprep.mubr.bf16.mxu0 0
    %7185 = vmatmul.mubr.bf16.gmra.mrb[0].mxu0 %v7016
    %v7186 = vpop.f32.mrb[0].mxu0
    %v7187 = vadd.f32 %v7082, %v7186
    %v7188 = vpop.f32.mrb[0].mxu0
    %v7189 = vpop.f32.mrb[0].mxu0
    %v7190 = vadd.f32 %v7085, %v7189
    %v7191 = vpop.f32.mrb[0].mxu0
    %7192 = vmatprep.mubr.bf16.mxu0 0
    %7193 = vmatmul.mubr.bf16.gmra.mrb[0].mxu0 %v7019
    %v7194 = vpop.f32.mrb[0].mxu0
    %v7195 = vadd.f32 %v7090, %v7194
    %v7196 = vpop.f32.mrb[0].mxu0
    %v7197 = vpop.f32.mrb[0].mxu0
    %v7198 = vadd.f32 %v7093, %v7197
    %v7199 = vpop.f32.mrb[0].mxu0
    %7200 = vmatprep.mubr.bf16.mxu0 0
    %7201 = vmatmul.mubr.bf16.gmra.mrb[0].mxu0 %v7022
    %v7202 = vpop.f32.mrb[0].mxu0
    %v7203 = vadd.f32 %v7098, %v7202
    %v7204 = vpop.f32.mrb[0].mxu0
    %v7205 = vpop.f32.mrb[0].mxu0
    %v7206 = vadd.f32 %v7101, %v7205
    %v7207 = vpop.f32.mrb[0].mxu0
    %7208 = vmatprep.mubr.bf16.mxu0 0
    %7209 = vmatmul.mubr.bf16.gmra.mrb[0].mxu0 %v7025
    %v7210 = vpop.f32.mrb[0].mxu0
    %v7211 = vadd.f32 %v7106, %v7210
    %v7212 = vpop.f32.mrb[0].mxu0
    %v7213 = vpop.f32.mrb[0].mxu0
    %v7214 = vadd.f32 %v7109, %v7213
    %v7215 = vpop.f32.mrb[0].mxu0
    %7216 = vmatprep.mubr.bf16.mxu0 0
    %7217 = vmatmul.mubr.bf16.gmra.mrb[0].mxu0 %v7028
    %v7218 = vpop.f32.mrb[0].mxu0
    %v7219 = vadd.f32 %v7114, %v7218
    %v7220 = vpop.f32.mrb[0].mxu0
    %v7221 = vpop.f32.mrb[0].mxu0
    %v7222 = vadd.f32 %v7117, %v7221
    %v7223 = vpop.f32.mrb[0].mxu0
    %7224 = vmatprep.mubr.bf16.mxu0 0
    %7225 = vmatmul.mubr.bf16.gmra.mrb[0].mxu0 %v7031
    %v7226 = vpop.f32.mrb[0].mxu0
    %v7227 = vadd.f32 %v7122, %v7226
    %v7228 = vpop.f32.mrb[0].mxu0
    %v7229 = vpop.f32.mrb[0].mxu0
    %v7230 = vadd.f32 %v7125, %v7229
    %v7231 = vpop.f32.mrb[0].mxu0
    %7232 = vmatprep.mubr.bf16.mxu0 0
    %7233 = vmatmul.mubr.bf16.gmra.mrb[0].mxu0 %v7034
    %v7234 = vpop.f32.mrb[0].mxu0
    %v7235 = vadd.f32 %v7130, %v7234
    %v7236 = vpop.f32.mrb[0].mxu0
    %v7237 = vpop.f32.mrb[0].mxu0
    %v7238 = vadd.f32 %v7133, %v7237
    %v7239 = vpop.f32.mrb[0].mxu0
    %7240 = vmatprep.mubr.bf16.mxu0 0
    %7241 = vmatmul.mubr.bf16.gmra.mrb[0].mxu0 %v7037
    %v7242 = vpop.f32.mrb[0].mxu0
    %v7243 = vadd.f32 %v7138, %v7242
    %v7244 = vpop.f32.mrb[0].mxu0
    %v7245 = vpop.f32.mrb[0].mxu0
    %v7246 = vadd.f32 %v7141, %v7245
    %v7247 = vpop.f32.mrb[0].mxu0
    %7248 = vdwg.mxu0
    %v7249 = vld [vmem:[%s19] sm:$0xf]
    %v7250 = vld [vmem:[%s18] sm:$0xff]
    %v7251 = vld [vmem:[%s18 + $0x8] sm:$0xff]
    %v7252 = vld [vmem:[%s18 + $0x10] sm:$0xff]
    %v7253 = vld [vmem:[%s18 + $0x18] sm:$0xff]
    %v7254 = vld [vmem:[%s18 + $0x20] sm:$0xff]
    %v7255 = vld [vmem:[%s18 + $0x28] sm:$0xff]
    %v7256 = vld [vmem:[%s18 + $0x30] sm:$0xff]
    %v7257 = vld [vmem:[%s18 + $0x38] sm:$0xff]
    %v7258 = vld [vmem:[%s18 + $0x40] sm:$0xff]
    %v7259 = vld [vmem:[%s18 + $0x48] sm:$0xff]
    %v7260 = vld [vmem:[%s18 + $0x50] sm:$0xff]
    %v7261 = vld [vmem:[%s18 + $0x58] sm:$0xff]
    %v7262 = vld [vmem:[%s18 + $0x60] sm:$0xff]
    %v7263 = vld [vmem:[%s18 + $0x68] sm:$0xff]
    %v7264 = vld [vmem:[%s18 + $0x70] sm:$0xff]
    %v7265 = vld [vmem:[%s18 + $0x78] sm:$0xff]
    %v7266 = vld [vmem:[%s18 + $0x80] sm:$0xff]
    %v7267 = vld [vmem:[%s18 + $0x88] sm:$0xff]
    %v7268 = vmul.f32 %v7179, %v7250
    %v7269 = vmul.f32 %v7182, %v7251
    %v7270 = vmul.f32 %v7187, %v7252
    %v7271 = vmul.f32 %v7190, %v7253
    %v7272 = vmul.f32 %v7195, %v7254
    %v7273 = vmul.f32 %v7198, %v7255
    %v7274 = vmul.f32 %v7203, %v7256
    %v7275 = vmul.f32 %v7206, %v7257
    %v7276 = vmul.f32 %v7211, %v7258
    %v7277 = vmul.f32 %v7214, %v7259
    %v7278 = vmul.f32 %v7219, %v7260
    %v7279 = vmul.f32 %v7222, %v7261
    %v7280 = vmul.f32 %v7227, %v7262
    %v7281 = vmul.f32 %v7230, %v7263
    %v7282 = vmul.f32 %v7235, %v7264
    %v7283 = vmul.f32 %v7238, %v7265
    %v7284 = vmul.f32 %v7243, %v7266
    %v7285 = vmul.f32 %v7246, %v7267
    %v7286 = vld [vmem:[%s20] sm:$0x1]
    %v7288 = vlaneseq
    %v7289 = vshrl.u32 %v7288, 7
    %v7290 = vsub.s32 0, %v7289
    %v7291 = vrot.slane %v7286, %v7290
    %v7295 = vunpack.c.l.s4 1983009808
    %v7296 = vunpack.c.0.s8 %v7295
    %v7297 = vlaneseq
    %v7298 = vshrl.u32 %v7297, 7
    %v7299 = vsub.s32 %v7296, %v7298
    %v7300 = vrot.slane %v7249, %v7299
    %v7301 = vcombine.high %v7300, %v7300
    %v7303 = vsel %vm1919, %v7301, 0
    %7305 = vmatprep.subr.mxu0 0.0
    %7306 = vmatpush1.msra.mxu0 %v7268
    %7307 = vmatprep.subr.mxu0 0.0
    %7308 = vmatpush1.msra.mxu0 %v7269
    %7309 = vmatprep.subr.mxu0 0.0
    %7310 = vmatpush1.msra.mxu0 %v7270
    %7311 = vmatprep.subr.mxu0 0.0
    %7312 = vmatpush1.msra.mxu0 %v7271
    %7313 = vmatprep.subr.mxu0 0.0
    %7314 = vmatpush1.msra.mxu0 %v7272
    %7315 = vmatprep.subr.mxu0 0.0
    %7316 = vmatpush1.msra.mxu0 %v7273
    %7317 = vmatprep.subr.mxu0 0.0
    %7318 = vmatpush1.msra.mxu0 %v7274
    %7319 = vmatprep.subr.mxu0 0.0
    %7320 = vmatpush1.msra.mxu0 %v7275
    %7321 = vmatprep.subr.mxu0 0.0
    %7322 = vmatpush1.msra.mxu0 %v7276
    %7323 = vmatprep.subr.mxu0 0.0
    %7324 = vmatpush1.msra.mxu0 %v7277
    %7325 = vmatprep.subr.mxu0 0.0
    %7326 = vmatpush1.msra.mxu0 %v7278
    %7327 = vmatprep.subr.mxu0 0.0
    %7328 = vmatpush1.msra.mxu0 %v7279
    %7329 = vmatprep.subr.mxu0 0.0
    %7330 = vmatpush1.msra.mxu0 %v7280
    %7331 = vmatprep.subr.mxu0 0.0
    %7332 = vmatpush1.msra.mxu0 %v7281
    %7333 = vmatprep.subr.mxu0 0.0
    %7334 = vmatpush1.msra.mxu0 %v7282
    %7335 = vmatprep.subr.mxu0 0.0
    %7336 = vmatpush1.msra.mxu0 %v7283
    %7337 = vmatprep.subr.mxu0 0.0
    %7338 = vmatpush1.msra.mxu0 %v7284
    %7339 = vmatprep.subr.mxu0 0.0
    %7340 = vmatpush1.msra.mxu0 %v7285
    %7341 = vmatprep.subr.mxu0 0.0
    %7342 = vmatpush1.msra.mxu0 0.0
    %7343 = vmatprep.subr.mxu0 0.0
    %7344 = vmatpush1.msra.mxu0 0.0
    %7345 = vmatprep.subr.mxu0 0.0
    %7346 = vmatpush1.msra.mxu0 0.0
    %7347 = vmatprep.subr.mxu0 0.0
    %7348 = vmatpush1.msra.mxu0 0.0
    %7349 = vmatprep.subr.mxu0 0.0
    %7350 = vmatpush1.msra.mxu0 0.0
    %7351 = vmatprep.subr.mxu0 0.0
    %7352 = vmatpush1.msra.mxu0 0.0
    %7353 = vmatprep.subr.mxu0 0.0
    %7354 = vmatpush1.msra.mxu0 0.0
    %7355 = vmatprep.subr.mxu0 0.0
    %7356 = vmatpush1.msra.mxu0 0.0
    %7357 = vmatprep.subr.mxu0 0.0
    %7358 = vmatpush1.msra.mxu0 0.0
    %7359 = vmatprep.subr.mxu0 0.0
    %7360 = vmatpush1.msra.mxu0 0.0
    %7361 = vmatprep.subr.mxu0 0.0
    %7362 = vmatpush1.msra.mxu0 0.0
    %7363 = vmatprep.subr.mxu0 0.0
    %7364 = vmatpush1.msra.mxu0 0.0
    %7365 = vmatprep.subr.mxu0 0.0
    %7366 = vmatpush1.msra.mxu0 0.0
    %7367 = vmatprep.subr.mxu0 0.0
    %7368 = vmatpush1.msra.mxu0 0.0
    %7369 = vmatprep.mubr.f32.mxu0 %v7303
    %7370 = vmatmul.mubr.f32.gmra.mrb[0].mxu0 %v7300
    %v7371 = vpop.f32.mrb[0].mxu0
    %v7372 = vadd.f32 %v7291, %v7371
    %v7373 = vpop.f32.mrb[0].mxu0
    %7374 = vdwg.mxu0
    %v7375 = vtanh.pop %v7372
    %vm7376 = vcmask 386048
    %7377 = vst.msk [vmem:[#allocation3] sm:$0x3] %vm7376, %v7375
    // Predicated region
    $region86: #{tpu_custom_call.1} parent=1 // pred_check
      _
    $region87: #{tpu_custom_call.1} parent=1 // pred_check_branch
      %7379 = sbr.rel (0) target = $region89
    $region88: #{tpu_custom_call.1} parent=1 // pred_region
      %s7381 = ssub.s32 32, 32
      %7382 = vsyncadd [#allocation4], %s7381
      %s7384 = sshll.u32 [#allocation3], 4
      %s7385 = int_to_ptr.vmem [resolvable:$true] %s7384
      %7387 = dma.vmem_to_hbm [thread:$0]  %s7385, 32, %s21, [#allocation4]
    $region89: #{tpu_custom_call.1} parent=1 // pred_fallthru
      _
    // Predicated region
    $region90: #{tpu_custom_call.1} parent=1 // pred_check
      _
    $region91: #{tpu_custom_call.1} parent=1 // pred_check_branch
      %7389 = sbr.rel (0) target = $region93
    $region92: #{tpu_custom_call.1} parent=1 // pred_region
      %7390 = dma.done [#allocation4], 32
    $region93: #{tpu_custom_call.1} parent=1 // pred_fallthru
      _
    %7391 = vsyncpa [#allocation4], 1

</llo_original>
